<compile_context>
chip_gen: v5e
topology: v5e:2x2
jax: 0.10.0
libtpu: 0.0.40
codegen_flags: <defaults>
</compile_context>

<pallas_src>
import functools

import jax
import jax.numpy as jnp
from jax import lax
from jax.experimental import pallas as pl
from jax.experimental.pallas import tpu as pltpu

VMEM = pltpu.MemorySpace.VMEM
F32 = jnp.float32


def _vspec():
    # whole-array block resident in VMEM (all shapes here are tiny)
    return pl.BlockSpec(memory_space=VMEM)


# ----------------------------------------------------------------------------
# small traced helpers (used inside kernels)
# ----------------------------------------------------------------------------

def _mm(a, b):
    return jnp.dot(a, b, preferred_element_type=F32)


def _elu(x):
    # exp argument clamped to <= 0 so the masked branch never overflows
    return jnp.where(x > 0, x, jnp.exp(jnp.minimum(x, 0.0)) - 1.0)


def _glu(y, n):
    return y[:, :n] * jax.nn.sigmoid(y[:, n:])


def _layernorm(y, g, b, eps=1e-5):
    mu = jnp.mean(y, axis=-1, keepdims=True)
    var = jnp.mean((y - mu) ** 2, axis=-1, keepdims=True)
    return (y - mu) * lax.rsqrt(var + eps) * g + b


# ----------------------------------------------------------------------------
# Launch 1: dual VariableSelection kernel
# ----------------------------------------------------------------------------

_VS_PARAM_KEYS = ("A1", "bA1", "W2", "b2", "Wg", "bg", "Wr", "br", "lng", "lnb",
                  "avg", "expand", "gather",
                  "fa1", "fb1", "fw2", "fb2", "fwg", "fbg", "far", "fbr", "flng", "flnb")
_N_VS_PARAMS = len(_VS_PARAM_KEYS)


def _vs_body(x_ref, p, sel_ref, w_ref):
    (A1, bA1, W2, b2, Wg, bg, Wr, br, lng, lnb, avg, expand, gather,
     fa1, fb1, fw2, fb2, fwg, fbg, far, fbr, flng, flnb) = p

    x = x_ref[...]                                     # [M, F]
    F = x.shape[-1]
    FD = Wr.shape[-1]                                  # F * D

    # ---- all per-variable GRNs as ONE dense matmul chain (block-diag weights,
    #      prescaler folded in at pack time) -------------------------------------
    h1 = _elu(_mm(x, A1[...]) + bA1[...])              # [M, F*Hc]
    h2 = _mm(h1, W2[...]) + b2[...]                    # [M, F*D]
    g = _mm(h2, Wg[...]) + bg[...]                     # [M, 2*F*D]  (linear | gate)
    y = g[:, :FD] * jax.nn.sigmoid(g[:, FD:]) + _mm(x, Wr[...]) + br[...]

    # ---- per-feature LayerNorm on each D-wide block via blocked (matmul) reductions,
    #      keeps everything lane-dense [M, F*D] (no lane-splitting reshape) ----------
    mean_b = _mm(y, avg[...])                          # [M, F]
    var_b = _mm(y * y, avg[...]) - mean_b * mean_b
    mean_f = _mm(mean_b, expand[...])                  # [M, F*D]
    var_f = _mm(var_b, expand[...])
    yn = (y - mean_f) * lax.rsqrt(var_f + 1e-5) * lng[...] + lnb[...]

    # ---- flattened-embedding GRN -> selection logits (prescaler + flatten folded) --
    fh = _elu(_mm(x, fa1[...]) + fb1[...])             # [M, D]
    fh = _mm(fh, fw2[...]) + fb2[...]                  # [M, F]
    fg = _mm(fh, fwg[...]) + fbg[...]                  # [M, 2F]
    fglu = fg[:, :F] * jax.nn.sigmoid(fg[:, F:])
    logits = _layernorm(fglu + _mm(x, far[...]) + fbr[...], flng[...], flnb[...])

    mx = jnp.max(logits, axis=-1, keepdims=True)
    e = jnp.exp(logits - mx)
    w = e / jnp.sum(e, axis=-1, keepdims=True)         # exact divide (output-facing)
    w_ref[...] = w

    # weighted combine: sel[m, d] = sum_f w[m, f] * yn[m, f*D + d]
    sel_ref[...] = _mm(_mm(w, expand[...]) * yn, gather[...])


def _dual_vs_kernel(*refs):
    xe, xd = refs[0], refs[1]
    pe = refs[2:2 + _N_VS_PARAMS]
    pd = refs[2 + _N_VS_PARAMS:2 + 2 * _N_VS_PARAMS]
    enc_sel, enc_w, dec_sel, dec_w = refs[2 + 2 * _N_VS_PARAMS:]
    _vs_body(xe, pe, enc_sel, enc_w)
    _vs_body(xd, pd, dec_sel, dec_w)


def dual_variable_selection(enc_pp, dec_pp, past, future):
    B, Tc, Fe = past.shape
    _, Td, Fd = future.shape
    D = enc_pp["gather"].shape[-1]
    Me, Md = B * Tc, B * Td
    args = [past.reshape(Me, Fe), future.reshape(Md, Fd)]   # pure leading-dim reshape
    args += [enc_pp[k] for k in _VS_PARAM_KEYS]
    args += [dec_pp[k] for k in _VS_PARAM_KEYS]
    out_shape = (jax.ShapeDtypeStruct((Me, D), F32),
                 jax.ShapeDtypeStruct((Me, Fe), F32),
                 jax.ShapeDtypeStruct((Md, D), F32),
                 jax.ShapeDtypeStruct((Md, Fd), F32))
    return pl.pallas_call(
        _dual_vs_kernel,
        out_shape=out_shape,
        in_specs=[_vspec()] * len(args),
        out_specs=tuple(_vspec() for _ in range(4)),
    )(*args)


# ----------------------------------------------------------------------------
# Launch 2: LSTMs + GLU/AddNorm + attention + decoder epilogue, fully fused
# ----------------------------------------------------------------------------

def _core_kernel(*refs, batch, n_heads, num_layers, causal):
    L = num_layers
    enc_sel_ref, dec_sel_ref = refs[0], refs[1]
    k = 2
    e_wih = refs[k:k + L]; k += L
    e_whh = refs[k:k + L]; k += L
    e_b = refs[k:k + L]; k += L
    d_wih = refs[k:k + L]; k += L
    d_whh = refs[k:k + L]; k += L
    d_b = refs[k:k + L]; k += L
    glu_w, glu_b, n1g, n1b = refs[k:k + 4]; k += 4
    wq, bq, wk, bk, wv, bv, wo, bo = refs[k:k + 8]; k += 8
    g1w, g1b, a1g, a1b = refs[k:k + 4]; k += 4
    gw1, gb1, gw2, gb2, gwg, gbg, glng, glnb = refs[k:k + 8]; k += 8
    g2w, g2b, a2g, a2b = refs[k:k + 4]; k += 4
    ow, ob = refs[k:k + 2]; k += 2
    out_ref, attnw_ref = refs[k:k + 2]; k += 2
    henc, hdec = refs[k:k + 2]                      # VMEM scratch sequence buffers

    D = enc_sel_ref.shape[-1]
    Me, Md = enc_sel_ref.shape[0], dec_sel_ref.shape[0]
    Tc, Td = Me // batch, Md // batch
    Dh = wv.shape[-1]

    # ---------- multi-layer LSTM, full sequence, state carried in vregs ----------
    def run_lstm(x2, T, wih, whh, bias, h0, c0, scr):
        Hd = whh[0].shape[0]
        # layer-0 input gates for every timestep with a single matmul
        xg0 = (_mm(x2, wih[0][...]) + bias[0][...]).reshape(batch, T, 4 * Hd)
        h, c = list(h0), list(c0)
        for t in range(T):                          # static unroll (T tiny)
            for l in range(L):
                if l == 0:
                    g = xg0[:, t, :] + _mm(h[0], whh[0][...])
                else:
                    g = (_mm(h[l - 1], wih[l][...]) + bias[l][...]
                         + _mm(h[l], whh[l][...]))
                # gates packed (i | f | o | g): one sigmoid over 3H + one tanh
                sig = jax.nn.sigmoid(g[:, :3 * Hd])
                gg = jnp.tanh(g[:, 3 * Hd:])
                c[l] = sig[:, Hd:2 * Hd] * c[l] + sig[:, :Hd] * gg
                h[l] = sig[:, 2 * Hd:3 * Hd] * jnp.tanh(c[l])
            scr[:, t, :] = h[L - 1]                 # VMEM-only (no HBM hseq output)
        return h, c

    zeros = [jnp.zeros((batch, D), F32) for _ in range(L)]
    h_n, c_n = run_lstm(enc_sel_ref[...], Tc, e_wih, e_whh, e_b, zeros, zeros, henc)
    run_lstm(dec_sel_ref[...], Td, d_wih, d_whh, d_b, h_n, c_n, hdec)

    # ---------- shared GatedLinearUnit + AddNorm on both streams ----------
    def glu_addnorm(x2, skip2):
        y = _mm(x2, glu_w[...]) + glu_b[...]
        return _layernorm(_glu(y, D) + skip2, n1g[...], n1b[...])

    enc_out = glu_addnorm(henc[...].reshape(Me, D), enc_sel_ref[...])   # [Me, D]
    dec_out = glu_addnorm(hdec[...].reshape(Md, D), dec_sel_ref[...])   # [Md, D]

    # ---------- interpretable multi-head attention (heads batched in Q/K proj) ----
    scale = Dh ** -0.5
    q_all = _mm(dec_out, wq[...]) + bq[...]          # [Md, H*Dh]
    ke_all = _mm(enc_out, wk[...]) + bk[...]         # [Me, H*Dh]
    kd_all = _mm(dec_out, wk[...]) + bk[...]         # [Md, H*Dh]
    v_enc = (_mm(enc_out, wv[...]) + bv[...]).reshape(batch, Tc, Dh)
    v_dec = (_mm(dec_out, wv[...]) + bv[...]).reshape(batch, Td, Dh)

    if causal:
        qi = lax.broadcasted_iota(jnp.int32, (Td, Td), 0)
        kj = lax.broadcasted_iota(jnp.int32, (Td, Td), 1)
        dec_bias = jnp.where(kj >= qi, -1e9, 0.0).astype(F32)   # matches reference mask
    else:
        dec_bias = jnp.zeros((Td, Td), F32)

    acc = jnp.zeros((batch, Td, Dh), F32)
    w_parts = []
    for h in range(n_heads):                         # static unroll over heads
        sl = slice(h * Dh, (h + 1) * Dh)
        qh = q_all[:, sl].reshape(batch, Td, Dh)
        khe = ke_all[:, sl].reshape(batch, Tc, Dh)
        khd = kd_all[:, sl].reshape(batch, Td, Dh)
        se = jnp.einsum('bqe,bke->bqk', qh, khe, preferred_element_type=F32) * scale
        sd = (jnp.einsum('bqe,bke->bqk', qh, khd, preferred_element_type=F32) * scale
              + dec_bias[None])
        # joint softmax over the split (enc | dec) key axis, exact divide
        m = jnp.maximum(jnp.max(se, -1, keepdims=True), jnp.max(sd, -1, keepdims=True))
        ee = jnp.exp(se - m)
        ed = jnp.exp(sd - m)
        inv = 1.0 / (jnp.sum(ee, -1, keepdims=True) + jnp.sum(ed, -1, keepdims=True))
        we, wd = ee * inv, ed * inv
        acc = (acc
               + jnp.einsum('bqk,bke->bqe', we, v_enc, preferred_element_type=F32)
               + jnp.einsum('bqk,bke->bqe', wd, v_dec, preferred_element_type=F32))
        w_parts += [we.reshape(Md, Tc), wd.reshape(Md, Td)]

    # single lane-dense store of attention weights, already in final layout
    attnw_ref[...] = jnp.concatenate(w_parts, axis=-1)          # [Md, H*(Tc+Td)]

    attn_out = _mm(acc.reshape(Md, Dh) * (1.0 / n_heads), wo[...]) + bo[...]   # [Md, D]

    # ---------- decoder epilogue (skips = decoder stream) ----------
    y = _mm(attn_out, g1w[...]) + g1b[...]
    y = _layernorm(_glu(y, D) + dec_out, a1g[...], a1b[...])

    hg = _elu(_mm(y, gw1[...]) + gb1[...])
    hg = _mm(hg, gw2[...]) + gb2[...]
    gg = _mm(hg, gwg[...]) + gbg[...]
    z = _layernorm(_glu(gg, D) + y, glng[...], glnb[...])        # identity residual GRN

    z = _mm(z, g2w[...]) + g2b[...]
    z = _layernorm(_glu(z, D) + dec_out, a2g[...], a2b[...])

    out_ref[...] = _mm(z, ow[...]) + ob[...]                     # [Md, output_dim]


def core_forward(packed, enc_sel, dec_sel, batch, cfg):
    D = enc_sel.shape[-1]
    Me, Md = enc_sel.shape[0], dec_sel.shape[0]
    Tc, Td = Me // batch, Md // batch
    H = cfg["num_heads"]
    O = cfg["output_dim"]
    L = cfg["num_lstm_layers"]
    a = packed["attn"]
    grn = packed["attn_grn"]

    args = [enc_sel, dec_sel]
    for lst in (packed["enc_lstm"], packed["dec_lstm"]):
        args += [layer["w_ih_t"] for layer in lst]
        args += [layer["w_hh_t"] for layer in lst]
        args += [layer["b"] for layer in lst]
    args += [packed["gate1"]["w"], packed["gate1"]["b"],
             packed["norm1"]["g"], packed["norm1"]["b"]]
    args += [a["wq"], a["bq"], a["wk"], a["bk"], a["wv"], a["bv"], a["wo"], a["bo"]]
    args += [packed["attn_gate1"]["w"], packed["attn_gate1"]["b"],
             packed["attn_norm1"]["g"], packed["attn_norm1"]["b"]]
    args += [grn["w1"], grn["b1"], grn["w2"], grn["b2"],
             grn["wg"], grn["bg"], grn["ln_g"], grn["ln_b"]]
    args += [packed["attn_gate2"]["w"], packed["attn_gate2"]["b"],
             packed["attn_norm2"]["g"], packed["attn_norm2"]["b"]]
    args += [packed["out_w"], packed["out_b"]]

    out, attnw = pl.pallas_call(
        functools.partial(_core_kernel, batch=batch, n_heads=H,
                          num_layers=L, causal=cfg["causal_attention"]),
        out_shape=(jax.ShapeDtypeStruct((Md, O), F32),
                   jax.ShapeDtypeStruct((Md, H * (Tc + Td)), F32)),
        in_specs=[_vspec()] * len(args),
        out_specs=(_vspec(), _vspec()),
        scratch_shapes=[pltpu.VMEM((batch, Tc, D), F32),
                        pltpu.VMEM((batch, Td, D), F32)],
    )(*args)
    return out, attnw


# ----------------------------------------------------------------------------
# Parameter initialization (deterministic, synthetic)
# ----------------------------------------------------------------------------

def _dense(key, din, dout, scale=0.05):
    w = jax.random.normal(key, (din, dout), F32) * scale
    b = jnp.zeros((1, dout), F32)
    return w, b


def init_grn(key, din, hidden, dout):
    k1, k2, k3 = jax.random.split(key, 3)
    w1, b1 = _dense(k1, din, hidden)
    w2, b2 = _dense(k2, hidden, dout)
    wg, bg = _dense(k3, dout, 2 * dout)
    return dict(w1=w1, b1=b1, w2=w2, b2=b2, wg=wg, bg=bg,
                ln_g=jnp.ones((1, dout), F32), ln_b=jnp.zeros((1, dout), F32))


def init_vs(key, n_features, hidden, d_model):
    keys = jax.random.split(key, n_features + 2)
    pre_w = jax.random.normal(keys[0], (n_features, hidden), F32) * 0.05
    pre_b = jnp.zeros((n_features, hidden), F32)
    single = [init_grn(keys[1 + f], hidden, hidden, d_model) for f in range(n_features)]
    flatten = init_grn(keys[-1], n_features * hidden, d_model, n_features)
    return dict(pre_w=pre_w, pre_b=pre_b, single=single, flatten=flatten)


def init_lstm(key, input_dim, hidden, num_layers):
    layers = []
    keys = jax.random.split(key, num_layers)
    for l in range(num_layers):
        din = input_dim if l == 0 else hidden
        k1, k2 = jax.random.split(keys[l])
        layers.append(dict(
            w_ih_t=jax.random.normal(k1, (din, 4 * hidden), F32) * 0.05,   # (i,f,g,o)
            w_hh_t=jax.random.normal(k2, (hidden, 4 * hidden), F32) * 0.05,
            b=jnp.zeros((4 * hidden,), F32),        # b_ih + b_hh
        ))
    return layers


def init_glu(key, d_model):
    w, b = _dense(key, d_model, 2 * d_model)
    return dict(w=w, b=b)


def init_addnorm(d_model):
    return dict(g=jnp.ones((1, d_model), F32), b=jnp.zeros((1, d_model), F32))


def init_attn(key, d_model, n_heads):
    dh = d_model // n_heads
    k = jax.random.split(key, 4)
    return dict(
        wq=jax.random.normal(k[0], (n_heads, d_model, dh), F32) * 0.05,
        bq=jnp.zeros((n_heads, dh), F32),
        wk=jax.random.normal(k[1], (n_heads, d_model, dh), F32) * 0.05,
        bk=jnp.zeros((n_heads, dh), F32),
        wv=jax.random.normal(k[2], (d_model, dh), F32) * 0.05,
        bv=jnp.zeros((1, dh), F32),
        wo=jax.random.normal(k[3], (dh, d_model), F32) * 0.05,
        bo=jnp.zeros((1, d_model), F32),
    )


def init_params(key, cfg):
    D = cfg["n_dim_model"]
    Hc = cfg["hidden_continuous_dim"]
    keys = iter(jax.random.split(key, 16))
    params = {}
    params["enc_vs"] = init_vs(next(keys), cfg["num_past_features"], Hc, D)
    params["dec_vs"] = init_vs(next(keys), cfg["num_future_features"], Hc, D)
    params["enc_lstm"] = init_lstm(next(keys), D, D, cfg["num_lstm_layers"])
    params["dec_lstm"] = init_lstm(next(keys), D, D, cfg["num_lstm_layers"])
    params["enc_gate1"] = init_glu(next(keys), D)      # shared with dec_gate1
    params["enc_norm1"] = init_addnorm(D)              # shared with dec_norm1
    params["attn"] = init_attn(next(keys), D, cfg["num_heads"])
    params["attn_gate1"] = init_glu(next(keys), D)
    params["attn_norm1"] = init_addnorm(D)
    params["attn_grn"] = init_grn(next(keys), D, D, D)
    params["attn_gate2"] = init_glu(next(keys), D)
    params["attn_norm2"] = init_addnorm(D)
    params["out_w"], params["out_b"] = _dense(next(keys), D, cfg["output_dim"])
    return params


# ----------------------------------------------------------------------------
# Kernel-ready packing (block-diag VS weights, gate reorder, head-concat Q/K)
# ----------------------------------------------------------------------------

def _interp_matrix(din, dout):
    # linear operator equivalent to jax.image.resize(x, (rows, dout), "linear") along
    # the last axis (resize is linear in its input, so resizing the identity yields it).
    # TODO(synk): exact match of torch F.interpolate corner handling not verified.
    return jax.image.resize(jnp.eye(din, dtype=F32), (din, dout), method="linear")


def _block_diag(blocks):
    rows = sum(b.shape[0] for b in blocks)
    cols = sum(b.shape[1] for b in blocks)
    out = jnp.zeros((rows, cols), F32)
    r = c = 0
    for b in blocks:
        out = out.at[r:r + b.shape[0], c:c + b.shape[1]].set(b)
        r += b.shape[0]
        c += b.shape[1]
    return out


def pack_vs(p, n_features, hidden, d_model):
    """Fold the prescalers in and stack per-variable GRN weights block-diagonally so the
    whole single-variable path is one dense matmul chain inside the kernel."""
    F, Hc, D = n_features, hidden, d_model
    Rs = _interp_matrix(Hc, D)                        # single-GRN residual resample
    Rf = _interp_matrix(F * Hc, F)                    # flatten-GRN residual resample
    pre_w, pre_b = p["pre_w"], p["pre_b"]             # [F, Hc]
    sg = p["single"]
    cat = functools.partial(jnp.concatenate, axis=-1)

    A1 = _block_diag([(pre_w[f] @ sg[f]["w1"])[None, :] for f in range(F)])      # [F,F*Hc]
    bA1 = cat([pre_b[f][None, :] @ sg[f]["w1"] + sg[f]["b1"] for f in range(F)]) # [1,F*Hc]
    W2 = _block_diag([sg[f]["w2"] for f in range(F)])                            # [F*Hc,F*D]
    b2 = cat([sg[f]["b2"] for f in range(F)])                                    # [1,F*D]
    Wg = cat([_block_diag([sg[f]["wg"][:, :D] for f in range(F)]),
              _block_diag([sg[f]["wg"][:, D:] for f in range(F)])])              # [F*D,2F*D]
    bg = cat([cat([sg[f]["bg"][:, :D] for f in range(F)]),
              cat([sg[f]["bg"][:, D:] for f in range(F)])])                      # [1,2F*D]
    Wr = _block_diag([(pre_w[f] @ Rs)[None, :] for f in range(F)])               # [F,F*D]
    br = cat([pre_b[f][None, :] @ Rs for f in range(F)])                         # [1,F*D]
    lng = cat([sg[f]["ln_g"] for f in range(F)])                                 # [1,F*D]
    lnb = cat([sg[f]["ln_b"] for f in range(F)])

    # constant matrices for blocked LayerNorm / weighted combine
    avg = jnp.kron(jnp.eye(F, dtype=F32), jnp.ones((D, 1), F32) / D)             # [F*D,F]
    expand = jnp.kron(jnp.eye(F, dtype=F32), jnp.ones((1, D), F32))              # [F,F*D]
    gather = jnp.kron(jnp.ones((F, 1), F32), jnp.eye(D, dtype=F32))              # [F*D,D]

    fl = p["flatten"]
    P = _block_diag([pre_w[f][None, :] for f in range(F)])                       # [F,F*Hc]
    p0 = pre_b.reshape(1, F * Hc)
    fa1 = P @ fl["w1"]                                                           # [F,D]
    fb1 = p0 @ fl["w1"] + fl["b1"]                                               # [1,D]
    far = P @ Rf                                                                 # [F,F]
    fbr = p0 @ Rf                                                                # [1,F]

    return dict(A1=A1, bA1=bA1, W2=W2, b2=b2, Wg=Wg, bg=bg, Wr=Wr, br=br,
                lng=lng, lnb=lnb, avg=avg, expand=expand, gather=gather,
                fa1=fa1, fb1=fb1, fw2=fl["w2"], fb2=fl["b2"],
                fwg=fl["wg"], fbg=fl["bg"], far=far, fbr=fbr,
                flng=fl["ln_g"], flnb=fl["ln_b"])


def _reorder_gates(w):
    # PyTorch LSTM gate order (i, f, g, o) -> (i, f, o, g): one sigmoid over 3H + one tanh
    H = w.shape[-1] // 4
    return jnp.concatenate([w[..., :2 * H], w[..., 3 * H:], w[..., 2 * H:3 * H]], axis=-1)


def pack_lstm(layers):
    return [dict(w_ih_t=_reorder_gates(l["w_ih_t"]),
                 w_hh_t=_reorder_gates(l["w_hh_t"]),
                 b=_reorder_gates(l["b"]).reshape(1, -1))
            for l in layers]


def pack_attn(a, n_heads):
    # batch the per-head Q/K projections: [H, D, Dh] -> [D, H*Dh]
    wq = jnp.concatenate([a["wq"][h] for h in range(n_heads)], axis=-1)
    wk = jnp.concatenate([a["wk"][h] for h in range(n_heads)], axis=-1)
    return dict(wq=wq, bq=a["bq"].reshape(1, -1), wk=wk, bk=a["bk"].reshape(1, -1),
                wv=a["wv"], bv=a["bv"], wo=a["wo"], bo=a["bo"])


def pack_params(params, cfg):
    D = cfg["n_dim_model"]
    Hc = cfg["hidden_continuous_dim"]
    return dict(
        enc_vs=pack_vs(params["enc_vs"], cfg["num_past_features"], Hc, D),
        dec_vs=pack_vs(params["dec_vs"], cfg["num_future_features"], Hc, D),
        enc_lstm=pack_lstm(params["enc_lstm"]),
        dec_lstm=pack_lstm(params["dec_lstm"]),
        gate1=params["enc_gate1"], norm1=params["enc_norm1"],      # shared enc/dec
        attn=pack_attn(params["attn"], cfg["num_heads"]),
        attn_gate1=params["attn_gate1"], attn_norm1=params["attn_norm1"],
        attn_grn=params["attn_grn"],
        attn_gate2=params["attn_gate2"], attn_norm2=params["attn_norm2"],
        out_w=params["out_w"], out_b=params["out_b"],
    )


# ----------------------------------------------------------------------------
# xTFT forward pass (2 pallas_call launches total, no XLA glue between them)
# ----------------------------------------------------------------------------

def xtft_forward(packed, past_covariates, future_covariates, cfg):
    B, Tc, Fe = past_covariates.shape
    _, Td, Fd = future_covariates.shape
    H = cfg["num_heads"]

    # launch 1: both variable-selection networks
    enc_sel, enc_w, dec_sel, dec_w = dual_variable_selection(
        packed["enc_vs"], packed["dec_vs"], past_covariates, future_covariates)

    # launch 2: enc LSTM -> dec LSTM -> shared GLU/AddNorm -> attention -> epilogue
    out2, attnw2 = core_forward(packed, enc_sel, dec_sel, B, cfg)

    # all reshapes below are pure (contiguous) metadata reshapes
    return {
        "output": out2.reshape(B, Td, cfg["output_dim"]),
        "enc_weights": enc_w.reshape(B, Tc, Fe),
        "dec_weights": dec_w.reshape(B, Td, Fd),
        "attn_weights": attnw2.reshape(B, Td, H, Tc + Td),
    }


if __name__ == "__main__":
    cfg = dict(num_past_features=5, num_future_features=4, n_dim_model=32,
               hidden_continuous_dim=8, num_heads=4, num_lstm_layers=2,
               output_dim=7, causal_attention=True)

    key = jax.random.PRNGKey(0)
    kp, kf, kparams = jax.random.split(key, 3)
    B, Tc, Td = 2, 8, 4
    past = jax.random.normal(kp, (B, Tc, cfg["num_past_features"]), F32)
    future = jax.random.normal(kf, (B, Td, cfg["num_future_features"]), F32)

    params = init_params(kparams, cfg)
    packed = pack_params(params, cfg)

    fwd = jax.jit(functools.partial(xtft_forward, cfg=cfg))
    out = fwd(packed, past, future)
    out = jax.tree_util.tree_map(jax.block_until_ready, out)

    assert out["output"].shape == (B, Td, cfg["output_dim"])
    assert out["enc_weights"].shape == (B, Tc, cfg["num_past_features"])
    assert out["dec_weights"].shape == (B, Td, cfg["num_future_features"])
    assert out["attn_weights"].shape == (B, Td, cfg["num_heads"], Tc + Td)
    assert all(bool(jnp.all(jnp.isfinite(v))) for v in out.values())
    # output-facing softmaxes use exact division -> rows sum to 1
    assert bool(jnp.allclose(jnp.sum(out["enc_weights"], -1), 1.0, atol=1e-4))
    assert bool(jnp.allclose(jnp.sum(out["dec_weights"], -1), 1.0, atol=1e-4))
    assert bool(jnp.allclose(jnp.sum(out["attn_weights"], -1), 1.0, atol=1e-4))

    print("KERNEL_OK")
</pallas_src>

<mosaic_0001>
module attributes {stable_mosaic.version = 11 : i64} {
  func.func @_core_kernel(%arg0: memref<16x32xf32, #tpu.memory_space<vmem>>, %arg1: memref<8x32xf32, #tpu.memory_space<vmem>>, %arg2: memref<32x128xf32, #tpu.memory_space<vmem>>, %arg3: memref<32x128xf32, #tpu.memory_space<vmem>>, %arg4: memref<32x128xf32, #tpu.memory_space<vmem>>, %arg5: memref<32x128xf32, #tpu.memory_space<vmem>>, %arg6: memref<1x128xf32, #tpu.memory_space<vmem>>, %arg7: memref<1x128xf32, #tpu.memory_space<vmem>>, %arg8: memref<32x128xf32, #tpu.memory_space<vmem>>, %arg9: memref<32x128xf32, #tpu.memory_space<vmem>>, %arg10: memref<32x128xf32, #tpu.memory_space<vmem>>, %arg11: memref<32x128xf32, #tpu.memory_space<vmem>>, %arg12: memref<1x128xf32, #tpu.memory_space<vmem>>, %arg13: memref<1x128xf32, #tpu.memory_space<vmem>>, %arg14: memref<32x64xf32, #tpu.memory_space<vmem>>, %arg15: memref<1x64xf32, #tpu.memory_space<vmem>>, %arg16: memref<1x32xf32, #tpu.memory_space<vmem>>, %arg17: memref<1x32xf32, #tpu.memory_space<vmem>>, %arg18: memref<32x32xf32, #tpu.memory_space<vmem>>, %arg19: memref<1x32xf32, #tpu.memory_space<vmem>>, %arg20: memref<32x32xf32, #tpu.memory_space<vmem>>, %arg21: memref<1x32xf32, #tpu.memory_space<vmem>>, %arg22: memref<32x8xf32, #tpu.memory_space<vmem>>, %arg23: memref<1x8xf32, #tpu.memory_space<vmem>>, %arg24: memref<8x32xf32, #tpu.memory_space<vmem>>, %arg25: memref<1x32xf32, #tpu.memory_space<vmem>>, %arg26: memref<32x64xf32, #tpu.memory_space<vmem>>, %arg27: memref<1x64xf32, #tpu.memory_space<vmem>>, %arg28: memref<1x32xf32, #tpu.memory_space<vmem>>, %arg29: memref<1x32xf32, #tpu.memory_space<vmem>>, %arg30: memref<32x32xf32, #tpu.memory_space<vmem>>, %arg31: memref<1x32xf32, #tpu.memory_space<vmem>>, %arg32: memref<32x32xf32, #tpu.memory_space<vmem>>, %arg33: memref<1x32xf32, #tpu.memory_space<vmem>>, %arg34: memref<32x64xf32, #tpu.memory_space<vmem>>, %arg35: memref<1x64xf32, #tpu.memory_space<vmem>>, %arg36: memref<1x32xf32, #tpu.memory_space<vmem>>, %arg37: memref<1x32xf32, #tpu.memory_space<vmem>>, %arg38: memref<32x64xf32, #tpu.memory_space<vmem>>, %arg39: memref<1x64xf32, #tpu.memory_space<vmem>>, %arg40: memref<1x32xf32, #tpu.memory_space<vmem>>, %arg41: memref<1x32xf32, #tpu.memory_space<vmem>>, %arg42: memref<32x7xf32, #tpu.memory_space<vmem>>, %arg43: memref<1x7xf32, #tpu.memory_space<vmem>>, %arg44: memref<8x7xf32, #tpu.memory_space<vmem>>, %arg45: memref<8x48xf32, #tpu.memory_space<vmem>>, %arg46: memref<2x8x32xf32, #tpu.memory_space<vmem>>, %arg47: memref<2x4x32xf32, #tpu.memory_space<vmem>>) attributes {dimension_semantics = [], scalar_prefetch = 0 : i64, scratch_operands = 2 : i64, tpu.core_type = #tpu.core_type<tc>} {
    %cst = arith.constant 0.000000e+00 : f32
    %0 = vector.broadcast %cst : f32 to vector<2x32xf32>
    %cst_0 = arith.constant 0.000000e+00 : f32
    %1 = vector.broadcast %cst_0 : f32 to vector<2x32xf32>
    %c0 = arith.constant 0 : index
    %c0_1 = arith.constant 0 : index
    %2 = vector.load %arg0[%c0, %c0_1] : memref<16x32xf32, #tpu.memory_space<vmem>>, vector<16x32xf32>
    %c0_2 = arith.constant 0 : index
    %c0_3 = arith.constant 0 : index
    %3 = vector.load %arg2[%c0_2, %c0_3] : memref<32x128xf32, #tpu.memory_space<vmem>>, vector<32x128xf32>
    %cst_4 = arith.constant dense<0.000000e+00> : vector<16x128xf32>
    %4 = tpu.matmul %2, %3, %cst_4 {dimension_numbers = #tpu.dot_dimension_numbers<[1], [0], [0], [1], [0, 0, 1, 1], [], []>} : vector<16x32xf32>, vector<32x128xf32>, vector<16x128xf32> -> vector<16x128xf32>
    %c0_5 = arith.constant 0 : index
    %c0_6 = arith.constant 0 : index
    %5 = vector.load %arg6[%c0_5, %c0_6] : memref<1x128xf32, #tpu.memory_space<vmem>>, vector<1x128xf32>
    %6 = vector.broadcast %5 : vector<1x128xf32> to vector<16x128xf32>
    %7 = arith.addf %4, %6 : vector<16x128xf32>
    %8 = vector.shape_cast %7 : vector<16x128xf32> to vector<2x8x128xf32>
    %9 = vector.extract_strided_slice %8 {offsets = [0, 0, 0], sizes = [2, 1, 128], strides = [1, 1, 1]} : vector<2x8x128xf32> to vector<2x1x128xf32>
    %10 = vector.shape_cast %9 : vector<2x1x128xf32> to vector<2x128xf32>
    %c0_7 = arith.constant 0 : index
    %c0_8 = arith.constant 0 : index
    %11 = vector.load %arg4[%c0_7, %c0_8] : memref<32x128xf32, #tpu.memory_space<vmem>>, vector<32x128xf32>
    %cst_9 = arith.constant dense<0.000000e+00> : vector<2x128xf32>
    %12 = tpu.matmul %0, %11, %cst_9 {dimension_numbers = #tpu.dot_dimension_numbers<[1], [0], [0], [1], [0, 0, 1, 1], [], []>} : vector<2x32xf32>, vector<32x128xf32>, vector<2x128xf32> -> vector<2x128xf32>
    %13 = arith.addf %10, %12 : vector<2x128xf32>
    %14 = vector.extract_strided_slice %13 {offsets = [0, 0], sizes = [2, 96], strides = [1, 1]} : vector<2x128xf32> to vector<2x96xf32>
    %15 = arith.negf %14 : vector<2x96xf32>
    %16 = math.exp %15 : vector<2x96xf32>
    %cst_10 = arith.constant 1.000000e+00 : f32
    %17 = vector.broadcast %cst_10 : f32 to vector<2x96xf32>
    %18 = arith.addf %17, %16 : vector<2x96xf32>
    %19 = arith.divf %17, %18 : vector<2x96xf32>
    %20 = vector.extract_strided_slice %13 {offsets = [0, 96], sizes = [2, 32], strides = [1, 1]} : vector<2x128xf32> to vector<2x32xf32>
    %21 = math.tanh %20 : vector<2x32xf32>
    %22 = vector.extract_strided_slice %19 {offsets = [0, 32], sizes = [2, 32], strides = [1, 1]} : vector<2x96xf32> to vector<2x32xf32>
    %23 = arith.mulf %22, %0 : vector<2x32xf32>
    %24 = vector.extract_strided_slice %19 {offsets = [0, 0], sizes = [2, 32], strides = [1, 1]} : vector<2x96xf32> to vector<2x32xf32>
    %25 = arith.mulf %24, %21 : vector<2x32xf32>
    %26 = arith.addf %23, %25 : vector<2x32xf32>
    %27 = vector.extract_strided_slice %19 {offsets = [0, 64], sizes = [2, 32], strides = [1, 1]} : vector<2x96xf32> to vector<2x32xf32>
    %28 = math.tanh %26 : vector<2x32xf32>
    %29 = arith.mulf %27, %28 : vector<2x32xf32>
    %c0_11 = arith.constant 0 : index
    %c0_12 = arith.constant 0 : index
    %30 = vector.load %arg3[%c0_11, %c0_12] : memref<32x128xf32, #tpu.memory_space<vmem>>, vector<32x128xf32>
    %cst_13 = arith.constant dense<0.000000e+00> : vector<2x128xf32>
    %31 = tpu.matmul %29, %30, %cst_13 {dimension_numbers = #tpu.dot_dimension_numbers<[1], [0], [0], [1], [0, 0, 1, 1], [], []>} : vector<2x32xf32>, vector<32x128xf32>, vector<2x128xf32> -> vector<2x128xf32>
    %c0_14 = arith.constant 0 : index
    %c0_15 = arith.constant 0 : index
    %32 = vector.load %arg7[%c0_14, %c0_15] : memref<1x128xf32, #tpu.memory_space<vmem>>, vector<1x128xf32>
    %33 = vector.broadcast %32 : vector<1x128xf32> to vector<2x128xf32>
    %34 = arith.addf %31, %33 : vector<2x128xf32>
    %c0_16 = arith.constant 0 : index
    %c0_17 = arith.constant 0 : index
    %35 = vector.load %arg5[%c0_16, %c0_17] : memref<32x128xf32, #tpu.memory_space<vmem>>, vector<32x128xf32>
    %cst_18 = arith.constant dense<0.000000e+00> : vector<2x128xf32>
    %36 = tpu.matmul %1, %35, %cst_18 {dimension_numbers = #tpu.dot_dimension_numbers<[1], [0], [0], [1], [0, 0, 1, 1], [], []>} : vector<2x32xf32>, vector<32x128xf32>, vector<2x128xf32> -> vector<2x128xf32>
    %37 = arith.addf %34, %36 : vector<2x128xf32>
    %38 = vector.extract_strided_slice %37 {offsets = [0, 0], sizes = [2, 96], strides = [1, 1]} : vector<2x128xf32> to vector<2x96xf32>
    %39 = arith.negf %38 : vector<2x96xf32>
    %40 = math.exp %39 : vector<2x96xf32>
    %cst_19 = arith.constant 1.000000e+00 : f32
    %41 = vector.broadcast %cst_19 : f32 to vector<2x96xf32>
    %42 = arith.addf %41, %40 : vector<2x96xf32>
    %43 = arith.divf %41, %42 : vector<2x96xf32>
    %44 = vector.extract_strided_slice %37 {offsets = [0, 96], sizes = [2, 32], strides = [1, 1]} : vector<2x128xf32> to vector<2x32xf32>
    %45 = math.tanh %44 : vector<2x32xf32>
    %46 = vector.extract_strided_slice %43 {offsets = [0, 32], sizes = [2, 32], strides = [1, 1]} : vector<2x96xf32> to vector<2x32xf32>
    %47 = arith.mulf %46, %1 : vector<2x32xf32>
    %48 = vector.extract_strided_slice %43 {offsets = [0, 0], sizes = [2, 32], strides = [1, 1]} : vector<2x96xf32> to vector<2x32xf32>
    %49 = arith.mulf %48, %45 : vector<2x32xf32>
    %50 = arith.addf %47, %49 : vector<2x32xf32>
    %51 = vector.extract_strided_slice %43 {offsets = [0, 64], sizes = [2, 32], strides = [1, 1]} : vector<2x96xf32> to vector<2x32xf32>
    %52 = math.tanh %50 : vector<2x32xf32>
    %53 = arith.mulf %51, %52 : vector<2x32xf32>
    %c0_20 = arith.constant 0 : index
    %c0_21 = arith.constant 0 : index
    %c0_22 = arith.constant 0 : index
    %54 = vector.load %arg46[%c0_20, %c0_21, %c0_22] : memref<2x8x32xf32, #tpu.memory_space<vmem>>, vector<2x1x32xf32>
    %55 = vector.shape_cast %54 : vector<2x1x32xf32> to vector<2x32xf32>
    %56 = vector.shape_cast %53 : vector<2x32xf32> to vector<2x1x32xf32>
    tpu.vector_store %arg46[%c0_20, %c0_21, %c0_22], %56 {strides = array<i32>} : memref<2x8x32xf32, #tpu.memory_space<vmem>>, vector<2x1x32xf32>,
    %57 = vector.extract_strided_slice %8 {offsets = [0, 1, 0], sizes = [2, 1, 128], strides = [1, 1, 1]} : vector<2x8x128xf32> to vector<2x1x128xf32>
    %58 = vector.shape_cast %57 : vector<2x1x128xf32> to vector<2x128xf32>
    %c0_23 = arith.constant 0 : index
    %c0_24 = arith.constant 0 : index
    %59 = vector.load %arg4[%c0_23, %c0_24] : memref<32x128xf32, #tpu.memory_space<vmem>>, vector<32x128xf32>
    %cst_25 = arith.constant dense<0.000000e+00> : vector<2x128xf32>
    %60 = tpu.matmul %29, %59, %cst_25 {dimension_numbers = #tpu.dot_dimension_numbers<[1], [0], [0], [1], [0, 0, 1, 1], [], []>} : vector<2x32xf32>, vector<32x128xf32>, vector<2x128xf32> -> vector<2x128xf32>
    %61 = arith.addf %58, %60 : vector<2x128xf32>
    %62 = vector.extract_strided_slice %61 {offsets = [0, 0], sizes = [2, 96], strides = [1, 1]} : vector<2x128xf32> to vector<2x96xf32>
    %63 = arith.negf %62 : vector<2x96xf32>
    %64 = math.exp %63 : vector<2x96xf32>
    %cst_26 = arith.constant 1.000000e+00 : f32
    %65 = vector.broadcast %cst_26 : f32 to vector<2x96xf32>
    %66 = arith.addf %65, %64 : vector<2x96xf32>
    %67 = arith.divf %65, %66 : vector<2x96xf32>
    %68 = vector.extract_strided_slice %61 {offsets = [0, 96], sizes = [2, 32], strides = [1, 1]} : vector<2x128xf32> to vector<2x32xf32>
    %69 = math.tanh %68 : vector<2x32xf32>
    %70 = vector.extract_strided_slice %67 {offsets = [0, 32], sizes = [2, 32], strides = [1, 1]} : vector<2x96xf32> to vector<2x32xf32>
    %71 = arith.mulf %70, %26 : vector<2x32xf32>
    %72 = vector.extract_strided_slice %67 {offsets = [0, 0], sizes = [2, 32], strides = [1, 1]} : vector<2x96xf32> to vector<2x32xf32>
    %73 = arith.mulf %72, %69 : vector<2x32xf32>
    %74 = arith.addf %71, %73 : vector<2x32xf32>
    %75 = vector.extract_strided_slice %67 {offsets = [0, 64], sizes = [2, 32], strides = [1, 1]} : vector<2x96xf32> to vector<2x32xf32>
    %76 = math.tanh %74 : vector<2x32xf32>
    %77 = arith.mulf %75, %76 : vector<2x32xf32>
    %c0_27 = arith.constant 0 : index
    %c0_28 = arith.constant 0 : index
    %78 = vector.load %arg3[%c0_27, %c0_28] : memref<32x128xf32, #tpu.memory_space<vmem>>, vector<32x128xf32>
    %cst_29 = arith.constant dense<0.000000e+00> : vector<2x128xf32>
    %79 = tpu.matmul %77, %78, %cst_29 {dimension_numbers = #tpu.dot_dimension_numbers<[1], [0], [0], [1], [0, 0, 1, 1], [], []>} : vector<2x32xf32>, vector<32x128xf32>, vector<2x128xf32> -> vector<2x128xf32>
    %c0_30 = arith.constant 0 : index
    %c0_31 = arith.constant 0 : index
    %80 = vector.load %arg7[%c0_30, %c0_31] : memref<1x128xf32, #tpu.memory_space<vmem>>, vector<1x128xf32>
    %81 = vector.broadcast %80 : vector<1x128xf32> to vector<2x128xf32>
    %82 = arith.addf %79, %81 : vector<2x128xf32>
    %c0_32 = arith.constant 0 : index
    %c0_33 = arith.constant 0 : index
    %83 = vector.load %arg5[%c0_32, %c0_33] : memref<32x128xf32, #tpu.memory_space<vmem>>, vector<32x128xf32>
    %cst_34 = arith.constant dense<0.000000e+00> : vector<2x128xf32>
    %84 = tpu.matmul %53, %83, %cst_34 {dimension_numbers = #tpu.dot_dimension_numbers<[1], [0], [0], [1], [0, 0, 1, 1], [], []>} : vector<2x32xf32>, vector<32x128xf32>, vector<2x128xf32> -> vector<2x128xf32>
    %85 = arith.addf %82, %84 : vector<2x128xf32>
    %86 = vector.extract_strided_slice %85 {offsets = [0, 0], sizes = [2, 96], strides = [1, 1]} : vector<2x128xf32> to vector<2x96xf32>
    %87 = arith.negf %86 : vector<2x96xf32>
    %88 = math.exp %87 : vector<2x96xf32>
    %cst_35 = arith.constant 1.000000e+00 : f32
    %89 = vector.broadcast %cst_35 : f32 to vector<2x96xf32>
    %90 = arith.addf %89, %88 : vector<2x96xf32>
    %91 = arith.divf %89, %90 : vector<2x96xf32>
    %92 = vector.extract_strided_slice %85 {offsets = [0, 96], sizes = [2, 32], strides = [1, 1]} : vector<2x128xf32> to vector<2x32xf32>
    %93 = math.tanh %92 : vector<2x32xf32>
    %94 = vector.extract_strided_slice %91 {offsets = [0, 32], sizes = [2, 32], strides = [1, 1]} : vector<2x96xf32> to vector<2x32xf32>
    %95 = arith.mulf %94, %50 : vector<2x32xf32>
    %96 = vector.extract_strided_slice %91 {offsets = [0, 0], sizes = [2, 32], strides = [1, 1]} : vector<2x96xf32> to vector<2x32xf32>
    %97 = arith.mulf %96, %93 : vector<2x32xf32>
    %98 = arith.addf %95, %97 : vector<2x32xf32>
    %99 = vector.extract_strided_slice %91 {offsets = [0, 64], sizes = [2, 32], strides = [1, 1]} : vector<2x96xf32> to vector<2x32xf32>
    %100 = math.tanh %98 : vector<2x32xf32>
    %101 = arith.mulf %99, %100 : vector<2x32xf32>
    %c0_36 = arith.constant 0 : index
    %c1 = arith.constant 1 : index
    %c0_37 = arith.constant 0 : index
    %102 = vector.load %arg46[%c0_36, %c1, %c0_37] : memref<2x8x32xf32, #tpu.memory_space<vmem>>, vector<2x1x32xf32>
    %103 = vector.shape_cast %102 : vector<2x1x32xf32> to vector<2x32xf32>
    %104 = vector.shape_cast %101 : vector<2x32xf32> to vector<2x1x32xf32>
    tpu.vector_store %arg46[%c0_36, %c1, %c0_37], %104 {strides = array<i32>} : memref<2x8x32xf32, #tpu.memory_space<vmem>>, vector<2x1x32xf32>,
    %105 = vector.extract_strided_slice %8 {offsets = [0, 2, 0], sizes = [2, 1, 128], strides = [1, 1, 1]} : vector<2x8x128xf32> to vector<2x1x128xf32>
    %106 = vector.shape_cast %105 : vector<2x1x128xf32> to vector<2x128xf32>
    %c0_38 = arith.constant 0 : index
    %c0_39 = arith.constant 0 : index
    %107 = vector.load %arg4[%c0_38, %c0_39] : memref<32x128xf32, #tpu.memory_space<vmem>>, vector<32x128xf32>
    %cst_40 = arith.constant dense<0.000000e+00> : vector<2x128xf32>
    %108 = tpu.matmul %77, %107, %cst_40 {dimension_numbers = #tpu.dot_dimension_numbers<[1], [0], [0], [1], [0, 0, 1, 1], [], []>} : vector<2x32xf32>, vector<32x128xf32>, vector<2x128xf32> -> vector<2x128xf32>
    %109 = arith.addf %106, %108 : vector<2x128xf32>
    %110 = vector.extract_strided_slice %109 {offsets = [0, 0], sizes = [2, 96], strides = [1, 1]} : vector<2x128xf32> to vector<2x96xf32>
    %111 = arith.negf %110 : vector<2x96xf32>
    %112 = math.exp %111 : vector<2x96xf32>
    %cst_41 = arith.constant 1.000000e+00 : f32
    %113 = vector.broadcast %cst_41 : f32 to vector<2x96xf32>
    %114 = arith.addf %113, %112 : vector<2x96xf32>
    %115 = arith.divf %113, %114 : vector<2x96xf32>
    %116 = vector.extract_strided_slice %109 {offsets = [0, 96], sizes = [2, 32], strides = [1, 1]} : vector<2x128xf32> to vector<2x32xf32>
    %117 = math.tanh %116 : vector<2x32xf32>
    %118 = vector.extract_strided_slice %115 {offsets = [0, 32], sizes = [2, 32], strides = [1, 1]} : vector<2x96xf32> to vector<2x32xf32>
    %119 = arith.mulf %118, %74 : vector<2x32xf32>
    %120 = vector.extract_strided_slice %115 {offsets = [0, 0], sizes = [2, 32], strides = [1, 1]} : vector<2x96xf32> to vector<2x32xf32>
    %121 = arith.mulf %120, %117 : vector<2x32xf32>
    %122 = arith.addf %119, %121 : vector<2x32xf32>
    %123 = vector.extract_strided_slice %115 {offsets = [0, 64], sizes = [2, 32], strides = [1, 1]} : vector<2x96xf32> to vector<2x32xf32>
    %124 = math.tanh %122 : vector<2x32xf32>
    %125 = arith.mulf %123, %124 : vector<2x32xf32>
    %c0_42 = arith.constant 0 : index
    %c0_43 = arith.constant 0 : index
    %126 = vector.load %arg3[%c0_42, %c0_43] : memref<32x128xf32, #tpu.memory_space<vmem>>, vector<32x128xf32>
    %cst_44 = arith.constant dense<0.000000e+00> : vector<2x128xf32>
    %127 = tpu.matmul %125, %126, %cst_44 {dimension_numbers = #tpu.dot_dimension_numbers<[1], [0], [0], [1], [0, 0, 1, 1], [], []>} : vector<2x32xf32>, vector<32x128xf32>, vector<2x128xf32> -> vector<2x128xf32>
    %c0_45 = arith.constant 0 : index
    %c0_46 = arith.constant 0 : index
    %128 = vector.load %arg7[%c0_45, %c0_46] : memref<1x128xf32, #tpu.memory_space<vmem>>, vector<1x128xf32>
    %129 = vector.broadcast %128 : vector<1x128xf32> to vector<2x128xf32>
    %130 = arith.addf %127, %129 : vector<2x128xf32>
    %c0_47 = arith.constant 0 : index
    %c0_48 = arith.constant 0 : index
    %131 = vector.load %arg5[%c0_47, %c0_48] : memref<32x128xf32, #tpu.memory_space<vmem>>, vector<32x128xf32>
    %cst_49 = arith.constant dense<0.000000e+00> : vector<2x128xf32>
    %132 = tpu.matmul %101, %131, %cst_49 {dimension_numbers = #tpu.dot_dimension_numbers<[1], [0], [0], [1], [0, 0, 1, 1], [], []>} : vector<2x32xf32>, vector<32x128xf32>, vector<2x128xf32> -> vector<2x128xf32>
    %133 = arith.addf %130, %132 : vector<2x128xf32>
    %134 = vector.extract_strided_slice %133 {offsets = [0, 0], sizes = [2, 96], strides = [1, 1]} : vector<2x128xf32> to vector<2x96xf32>
    %135 = arith.negf %134 : vector<2x96xf32>
    %136 = math.exp %135 : vector<2x96xf32>
    %cst_50 = arith.constant 1.000000e+00 : f32
    %137 = vector.broadcast %cst_50 : f32 to vector<2x96xf32>
    %138 = arith.addf %137, %136 : vector<2x96xf32>
    %139 = arith.divf %137, %138 : vector<2x96xf32>
    %140 = vector.extract_strided_slice %133 {offsets = [0, 96], sizes = [2, 32], strides = [1, 1]} : vector<2x128xf32> to vector<2x32xf32>
    %141 = math.tanh %140 : vector<2x32xf32>
    %142 = vector.extract_strided_slice %139 {offsets = [0, 32], sizes = [2, 32], strides = [1, 1]} : vector<2x96xf32> to vector<2x32xf32>
    %143 = arith.mulf %142, %98 : vector<2x32xf32>
    %144 = vector.extract_strided_slice %139 {offsets = [0, 0], sizes = [2, 32], strides = [1, 1]} : vector<2x96xf32> to vector<2x32xf32>
    %145 = arith.mulf %144, %141 : vector<2x32xf32>
    %146 = arith.addf %143, %145 : vector<2x32xf32>
    %147 = vector.extract_strided_slice %139 {offsets = [0, 64], sizes = [2, 32], strides = [1, 1]} : vector<2x96xf32> to vector<2x32xf32>
    %148 = math.tanh %146 : vector<2x32xf32>
    %149 = arith.mulf %147, %148 : vector<2x32xf32>
    %c0_51 = arith.constant 0 : index
    %c2 = arith.constant 2 : index
    %c0_52 = arith.constant 0 : index
    %150 = vector.load %arg46[%c0_51, %c2, %c0_52] : memref<2x8x32xf32, #tpu.memory_space<vmem>>, vector<2x1x32xf32>
    %151 = vector.shape_cast %150 : vector<2x1x32xf32> to vector<2x32xf32>
    %152 = vector.shape_cast %149 : vector<2x32xf32> to vector<2x1x32xf32>
    tpu.vector_store %arg46[%c0_51, %c2, %c0_52], %152 {strides = array<i32>} : memref<2x8x32xf32, #tpu.memory_space<vmem>>, vector<2x1x32xf32>,
    %153 = vector.extract_strided_slice %8 {offsets = [0, 3, 0], sizes = [2, 1, 128], strides = [1, 1, 1]} : vector<2x8x128xf32> to vector<2x1x128xf32>
    %154 = vector.shape_cast %153 : vector<2x1x128xf32> to vector<2x128xf32>
    %c0_53 = arith.constant 0 : index
    %c0_54 = arith.constant 0 : index
    %155 = vector.load %arg4[%c0_53, %c0_54] : memref<32x128xf32, #tpu.memory_space<vmem>>, vector<32x128xf32>
    %cst_55 = arith.constant dense<0.000000e+00> : vector<2x128xf32>
    %156 = tpu.matmul %125, %155, %cst_55 {dimension_numbers = #tpu.dot_dimension_numbers<[1], [0], [0], [1], [0, 0, 1, 1], [], []>} : vector<2x32xf32>, vector<32x128xf32>, vector<2x128xf32> -> vector<2x128xf32>
    %157 = arith.addf %154, %156 : vector<2x128xf32>
    %158 = vector.extract_strided_slice %157 {offsets = [0, 0], sizes = [2, 96], strides = [1, 1]} : vector<2x128xf32> to vector<2x96xf32>
    %159 = arith.negf %158 : vector<2x96xf32>
    %160 = math.exp %159 : vector<2x96xf32>
    %cst_56 = arith.constant 1.000000e+00 : f32
    %161 = vector.broadcast %cst_56 : f32 to vector<2x96xf32>
    %162 = arith.addf %161, %160 : vector<2x96xf32>
    %163 = arith.divf %161, %162 : vector<2x96xf32>
    %164 = vector.extract_strided_slice %157 {offsets = [0, 96], sizes = [2, 32], strides = [1, 1]} : vector<2x128xf32> to vector<2x32xf32>
    %165 = math.tanh %164 : vector<2x32xf32>
    %166 = vector.extract_strided_slice %163 {offsets = [0, 32], sizes = [2, 32], strides = [1, 1]} : vector<2x96xf32> to vector<2x32xf32>
    %167 = arith.mulf %166, %122 : vector<2x32xf32>
    %168 = vector.extract_strided_slice %163 {offsets = [0, 0], sizes = [2, 32], strides = [1, 1]} : vector<2x96xf32> to vector<2x32xf32>
    %169 = arith.mulf %168, %165 : vector<2x32xf32>
    %170 = arith.addf %167, %169 : vector<2x32xf32>
    %171 = vector.extract_strided_slice %163 {offsets = [0, 64], sizes = [2, 32], strides = [1, 1]} : vector<2x96xf32> to vector<2x32xf32>
    %172 = math.tanh %170 : vector<2x32xf32>
    %173 = arith.mulf %171, %172 : vector<2x32xf32>
    %c0_57 = arith.constant 0 : index
    %c0_58 = arith.constant 0 : index
    %174 = vector.load %arg3[%c0_57, %c0_58] : memref<32x128xf32, #tpu.memory_space<vmem>>, vector<32x128xf32>
    %cst_59 = arith.constant dense<0.000000e+00> : vector<2x128xf32>
    %175 = tpu.matmul %173, %174, %cst_59 {dimension_numbers = #tpu.dot_dimension_numbers<[1], [0], [0], [1], [0, 0, 1, 1], [], []>} : vector<2x32xf32>, vector<32x128xf32>, vector<2x128xf32> -> vector<2x128xf32>
    %c0_60 = arith.constant 0 : index
    %c0_61 = arith.constant 0 : index
    %176 = vector.load %arg7[%c0_60, %c0_61] : memref<1x128xf32, #tpu.memory_space<vmem>>, vector<1x128xf32>
    %177 = vector.broadcast %176 : vector<1x128xf32> to vector<2x128xf32>
    %178 = arith.addf %175, %177 : vector<2x128xf32>
    %c0_62 = arith.constant 0 : index
    %c0_63 = arith.constant 0 : index
    %179 = vector.load %arg5[%c0_62, %c0_63] : memref<32x128xf32, #tpu.memory_space<vmem>>, vector<32x128xf32>
    %cst_64 = arith.constant dense<0.000000e+00> : vector<2x128xf32>
    %180 = tpu.matmul %149, %179, %cst_64 {dimension_numbers = #tpu.dot_dimension_numbers<[1], [0], [0], [1], [0, 0, 1, 1], [], []>} : vector<2x32xf32>, vector<32x128xf32>, vector<2x128xf32> -> vector<2x128xf32>
    %181 = arith.addf %178, %180 : vector<2x128xf32>
    %182 = vector.extract_strided_slice %181 {offsets = [0, 0], sizes = [2, 96], strides = [1, 1]} : vector<2x128xf32> to vector<2x96xf32>
    %183 = arith.negf %182 : vector<2x96xf32>
    %184 = math.exp %183 : vector<2x96xf32>
    %cst_65 = arith.constant 1.000000e+00 : f32
    %185 = vector.broadcast %cst_65 : f32 to vector<2x96xf32>
    %186 = arith.addf %185, %184 : vector<2x96xf32>
    %187 = arith.divf %185, %186 : vector<2x96xf32>
    %188 = vector.extract_strided_slice %181 {offsets = [0, 96], sizes = [2, 32], strides = [1, 1]} : vector<2x128xf32> to vector<2x32xf32>
    %189 = math.tanh %188 : vector<2x32xf32>
    %190 = vector.extract_strided_slice %187 {offsets = [0, 32], sizes = [2, 32], strides = [1, 1]} : vector<2x96xf32> to vector<2x32xf32>
    %191 = arith.mulf %190, %146 : vector<2x32xf32>
    %192 = vector.extract_strided_slice %187 {offsets = [0, 0], sizes = [2, 32], strides = [1, 1]} : vector<2x96xf32> to vector<2x32xf32>
    %193 = arith.mulf %192, %189 : vector<2x32xf32>
    %194 = arith.addf %191, %193 : vector<2x32xf32>
    %195 = vector.extract_strided_slice %187 {offsets = [0, 64], sizes = [2, 32], strides = [1, 1]} : vector<2x96xf32> to vector<2x32xf32>
    %196 = math.tanh %194 : vector<2x32xf32>
    %197 = arith.mulf %195, %196 : vector<2x32xf32>
    %c0_66 = arith.constant 0 : index
    %c3 = arith.constant 3 : index
    %c0_67 = arith.constant 0 : index
    %198 = vector.load %arg46[%c0_66, %c3, %c0_67] : memref<2x8x32xf32, #tpu.memory_space<vmem>>, vector<2x1x32xf32>
    %199 = vector.shape_cast %198 : vector<2x1x32xf32> to vector<2x32xf32>
    %200 = vector.shape_cast %197 : vector<2x32xf32> to vector<2x1x32xf32>
    tpu.vector_store %arg46[%c0_66, %c3, %c0_67], %200 {strides = array<i32>} : memref<2x8x32xf32, #tpu.memory_space<vmem>>, vector<2x1x32xf32>,
    %201 = vector.extract_strided_slice %8 {offsets = [0, 4, 0], sizes = [2, 1, 128], strides = [1, 1, 1]} : vector<2x8x128xf32> to vector<2x1x128xf32>
    %202 = vector.shape_cast %201 : vector<2x1x128xf32> to vector<2x128xf32>
    %c0_68 = arith.constant 0 : index
    %c0_69 = arith.constant 0 : index
    %203 = vector.load %arg4[%c0_68, %c0_69] : memref<32x128xf32, #tpu.memory_space<vmem>>, vector<32x128xf32>
    %cst_70 = arith.constant dense<0.000000e+00> : vector<2x128xf32>
    %204 = tpu.matmul %173, %203, %cst_70 {dimension_numbers = #tpu.dot_dimension_numbers<[1], [0], [0], [1], [0, 0, 1, 1], [], []>} : vector<2x32xf32>, vector<32x128xf32>, vector<2x128xf32> -> vector<2x128xf32>
    %205 = arith.addf %202, %204 : vector<2x128xf32>
    %206 = vector.extract_strided_slice %205 {offsets = [0, 0], sizes = [2, 96], strides = [1, 1]} : vector<2x128xf32> to vector<2x96xf32>
    %207 = arith.negf %206 : vector<2x96xf32>
    %208 = math.exp %207 : vector<2x96xf32>
    %cst_71 = arith.constant 1.000000e+00 : f32
    %209 = vector.broadcast %cst_71 : f32 to vector<2x96xf32>
    %210 = arith.addf %209, %208 : vector<2x96xf32>
    %211 = arith.divf %209, %210 : vector<2x96xf32>
    %212 = vector.extract_strided_slice %205 {offsets = [0, 96], sizes = [2, 32], strides = [1, 1]} : vector<2x128xf32> to vector<2x32xf32>
    %213 = math.tanh %212 : vector<2x32xf32>
    %214 = vector.extract_strided_slice %211 {offsets = [0, 32], sizes = [2, 32], strides = [1, 1]} : vector<2x96xf32> to vector<2x32xf32>
    %215 = arith.mulf %214, %170 : vector<2x32xf32>
    %216 = vector.extract_strided_slice %211 {offsets = [0, 0], sizes = [2, 32], strides = [1, 1]} : vector<2x96xf32> to vector<2x32xf32>
    %217 = arith.mulf %216, %213 : vector<2x32xf32>
    %218 = arith.addf %215, %217 : vector<2x32xf32>
    %219 = vector.extract_strided_slice %211 {offsets = [0, 64], sizes = [2, 32], strides = [1, 1]} : vector<2x96xf32> to vector<2x32xf32>
    %220 = math.tanh %218 : vector<2x32xf32>
    %221 = arith.mulf %219, %220 : vector<2x32xf32>
    %c0_72 = arith.constant 0 : index
    %c0_73 = arith.constant 0 : index
    %222 = vector.load %arg3[%c0_72, %c0_73] : memref<32x128xf32, #tpu.memory_space<vmem>>, vector<32x128xf32>
    %cst_74 = arith.constant dense<0.000000e+00> : vector<2x128xf32>
    %223 = tpu.matmul %221, %222, %cst_74 {dimension_numbers = #tpu.dot_dimension_numbers<[1], [0], [0], [1], [0, 0, 1, 1], [], []>} : vector<2x32xf32>, vector<32x128xf32>, vector<2x128xf32> -> vector<2x128xf32>
    %c0_75 = arith.constant 0 : index
    %c0_76 = arith.constant 0 : index
    %224 = vector.load %arg7[%c0_75, %c0_76] : memref<1x128xf32, #tpu.memory_space<vmem>>, vector<1x128xf32>
    %225 = vector.broadcast %224 : vector<1x128xf32> to vector<2x128xf32>
    %226 = arith.addf %223, %225 : vector<2x128xf32>
    %c0_77 = arith.constant 0 : index
    %c0_78 = arith.constant 0 : index
    %227 = vector.load %arg5[%c0_77, %c0_78] : memref<32x128xf32, #tpu.memory_space<vmem>>, vector<32x128xf32>
    %cst_79 = arith.constant dense<0.000000e+00> : vector<2x128xf32>
    %228 = tpu.matmul %197, %227, %cst_79 {dimension_numbers = #tpu.dot_dimension_numbers<[1], [0], [0], [1], [0, 0, 1, 1], [], []>} : vector<2x32xf32>, vector<32x128xf32>, vector<2x128xf32> -> vector<2x128xf32>
    %229 = arith.addf %226, %228 : vector<2x128xf32>
    %230 = vector.extract_strided_slice %229 {offsets = [0, 0], sizes = [2, 96], strides = [1, 1]} : vector<2x128xf32> to vector<2x96xf32>
    %231 = arith.negf %230 : vector<2x96xf32>
    %232 = math.exp %231 : vector<2x96xf32>
    %cst_80 = arith.constant 1.000000e+00 : f32
    %233 = vector.broadcast %cst_80 : f32 to vector<2x96xf32>
    %234 = arith.addf %233, %232 : vector<2x96xf32>
    %235 = arith.divf %233, %234 : vector<2x96xf32>
    %236 = vector.extract_strided_slice %229 {offsets = [0, 96], sizes = [2, 32], strides = [1, 1]} : vector<2x128xf32> to vector<2x32xf32>
    %237 = math.tanh %236 : vector<2x32xf32>
    %238 = vector.extract_strided_slice %235 {offsets = [0, 32], sizes = [2, 32], strides = [1, 1]} : vector<2x96xf32> to vector<2x32xf32>
    %239 = arith.mulf %238, %194 : vector<2x32xf32>
    %240 = vector.extract_strided_slice %235 {offsets = [0, 0], sizes = [2, 32], strides = [1, 1]} : vector<2x96xf32> to vector<2x32xf32>
    %241 = arith.mulf %240, %237 : vector<2x32xf32>
    %242 = arith.addf %239, %241 : vector<2x32xf32>
    %243 = vector.extract_strided_slice %235 {offsets = [0, 64], sizes = [2, 32], strides = [1, 1]} : vector<2x96xf32> to vector<2x32xf32>
    %244 = math.tanh %242 : vector<2x32xf32>
    %245 = arith.mulf %243, %244 : vector<2x32xf32>
    %c0_81 = arith.constant 0 : index
    %c4 = arith.constant 4 : index
    %c0_82 = arith.constant 0 : index
    %246 = vector.load %arg46[%c0_81, %c4, %c0_82] : memref<2x8x32xf32, #tpu.memory_space<vmem>>, vector<2x1x32xf32>
    %247 = vector.shape_cast %246 : vector<2x1x32xf32> to vector<2x32xf32>
    %248 = vector.shape_cast %245 : vector<2x32xf32> to vector<2x1x32xf32>
    tpu.vector_store %arg46[%c0_81, %c4, %c0_82], %248 {strides = array<i32>} : memref<2x8x32xf32, #tpu.memory_space<vmem>>, vector<2x1x32xf32>,
    %249 = vector.extract_strided_slice %8 {offsets = [0, 5, 0], sizes = [2, 1, 128], strides = [1, 1, 1]} : vector<2x8x128xf32> to vector<2x1x128xf32>
    %250 = vector.shape_cast %249 : vector<2x1x128xf32> to vector<2x128xf32>
    %c0_83 = arith.constant 0 : index
    %c0_84 = arith.constant 0 : index
    %251 = vector.load %arg4[%c0_83, %c0_84] : memref<32x128xf32, #tpu.memory_space<vmem>>, vector<32x128xf32>
    %cst_85 = arith.constant dense<0.000000e+00> : vector<2x128xf32>
    %252 = tpu.matmul %221, %251, %cst_85 {dimension_numbers = #tpu.dot_dimension_numbers<[1], [0], [0], [1], [0, 0, 1, 1], [], []>} : vector<2x32xf32>, vector<32x128xf32>, vector<2x128xf32> -> vector<2x128xf32>
    %253 = arith.addf %250, %252 : vector<2x128xf32>
    %254 = vector.extract_strided_slice %253 {offsets = [0, 0], sizes = [2, 96], strides = [1, 1]} : vector<2x128xf32> to vector<2x96xf32>
    %255 = arith.negf %254 : vector<2x96xf32>
    %256 = math.exp %255 : vector<2x96xf32>
    %cst_86 = arith.constant 1.000000e+00 : f32
    %257 = vector.broadcast %cst_86 : f32 to vector<2x96xf32>
    %258 = arith.addf %257, %256 : vector<2x96xf32>
    %259 = arith.divf %257, %258 : vector<2x96xf32>
    %260 = vector.extract_strided_slice %253 {offsets = [0, 96], sizes = [2, 32], strides = [1, 1]} : vector<2x128xf32> to vector<2x32xf32>
    %261 = math.tanh %260 : vector<2x32xf32>
    %262 = vector.extract_strided_slice %259 {offsets = [0, 32], sizes = [2, 32], strides = [1, 1]} : vector<2x96xf32> to vector<2x32xf32>
    %263 = arith.mulf %262, %218 : vector<2x32xf32>
    %264 = vector.extract_strided_slice %259 {offsets = [0, 0], sizes = [2, 32], strides = [1, 1]} : vector<2x96xf32> to vector<2x32xf32>
    %265 = arith.mulf %264, %261 : vector<2x32xf32>
    %266 = arith.addf %263, %265 : vector<2x32xf32>
    %267 = vector.extract_strided_slice %259 {offsets = [0, 64], sizes = [2, 32], strides = [1, 1]} : vector<2x96xf32> to vector<2x32xf32>
    %268 = math.tanh %266 : vector<2x32xf32>
    %269 = arith.mulf %267, %268 : vector<2x32xf32>
    %c0_87 = arith.constant 0 : index
    %c0_88 = arith.constant 0 : index
    %270 = vector.load %arg3[%c0_87, %c0_88] : memref<32x128xf32, #tpu.memory_space<vmem>>, vector<32x128xf32>
    %cst_89 = arith.constant dense<0.000000e+00> : vector<2x128xf32>
    %271 = tpu.matmul %269, %270, %cst_89 {dimension_numbers = #tpu.dot_dimension_numbers<[1], [0], [0], [1], [0, 0, 1, 1], [], []>} : vector<2x32xf32>, vector<32x128xf32>, vector<2x128xf32> -> vector<2x128xf32>
    %c0_90 = arith.constant 0 : index
    %c0_91 = arith.constant 0 : index
    %272 = vector.load %arg7[%c0_90, %c0_91] : memref<1x128xf32, #tpu.memory_space<vmem>>, vector<1x128xf32>
    %273 = vector.broadcast %272 : vector<1x128xf32> to vector<2x128xf32>
    %274 = arith.addf %271, %273 : vector<2x128xf32>
    %c0_92 = arith.constant 0 : index
    %c0_93 = arith.constant 0 : index
    %275 = vector.load %arg5[%c0_92, %c0_93] : memref<32x128xf32, #tpu.memory_space<vmem>>, vector<32x128xf32>
    %cst_94 = arith.constant dense<0.000000e+00> : vector<2x128xf32>
    %276 = tpu.matmul %245, %275, %cst_94 {dimension_numbers = #tpu.dot_dimension_numbers<[1], [0], [0], [1], [0, 0, 1, 1], [], []>} : vector<2x32xf32>, vector<32x128xf32>, vector<2x128xf32> -> vector<2x128xf32>
    %277 = arith.addf %274, %276 : vector<2x128xf32>
    %278 = vector.extract_strided_slice %277 {offsets = [0, 0], sizes = [2, 96], strides = [1, 1]} : vector<2x128xf32> to vector<2x96xf32>
    %279 = arith.negf %278 : vector<2x96xf32>
    %280 = math.exp %279 : vector<2x96xf32>
    %cst_95 = arith.constant 1.000000e+00 : f32
    %281 = vector.broadcast %cst_95 : f32 to vector<2x96xf32>
    %282 = arith.addf %281, %280 : vector<2x96xf32>
    %283 = arith.divf %281, %282 : vector<2x96xf32>
    %284 = vector.extract_strided_slice %277 {offsets = [0, 96], sizes = [2, 32], strides = [1, 1]} : vector<2x128xf32> to vector<2x32xf32>
    %285 = math.tanh %284 : vector<2x32xf32>
    %286 = vector.extract_strided_slice %283 {offsets = [0, 32], sizes = [2, 32], strides = [1, 1]} : vector<2x96xf32> to vector<2x32xf32>
    %287 = arith.mulf %286, %242 : vector<2x32xf32>
    %288 = vector.extract_strided_slice %283 {offsets = [0, 0], sizes = [2, 32], strides = [1, 1]} : vector<2x96xf32> to vector<2x32xf32>
    %289 = arith.mulf %288, %285 : vector<2x32xf32>
    %290 = arith.addf %287, %289 : vector<2x32xf32>
    %291 = vector.extract_strided_slice %283 {offsets = [0, 64], sizes = [2, 32], strides = [1, 1]} : vector<2x96xf32> to vector<2x32xf32>
    %292 = math.tanh %290 : vector<2x32xf32>
    %293 = arith.mulf %291, %292 : vector<2x32xf32>
    %c0_96 = arith.constant 0 : index
    %c5 = arith.constant 5 : index
    %c0_97 = arith.constant 0 : index
    %294 = vector.load %arg46[%c0_96, %c5, %c0_97] : memref<2x8x32xf32, #tpu.memory_space<vmem>>, vector<2x1x32xf32>
    %295 = vector.shape_cast %294 : vector<2x1x32xf32> to vector<2x32xf32>
    %296 = vector.shape_cast %293 : vector<2x32xf32> to vector<2x1x32xf32>
    tpu.vector_store %arg46[%c0_96, %c5, %c0_97], %296 {strides = array<i32>} : memref<2x8x32xf32, #tpu.memory_space<vmem>>, vector<2x1x32xf32>,
    %297 = vector.extract_strided_slice %8 {offsets = [0, 6, 0], sizes = [2, 1, 128], strides = [1, 1, 1]} : vector<2x8x128xf32> to vector<2x1x128xf32>
    %298 = vector.shape_cast %297 : vector<2x1x128xf32> to vector<2x128xf32>
    %c0_98 = arith.constant 0 : index
    %c0_99 = arith.constant 0 : index
    %299 = vector.load %arg4[%c0_98, %c0_99] : memref<32x128xf32, #tpu.memory_space<vmem>>, vector<32x128xf32>
    %cst_100 = arith.constant dense<0.000000e+00> : vector<2x128xf32>
    %300 = tpu.matmul %269, %299, %cst_100 {dimension_numbers = #tpu.dot_dimension_numbers<[1], [0], [0], [1], [0, 0, 1, 1], [], []>} : vector<2x32xf32>, vector<32x128xf32>, vector<2x128xf32> -> vector<2x128xf32>
    %301 = arith.addf %298, %300 : vector<2x128xf32>
    %302 = vector.extract_strided_slice %301 {offsets = [0, 0], sizes = [2, 96], strides = [1, 1]} : vector<2x128xf32> to vector<2x96xf32>
    %303 = arith.negf %302 : vector<2x96xf32>
    %304 = math.exp %303 : vector<2x96xf32>
    %cst_101 = arith.constant 1.000000e+00 : f32
    %305 = vector.broadcast %cst_101 : f32 to vector<2x96xf32>
    %306 = arith.addf %305, %304 : vector<2x96xf32>
    %307 = arith.divf %305, %306 : vector<2x96xf32>
    %308 = vector.extract_strided_slice %301 {offsets = [0, 96], sizes = [2, 32], strides = [1, 1]} : vector<2x128xf32> to vector<2x32xf32>
    %309 = math.tanh %308 : vector<2x32xf32>
    %310 = vector.extract_strided_slice %307 {offsets = [0, 32], sizes = [2, 32], strides = [1, 1]} : vector<2x96xf32> to vector<2x32xf32>
    %311 = arith.mulf %310, %266 : vector<2x32xf32>
    %312 = vector.extract_strided_slice %307 {offsets = [0, 0], sizes = [2, 32], strides = [1, 1]} : vector<2x96xf32> to vector<2x32xf32>
    %313 = arith.mulf %312, %309 : vector<2x32xf32>
    %314 = arith.addf %311, %313 : vector<2x32xf32>
    %315 = vector.extract_strided_slice %307 {offsets = [0, 64], sizes = [2, 32], strides = [1, 1]} : vector<2x96xf32> to vector<2x32xf32>
    %316 = math.tanh %314 : vector<2x32xf32>
    %317 = arith.mulf %315, %316 : vector<2x32xf32>
    %c0_102 = arith.constant 0 : index
    %c0_103 = arith.constant 0 : index
    %318 = vector.load %arg3[%c0_102, %c0_103] : memref<32x128xf32, #tpu.memory_space<vmem>>, vector<32x128xf32>
    %cst_104 = arith.constant dense<0.000000e+00> : vector<2x128xf32>
    %319 = tpu.matmul %317, %318, %cst_104 {dimension_numbers = #tpu.dot_dimension_numbers<[1], [0], [0], [1], [0, 0, 1, 1], [], []>} : vector<2x32xf32>, vector<32x128xf32>, vector<2x128xf32> -> vector<2x128xf32>
    %c0_105 = arith.constant 0 : index
    %c0_106 = arith.constant 0 : index
    %320 = vector.load %arg7[%c0_105, %c0_106] : memref<1x128xf32, #tpu.memory_space<vmem>>, vector<1x128xf32>
    %321 = vector.broadcast %320 : vector<1x128xf32> to vector<2x128xf32>
    %322 = arith.addf %319, %321 : vector<2x128xf32>
    %c0_107 = arith.constant 0 : index
    %c0_108 = arith.constant 0 : index
    %323 = vector.load %arg5[%c0_107, %c0_108] : memref<32x128xf32, #tpu.memory_space<vmem>>, vector<32x128xf32>
    %cst_109 = arith.constant dense<0.000000e+00> : vector<2x128xf32>
    %324 = tpu.matmul %293, %323, %cst_109 {dimension_numbers = #tpu.dot_dimension_numbers<[1], [0], [0], [1], [0, 0, 1, 1], [], []>} : vector<2x32xf32>, vector<32x128xf32>, vector<2x128xf32> -> vector<2x128xf32>
    %325 = arith.addf %322, %324 : vector<2x128xf32>
    %326 = vector.extract_strided_slice %325 {offsets = [0, 0], sizes = [2, 96], strides = [1, 1]} : vector<2x128xf32> to vector<2x96xf32>
    %327 = arith.negf %326 : vector<2x96xf32>
    %328 = math.exp %327 : vector<2x96xf32>
    %cst_110 = arith.constant 1.000000e+00 : f32
    %329 = vector.broadcast %cst_110 : f32 to vector<2x96xf32>
    %330 = arith.addf %329, %328 : vector<2x96xf32>
    %331 = arith.divf %329, %330 : vector<2x96xf32>
    %332 = vector.extract_strided_slice %325 {offsets = [0, 96], sizes = [2, 32], strides = [1, 1]} : vector<2x128xf32> to vector<2x32xf32>
    %333 = math.tanh %332 : vector<2x32xf32>
    %334 = vector.extract_strided_slice %331 {offsets = [0, 32], sizes = [2, 32], strides = [1, 1]} : vector<2x96xf32> to vector<2x32xf32>
    %335 = arith.mulf %334, %290 : vector<2x32xf32>
    %336 = vector.extract_strided_slice %331 {offsets = [0, 0], sizes = [2, 32], strides = [1, 1]} : vector<2x96xf32> to vector<2x32xf32>
    %337 = arith.mulf %336, %333 : vector<2x32xf32>
    %338 = arith.addf %335, %337 : vector<2x32xf32>
    %339 = vector.extract_strided_slice %331 {offsets = [0, 64], sizes = [2, 32], strides = [1, 1]} : vector<2x96xf32> to vector<2x32xf32>
    %340 = math.tanh %338 : vector<2x32xf32>
    %341 = arith.mulf %339, %340 : vector<2x32xf32>
    %c0_111 = arith.constant 0 : index
    %c6 = arith.constant 6 : index
    %c0_112 = arith.constant 0 : index
    %342 = vector.load %arg46[%c0_111, %c6, %c0_112] : memref<2x8x32xf32, #tpu.memory_space<vmem>>, vector<2x1x32xf32>
    %343 = vector.shape_cast %342 : vector<2x1x32xf32> to vector<2x32xf32>
    %344 = vector.shape_cast %341 : vector<2x32xf32> to vector<2x1x32xf32>
    tpu.vector_store %arg46[%c0_111, %c6, %c0_112], %344 {strides = array<i32>} : memref<2x8x32xf32, #tpu.memory_space<vmem>>, vector<2x1x32xf32>,
    %345 = vector.extract_strided_slice %8 {offsets = [0, 7, 0], sizes = [2, 1, 128], strides = [1, 1, 1]} : vector<2x8x128xf32> to vector<2x1x128xf32>
    %346 = vector.shape_cast %345 : vector<2x1x128xf32> to vector<2x128xf32>
    %c0_113 = arith.constant 0 : index
    %c0_114 = arith.constant 0 : index
    %347 = vector.load %arg4[%c0_113, %c0_114] : memref<32x128xf32, #tpu.memory_space<vmem>>, vector<32x128xf32>
    %cst_115 = arith.constant dense<0.000000e+00> : vector<2x128xf32>
    %348 = tpu.matmul %317, %347, %cst_115 {dimension_numbers = #tpu.dot_dimension_numbers<[1], [0], [0], [1], [0, 0, 1, 1], [], []>} : vector<2x32xf32>, vector<32x128xf32>, vector<2x128xf32> -> vector<2x128xf32>
    %349 = arith.addf %346, %348 : vector<2x128xf32>
    %350 = vector.extract_strided_slice %349 {offsets = [0, 0], sizes = [2, 96], strides = [1, 1]} : vector<2x128xf32> to vector<2x96xf32>
    %351 = arith.negf %350 : vector<2x96xf32>
    %352 = math.exp %351 : vector<2x96xf32>
    %cst_116 = arith.constant 1.000000e+00 : f32
    %353 = vector.broadcast %cst_116 : f32 to vector<2x96xf32>
    %354 = arith.addf %353, %352 : vector<2x96xf32>
    %355 = arith.divf %353, %354 : vector<2x96xf32>
    %356 = vector.extract_strided_slice %349 {offsets = [0, 96], sizes = [2, 32], strides = [1, 1]} : vector<2x128xf32> to vector<2x32xf32>
    %357 = math.tanh %356 : vector<2x32xf32>
    %358 = vector.extract_strided_slice %355 {offsets = [0, 32], sizes = [2, 32], strides = [1, 1]} : vector<2x96xf32> to vector<2x32xf32>
    %359 = arith.mulf %358, %314 : vector<2x32xf32>
    %360 = vector.extract_strided_slice %355 {offsets = [0, 0], sizes = [2, 32], strides = [1, 1]} : vector<2x96xf32> to vector<2x32xf32>
    %361 = arith.mulf %360, %357 : vector<2x32xf32>
    %362 = arith.addf %359, %361 : vector<2x32xf32>
    %363 = vector.extract_strided_slice %355 {offsets = [0, 64], sizes = [2, 32], strides = [1, 1]} : vector<2x96xf32> to vector<2x32xf32>
    %364 = math.tanh %362 : vector<2x32xf32>
    %365 = arith.mulf %363, %364 : vector<2x32xf32>
    %c0_117 = arith.constant 0 : index
    %c0_118 = arith.constant 0 : index
    %366 = vector.load %arg3[%c0_117, %c0_118] : memref<32x128xf32, #tpu.memory_space<vmem>>, vector<32x128xf32>
    %cst_119 = arith.constant dense<0.000000e+00> : vector<2x128xf32>
    %367 = tpu.matmul %365, %366, %cst_119 {dimension_numbers = #tpu.dot_dimension_numbers<[1], [0], [0], [1], [0, 0, 1, 1], [], []>} : vector<2x32xf32>, vector<32x128xf32>, vector<2x128xf32> -> vector<2x128xf32>
    %c0_120 = arith.constant 0 : index
    %c0_121 = arith.constant 0 : index
    %368 = vector.load %arg7[%c0_120, %c0_121] : memref<1x128xf32, #tpu.memory_space<vmem>>, vector<1x128xf32>
    %369 = vector.broadcast %368 : vector<1x128xf32> to vector<2x128xf32>
    %370 = arith.addf %367, %369 : vector<2x128xf32>
    %c0_122 = arith.constant 0 : index
    %c0_123 = arith.constant 0 : index
    %371 = vector.load %arg5[%c0_122, %c0_123] : memref<32x128xf32, #tpu.memory_space<vmem>>, vector<32x128xf32>
    %cst_124 = arith.constant dense<0.000000e+00> : vector<2x128xf32>
    %372 = tpu.matmul %341, %371, %cst_124 {dimension_numbers = #tpu.dot_dimension_numbers<[1], [0], [0], [1], [0, 0, 1, 1], [], []>} : vector<2x32xf32>, vector<32x128xf32>, vector<2x128xf32> -> vector<2x128xf32>
    %373 = arith.addf %370, %372 : vector<2x128xf32>
    %374 = vector.extract_strided_slice %373 {offsets = [0, 0], sizes = [2, 96], strides = [1, 1]} : vector<2x128xf32> to vector<2x96xf32>
    %375 = arith.negf %374 : vector<2x96xf32>
    %376 = math.exp %375 : vector<2x96xf32>
    %cst_125 = arith.constant 1.000000e+00 : f32
    %377 = vector.broadcast %cst_125 : f32 to vector<2x96xf32>
    %378 = arith.addf %377, %376 : vector<2x96xf32>
    %379 = arith.divf %377, %378 : vector<2x96xf32>
    %380 = vector.extract_strided_slice %373 {offsets = [0, 96], sizes = [2, 32], strides = [1, 1]} : vector<2x128xf32> to vector<2x32xf32>
    %381 = math.tanh %380 : vector<2x32xf32>
    %382 = vector.extract_strided_slice %379 {offsets = [0, 32], sizes = [2, 32], strides = [1, 1]} : vector<2x96xf32> to vector<2x32xf32>
    %383 = arith.mulf %382, %338 : vector<2x32xf32>
    %384 = vector.extract_strided_slice %379 {offsets = [0, 0], sizes = [2, 32], strides = [1, 1]} : vector<2x96xf32> to vector<2x32xf32>
    %385 = arith.mulf %384, %381 : vector<2x32xf32>
    %386 = arith.addf %383, %385 : vector<2x32xf32>
    %387 = vector.extract_strided_slice %379 {offsets = [0, 64], sizes = [2, 32], strides = [1, 1]} : vector<2x96xf32> to vector<2x32xf32>
    %388 = math.tanh %386 : vector<2x32xf32>
    %389 = arith.mulf %387, %388 : vector<2x32xf32>
    %c0_126 = arith.constant 0 : index
    %c7 = arith.constant 7 : index
    %c0_127 = arith.constant 0 : index
    %390 = vector.load %arg46[%c0_126, %c7, %c0_127] : memref<2x8x32xf32, #tpu.memory_space<vmem>>, vector<2x1x32xf32>
    %391 = vector.shape_cast %390 : vector<2x1x32xf32> to vector<2x32xf32>
    %392 = vector.shape_cast %389 : vector<2x32xf32> to vector<2x1x32xf32>
    tpu.vector_store %arg46[%c0_126, %c7, %c0_127], %392 {strides = array<i32>} : memref<2x8x32xf32, #tpu.memory_space<vmem>>, vector<2x1x32xf32>,
    %c0_128 = arith.constant 0 : index
    %c0_129 = arith.constant 0 : index
    %393 = vector.load %arg1[%c0_128, %c0_129] : memref<8x32xf32, #tpu.memory_space<vmem>>, vector<8x32xf32>
    %c0_130 = arith.constant 0 : index
    %c0_131 = arith.constant 0 : index
    %394 = vector.load %arg8[%c0_130, %c0_131] : memref<32x128xf32, #tpu.memory_space<vmem>>, vector<32x128xf32>
    %cst_132 = arith.constant dense<0.000000e+00> : vector<8x128xf32>
    %395 = tpu.matmul %393, %394, %cst_132 {dimension_numbers = #tpu.dot_dimension_numbers<[1], [0], [0], [1], [0, 0, 1, 1], [], []>} : vector<8x32xf32>, vector<32x128xf32>, vector<8x128xf32> -> vector<8x128xf32>
    %c0_133 = arith.constant 0 : index
    %c0_134 = arith.constant 0 : index
    %396 = vector.load %arg12[%c0_133, %c0_134] : memref<1x128xf32, #tpu.memory_space<vmem>>, vector<1x128xf32>
    %397 = vector.broadcast %396 : vector<1x128xf32> to vector<8x128xf32>
    %398 = arith.addf %395, %397 : vector<8x128xf32>
    %399 = vector.shape_cast %398 : vector<8x128xf32> to vector<2x4x128xf32>
    %400 = vector.extract_strided_slice %399 {offsets = [0, 0, 0], sizes = [2, 1, 128], strides = [1, 1, 1]} : vector<2x4x128xf32> to vector<2x1x128xf32>
    %401 = vector.shape_cast %400 : vector<2x1x128xf32> to vector<2x128xf32>
    %c0_135 = arith.constant 0 : index
    %c0_136 = arith.constant 0 : index
    %402 = vector.load %arg10[%c0_135, %c0_136] : memref<32x128xf32, #tpu.memory_space<vmem>>, vector<32x128xf32>
    %cst_137 = arith.constant dense<0.000000e+00> : vector<2x128xf32>
    %403 = tpu.matmul %365, %402, %cst_137 {dimension_numbers = #tpu.dot_dimension_numbers<[1], [0], [0], [1], [0, 0, 1, 1], [], []>} : vector<2x32xf32>, vector<32x128xf32>, vector<2x128xf32> -> vector<2x128xf32>
    %404 = arith.addf %401, %403 : vector<2x128xf32>
    %405 = vector.extract_strided_slice %404 {offsets = [0, 0], sizes = [2, 96], strides = [1, 1]} : vector<2x128xf32> to vector<2x96xf32>
    %406 = arith.negf %405 : vector<2x96xf32>
    %407 = math.exp %406 : vector<2x96xf32>
    %cst_138 = arith.constant 1.000000e+00 : f32
    %408 = vector.broadcast %cst_138 : f32 to vector<2x96xf32>
    %409 = arith.addf %408, %407 : vector<2x96xf32>
    %410 = arith.divf %408, %409 : vector<2x96xf32>
    %411 = vector.extract_strided_slice %404 {offsets = [0, 96], sizes = [2, 32], strides = [1, 1]} : vector<2x128xf32> to vector<2x32xf32>
    %412 = math.tanh %411 : vector<2x32xf32>
    %413 = vector.extract_strided_slice %410 {offsets = [0, 32], sizes = [2, 32], strides = [1, 1]} : vector<2x96xf32> to vector<2x32xf32>
    %414 = arith.mulf %413, %362 : vector<2x32xf32>
    %415 = vector.extract_strided_slice %410 {offsets = [0, 0], sizes = [2, 32], strides = [1, 1]} : vector<2x96xf32> to vector<2x32xf32>
    %416 = arith.mulf %415, %412 : vector<2x32xf32>
    %417 = arith.addf %414, %416 : vector<2x32xf32>
    %418 = vector.extract_strided_slice %410 {offsets = [0, 64], sizes = [2, 32], strides = [1, 1]} : vector<2x96xf32> to vector<2x32xf32>
    %419 = math.tanh %417 : vector<2x32xf32>
    %420 = arith.mulf %418, %419 : vector<2x32xf32>
    %c0_139 = arith.constant 0 : index
    %c0_140 = arith.constant 0 : index
    %421 = vector.load %arg9[%c0_139, %c0_140] : memref<32x128xf32, #tpu.memory_space<vmem>>, vector<32x128xf32>
    %cst_141 = arith.constant dense<0.000000e+00> : vector<2x128xf32>
    %422 = tpu.matmul %420, %421, %cst_141 {dimension_numbers = #tpu.dot_dimension_numbers<[1], [0], [0], [1], [0, 0, 1, 1], [], []>} : vector<2x32xf32>, vector<32x128xf32>, vector<2x128xf32> -> vector<2x128xf32>
    %c0_142 = arith.constant 0 : index
    %c0_143 = arith.constant 0 : index
    %423 = vector.load %arg13[%c0_142, %c0_143] : memref<1x128xf32, #tpu.memory_space<vmem>>, vector<1x128xf32>
    %424 = vector.broadcast %423 : vector<1x128xf32> to vector<2x128xf32>
    %425 = arith.addf %422, %424 : vector<2x128xf32>
    %c0_144 = arith.constant 0 : index
    %c0_145 = arith.constant 0 : index
    %426 = vector.load %arg11[%c0_144, %c0_145] : memref<32x128xf32, #tpu.memory_space<vmem>>, vector<32x128xf32>
    %cst_146 = arith.constant dense<0.000000e+00> : vector<2x128xf32>
    %427 = tpu.matmul %389, %426, %cst_146 {dimension_numbers = #tpu.dot_dimension_numbers<[1], [0], [0], [1], [0, 0, 1, 1], [], []>} : vector<2x32xf32>, vector<32x128xf32>, vector<2x128xf32> -> vector<2x128xf32>
    %428 = arith.addf %425, %427 : vector<2x128xf32>
    %429 = vector.extract_strided_slice %428 {offsets = [0, 0], sizes = [2, 96], strides = [1, 1]} : vector<2x128xf32> to vector<2x96xf32>
    %430 = arith.negf %429 : vector<2x96xf32>
    %431 = math.exp %430 : vector<2x96xf32>
    %cst_147 = arith.constant 1.000000e+00 : f32
    %432 = vector.broadcast %cst_147 : f32 to vector<2x96xf32>
    %433 = arith.addf %432, %431 : vector<2x96xf32>
    %434 = arith.divf %432, %433 : vector<2x96xf32>
    %435 = vector.extract_strided_slice %428 {offsets = [0, 96], sizes = [2, 32], strides = [1, 1]} : vector<2x128xf32> to vector<2x32xf32>
    %436 = math.tanh %435 : vector<2x32xf32>
    %437 = vector.extract_strided_slice %434 {offsets = [0, 32], sizes = [2, 32], strides = [1, 1]} : vector<2x96xf32> to vector<2x32xf32>
    %438 = arith.mulf %437, %386 : vector<2x32xf32>
    %439 = vector.extract_strided_slice %434 {offsets = [0, 0], sizes = [2, 32], strides = [1, 1]} : vector<2x96xf32> to vector<2x32xf32>
    %440 = arith.mulf %439, %436 : vector<2x32xf32>
    %441 = arith.addf %438, %440 : vector<2x32xf32>
    %442 = vector.extract_strided_slice %434 {offsets = [0, 64], sizes = [2, 32], strides = [1, 1]} : vector<2x96xf32> to vector<2x32xf32>
    %443 = math.tanh %441 : vector<2x32xf32>
    %444 = arith.mulf %442, %443 : vector<2x32xf32>
    %c0_148 = arith.constant 0 : index
    %c0_149 = arith.constant 0 : index
    %c0_150 = arith.constant 0 : index
    %445 = vector.load %arg47[%c0_148, %c0_149, %c0_150] : memref<2x4x32xf32, #tpu.memory_space<vmem>>, vector<2x1x32xf32>
    %446 = vector.shape_cast %445 : vector<2x1x32xf32> to vector<2x32xf32>
    %447 = vector.shape_cast %444 : vector<2x32xf32> to vector<2x1x32xf32>
    tpu.vector_store %arg47[%c0_148, %c0_149, %c0_150], %447 {strides = array<i32>} : memref<2x4x32xf32, #tpu.memory_space<vmem>>, vector<2x1x32xf32>,
    %448 = vector.extract_strided_slice %399 {offsets = [0, 1, 0], sizes = [2, 1, 128], strides = [1, 1, 1]} : vector<2x4x128xf32> to vector<2x1x128xf32>
    %449 = vector.shape_cast %448 : vector<2x1x128xf32> to vector<2x128xf32>
    %c0_151 = arith.constant 0 : index
    %c0_152 = arith.constant 0 : index
    %450 = vector.load %arg10[%c0_151, %c0_152] : memref<32x128xf32, #tpu.memory_space<vmem>>, vector<32x128xf32>
    %cst_153 = arith.constant dense<0.000000e+00> : vector<2x128xf32>
    %451 = tpu.matmul %420, %450, %cst_153 {dimension_numbers = #tpu.dot_dimension_numbers<[1], [0], [0], [1], [0, 0, 1, 1], [], []>} : vector<2x32xf32>, vector<32x128xf32>, vector<2x128xf32> -> vector<2x128xf32>
    %452 = arith.addf %449, %451 : vector<2x128xf32>
    %453 = vector.extract_strided_slice %452 {offsets = [0, 0], sizes = [2, 96], strides = [1, 1]} : vector<2x128xf32> to vector<2x96xf32>
    %454 = arith.negf %453 : vector<2x96xf32>
    %455 = math.exp %454 : vector<2x96xf32>
    %cst_154 = arith.constant 1.000000e+00 : f32
    %456 = vector.broadcast %cst_154 : f32 to vector<2x96xf32>
    %457 = arith.addf %456, %455 : vector<2x96xf32>
    %458 = arith.divf %456, %457 : vector<2x96xf32>
    %459 = vector.extract_strided_slice %452 {offsets = [0, 96], sizes = [2, 32], strides = [1, 1]} : vector<2x128xf32> to vector<2x32xf32>
    %460 = math.tanh %459 : vector<2x32xf32>
    %461 = vector.extract_strided_slice %458 {offsets = [0, 32], sizes = [2, 32], strides = [1, 1]} : vector<2x96xf32> to vector<2x32xf32>
    %462 = arith.mulf %461, %417 : vector<2x32xf32>
    %463 = vector.extract_strided_slice %458 {offsets = [0, 0], sizes = [2, 32], strides = [1, 1]} : vector<2x96xf32> to vector<2x32xf32>
    %464 = arith.mulf %463, %460 : vector<2x32xf32>
    %465 = arith.addf %462, %464 : vector<2x32xf32>
    %466 = vector.extract_strided_slice %458 {offsets = [0, 64], sizes = [2, 32], strides = [1, 1]} : vector<2x96xf32> to vector<2x32xf32>
    %467 = math.tanh %465 : vector<2x32xf32>
    %468 = arith.mulf %466, %467 : vector<2x32xf32>
    %c0_155 = arith.constant 0 : index
    %c0_156 = arith.constant 0 : index
    %469 = vector.load %arg9[%c0_155, %c0_156] : memref<32x128xf32, #tpu.memory_space<vmem>>, vector<32x128xf32>
    %cst_157 = arith.constant dense<0.000000e+00> : vector<2x128xf32>
    %470 = tpu.matmul %468, %469, %cst_157 {dimension_numbers = #tpu.dot_dimension_numbers<[1], [0], [0], [1], [0, 0, 1, 1], [], []>} : vector<2x32xf32>, vector<32x128xf32>, vector<2x128xf32> -> vector<2x128xf32>
    %c0_158 = arith.constant 0 : index
    %c0_159 = arith.constant 0 : index
    %471 = vector.load %arg13[%c0_158, %c0_159] : memref<1x128xf32, #tpu.memory_space<vmem>>, vector<1x128xf32>
    %472 = vector.broadcast %471 : vector<1x128xf32> to vector<2x128xf32>
    %473 = arith.addf %470, %472 : vector<2x128xf32>
    %c0_160 = arith.constant 0 : index
    %c0_161 = arith.constant 0 : index
    %474 = vector.load %arg11[%c0_160, %c0_161] : memref<32x128xf32, #tpu.memory_space<vmem>>, vector<32x128xf32>
    %cst_162 = arith.constant dense<0.000000e+00> : vector<2x128xf32>
    %475 = tpu.matmul %444, %474, %cst_162 {dimension_numbers = #tpu.dot_dimension_numbers<[1], [0], [0], [1], [0, 0, 1, 1], [], []>} : vector<2x32xf32>, vector<32x128xf32>, vector<2x128xf32> -> vector<2x128xf32>
    %476 = arith.addf %473, %475 : vector<2x128xf32>
    %477 = vector.extract_strided_slice %476 {offsets = [0, 0], sizes = [2, 96], strides = [1, 1]} : vector<2x128xf32> to vector<2x96xf32>
    %478 = arith.negf %477 : vector<2x96xf32>
    %479 = math.exp %478 : vector<2x96xf32>
    %cst_163 = arith.constant 1.000000e+00 : f32
    %480 = vector.broadcast %cst_163 : f32 to vector<2x96xf32>
    %481 = arith.addf %480, %479 : vector<2x96xf32>
    %482 = arith.divf %480, %481 : vector<2x96xf32>
    %483 = vector.extract_strided_slice %476 {offsets = [0, 96], sizes = [2, 32], strides = [1, 1]} : vector<2x128xf32> to vector<2x32xf32>
    %484 = math.tanh %483 : vector<2x32xf32>
    %485 = vector.extract_strided_slice %482 {offsets = [0, 32], sizes = [2, 32], strides = [1, 1]} : vector<2x96xf32> to vector<2x32xf32>
    %486 = arith.mulf %485, %441 : vector<2x32xf32>
    %487 = vector.extract_strided_slice %482 {offsets = [0, 0], sizes = [2, 32], strides = [1, 1]} : vector<2x96xf32> to vector<2x32xf32>
    %488 = arith.mulf %487, %484 : vector<2x32xf32>
    %489 = arith.addf %486, %488 : vector<2x32xf32>
    %490 = vector.extract_strided_slice %482 {offsets = [0, 64], sizes = [2, 32], strides = [1, 1]} : vector<2x96xf32> to vector<2x32xf32>
    %491 = math.tanh %489 : vector<2x32xf32>
    %492 = arith.mulf %490, %491 : vector<2x32xf32>
    %c0_164 = arith.constant 0 : index
    %c1_165 = arith.constant 1 : index
    %c0_166 = arith.constant 0 : index
    %493 = vector.load %arg47[%c0_164, %c1_165, %c0_166] : memref<2x4x32xf32, #tpu.memory_space<vmem>>, vector<2x1x32xf32>
    %494 = vector.shape_cast %493 : vector<2x1x32xf32> to vector<2x32xf32>
    %495 = vector.shape_cast %492 : vector<2x32xf32> to vector<2x1x32xf32>
    tpu.vector_store %arg47[%c0_164, %c1_165, %c0_166], %495 {strides = array<i32>} : memref<2x4x32xf32, #tpu.memory_space<vmem>>, vector<2x1x32xf32>,
    %496 = vector.extract_strided_slice %399 {offsets = [0, 2, 0], sizes = [2, 1, 128], strides = [1, 1, 1]} : vector<2x4x128xf32> to vector<2x1x128xf32>
    %497 = vector.shape_cast %496 : vector<2x1x128xf32> to vector<2x128xf32>
    %c0_167 = arith.constant 0 : index
    %c0_168 = arith.constant 0 : index
    %498 = vector.load %arg10[%c0_167, %c0_168] : memref<32x128xf32, #tpu.memory_space<vmem>>, vector<32x128xf32>
    %cst_169 = arith.constant dense<0.000000e+00> : vector<2x128xf32>
    %499 = tpu.matmul %468, %498, %cst_169 {dimension_numbers = #tpu.dot_dimension_numbers<[1], [0], [0], [1], [0, 0, 1, 1], [], []>} : vector<2x32xf32>, vector<32x128xf32>, vector<2x128xf32> -> vector<2x128xf32>
    %500 = arith.addf %497, %499 : vector<2x128xf32>
    %501 = vector.extract_strided_slice %500 {offsets = [0, 0], sizes = [2, 96], strides = [1, 1]} : vector<2x128xf32> to vector<2x96xf32>
    %502 = arith.negf %501 : vector<2x96xf32>
    %503 = math.exp %502 : vector<2x96xf32>
    %cst_170 = arith.constant 1.000000e+00 : f32
    %504 = vector.broadcast %cst_170 : f32 to vector<2x96xf32>
    %505 = arith.addf %504, %503 : vector<2x96xf32>
    %506 = arith.divf %504, %505 : vector<2x96xf32>
    %507 = vector.extract_strided_slice %500 {offsets = [0, 96], sizes = [2, 32], strides = [1, 1]} : vector<2x128xf32> to vector<2x32xf32>
    %508 = math.tanh %507 : vector<2x32xf32>
    %509 = vector.extract_strided_slice %506 {offsets = [0, 32], sizes = [2, 32], strides = [1, 1]} : vector<2x96xf32> to vector<2x32xf32>
    %510 = arith.mulf %509, %465 : vector<2x32xf32>
    %511 = vector.extract_strided_slice %506 {offsets = [0, 0], sizes = [2, 32], strides = [1, 1]} : vector<2x96xf32> to vector<2x32xf32>
    %512 = arith.mulf %511, %508 : vector<2x32xf32>
    %513 = arith.addf %510, %512 : vector<2x32xf32>
    %514 = vector.extract_strided_slice %506 {offsets = [0, 64], sizes = [2, 32], strides = [1, 1]} : vector<2x96xf32> to vector<2x32xf32>
    %515 = math.tanh %513 : vector<2x32xf32>
    %516 = arith.mulf %514, %515 : vector<2x32xf32>
    %c0_171 = arith.constant 0 : index
    %c0_172 = arith.constant 0 : index
    %517 = vector.load %arg9[%c0_171, %c0_172] : memref<32x128xf32, #tpu.memory_space<vmem>>, vector<32x128xf32>
    %cst_173 = arith.constant dense<0.000000e+00> : vector<2x128xf32>
    %518 = tpu.matmul %516, %517, %cst_173 {dimension_numbers = #tpu.dot_dimension_numbers<[1], [0], [0], [1], [0, 0, 1, 1], [], []>} : vector<2x32xf32>, vector<32x128xf32>, vector<2x128xf32> -> vector<2x128xf32>
    %c0_174 = arith.constant 0 : index
    %c0_175 = arith.constant 0 : index
    %519 = vector.load %arg13[%c0_174, %c0_175] : memref<1x128xf32, #tpu.memory_space<vmem>>, vector<1x128xf32>
    %520 = vector.broadcast %519 : vector<1x128xf32> to vector<2x128xf32>
    %521 = arith.addf %518, %520 : vector<2x128xf32>
    %c0_176 = arith.constant 0 : index
    %c0_177 = arith.constant 0 : index
    %522 = vector.load %arg11[%c0_176, %c0_177] : memref<32x128xf32, #tpu.memory_space<vmem>>, vector<32x128xf32>
    %cst_178 = arith.constant dense<0.000000e+00> : vector<2x128xf32>
    %523 = tpu.matmul %492, %522, %cst_178 {dimension_numbers = #tpu.dot_dimension_numbers<[1], [0], [0], [1], [0, 0, 1, 1], [], []>} : vector<2x32xf32>, vector<32x128xf32>, vector<2x128xf32> -> vector<2x128xf32>
    %524 = arith.addf %521, %523 : vector<2x128xf32>
    %525 = vector.extract_strided_slice %524 {offsets = [0, 0], sizes = [2, 96], strides = [1, 1]} : vector<2x128xf32> to vector<2x96xf32>
    %526 = arith.negf %525 : vector<2x96xf32>
    %527 = math.exp %526 : vector<2x96xf32>
    %cst_179 = arith.constant 1.000000e+00 : f32
    %528 = vector.broadcast %cst_179 : f32 to vector<2x96xf32>
    %529 = arith.addf %528, %527 : vector<2x96xf32>
    %530 = arith.divf %528, %529 : vector<2x96xf32>
    %531 = vector.extract_strided_slice %524 {offsets = [0, 96], sizes = [2, 32], strides = [1, 1]} : vector<2x128xf32> to vector<2x32xf32>
    %532 = math.tanh %531 : vector<2x32xf32>
    %533 = vector.extract_strided_slice %530 {offsets = [0, 32], sizes = [2, 32], strides = [1, 1]} : vector<2x96xf32> to vector<2x32xf32>
    %534 = arith.mulf %533, %489 : vector<2x32xf32>
    %535 = vector.extract_strided_slice %530 {offsets = [0, 0], sizes = [2, 32], strides = [1, 1]} : vector<2x96xf32> to vector<2x32xf32>
    %536 = arith.mulf %535, %532 : vector<2x32xf32>
    %537 = arith.addf %534, %536 : vector<2x32xf32>
    %538 = vector.extract_strided_slice %530 {offsets = [0, 64], sizes = [2, 32], strides = [1, 1]} : vector<2x96xf32> to vector<2x32xf32>
    %539 = math.tanh %537 : vector<2x32xf32>
    %540 = arith.mulf %538, %539 : vector<2x32xf32>
    %c0_180 = arith.constant 0 : index
    %c2_181 = arith.constant 2 : index
    %c0_182 = arith.constant 0 : index
    %541 = vector.load %arg47[%c0_180, %c2_181, %c0_182] : memref<2x4x32xf32, #tpu.memory_space<vmem>>, vector<2x1x32xf32>
    %542 = vector.shape_cast %541 : vector<2x1x32xf32> to vector<2x32xf32>
    %543 = vector.shape_cast %540 : vector<2x32xf32> to vector<2x1x32xf32>
    tpu.vector_store %arg47[%c0_180, %c2_181, %c0_182], %543 {strides = array<i32>} : memref<2x4x32xf32, #tpu.memory_space<vmem>>, vector<2x1x32xf32>,
    %544 = vector.extract_strided_slice %399 {offsets = [0, 3, 0], sizes = [2, 1, 128], strides = [1, 1, 1]} : vector<2x4x128xf32> to vector<2x1x128xf32>
    %545 = vector.shape_cast %544 : vector<2x1x128xf32> to vector<2x128xf32>
    %c0_183 = arith.constant 0 : index
    %c0_184 = arith.constant 0 : index
    %546 = vector.load %arg10[%c0_183, %c0_184] : memref<32x128xf32, #tpu.memory_space<vmem>>, vector<32x128xf32>
    %cst_185 = arith.constant dense<0.000000e+00> : vector<2x128xf32>
    %547 = tpu.matmul %516, %546, %cst_185 {dimension_numbers = #tpu.dot_dimension_numbers<[1], [0], [0], [1], [0, 0, 1, 1], [], []>} : vector<2x32xf32>, vector<32x128xf32>, vector<2x128xf32> -> vector<2x128xf32>
    %548 = arith.addf %545, %547 : vector<2x128xf32>
    %549 = vector.extract_strided_slice %548 {offsets = [0, 0], sizes = [2, 96], strides = [1, 1]} : vector<2x128xf32> to vector<2x96xf32>
    %550 = arith.negf %549 : vector<2x96xf32>
    %551 = math.exp %550 : vector<2x96xf32>
    %cst_186 = arith.constant 1.000000e+00 : f32
    %552 = vector.broadcast %cst_186 : f32 to vector<2x96xf32>
    %553 = arith.addf %552, %551 : vector<2x96xf32>
    %554 = arith.divf %552, %553 : vector<2x96xf32>
    %555 = vector.extract_strided_slice %548 {offsets = [0, 96], sizes = [2, 32], strides = [1, 1]} : vector<2x128xf32> to vector<2x32xf32>
    %556 = math.tanh %555 : vector<2x32xf32>
    %557 = vector.extract_strided_slice %554 {offsets = [0, 32], sizes = [2, 32], strides = [1, 1]} : vector<2x96xf32> to vector<2x32xf32>
    %558 = arith.mulf %557, %513 : vector<2x32xf32>
    %559 = vector.extract_strided_slice %554 {offsets = [0, 0], sizes = [2, 32], strides = [1, 1]} : vector<2x96xf32> to vector<2x32xf32>
    %560 = arith.mulf %559, %556 : vector<2x32xf32>
    %561 = arith.addf %558, %560 : vector<2x32xf32>
    %562 = vector.extract_strided_slice %554 {offsets = [0, 64], sizes = [2, 32], strides = [1, 1]} : vector<2x96xf32> to vector<2x32xf32>
    %563 = math.tanh %561 : vector<2x32xf32>
    %564 = arith.mulf %562, %563 : vector<2x32xf32>
    %c0_187 = arith.constant 0 : index
    %c0_188 = arith.constant 0 : index
    %565 = vector.load %arg9[%c0_187, %c0_188] : memref<32x128xf32, #tpu.memory_space<vmem>>, vector<32x128xf32>
    %cst_189 = arith.constant dense<0.000000e+00> : vector<2x128xf32>
    %566 = tpu.matmul %564, %565, %cst_189 {dimension_numbers = #tpu.dot_dimension_numbers<[1], [0], [0], [1], [0, 0, 1, 1], [], []>} : vector<2x32xf32>, vector<32x128xf32>, vector<2x128xf32> -> vector<2x128xf32>
    %c0_190 = arith.constant 0 : index
    %c0_191 = arith.constant 0 : index
    %567 = vector.load %arg13[%c0_190, %c0_191] : memref<1x128xf32, #tpu.memory_space<vmem>>, vector<1x128xf32>
    %568 = vector.broadcast %567 : vector<1x128xf32> to vector<2x128xf32>
    %569 = arith.addf %566, %568 : vector<2x128xf32>
    %c0_192 = arith.constant 0 : index
    %c0_193 = arith.constant 0 : index
    %570 = vector.load %arg11[%c0_192, %c0_193] : memref<32x128xf32, #tpu.memory_space<vmem>>, vector<32x128xf32>
    %cst_194 = arith.constant dense<0.000000e+00> : vector<2x128xf32>
    %571 = tpu.matmul %540, %570, %cst_194 {dimension_numbers = #tpu.dot_dimension_numbers<[1], [0], [0], [1], [0, 0, 1, 1], [], []>} : vector<2x32xf32>, vector<32x128xf32>, vector<2x128xf32> -> vector<2x128xf32>
    %572 = arith.addf %569, %571 : vector<2x128xf32>
    %573 = vector.extract_strided_slice %572 {offsets = [0, 0], sizes = [2, 96], strides = [1, 1]} : vector<2x128xf32> to vector<2x96xf32>
    %574 = arith.negf %573 : vector<2x96xf32>
    %575 = math.exp %574 : vector<2x96xf32>
    %cst_195 = arith.constant 1.000000e+00 : f32
    %576 = vector.broadcast %cst_195 : f32 to vector<2x96xf32>
    %577 = arith.addf %576, %575 : vector<2x96xf32>
    %578 = arith.divf %576, %577 : vector<2x96xf32>
    %579 = vector.extract_strided_slice %572 {offsets = [0, 96], sizes = [2, 32], strides = [1, 1]} : vector<2x128xf32> to vector<2x32xf32>
    %580 = math.tanh %579 : vector<2x32xf32>
    %581 = vector.extract_strided_slice %578 {offsets = [0, 32], sizes = [2, 32], strides = [1, 1]} : vector<2x96xf32> to vector<2x32xf32>
    %582 = arith.mulf %581, %537 : vector<2x32xf32>
    %583 = vector.extract_strided_slice %578 {offsets = [0, 0], sizes = [2, 32], strides = [1, 1]} : vector<2x96xf32> to vector<2x32xf32>
    %584 = arith.mulf %583, %580 : vector<2x32xf32>
    %585 = arith.addf %582, %584 : vector<2x32xf32>
    %586 = vector.extract_strided_slice %578 {offsets = [0, 64], sizes = [2, 32], strides = [1, 1]} : vector<2x96xf32> to vector<2x32xf32>
    %587 = math.tanh %585 : vector<2x32xf32>
    %588 = arith.mulf %586, %587 : vector<2x32xf32>
    %c0_196 = arith.constant 0 : index
    %c3_197 = arith.constant 3 : index
    %c0_198 = arith.constant 0 : index
    %589 = vector.load %arg47[%c0_196, %c3_197, %c0_198] : memref<2x4x32xf32, #tpu.memory_space<vmem>>, vector<2x1x32xf32>
    %590 = vector.shape_cast %589 : vector<2x1x32xf32> to vector<2x32xf32>
    %591 = vector.shape_cast %588 : vector<2x32xf32> to vector<2x1x32xf32>
    tpu.vector_store %arg47[%c0_196, %c3_197, %c0_198], %591 {strides = array<i32>} : memref<2x4x32xf32, #tpu.memory_space<vmem>>, vector<2x1x32xf32>,
    %c0_199 = arith.constant 0 : index
    %c0_200 = arith.constant 0 : index
    %c0_201 = arith.constant 0 : index
    %592 = vector.load %arg46[%c0_199, %c0_200, %c0_201] : memref<2x8x32xf32, #tpu.memory_space<vmem>>, vector<2x8x32xf32>
    %593 = vector.shape_cast %592 : vector<2x8x32xf32> to vector<16x32xf32>
    %c0_202 = arith.constant 0 : index
    %c0_203 = arith.constant 0 : index
    %594 = vector.load %arg0[%c0_202, %c0_203] : memref<16x32xf32, #tpu.memory_space<vmem>>, vector<16x32xf32>
    %c0_204 = arith.constant 0 : index
    %c0_205 = arith.constant 0 : index
    %595 = vector.load %arg14[%c0_204, %c0_205] : memref<32x64xf32, #tpu.memory_space<vmem>>, vector<32x64xf32>
    %cst_206 = arith.constant dense<0.000000e+00> : vector<16x64xf32>
    %596 = tpu.matmul %593, %595, %cst_206 {dimension_numbers = #tpu.dot_dimension_numbers<[1], [0], [0], [1], [0, 0, 1, 1], [], []>} : vector<16x32xf32>, vector<32x64xf32>, vector<16x64xf32> -> vector<16x64xf32>
    %c0_207 = arith.constant 0 : index
    %c0_208 = arith.constant 0 : index
    %597 = vector.load %arg15[%c0_207, %c0_208] : memref<1x64xf32, #tpu.memory_space<vmem>>, vector<1x64xf32>
    %598 = vector.broadcast %597 : vector<1x64xf32> to vector<16x64xf32>
    %599 = arith.addf %596, %598 : vector<16x64xf32>
    %600 = vector.extract_strided_slice %599 {offsets = [0, 0], sizes = [16, 32], strides = [1, 1]} : vector<16x64xf32> to vector<16x32xf32>
    %601 = vector.extract_strided_slice %599 {offsets = [0, 32], sizes = [16, 32], strides = [1, 1]} : vector<16x64xf32> to vector<16x32xf32>
    %602 = arith.negf %601 : vector<16x32xf32>
    %603 = math.exp %602 : vector<16x32xf32>
    %cst_209 = arith.constant 1.000000e+00 : f32
    %604 = vector.broadcast %cst_209 : f32 to vector<16x32xf32>
    %605 = arith.addf %604, %603 : vector<16x32xf32>
    %606 = arith.divf %604, %605 : vector<16x32xf32>
    %607 = arith.mulf %600, %606 : vector<16x32xf32>
    %608 = arith.addf %607, %594 : vector<16x32xf32>
    %c0_210 = arith.constant 0 : index
    %c0_211 = arith.constant 0 : index
    %609 = vector.load %arg16[%c0_210, %c0_211] : memref<1x32xf32, #tpu.memory_space<vmem>>, vector<1x32xf32>
    %c0_212 = arith.constant 0 : index
    %c0_213 = arith.constant 0 : index
    %610 = vector.load %arg17[%c0_212, %c0_213] : memref<1x32xf32, #tpu.memory_space<vmem>>, vector<1x32xf32>
    %cst_214 = arith.constant dense<0.000000e+00> : vector<16xf32>
    %611 = vector.multi_reduction <add>, %608, %cst_214 [1] : vector<16x32xf32> to vector<16xf32>
    %612 = vector.shape_cast %611 : vector<16xf32> to vector<16x1xf32>
    %cst_215 = arith.constant 3.200000e+01 : f32
    %613 = vector.broadcast %cst_215 : f32 to vector<16x1xf32>
    %614 = arith.divf %612, %613 : vector<16x1xf32>
    %615 = vector.broadcast %614 : vector<16x1xf32> to vector<16x32xf32>
    %616 = arith.subf %608, %615 : vector<16x32xf32>
    %617 = arith.mulf %616, %616 : vector<16x32xf32>
    %cst_216 = arith.constant dense<0.000000e+00> : vector<16xf32>
    %618 = vector.multi_reduction <add>, %617, %cst_216 [1] : vector<16x32xf32> to vector<16xf32>
    %619 = vector.shape_cast %618 : vector<16xf32> to vector<16x1xf32>
    %cst_217 = arith.constant 3.200000e+01 : f32
    %620 = vector.broadcast %cst_217 : f32 to vector<16x1xf32>
    %621 = arith.divf %619, %620 : vector<16x1xf32>
    %622 = vector.broadcast %614 : vector<16x1xf32> to vector<16x32xf32>
    %623 = arith.subf %608, %622 : vector<16x32xf32>
    %cst_218 = arith.constant 9.99999974E-6 : f32
    %624 = vector.broadcast %cst_218 : f32 to vector<16x1xf32>
    %625 = arith.addf %621, %624 : vector<16x1xf32>
    %626 = math.rsqrt %625 : vector<16x1xf32>
    %627 = vector.broadcast %626 : vector<16x1xf32> to vector<16x32xf32>
    %628 = arith.mulf %623, %627 : vector<16x32xf32>
    %629 = vector.broadcast %609 : vector<1x32xf32> to vector<16x32xf32>
    %630 = arith.mulf %628, %629 : vector<16x32xf32>
    %631 = vector.broadcast %610 : vector<1x32xf32> to vector<16x32xf32>
    %632 = arith.addf %630, %631 : vector<16x32xf32>
    %c0_219 = arith.constant 0 : index
    %c0_220 = arith.constant 0 : index
    %c0_221 = arith.constant 0 : index
    %633 = vector.load %arg47[%c0_219, %c0_220, %c0_221] : memref<2x4x32xf32, #tpu.memory_space<vmem>>, vector<2x4x32xf32>
    %634 = vector.shape_cast %633 : vector<2x4x32xf32> to vector<8x32xf32>
    %c0_222 = arith.constant 0 : index
    %c0_223 = arith.constant 0 : index
    %635 = vector.load %arg1[%c0_222, %c0_223] : memref<8x32xf32, #tpu.memory_space<vmem>>, vector<8x32xf32>
    %c0_224 = arith.constant 0 : index
    %c0_225 = arith.constant 0 : index
    %636 = vector.load %arg14[%c0_224, %c0_225] : memref<32x64xf32, #tpu.memory_space<vmem>>, vector<32x64xf32>
    %cst_226 = arith.constant dense<0.000000e+00> : vector<8x64xf32>
    %637 = tpu.matmul %634, %636, %cst_226 {dimension_numbers = #tpu.dot_dimension_numbers<[1], [0], [0], [1], [0, 0, 1, 1], [], []>} : vector<8x32xf32>, vector<32x64xf32>, vector<8x64xf32> -> vector<8x64xf32>
    %c0_227 = arith.constant 0 : index
    %c0_228 = arith.constant 0 : index
    %638 = vector.load %arg15[%c0_227, %c0_228] : memref<1x64xf32, #tpu.memory_space<vmem>>, vector<1x64xf32>
    %639 = vector.broadcast %638 : vector<1x64xf32> to vector<8x64xf32>
    %640 = arith.addf %637, %639 : vector<8x64xf32>
    %641 = vector.extract_strided_slice %640 {offsets = [0, 0], sizes = [8, 32], strides = [1, 1]} : vector<8x64xf32> to vector<8x32xf32>
    %642 = vector.extract_strided_slice %640 {offsets = [0, 32], sizes = [8, 32], strides = [1, 1]} : vector<8x64xf32> to vector<8x32xf32>
    %643 = arith.negf %642 : vector<8x32xf32>
    %644 = math.exp %643 : vector<8x32xf32>
    %cst_229 = arith.constant 1.000000e+00 : f32
    %645 = vector.broadcast %cst_229 : f32 to vector<8x32xf32>
    %646 = arith.addf %645, %644 : vector<8x32xf32>
    %647 = arith.divf %645, %646 : vector<8x32xf32>
    %648 = arith.mulf %641, %647 : vector<8x32xf32>
    %649 = arith.addf %648, %635 : vector<8x32xf32>
    %c0_230 = arith.constant 0 : index
    %c0_231 = arith.constant 0 : index
    %650 = vector.load %arg16[%c0_230, %c0_231] : memref<1x32xf32, #tpu.memory_space<vmem>>, vector<1x32xf32>
    %c0_232 = arith.constant 0 : index
    %c0_233 = arith.constant 0 : index
    %651 = vector.load %arg17[%c0_232, %c0_233] : memref<1x32xf32, #tpu.memory_space<vmem>>, vector<1x32xf32>
    %cst_234 = arith.constant dense<0.000000e+00> : vector<8xf32>
    %652 = vector.multi_reduction <add>, %649, %cst_234 [1] : vector<8x32xf32> to vector<8xf32>
    %653 = vector.shape_cast %652 : vector<8xf32> to vector<8x1xf32>
    %cst_235 = arith.constant 3.200000e+01 : f32
    %654 = vector.broadcast %cst_235 : f32 to vector<8x1xf32>
    %655 = arith.divf %653, %654 : vector<8x1xf32>
    %656 = vector.broadcast %655 : vector<8x1xf32> to vector<8x32xf32>
    %657 = arith.subf %649, %656 : vector<8x32xf32>
    %658 = arith.mulf %657, %657 : vector<8x32xf32>
    %cst_236 = arith.constant dense<0.000000e+00> : vector<8xf32>
    %659 = vector.multi_reduction <add>, %658, %cst_236 [1] : vector<8x32xf32> to vector<8xf32>
    %660 = vector.shape_cast %659 : vector<8xf32> to vector<8x1xf32>
    %cst_237 = arith.constant 3.200000e+01 : f32
    %661 = vector.broadcast %cst_237 : f32 to vector<8x1xf32>
    %662 = arith.divf %660, %661 : vector<8x1xf32>
    %663 = vector.broadcast %655 : vector<8x1xf32> to vector<8x32xf32>
    %664 = arith.subf %649, %663 : vector<8x32xf32>
    %cst_238 = arith.constant 9.99999974E-6 : f32
    %665 = vector.broadcast %cst_238 : f32 to vector<8x1xf32>
    %666 = arith.addf %662, %665 : vector<8x1xf32>
    %667 = math.rsqrt %666 : vector<8x1xf32>
    %668 = vector.broadcast %667 : vector<8x1xf32> to vector<8x32xf32>
    %669 = arith.mulf %664, %668 : vector<8x32xf32>
    %670 = vector.broadcast %650 : vector<1x32xf32> to vector<8x32xf32>
    %671 = arith.mulf %669, %670 : vector<8x32xf32>
    %672 = vector.broadcast %651 : vector<1x32xf32> to vector<8x32xf32>
    %673 = arith.addf %671, %672 : vector<8x32xf32>
    %c0_239 = arith.constant 0 : index
    %c0_240 = arith.constant 0 : index
    %674 = vector.load %arg18[%c0_239, %c0_240] : memref<32x32xf32, #tpu.memory_space<vmem>>, vector<32x32xf32>
    %cst_241 = arith.constant dense<0.000000e+00> : vector<8x32xf32>
    %675 = tpu.matmul %673, %674, %cst_241 {dimension_numbers = #tpu.dot_dimension_numbers<[1], [0], [0], [1], [0, 0, 1, 1], [], []>} : vector<8x32xf32>, vector<32x32xf32>, vector<8x32xf32> -> vector<8x32xf32>
    %c0_242 = arith.constant 0 : index
    %c0_243 = arith.constant 0 : index
    %676 = vector.load %arg19[%c0_242, %c0_243] : memref<1x32xf32, #tpu.memory_space<vmem>>, vector<1x32xf32>
    %677 = vector.broadcast %676 : vector<1x32xf32> to vector<8x32xf32>
    %678 = arith.addf %675, %677 : vector<8x32xf32>
    %c0_244 = arith.constant 0 : index
    %c0_245 = arith.constant 0 : index
    %679 = vector.load %arg20[%c0_244, %c0_245] : memref<32x32xf32, #tpu.memory_space<vmem>>, vector<32x32xf32>
    %cst_246 = arith.constant dense<0.000000e+00> : vector<16x32xf32>
    %680 = tpu.matmul %632, %679, %cst_246 {dimension_numbers = #tpu.dot_dimension_numbers<[1], [0], [0], [1], [0, 0, 1, 1], [], []>} : vector<16x32xf32>, vector<32x32xf32>, vector<16x32xf32> -> vector<16x32xf32>
    %c0_247 = arith.constant 0 : index
    %c0_248 = arith.constant 0 : index
    %681 = vector.load %arg21[%c0_247, %c0_248] : memref<1x32xf32, #tpu.memory_space<vmem>>, vector<1x32xf32>
    %682 = vector.broadcast %681 : vector<1x32xf32> to vector<16x32xf32>
    %683 = arith.addf %680, %682 : vector<16x32xf32>
    %c0_249 = arith.constant 0 : index
    %c0_250 = arith.constant 0 : index
    %684 = vector.load %arg20[%c0_249, %c0_250] : memref<32x32xf32, #tpu.memory_space<vmem>>, vector<32x32xf32>
    %cst_251 = arith.constant dense<0.000000e+00> : vector<8x32xf32>
    %685 = tpu.matmul %673, %684, %cst_251 {dimension_numbers = #tpu.dot_dimension_numbers<[1], [0], [0], [1], [0, 0, 1, 1], [], []>} : vector<8x32xf32>, vector<32x32xf32>, vector<8x32xf32> -> vector<8x32xf32>
    %c0_252 = arith.constant 0 : index
    %c0_253 = arith.constant 0 : index
    %686 = vector.load %arg21[%c0_252, %c0_253] : memref<1x32xf32, #tpu.memory_space<vmem>>, vector<1x32xf32>
    %687 = vector.broadcast %686 : vector<1x32xf32> to vector<8x32xf32>
    %688 = arith.addf %685, %687 : vector<8x32xf32>
    %c0_254 = arith.constant 0 : index
    %c0_255 = arith.constant 0 : index
    %689 = vector.load %arg22[%c0_254, %c0_255] : memref<32x8xf32, #tpu.memory_space<vmem>>, vector<32x8xf32>
    %cst_256 = arith.constant dense<0.000000e+00> : vector<16x8xf32>
    %690 = tpu.matmul %632, %689, %cst_256 {dimension_numbers = #tpu.dot_dimension_numbers<[1], [0], [0], [1], [0, 0, 1, 1], [], []>} : vector<16x32xf32>, vector<32x8xf32>, vector<16x8xf32> -> vector<16x8xf32>
    %c0_257 = arith.constant 0 : index
    %c0_258 = arith.constant 0 : index
    %691 = vector.load %arg23[%c0_257, %c0_258] : memref<1x8xf32, #tpu.memory_space<vmem>>, vector<1x8xf32>
    %692 = vector.broadcast %691 : vector<1x8xf32> to vector<16x8xf32>
    %693 = arith.addf %690, %692 : vector<16x8xf32>
    %694 = vector.shape_cast %693 : vector<16x8xf32> to vector<2x8x8xf32>
    %c0_259 = arith.constant 0 : index
    %c0_260 = arith.constant 0 : index
    %695 = vector.load %arg22[%c0_259, %c0_260] : memref<32x8xf32, #tpu.memory_space<vmem>>, vector<32x8xf32>
    %cst_261 = arith.constant dense<0.000000e+00> : vector<8x8xf32>
    %696 = tpu.matmul %673, %695, %cst_261 {dimension_numbers = #tpu.dot_dimension_numbers<[1], [0], [0], [1], [0, 0, 1, 1], [], []>} : vector<8x32xf32>, vector<32x8xf32>, vector<8x8xf32> -> vector<8x8xf32>
    %c0_262 = arith.constant 0 : index
    %c0_263 = arith.constant 0 : index
    %697 = vector.load %arg23[%c0_262, %c0_263] : memref<1x8xf32, #tpu.memory_space<vmem>>, vector<1x8xf32>
    %698 = vector.broadcast %697 : vector<1x8xf32> to vector<8x8xf32>
    %699 = arith.addf %696, %698 : vector<8x8xf32>
    %700 = vector.shape_cast %699 : vector<8x8xf32> to vector<2x4x8xf32>
    %701 = tpu.iota {dimensions = array<i32: 0>} : vector<4x4xi32>
    %702 = tpu.iota {dimensions = array<i32: 1>} : vector<4x4xi32>
    %703 = arith.cmpi sge, %702, %701 : vector<4x4xi32>
    %cst_264 = arith.constant -1.000000e+09 : f32
    %cst_265 = arith.constant 0.000000e+00 : f32
    %704 = vector.broadcast %cst_264 : f32 to vector<4x4xf32>
    %705 = vector.broadcast %cst_265 : f32 to vector<4x4xf32>
    %706 = arith.select %703, %704, %705 : vector<4x4xi1>, vector<4x4xf32>
    %cst_266 = arith.constant 0.000000e+00 : f32
    %707 = vector.broadcast %cst_266 : f32 to vector<2x4x8xf32>
    %708 = vector.extract_strided_slice %678 {offsets = [0, 0], sizes = [8, 8], strides = [1, 1]} : vector<8x32xf32> to vector<8x8xf32>
    %709 = vector.shape_cast %708 : vector<8x8xf32> to vector<2x4x8xf32>
    %710 = vector.extract_strided_slice %683 {offsets = [0, 0], sizes = [16, 8], strides = [1, 1]} : vector<16x32xf32> to vector<16x8xf32>
    %711 = vector.shape_cast %710 : vector<16x8xf32> to vector<2x8x8xf32>
    %712 = vector.extract_strided_slice %688 {offsets = [0, 0], sizes = [8, 8], strides = [1, 1]} : vector<8x32xf32> to vector<8x8xf32>
    %713 = vector.shape_cast %712 : vector<8x8xf32> to vector<2x4x8xf32>
    "tpu.trace_start"() <{level = 10 : i32, message = "bqe,bke->bqk"}> : () -> ()
    %cst_267 = arith.constant dense<0.000000e+00> : vector<2x4x8xf32>
    %714 = tpu.matmul %709, %711, %cst_267 {dimension_numbers = #tpu.dot_dimension_numbers<[2], [2], [1], [1], [0, 0, 0, 1, 1, 1], [0], [0]>} : vector<2x4x8xf32>, vector<2x8x8xf32>, vector<2x4x8xf32> -> vector<2x4x8xf32>
    "tpu.trace_stop"() : () -> ()
    %cst_268 = arith.constant 0.353553385 : f32
    %715 = vector.broadcast %cst_268 : f32 to vector<2x4x8xf32>
    %716 = arith.mulf %714, %715 : vector<2x4x8xf32>
    "tpu.trace_start"() <{level = 10 : i32, message = "bqe,bke->bqk"}> : () -> ()
    %cst_269 = arith.constant dense<0.000000e+00> : vector<2x4x4xf32>
    %717 = tpu.matmul %709, %713, %cst_269 {dimension_numbers = #tpu.dot_dimension_numbers<[2], [2], [1], [1], [0, 0, 0, 1, 1, 1], [0], [0]>} : vector<2x4x8xf32>, vector<2x4x8xf32>, vector<2x4x4xf32> -> vector<2x4x4xf32>
    "tpu.trace_stop"() : () -> ()
    %cst_270 = arith.constant 0.353553385 : f32
    %718 = vector.broadcast %cst_270 : f32 to vector<2x4x4xf32>
    %719 = arith.mulf %717, %718 : vector<2x4x4xf32>
    %720 = vector.shape_cast %706 : vector<4x4xf32> to vector<1x4x4xf32>
    %721 = vector.broadcast %720 : vector<1x4x4xf32> to vector<2x4x4xf32>
    %722 = arith.addf %719, %721 : vector<2x4x4xf32>
    %cst_271 = arith.constant dense<0xFF800000> : vector<2x4xf32>
    %723 = vector.multi_reduction <maximumf>, %716, %cst_271 [2] : vector<2x4x8xf32> to vector<2x4xf32>
    %724 = vector.shape_cast %723 : vector<2x4xf32> to vector<2x4x1xf32>
    %cst_272 = arith.constant dense<0xFF800000> : vector<2x4xf32>
    %725 = vector.multi_reduction <maximumf>, %722, %cst_272 [2] : vector<2x4x4xf32> to vector<2x4xf32>
    %726 = vector.shape_cast %725 : vector<2x4xf32> to vector<2x4x1xf32>
    %727 = arith.maximumf %724, %726 : vector<2x4x1xf32>
    %728 = vector.broadcast %727 : vector<2x4x1xf32> to vector<2x4x8xf32>
    %729 = arith.subf %716, %728 : vector<2x4x8xf32>
    %730 = math.exp %729 : vector<2x4x8xf32>
    %731 = vector.broadcast %727 : vector<2x4x1xf32> to vector<2x4x4xf32>
    %732 = arith.subf %722, %731 : vector<2x4x4xf32>
    %733 = math.exp %732 : vector<2x4x4xf32>
    %cst_273 = arith.constant dense<0.000000e+00> : vector<2x4xf32>
    %734 = vector.multi_reduction <add>, %730, %cst_273 [2] : vector<2x4x8xf32> to vector<2x4xf32>
    %735 = vector.shape_cast %734 : vector<2x4xf32> to vector<2x4x1xf32>
    %cst_274 = arith.constant dense<0.000000e+00> : vector<2x4xf32>
    %736 = vector.multi_reduction <add>, %733, %cst_274 [2] : vector<2x4x4xf32> to vector<2x4xf32>
    %737 = vector.shape_cast %736 : vector<2x4xf32> to vector<2x4x1xf32>
    %738 = arith.addf %735, %737 : vector<2x4x1xf32>
    %cst_275 = arith.constant 1.000000e+00 : f32
    %739 = vector.broadcast %cst_275 : f32 to vector<2x4x1xf32>
    %740 = arith.divf %739, %738 : vector<2x4x1xf32>
    %741 = vector.broadcast %740 : vector<2x4x1xf32> to vector<2x4x8xf32>
    %742 = arith.mulf %730, %741 : vector<2x4x8xf32>
    %743 = vector.broadcast %740 : vector<2x4x1xf32> to vector<2x4x4xf32>
    %744 = arith.mulf %733, %743 : vector<2x4x4xf32>
    "tpu.trace_start"() <{level = 10 : i32, message = "bqk,bke->bqe"}> : () -> ()
    %cst_276 = arith.constant dense<0.000000e+00> : vector<2x4x8xf32>
    %745 = tpu.matmul %742, %694, %cst_276 {dimension_numbers = #tpu.dot_dimension_numbers<[2], [1], [1], [2], [0, 0, 0, 1, 1, 2], [0], [0]>} : vector<2x4x8xf32>, vector<2x8x8xf32>, vector<2x4x8xf32> -> vector<2x4x8xf32>
    "tpu.trace_stop"() : () -> ()
    %746 = arith.addf %707, %745 : vector<2x4x8xf32>
    "tpu.trace_start"() <{level = 10 : i32, message = "bqk,bke->bqe"}> : () -> ()
    %cst_277 = arith.constant dense<0.000000e+00> : vector<2x4x8xf32>
    %747 = tpu.matmul %744, %700, %cst_277 {dimension_numbers = #tpu.dot_dimension_numbers<[2], [1], [1], [2], [0, 0, 0, 1, 1, 2], [0], [0]>} : vector<2x4x4xf32>, vector<2x4x8xf32>, vector<2x4x8xf32> -> vector<2x4x8xf32>
    "tpu.trace_stop"() : () -> ()
    %748 = arith.addf %746, %747 : vector<2x4x8xf32>
    %749 = vector.shape_cast %742 : vector<2x4x8xf32> to vector<8x8xf32>
    %750 = vector.shape_cast %744 : vector<2x4x4xf32> to vector<8x4xf32>
    %751 = vector.extract_strided_slice %678 {offsets = [0, 8], sizes = [8, 8], strides = [1, 1]} : vector<8x32xf32> to vector<8x8xf32>
    %752 = vector.shape_cast %751 : vector<8x8xf32> to vector<2x4x8xf32>
    %753 = vector.extract_strided_slice %683 {offsets = [0, 8], sizes = [16, 8], strides = [1, 1]} : vector<16x32xf32> to vector<16x8xf32>
    %754 = vector.shape_cast %753 : vector<16x8xf32> to vector<2x8x8xf32>
    %755 = vector.extract_strided_slice %688 {offsets = [0, 8], sizes = [8, 8], strides = [1, 1]} : vector<8x32xf32> to vector<8x8xf32>
    %756 = vector.shape_cast %755 : vector<8x8xf32> to vector<2x4x8xf32>
    "tpu.trace_start"() <{level = 10 : i32, message = "bqe,bke->bqk"}> : () -> ()
    %cst_278 = arith.constant dense<0.000000e+00> : vector<2x4x8xf32>
    %757 = tpu.matmul %752, %754, %cst_278 {dimension_numbers = #tpu.dot_dimension_numbers<[2], [2], [1], [1], [0, 0, 0, 1, 1, 1], [0], [0]>} : vector<2x4x8xf32>, vector<2x8x8xf32>, vector<2x4x8xf32> -> vector<2x4x8xf32>
    "tpu.trace_stop"() : () -> ()
    %cst_279 = arith.constant 0.353553385 : f32
    %758 = vector.broadcast %cst_279 : f32 to vector<2x4x8xf32>
    %759 = arith.mulf %757, %758 : vector<2x4x8xf32>
    "tpu.trace_start"() <{level = 10 : i32, message = "bqe,bke->bqk"}> : () -> ()
    %cst_280 = arith.constant dense<0.000000e+00> : vector<2x4x4xf32>
    %760 = tpu.matmul %752, %756, %cst_280 {dimension_numbers = #tpu.dot_dimension_numbers<[2], [2], [1], [1], [0, 0, 0, 1, 1, 1], [0], [0]>} : vector<2x4x8xf32>, vector<2x4x8xf32>, vector<2x4x4xf32> -> vector<2x4x4xf32>
    "tpu.trace_stop"() : () -> ()
    %cst_281 = arith.constant 0.353553385 : f32
    %761 = vector.broadcast %cst_281 : f32 to vector<2x4x4xf32>
    %762 = arith.mulf %760, %761 : vector<2x4x4xf32>
    %763 = vector.shape_cast %706 : vector<4x4xf32> to vector<1x4x4xf32>
    %764 = vector.broadcast %763 : vector<1x4x4xf32> to vector<2x4x4xf32>
    %765 = arith.addf %762, %764 : vector<2x4x4xf32>
    %cst_282 = arith.constant dense<0xFF800000> : vector<2x4xf32>
    %766 = vector.multi_reduction <maximumf>, %759, %cst_282 [2] : vector<2x4x8xf32> to vector<2x4xf32>
    %767 = vector.shape_cast %766 : vector<2x4xf32> to vector<2x4x1xf32>
    %cst_283 = arith.constant dense<0xFF800000> : vector<2x4xf32>
    %768 = vector.multi_reduction <maximumf>, %765, %cst_283 [2] : vector<2x4x4xf32> to vector<2x4xf32>
    %769 = vector.shape_cast %768 : vector<2x4xf32> to vector<2x4x1xf32>
    %770 = arith.maximumf %767, %769 : vector<2x4x1xf32>
    %771 = vector.broadcast %770 : vector<2x4x1xf32> to vector<2x4x8xf32>
    %772 = arith.subf %759, %771 : vector<2x4x8xf32>
    %773 = math.exp %772 : vector<2x4x8xf32>
    %774 = vector.broadcast %770 : vector<2x4x1xf32> to vector<2x4x4xf32>
    %775 = arith.subf %765, %774 : vector<2x4x4xf32>
    %776 = math.exp %775 : vector<2x4x4xf32>
    %cst_284 = arith.constant dense<0.000000e+00> : vector<2x4xf32>
    %777 = vector.multi_reduction <add>, %773, %cst_284 [2] : vector<2x4x8xf32> to vector<2x4xf32>
    %778 = vector.shape_cast %777 : vector<2x4xf32> to vector<2x4x1xf32>
    %cst_285 = arith.constant dense<0.000000e+00> : vector<2x4xf32>
    %779 = vector.multi_reduction <add>, %776, %cst_285 [2] : vector<2x4x4xf32> to vector<2x4xf32>
    %780 = vector.shape_cast %779 : vector<2x4xf32> to vector<2x4x1xf32>
    %781 = arith.addf %778, %780 : vector<2x4x1xf32>
    %cst_286 = arith.constant 1.000000e+00 : f32
    %782 = vector.broadcast %cst_286 : f32 to vector<2x4x1xf32>
    %783 = arith.divf %782, %781 : vector<2x4x1xf32>
    %784 = vector.broadcast %783 : vector<2x4x1xf32> to vector<2x4x8xf32>
    %785 = arith.mulf %773, %784 : vector<2x4x8xf32>
    %786 = vector.broadcast %783 : vector<2x4x1xf32> to vector<2x4x4xf32>
    %787 = arith.mulf %776, %786 : vector<2x4x4xf32>
    "tpu.trace_start"() <{level = 10 : i32, message = "bqk,bke->bqe"}> : () -> ()
    %cst_287 = arith.constant dense<0.000000e+00> : vector<2x4x8xf32>
    %788 = tpu.matmul %785, %694, %cst_287 {dimension_numbers = #tpu.dot_dimension_numbers<[2], [1], [1], [2], [0, 0, 0, 1, 1, 2], [0], [0]>} : vector<2x4x8xf32>, vector<2x8x8xf32>, vector<2x4x8xf32> -> vector<2x4x8xf32>
    "tpu.trace_stop"() : () -> ()
    %789 = arith.addf %748, %788 : vector<2x4x8xf32>
    "tpu.trace_start"() <{level = 10 : i32, message = "bqk,bke->bqe"}> : () -> ()
    %cst_288 = arith.constant dense<0.000000e+00> : vector<2x4x8xf32>
    %790 = tpu.matmul %787, %700, %cst_288 {dimension_numbers = #tpu.dot_dimension_numbers<[2], [1], [1], [2], [0, 0, 0, 1, 1, 2], [0], [0]>} : vector<2x4x4xf32>, vector<2x4x8xf32>, vector<2x4x8xf32> -> vector<2x4x8xf32>
    "tpu.trace_stop"() : () -> ()
    %791 = arith.addf %789, %790 : vector<2x4x8xf32>
    %792 = vector.shape_cast %785 : vector<2x4x8xf32> to vector<8x8xf32>
    %793 = vector.shape_cast %787 : vector<2x4x4xf32> to vector<8x4xf32>
    %794 = vector.extract_strided_slice %678 {offsets = [0, 16], sizes = [8, 8], strides = [1, 1]} : vector<8x32xf32> to vector<8x8xf32>
    %795 = vector.shape_cast %794 : vector<8x8xf32> to vector<2x4x8xf32>
    %796 = vector.extract_strided_slice %683 {offsets = [0, 16], sizes = [16, 8], strides = [1, 1]} : vector<16x32xf32> to vector<16x8xf32>
    %797 = vector.shape_cast %796 : vector<16x8xf32> to vector<2x8x8xf32>
    %798 = vector.extract_strided_slice %688 {offsets = [0, 16], sizes = [8, 8], strides = [1, 1]} : vector<8x32xf32> to vector<8x8xf32>
    %799 = vector.shape_cast %798 : vector<8x8xf32> to vector<2x4x8xf32>
    "tpu.trace_start"() <{level = 10 : i32, message = "bqe,bke->bqk"}> : () -> ()
    %cst_289 = arith.constant dense<0.000000e+00> : vector<2x4x8xf32>
    %800 = tpu.matmul %795, %797, %cst_289 {dimension_numbers = #tpu.dot_dimension_numbers<[2], [2], [1], [1], [0, 0, 0, 1, 1, 1], [0], [0]>} : vector<2x4x8xf32>, vector<2x8x8xf32>, vector<2x4x8xf32> -> vector<2x4x8xf32>
    "tpu.trace_stop"() : () -> ()
    %cst_290 = arith.constant 0.353553385 : f32
    %801 = vector.broadcast %cst_290 : f32 to vector<2x4x8xf32>
    %802 = arith.mulf %800, %801 : vector<2x4x8xf32>
    "tpu.trace_start"() <{level = 10 : i32, message = "bqe,bke->bqk"}> : () -> ()
    %cst_291 = arith.constant dense<0.000000e+00> : vector<2x4x4xf32>
    %803 = tpu.matmul %795, %799, %cst_291 {dimension_numbers = #tpu.dot_dimension_numbers<[2], [2], [1], [1], [0, 0, 0, 1, 1, 1], [0], [0]>} : vector<2x4x8xf32>, vector<2x4x8xf32>, vector<2x4x4xf32> -> vector<2x4x4xf32>
    "tpu.trace_stop"() : () -> ()
    %cst_292 = arith.constant 0.353553385 : f32
    %804 = vector.broadcast %cst_292 : f32 to vector<2x4x4xf32>
    %805 = arith.mulf %803, %804 : vector<2x4x4xf32>
    %806 = vector.shape_cast %706 : vector<4x4xf32> to vector<1x4x4xf32>
    %807 = vector.broadcast %806 : vector<1x4x4xf32> to vector<2x4x4xf32>
    %808 = arith.addf %805, %807 : vector<2x4x4xf32>
    %cst_293 = arith.constant dense<0xFF800000> : vector<2x4xf32>
    %809 = vector.multi_reduction <maximumf>, %802, %cst_293 [2] : vector<2x4x8xf32> to vector<2x4xf32>
    %810 = vector.shape_cast %809 : vector<2x4xf32> to vector<2x4x1xf32>
    %cst_294 = arith.constant dense<0xFF800000> : vector<2x4xf32>
    %811 = vector.multi_reduction <maximumf>, %808, %cst_294 [2] : vector<2x4x4xf32> to vector<2x4xf32>
    %812 = vector.shape_cast %811 : vector<2x4xf32> to vector<2x4x1xf32>
    %813 = arith.maximumf %810, %812 : vector<2x4x1xf32>
    %814 = vector.broadcast %813 : vector<2x4x1xf32> to vector<2x4x8xf32>
    %815 = arith.subf %802, %814 : vector<2x4x8xf32>
    %816 = math.exp %815 : vector<2x4x8xf32>
    %817 = vector.broadcast %813 : vector<2x4x1xf32> to vector<2x4x4xf32>
    %818 = arith.subf %808, %817 : vector<2x4x4xf32>
    %819 = math.exp %818 : vector<2x4x4xf32>
    %cst_295 = arith.constant dense<0.000000e+00> : vector<2x4xf32>
    %820 = vector.multi_reduction <add>, %816, %cst_295 [2] : vector<2x4x8xf32> to vector<2x4xf32>
    %821 = vector.shape_cast %820 : vector<2x4xf32> to vector<2x4x1xf32>
    %cst_296 = arith.constant dense<0.000000e+00> : vector<2x4xf32>
    %822 = vector.multi_reduction <add>, %819, %cst_296 [2] : vector<2x4x4xf32> to vector<2x4xf32>
    %823 = vector.shape_cast %822 : vector<2x4xf32> to vector<2x4x1xf32>
    %824 = arith.addf %821, %823 : vector<2x4x1xf32>
    %cst_297 = arith.constant 1.000000e+00 : f32
    %825 = vector.broadcast %cst_297 : f32 to vector<2x4x1xf32>
    %826 = arith.divf %825, %824 : vector<2x4x1xf32>
    %827 = vector.broadcast %826 : vector<2x4x1xf32> to vector<2x4x8xf32>
    %828 = arith.mulf %816, %827 : vector<2x4x8xf32>
    %829 = vector.broadcast %826 : vector<2x4x1xf32> to vector<2x4x4xf32>
    %830 = arith.mulf %819, %829 : vector<2x4x4xf32>
    "tpu.trace_start"() <{level = 10 : i32, message = "bqk,bke->bqe"}> : () -> ()
    %cst_298 = arith.constant dense<0.000000e+00> : vector<2x4x8xf32>
    %831 = tpu.matmul %828, %694, %cst_298 {dimension_numbers = #tpu.dot_dimension_numbers<[2], [1], [1], [2], [0, 0, 0, 1, 1, 2], [0], [0]>} : vector<2x4x8xf32>, vector<2x8x8xf32>, vector<2x4x8xf32> -> vector<2x4x8xf32>
    "tpu.trace_stop"() : () -> ()
    %832 = arith.addf %791, %831 : vector<2x4x8xf32>
    "tpu.trace_start"() <{level = 10 : i32, message = "bqk,bke->bqe"}> : () -> ()
    %cst_299 = arith.constant dense<0.000000e+00> : vector<2x4x8xf32>
    %833 = tpu.matmul %830, %700, %cst_299 {dimension_numbers = #tpu.dot_dimension_numbers<[2], [1], [1], [2], [0, 0, 0, 1, 1, 2], [0], [0]>} : vector<2x4x4xf32>, vector<2x4x8xf32>, vector<2x4x8xf32> -> vector<2x4x8xf32>
    "tpu.trace_stop"() : () -> ()
    %834 = arith.addf %832, %833 : vector<2x4x8xf32>
    %835 = vector.shape_cast %828 : vector<2x4x8xf32> to vector<8x8xf32>
    %836 = vector.shape_cast %830 : vector<2x4x4xf32> to vector<8x4xf32>
    %837 = vector.extract_strided_slice %678 {offsets = [0, 24], sizes = [8, 8], strides = [1, 1]} : vector<8x32xf32> to vector<8x8xf32>
    %838 = vector.shape_cast %837 : vector<8x8xf32> to vector<2x4x8xf32>
    %839 = vector.extract_strided_slice %683 {offsets = [0, 24], sizes = [16, 8], strides = [1, 1]} : vector<16x32xf32> to vector<16x8xf32>
    %840 = vector.shape_cast %839 : vector<16x8xf32> to vector<2x8x8xf32>
    %841 = vector.extract_strided_slice %688 {offsets = [0, 24], sizes = [8, 8], strides = [1, 1]} : vector<8x32xf32> to vector<8x8xf32>
    %842 = vector.shape_cast %841 : vector<8x8xf32> to vector<2x4x8xf32>
    "tpu.trace_start"() <{level = 10 : i32, message = "bqe,bke->bqk"}> : () -> ()
    %cst_300 = arith.constant dense<0.000000e+00> : vector<2x4x8xf32>
    %843 = tpu.matmul %838, %840, %cst_300 {dimension_numbers = #tpu.dot_dimension_numbers<[2], [2], [1], [1], [0, 0, 0, 1, 1, 1], [0], [0]>} : vector<2x4x8xf32>, vector<2x8x8xf32>, vector<2x4x8xf32> -> vector<2x4x8xf32>
    "tpu.trace_stop"() : () -> ()
    %cst_301 = arith.constant 0.353553385 : f32
    %844 = vector.broadcast %cst_301 : f32 to vector<2x4x8xf32>
    %845 = arith.mulf %843, %844 : vector<2x4x8xf32>
    "tpu.trace_start"() <{level = 10 : i32, message = "bqe,bke->bqk"}> : () -> ()
    %cst_302 = arith.constant dense<0.000000e+00> : vector<2x4x4xf32>
    %846 = tpu.matmul %838, %842, %cst_302 {dimension_numbers = #tpu.dot_dimension_numbers<[2], [2], [1], [1], [0, 0, 0, 1, 1, 1], [0], [0]>} : vector<2x4x8xf32>, vector<2x4x8xf32>, vector<2x4x4xf32> -> vector<2x4x4xf32>
    "tpu.trace_stop"() : () -> ()
    %cst_303 = arith.constant 0.353553385 : f32
    %847 = vector.broadcast %cst_303 : f32 to vector<2x4x4xf32>
    %848 = arith.mulf %846, %847 : vector<2x4x4xf32>
    %849 = vector.shape_cast %706 : vector<4x4xf32> to vector<1x4x4xf32>
    %850 = vector.broadcast %849 : vector<1x4x4xf32> to vector<2x4x4xf32>
    %851 = arith.addf %848, %850 : vector<2x4x4xf32>
    %cst_304 = arith.constant dense<0xFF800000> : vector<2x4xf32>
    %852 = vector.multi_reduction <maximumf>, %845, %cst_304 [2] : vector<2x4x8xf32> to vector<2x4xf32>
    %853 = vector.shape_cast %852 : vector<2x4xf32> to vector<2x4x1xf32>
    %cst_305 = arith.constant dense<0xFF800000> : vector<2x4xf32>
    %854 = vector.multi_reduction <maximumf>, %851, %cst_305 [2] : vector<2x4x4xf32> to vector<2x4xf32>
    %855 = vector.shape_cast %854 : vector<2x4xf32> to vector<2x4x1xf32>
    %856 = arith.maximumf %853, %855 : vector<2x4x1xf32>
    %857 = vector.broadcast %856 : vector<2x4x1xf32> to vector<2x4x8xf32>
    %858 = arith.subf %845, %857 : vector<2x4x8xf32>
    %859 = math.exp %858 : vector<2x4x8xf32>
    %860 = vector.broadcast %856 : vector<2x4x1xf32> to vector<2x4x4xf32>
    %861 = arith.subf %851, %860 : vector<2x4x4xf32>
    %862 = math.exp %861 : vector<2x4x4xf32>
    %cst_306 = arith.constant dense<0.000000e+00> : vector<2x4xf32>
    %863 = vector.multi_reduction <add>, %859, %cst_306 [2] : vector<2x4x8xf32> to vector<2x4xf32>
    %864 = vector.shape_cast %863 : vector<2x4xf32> to vector<2x4x1xf32>
    %cst_307 = arith.constant dense<0.000000e+00> : vector<2x4xf32>
    %865 = vector.multi_reduction <add>, %862, %cst_307 [2] : vector<2x4x4xf32> to vector<2x4xf32>
    %866 = vector.shape_cast %865 : vector<2x4xf32> to vector<2x4x1xf32>
    %867 = arith.addf %864, %866 : vector<2x4x1xf32>
    %cst_308 = arith.constant 1.000000e+00 : f32
    %868 = vector.broadcast %cst_308 : f32 to vector<2x4x1xf32>
    %869 = arith.divf %868, %867 : vector<2x4x1xf32>
    %870 = vector.broadcast %869 : vector<2x4x1xf32> to vector<2x4x8xf32>
    %871 = arith.mulf %859, %870 : vector<2x4x8xf32>
    %872 = vector.broadcast %869 : vector<2x4x1xf32> to vector<2x4x4xf32>
    %873 = arith.mulf %862, %872 : vector<2x4x4xf32>
    "tpu.trace_start"() <{level = 10 : i32, message = "bqk,bke->bqe"}> : () -> ()
    %cst_309 = arith.constant dense<0.000000e+00> : vector<2x4x8xf32>
    %874 = tpu.matmul %871, %694, %cst_309 {dimension_numbers = #tpu.dot_dimension_numbers<[2], [1], [1], [2], [0, 0, 0, 1, 1, 2], [0], [0]>} : vector<2x4x8xf32>, vector<2x8x8xf32>, vector<2x4x8xf32> -> vector<2x4x8xf32>
    "tpu.trace_stop"() : () -> ()
    %875 = arith.addf %834, %874 : vector<2x4x8xf32>
    "tpu.trace_start"() <{level = 10 : i32, message = "bqk,bke->bqe"}> : () -> ()
    %cst_310 = arith.constant dense<0.000000e+00> : vector<2x4x8xf32>
    %876 = tpu.matmul %873, %700, %cst_310 {dimension_numbers = #tpu.dot_dimension_numbers<[2], [1], [1], [2], [0, 0, 0, 1, 1, 2], [0], [0]>} : vector<2x4x4xf32>, vector<2x4x8xf32>, vector<2x4x8xf32> -> vector<2x4x8xf32>
    "tpu.trace_stop"() : () -> ()
    %877 = arith.addf %875, %876 : vector<2x4x8xf32>
    %878 = vector.shape_cast %871 : vector<2x4x8xf32> to vector<8x8xf32>
    %879 = vector.shape_cast %873 : vector<2x4x4xf32> to vector<8x4xf32>
    %880 = tpu.concatenate %749, %750, %792, %793, %835, %836, %878, %879 in 1 : vector<8x8xf32>, vector<8x4xf32>, vector<8x8xf32>, vector<8x4xf32>, vector<8x8xf32>, vector<8x4xf32>, vector<8x8xf32>, vector<8x4xf32> -> vector<8x48xf32>
    %c0_311 = arith.constant 0 : index
    %c0_312 = arith.constant 0 : index
    %881 = vector.load %arg45[%c0_311, %c0_312] : memref<8x48xf32, #tpu.memory_space<vmem>>, vector<8x48xf32>
    tpu.vector_store %arg45[%c0_311, %c0_312], %880 {strides = array<i32>} : memref<8x48xf32, #tpu.memory_space<vmem>>, vector<8x48xf32>,
    %882 = vector.shape_cast %877 : vector<2x4x8xf32> to vector<8x8xf32>
    %cst_313 = arith.constant 2.500000e-01 : f32
    %883 = vector.broadcast %cst_313 : f32 to vector<8x8xf32>
    %884 = arith.mulf %882, %883 : vector<8x8xf32>
    %c0_314 = arith.constant 0 : index
    %c0_315 = arith.constant 0 : index
    %885 = vector.load %arg24[%c0_314, %c0_315] : memref<8x32xf32, #tpu.memory_space<vmem>>, vector<8x32xf32>
    %cst_316 = arith.constant dense<0.000000e+00> : vector<8x32xf32>
    %886 = tpu.matmul %884, %885, %cst_316 {dimension_numbers = #tpu.dot_dimension_numbers<[1], [0], [0], [1], [0, 0, 1, 1], [], []>} : vector<8x8xf32>, vector<8x32xf32>, vector<8x32xf32> -> vector<8x32xf32>
    %c0_317 = arith.constant 0 : index
    %c0_318 = arith.constant 0 : index
    %887 = vector.load %arg25[%c0_317, %c0_318] : memref<1x32xf32, #tpu.memory_space<vmem>>, vector<1x32xf32>
    %888 = vector.broadcast %887 : vector<1x32xf32> to vector<8x32xf32>
    %889 = arith.addf %886, %888 : vector<8x32xf32>
    %c0_319 = arith.constant 0 : index
    %c0_320 = arith.constant 0 : index
    %890 = vector.load %arg26[%c0_319, %c0_320] : memref<32x64xf32, #tpu.memory_space<vmem>>, vector<32x64xf32>
    %cst_321 = arith.constant dense<0.000000e+00> : vector<8x64xf32>
    %891 = tpu.matmul %889, %890, %cst_321 {dimension_numbers = #tpu.dot_dimension_numbers<[1], [0], [0], [1], [0, 0, 1, 1], [], []>} : vector<8x32xf32>, vector<32x64xf32>, vector<8x64xf32> -> vector<8x64xf32>
    %c0_322 = arith.constant 0 : index
    %c0_323 = arith.constant 0 : index
    %892 = vector.load %arg27[%c0_322, %c0_323] : memref<1x64xf32, #tpu.memory_space<vmem>>, vector<1x64xf32>
    %893 = vector.broadcast %892 : vector<1x64xf32> to vector<8x64xf32>
    %894 = arith.addf %891, %893 : vector<8x64xf32>
    %895 = vector.extract_strided_slice %894 {offsets = [0, 0], sizes = [8, 32], strides = [1, 1]} : vector<8x64xf32> to vector<8x32xf32>
    %896 = vector.extract_strided_slice %894 {offsets = [0, 32], sizes = [8, 32], strides = [1, 1]} : vector<8x64xf32> to vector<8x32xf32>
    %897 = arith.negf %896 : vector<8x32xf32>
    %898 = math.exp %897 : vector<8x32xf32>
    %cst_324 = arith.constant 1.000000e+00 : f32
    %899 = vector.broadcast %cst_324 : f32 to vector<8x32xf32>
    %900 = arith.addf %899, %898 : vector<8x32xf32>
    %901 = arith.divf %899, %900 : vector<8x32xf32>
    %902 = arith.mulf %895, %901 : vector<8x32xf32>
    %903 = arith.addf %902, %673 : vector<8x32xf32>
    %c0_325 = arith.constant 0 : index
    %c0_326 = arith.constant 0 : index
    %904 = vector.load %arg28[%c0_325, %c0_326] : memref<1x32xf32, #tpu.memory_space<vmem>>, vector<1x32xf32>
    %c0_327 = arith.constant 0 : index
    %c0_328 = arith.constant 0 : index
    %905 = vector.load %arg29[%c0_327, %c0_328] : memref<1x32xf32, #tpu.memory_space<vmem>>, vector<1x32xf32>
    %cst_329 = arith.constant dense<0.000000e+00> : vector<8xf32>
    %906 = vector.multi_reduction <add>, %903, %cst_329 [1] : vector<8x32xf32> to vector<8xf32>
    %907 = vector.shape_cast %906 : vector<8xf32> to vector<8x1xf32>
    %cst_330 = arith.constant 3.200000e+01 : f32
    %908 = vector.broadcast %cst_330 : f32 to vector<8x1xf32>
    %909 = arith.divf %907, %908 : vector<8x1xf32>
    %910 = vector.broadcast %909 : vector<8x1xf32> to vector<8x32xf32>
    %911 = arith.subf %903, %910 : vector<8x32xf32>
    %912 = arith.mulf %911, %911 : vector<8x32xf32>
    %cst_331 = arith.constant dense<0.000000e+00> : vector<8xf32>
    %913 = vector.multi_reduction <add>, %912, %cst_331 [1] : vector<8x32xf32> to vector<8xf32>
    %914 = vector.shape_cast %913 : vector<8xf32> to vector<8x1xf32>
    %cst_332 = arith.constant 3.200000e+01 : f32
    %915 = vector.broadcast %cst_332 : f32 to vector<8x1xf32>
    %916 = arith.divf %914, %915 : vector<8x1xf32>
    %917 = vector.broadcast %909 : vector<8x1xf32> to vector<8x32xf32>
    %918 = arith.subf %903, %917 : vector<8x32xf32>
    %cst_333 = arith.constant 9.99999974E-6 : f32
    %919 = vector.broadcast %cst_333 : f32 to vector<8x1xf32>
    %920 = arith.addf %916, %919 : vector<8x1xf32>
    %921 = math.rsqrt %920 : vector<8x1xf32>
    %922 = vector.broadcast %921 : vector<8x1xf32> to vector<8x32xf32>
    %923 = arith.mulf %918, %922 : vector<8x32xf32>
    %924 = vector.broadcast %904 : vector<1x32xf32> to vector<8x32xf32>
    %925 = arith.mulf %923, %924 : vector<8x32xf32>
    %926 = vector.broadcast %905 : vector<1x32xf32> to vector<8x32xf32>
    %927 = arith.addf %925, %926 : vector<8x32xf32>
    %c0_334 = arith.constant 0 : index
    %c0_335 = arith.constant 0 : index
    %928 = vector.load %arg30[%c0_334, %c0_335] : memref<32x32xf32, #tpu.memory_space<vmem>>, vector<32x32xf32>
    %cst_336 = arith.constant dense<0.000000e+00> : vector<8x32xf32>
    %929 = tpu.matmul %927, %928, %cst_336 {dimension_numbers = #tpu.dot_dimension_numbers<[1], [0], [0], [1], [0, 0, 1, 1], [], []>} : vector<8x32xf32>, vector<32x32xf32>, vector<8x32xf32> -> vector<8x32xf32>
    %c0_337 = arith.constant 0 : index
    %c0_338 = arith.constant 0 : index
    %930 = vector.load %arg31[%c0_337, %c0_338] : memref<1x32xf32, #tpu.memory_space<vmem>>, vector<1x32xf32>
    %931 = vector.broadcast %930 : vector<1x32xf32> to vector<8x32xf32>
    %932 = arith.addf %929, %931 : vector<8x32xf32>
    %cst_339 = arith.constant 0.000000e+00 : f32
    %933 = vector.broadcast %cst_339 : f32 to vector<8x32xf32>
    %934 = arith.cmpf ogt, %932, %933 : vector<8x32xf32>
    %cst_340 = arith.constant 0.000000e+00 : f32
    %935 = vector.broadcast %cst_340 : f32 to vector<8x32xf32>
    %936 = arith.minimumf %932, %935 : vector<8x32xf32>
    %937 = math.exp %936 : vector<8x32xf32>
    %cst_341 = arith.constant 1.000000e+00 : f32
    %938 = vector.broadcast %cst_341 : f32 to vector<8x32xf32>
    %939 = arith.subf %937, %938 : vector<8x32xf32>
    %940 = arith.select %934, %932, %939 : vector<8x32xi1>, vector<8x32xf32>
    %c0_342 = arith.constant 0 : index
    %c0_343 = arith.constant 0 : index
    %941 = vector.load %arg32[%c0_342, %c0_343] : memref<32x32xf32, #tpu.memory_space<vmem>>, vector<32x32xf32>
    %cst_344 = arith.constant dense<0.000000e+00> : vector<8x32xf32>
    %942 = tpu.matmul %940, %941, %cst_344 {dimension_numbers = #tpu.dot_dimension_numbers<[1], [0], [0], [1], [0, 0, 1, 1], [], []>} : vector<8x32xf32>, vector<32x32xf32>, vector<8x32xf32> -> vector<8x32xf32>
    %c0_345 = arith.constant 0 : index
    %c0_346 = arith.constant 0 : index
    %943 = vector.load %arg33[%c0_345, %c0_346] : memref<1x32xf32, #tpu.memory_space<vmem>>, vector<1x32xf32>
    %944 = vector.broadcast %943 : vector<1x32xf32> to vector<8x32xf32>
    %945 = arith.addf %942, %944 : vector<8x32xf32>
    %c0_347 = arith.constant 0 : index
    %c0_348 = arith.constant 0 : index
    %946 = vector.load %arg34[%c0_347, %c0_348] : memref<32x64xf32, #tpu.memory_space<vmem>>, vector<32x64xf32>
    %cst_349 = arith.constant dense<0.000000e+00> : vector<8x64xf32>
    %947 = tpu.matmul %945, %946, %cst_349 {dimension_numbers = #tpu.dot_dimension_numbers<[1], [0], [0], [1], [0, 0, 1, 1], [], []>} : vector<8x32xf32>, vector<32x64xf32>, vector<8x64xf32> -> vector<8x64xf32>
    %c0_350 = arith.constant 0 : index
    %c0_351 = arith.constant 0 : index
    %948 = vector.load %arg35[%c0_350, %c0_351] : memref<1x64xf32, #tpu.memory_space<vmem>>, vector<1x64xf32>
    %949 = vector.broadcast %948 : vector<1x64xf32> to vector<8x64xf32>
    %950 = arith.addf %947, %949 : vector<8x64xf32>
    %951 = vector.extract_strided_slice %950 {offsets = [0, 0], sizes = [8, 32], strides = [1, 1]} : vector<8x64xf32> to vector<8x32xf32>
    %952 = vector.extract_strided_slice %950 {offsets = [0, 32], sizes = [8, 32], strides = [1, 1]} : vector<8x64xf32> to vector<8x32xf32>
    %953 = arith.negf %952 : vector<8x32xf32>
    %954 = math.exp %953 : vector<8x32xf32>
    %cst_352 = arith.constant 1.000000e+00 : f32
    %955 = vector.broadcast %cst_352 : f32 to vector<8x32xf32>
    %956 = arith.addf %955, %954 : vector<8x32xf32>
    %957 = arith.divf %955, %956 : vector<8x32xf32>
    %958 = arith.mulf %951, %957 : vector<8x32xf32>
    %959 = arith.addf %958, %927 : vector<8x32xf32>
    %c0_353 = arith.constant 0 : index
    %c0_354 = arith.constant 0 : index
    %960 = vector.load %arg36[%c0_353, %c0_354] : memref<1x32xf32, #tpu.memory_space<vmem>>, vector<1x32xf32>
    %c0_355 = arith.constant 0 : index
    %c0_356 = arith.constant 0 : index
    %961 = vector.load %arg37[%c0_355, %c0_356] : memref<1x32xf32, #tpu.memory_space<vmem>>, vector<1x32xf32>
    %cst_357 = arith.constant dense<0.000000e+00> : vector<8xf32>
    %962 = vector.multi_reduction <add>, %959, %cst_357 [1] : vector<8x32xf32> to vector<8xf32>
    %963 = vector.shape_cast %962 : vector<8xf32> to vector<8x1xf32>
    %cst_358 = arith.constant 3.200000e+01 : f32
    %964 = vector.broadcast %cst_358 : f32 to vector<8x1xf32>
    %965 = arith.divf %963, %964 : vector<8x1xf32>
    %966 = vector.broadcast %965 : vector<8x1xf32> to vector<8x32xf32>
    %967 = arith.subf %959, %966 : vector<8x32xf32>
    %968 = arith.mulf %967, %967 : vector<8x32xf32>
    %cst_359 = arith.constant dense<0.000000e+00> : vector<8xf32>
    %969 = vector.multi_reduction <add>, %968, %cst_359 [1] : vector<8x32xf32> to vector<8xf32>
    %970 = vector.shape_cast %969 : vector<8xf32> to vector<8x1xf32>
    %cst_360 = arith.constant 3.200000e+01 : f32
    %971 = vector.broadcast %cst_360 : f32 to vector<8x1xf32>
    %972 = arith.divf %970, %971 : vector<8x1xf32>
    %973 = vector.broadcast %965 : vector<8x1xf32> to vector<8x32xf32>
    %974 = arith.subf %959, %973 : vector<8x32xf32>
    %cst_361 = arith.constant 9.99999974E-6 : f32
    %975 = vector.broadcast %cst_361 : f32 to vector<8x1xf32>
    %976 = arith.addf %972, %975 : vector<8x1xf32>
    %977 = math.rsqrt %976 : vector<8x1xf32>
    %978 = vector.broadcast %977 : vector<8x1xf32> to vector<8x32xf32>
    %979 = arith.mulf %974, %978 : vector<8x32xf32>
    %980 = vector.broadcast %960 : vector<1x32xf32> to vector<8x32xf32>
    %981 = arith.mulf %979, %980 : vector<8x32xf32>
    %982 = vector.broadcast %961 : vector<1x32xf32> to vector<8x32xf32>
    %983 = arith.addf %981, %982 : vector<8x32xf32>
    %c0_362 = arith.constant 0 : index
    %c0_363 = arith.constant 0 : index
    %984 = vector.load %arg38[%c0_362, %c0_363] : memref<32x64xf32, #tpu.memory_space<vmem>>, vector<32x64xf32>
    %cst_364 = arith.constant dense<0.000000e+00> : vector<8x64xf32>
    %985 = tpu.matmul %983, %984, %cst_364 {dimension_numbers = #tpu.dot_dimension_numbers<[1], [0], [0], [1], [0, 0, 1, 1], [], []>} : vector<8x32xf32>, vector<32x64xf32>, vector<8x64xf32> -> vector<8x64xf32>
    %c0_365 = arith.constant 0 : index
    %c0_366 = arith.constant 0 : index
    %986 = vector.load %arg39[%c0_365, %c0_366] : memref<1x64xf32, #tpu.memory_space<vmem>>, vector<1x64xf32>
    %987 = vector.broadcast %986 : vector<1x64xf32> to vector<8x64xf32>
    %988 = arith.addf %985, %987 : vector<8x64xf32>
    %989 = vector.extract_strided_slice %988 {offsets = [0, 0], sizes = [8, 32], strides = [1, 1]} : vector<8x64xf32> to vector<8x32xf32>
    %990 = vector.extract_strided_slice %988 {offsets = [0, 32], sizes = [8, 32], strides = [1, 1]} : vector<8x64xf32> to vector<8x32xf32>
    %991 = arith.negf %990 : vector<8x32xf32>
    %992 = math.exp %991 : vector<8x32xf32>
    %cst_367 = arith.constant 1.000000e+00 : f32
    %993 = vector.broadcast %cst_367 : f32 to vector<8x32xf32>
    %994 = arith.addf %993, %992 : vector<8x32xf32>
    %995 = arith.divf %993, %994 : vector<8x32xf32>
    %996 = arith.mulf %989, %995 : vector<8x32xf32>
    %997 = arith.addf %996, %673 : vector<8x32xf32>
    %c0_368 = arith.constant 0 : index
    %c0_369 = arith.constant 0 : index
    %998 = vector.load %arg40[%c0_368, %c0_369] : memref<1x32xf32, #tpu.memory_space<vmem>>, vector<1x32xf32>
    %c0_370 = arith.constant 0 : index
    %c0_371 = arith.constant 0 : index
    %999 = vector.load %arg41[%c0_370, %c0_371] : memref<1x32xf32, #tpu.memory_space<vmem>>, vector<1x32xf32>
    %cst_372 = arith.constant dense<0.000000e+00> : vector<8xf32>
    %1000 = vector.multi_reduction <add>, %997, %cst_372 [1] : vector<8x32xf32> to vector<8xf32>
    %1001 = vector.shape_cast %1000 : vector<8xf32> to vector<8x1xf32>
    %cst_373 = arith.constant 3.200000e+01 : f32
    %1002 = vector.broadcast %cst_373 : f32 to vector<8x1xf32>
    %1003 = arith.divf %1001, %1002 : vector<8x1xf32>
    %1004 = vector.broadcast %1003 : vector<8x1xf32> to vector<8x32xf32>
    %1005 = arith.subf %997, %1004 : vector<8x32xf32>
    %1006 = arith.mulf %1005, %1005 : vector<8x32xf32>
    %cst_374 = arith.constant dense<0.000000e+00> : vector<8xf32>
    %1007 = vector.multi_reduction <add>, %1006, %cst_374 [1] : vector<8x32xf32> to vector<8xf32>
    %1008 = vector.shape_cast %1007 : vector<8xf32> to vector<8x1xf32>
    %cst_375 = arith.constant 3.200000e+01 : f32
    %1009 = vector.broadcast %cst_375 : f32 to vector<8x1xf32>
    %1010 = arith.divf %1008, %1009 : vector<8x1xf32>
    %1011 = vector.broadcast %1003 : vector<8x1xf32> to vector<8x32xf32>
    %1012 = arith.subf %997, %1011 : vector<8x32xf32>
    %cst_376 = arith.constant 9.99999974E-6 : f32
    %1013 = vector.broadcast %cst_376 : f32 to vector<8x1xf32>
    %1014 = arith.addf %1010, %1013 : vector<8x1xf32>
    %1015 = math.rsqrt %1014 : vector<8x1xf32>
    %1016 = vector.broadcast %1015 : vector<8x1xf32> to vector<8x32xf32>
    %1017 = arith.mulf %1012, %1016 : vector<8x32xf32>
    %1018 = vector.broadcast %998 : vector<1x32xf32> to vector<8x32xf32>
    %1019 = arith.mulf %1017, %1018 : vector<8x32xf32>
    %1020 = vector.broadcast %999 : vector<1x32xf32> to vector<8x32xf32>
    %1021 = arith.addf %1019, %1020 : vector<8x32xf32>
    %c0_377 = arith.constant 0 : index
    %c0_378 = arith.constant 0 : index
    %1022 = vector.load %arg42[%c0_377, %c0_378] : memref<32x7xf32, #tpu.memory_space<vmem>>, vector<32x7xf32>
    %cst_379 = arith.constant dense<0.000000e+00> : vector<8x7xf32>
    %1023 = tpu.matmul %1021, %1022, %cst_379 {dimension_numbers = #tpu.dot_dimension_numbers<[1], [0], [0], [1], [0, 0, 1, 1], [], []>} : vector<8x32xf32>, vector<32x7xf32>, vector<8x7xf32> -> vector<8x7xf32>
    %c0_380 = arith.constant 0 : index
    %c0_381 = arith.constant 0 : index
    %1024 = vector.load %arg43[%c0_380, %c0_381] : memref<1x7xf32, #tpu.memory_space<vmem>>, vector<1x7xf32>
    %1025 = vector.broadcast %1024 : vector<1x7xf32> to vector<8x7xf32>
    %1026 = arith.addf %1023, %1025 : vector<8x7xf32>
    %c0_382 = arith.constant 0 : index
    %c0_383 = arith.constant 0 : index
    %1027 = vector.load %arg44[%c0_382, %c0_383] : memref<8x7xf32, #tpu.memory_space<vmem>>, vector<8x7xf32>
    tpu.vector_store %arg44[%c0_382, %c0_383], %1026 {strides = array<i32>} : memref<8x7xf32, #tpu.memory_space<vmem>>, vector<8x7xf32>,
    return
  }
}

module attributes {stable_mosaic.version = 11 : i64} {
  func.func @_dual_vs_kernel(%arg0: memref<16x5xf32, #tpu.memory_space<vmem>>, %arg1: memref<8x4xf32, #tpu.memory_space<vmem>>, %arg2: memref<5x40xf32, #tpu.memory_space<vmem>>, %arg3: memref<1x40xf32, #tpu.memory_space<vmem>>, %arg4: memref<40x160xf32, #tpu.memory_space<vmem>>, %arg5: memref<1x160xf32, #tpu.memory_space<vmem>>, %arg6: memref<160x320xf32, #tpu.memory_space<vmem>>, %arg7: memref<1x320xf32, #tpu.memory_space<vmem>>, %arg8: memref<5x160xf32, #tpu.memory_space<vmem>>, %arg9: memref<1x160xf32, #tpu.memory_space<vmem>>, %arg10: memref<1x160xf32, #tpu.memory_space<vmem>>, %arg11: memref<1x160xf32, #tpu.memory_space<vmem>>, %arg12: memref<160x5xf32, #tpu.memory_space<vmem>>, %arg13: memref<5x160xf32, #tpu.memory_space<vmem>>, %arg14: memref<160x32xf32, #tpu.memory_space<vmem>>, %arg15: memref<5x32xf32, #tpu.memory_space<vmem>>, %arg16: memref<1x32xf32, #tpu.memory_space<vmem>>, %arg17: memref<32x5xf32, #tpu.memory_space<vmem>>, %arg18: memref<1x5xf32, #tpu.memory_space<vmem>>, %arg19: memref<5x10xf32, #tpu.memory_space<vmem>>, %arg20: memref<1x10xf32, #tpu.memory_space<vmem>>, %arg21: memref<5x5xf32, #tpu.memory_space<vmem>>, %arg22: memref<1x5xf32, #tpu.memory_space<vmem>>, %arg23: memref<1x5xf32, #tpu.memory_space<vmem>>, %arg24: memref<1x5xf32, #tpu.memory_space<vmem>>, %arg25: memref<4x32xf32, #tpu.memory_space<vmem>>, %arg26: memref<1x32xf32, #tpu.memory_space<vmem>>, %arg27: memref<32x128xf32, #tpu.memory_space<vmem>>, %arg28: memref<1x128xf32, #tpu.memory_space<vmem>>, %arg29: memref<128x256xf32, #tpu.memory_space<vmem>>, %arg30: memref<1x256xf32, #tpu.memory_space<vmem>>, %arg31: memref<4x128xf32, #tpu.memory_space<vmem>>, %arg32: memref<1x128xf32, #tpu.memory_space<vmem>>, %arg33: memref<1x128xf32, #tpu.memory_space<vmem>>, %arg34: memref<1x128xf32, #tpu.memory_space<vmem>>, %arg35: memref<128x4xf32, #tpu.memory_space<vmem>>, %arg36: memref<4x128xf32, #tpu.memory_space<vmem>>, %arg37: memref<128x32xf32, #tpu.memory_space<vmem>>, %arg38: memref<4x32xf32, #tpu.memory_space<vmem>>, %arg39: memref<1x32xf32, #tpu.memory_space<vmem>>, %arg40: memref<32x4xf32, #tpu.memory_space<vmem>>, %arg41: memref<1x4xf32, #tpu.memory_space<vmem>>, %arg42: memref<4x8xf32, #tpu.memory_space<vmem>>, %arg43: memref<1x8xf32, #tpu.memory_space<vmem>>, %arg44: memref<4x4xf32, #tpu.memory_space<vmem>>, %arg45: memref<1x4xf32, #tpu.memory_space<vmem>>, %arg46: memref<1x4xf32, #tpu.memory_space<vmem>>, %arg47: memref<1x4xf32, #tpu.memory_space<vmem>>, %arg48: memref<16x32xf32, #tpu.memory_space<vmem>>, %arg49: memref<16x5xf32, #tpu.memory_space<vmem>>, %arg50: memref<8x32xf32, #tpu.memory_space<vmem>>, %arg51: memref<8x4xf32, #tpu.memory_space<vmem>>) attributes {dimension_semantics = [], scalar_prefetch = 0 : i64, scratch_operands = 0 : i64, tpu.core_type = #tpu.core_type<tc>} {
    %c0 = arith.constant 0 : index
    %c0_0 = arith.constant 0 : index
    %0 = vector.load %arg0[%c0, %c0_0] : memref<16x5xf32, #tpu.memory_space<vmem>>, vector<16x5xf32>
    %c0_1 = arith.constant 0 : index
    %c0_2 = arith.constant 0 : index
    %1 = vector.load %arg2[%c0_1, %c0_2] : memref<5x40xf32, #tpu.memory_space<vmem>>, vector<5x40xf32>
    %cst = arith.constant dense<0.000000e+00> : vector<16x40xf32>
    %2 = tpu.matmul %0, %1, %cst {dimension_numbers = #tpu.dot_dimension_numbers<[1], [0], [0], [1], [0, 0, 1, 1], [], []>} : vector<16x5xf32>, vector<5x40xf32>, vector<16x40xf32> -> vector<16x40xf32>
    %c0_3 = arith.constant 0 : index
    %c0_4 = arith.constant 0 : index
    %3 = vector.load %arg3[%c0_3, %c0_4] : memref<1x40xf32, #tpu.memory_space<vmem>>, vector<1x40xf32>
    %4 = vector.broadcast %3 : vector<1x40xf32> to vector<16x40xf32>
    %5 = arith.addf %2, %4 : vector<16x40xf32>
    %cst_5 = arith.constant 0.000000e+00 : f32
    %6 = vector.broadcast %cst_5 : f32 to vector<16x40xf32>
    %7 = arith.cmpf ogt, %5, %6 : vector<16x40xf32>
    %cst_6 = arith.constant 0.000000e+00 : f32
    %8 = vector.broadcast %cst_6 : f32 to vector<16x40xf32>
    %9 = arith.minimumf %5, %8 : vector<16x40xf32>
    %10 = math.exp %9 : vector<16x40xf32>
    %cst_7 = arith.constant 1.000000e+00 : f32
    %11 = vector.broadcast %cst_7 : f32 to vector<16x40xf32>
    %12 = arith.subf %10, %11 : vector<16x40xf32>
    %13 = arith.select %7, %5, %12 : vector<16x40xi1>, vector<16x40xf32>
    %c0_8 = arith.constant 0 : index
    %c0_9 = arith.constant 0 : index
    %14 = vector.load %arg4[%c0_8, %c0_9] : memref<40x160xf32, #tpu.memory_space<vmem>>, vector<40x160xf32>
    %cst_10 = arith.constant dense<0.000000e+00> : vector<16x160xf32>
    %15 = tpu.matmul %13, %14, %cst_10 {dimension_numbers = #tpu.dot_dimension_numbers<[1], [0], [0], [1], [0, 0, 1, 1], [], []>} : vector<16x40xf32>, vector<40x160xf32>, vector<16x160xf32> -> vector<16x160xf32>
    %c0_11 = arith.constant 0 : index
    %c0_12 = arith.constant 0 : index
    %16 = vector.load %arg5[%c0_11, %c0_12] : memref<1x160xf32, #tpu.memory_space<vmem>>, vector<1x160xf32>
    %17 = vector.broadcast %16 : vector<1x160xf32> to vector<16x160xf32>
    %18 = arith.addf %15, %17 : vector<16x160xf32>
    %c0_13 = arith.constant 0 : index
    %c0_14 = arith.constant 0 : index
    %19 = vector.load %arg6[%c0_13, %c0_14] : memref<160x320xf32, #tpu.memory_space<vmem>>, vector<160x320xf32>
    %cst_15 = arith.constant dense<0.000000e+00> : vector<16x320xf32>
    %20 = tpu.matmul %18, %19, %cst_15 {dimension_numbers = #tpu.dot_dimension_numbers<[1], [0], [0], [1], [0, 0, 1, 1], [], []>} : vector<16x160xf32>, vector<160x320xf32>, vector<16x320xf32> -> vector<16x320xf32>
    %c0_16 = arith.constant 0 : index
    %c0_17 = arith.constant 0 : index
    %21 = vector.load %arg7[%c0_16, %c0_17] : memref<1x320xf32, #tpu.memory_space<vmem>>, vector<1x320xf32>
    %22 = vector.broadcast %21 : vector<1x320xf32> to vector<16x320xf32>
    %23 = arith.addf %20, %22 : vector<16x320xf32>
    %24 = vector.extract_strided_slice %23 {offsets = [0, 0], sizes = [16, 160], strides = [1, 1]} : vector<16x320xf32> to vector<16x160xf32>
    %25 = vector.extract_strided_slice %23 {offsets = [0, 160], sizes = [16, 160], strides = [1, 1]} : vector<16x320xf32> to vector<16x160xf32>
    %26 = arith.negf %25 : vector<16x160xf32>
    %27 = math.exp %26 : vector<16x160xf32>
    %cst_18 = arith.constant 1.000000e+00 : f32
    %28 = vector.broadcast %cst_18 : f32 to vector<16x160xf32>
    %29 = arith.addf %28, %27 : vector<16x160xf32>
    %30 = arith.divf %28, %29 : vector<16x160xf32>
    %31 = arith.mulf %24, %30 : vector<16x160xf32>
    %c0_19 = arith.constant 0 : index
    %c0_20 = arith.constant 0 : index
    %32 = vector.load %arg8[%c0_19, %c0_20] : memref<5x160xf32, #tpu.memory_space<vmem>>, vector<5x160xf32>
    %cst_21 = arith.constant dense<0.000000e+00> : vector<16x160xf32>
    %33 = tpu.matmul %0, %32, %cst_21 {dimension_numbers = #tpu.dot_dimension_numbers<[1], [0], [0], [1], [0, 0, 1, 1], [], []>} : vector<16x5xf32>, vector<5x160xf32>, vector<16x160xf32> -> vector<16x160xf32>
    %34 = arith.addf %31, %33 : vector<16x160xf32>
    %c0_22 = arith.constant 0 : index
    %c0_23 = arith.constant 0 : index
    %35 = vector.load %arg9[%c0_22, %c0_23] : memref<1x160xf32, #tpu.memory_space<vmem>>, vector<1x160xf32>
    %36 = vector.broadcast %35 : vector<1x160xf32> to vector<16x160xf32>
    %37 = arith.addf %34, %36 : vector<16x160xf32>
    %c0_24 = arith.constant 0 : index
    %c0_25 = arith.constant 0 : index
    %38 = vector.load %arg12[%c0_24, %c0_25] : memref<160x5xf32, #tpu.memory_space<vmem>>, vector<160x5xf32>
    %cst_26 = arith.constant dense<0.000000e+00> : vector<16x5xf32>
    %39 = tpu.matmul %37, %38, %cst_26 {dimension_numbers = #tpu.dot_dimension_numbers<[1], [0], [0], [1], [0, 0, 1, 1], [], []>} : vector<16x160xf32>, vector<160x5xf32>, vector<16x5xf32> -> vector<16x5xf32>
    %40 = arith.mulf %37, %37 : vector<16x160xf32>
    %c0_27 = arith.constant 0 : index
    %c0_28 = arith.constant 0 : index
    %41 = vector.load %arg12[%c0_27, %c0_28] : memref<160x5xf32, #tpu.memory_space<vmem>>, vector<160x5xf32>
    %cst_29 = arith.constant dense<0.000000e+00> : vector<16x5xf32>
    %42 = tpu.matmul %40, %41, %cst_29 {dimension_numbers = #tpu.dot_dimension_numbers<[1], [0], [0], [1], [0, 0, 1, 1], [], []>} : vector<16x160xf32>, vector<160x5xf32>, vector<16x5xf32> -> vector<16x5xf32>
    %43 = arith.mulf %39, %39 : vector<16x5xf32>
    %44 = arith.subf %42, %43 : vector<16x5xf32>
    %c0_30 = arith.constant 0 : index
    %c0_31 = arith.constant 0 : index
    %45 = vector.load %arg13[%c0_30, %c0_31] : memref<5x160xf32, #tpu.memory_space<vmem>>, vector<5x160xf32>
    %cst_32 = arith.constant dense<0.000000e+00> : vector<16x160xf32>
    %46 = tpu.matmul %39, %45, %cst_32 {dimension_numbers = #tpu.dot_dimension_numbers<[1], [0], [0], [1], [0, 0, 1, 1], [], []>} : vector<16x5xf32>, vector<5x160xf32>, vector<16x160xf32> -> vector<16x160xf32>
    %c0_33 = arith.constant 0 : index
    %c0_34 = arith.constant 0 : index
    %47 = vector.load %arg13[%c0_33, %c0_34] : memref<5x160xf32, #tpu.memory_space<vmem>>, vector<5x160xf32>
    %cst_35 = arith.constant dense<0.000000e+00> : vector<16x160xf32>
    %48 = tpu.matmul %44, %47, %cst_35 {dimension_numbers = #tpu.dot_dimension_numbers<[1], [0], [0], [1], [0, 0, 1, 1], [], []>} : vector<16x5xf32>, vector<5x160xf32>, vector<16x160xf32> -> vector<16x160xf32>
    %49 = arith.subf %37, %46 : vector<16x160xf32>
    %cst_36 = arith.constant 9.99999974E-6 : f32
    %50 = vector.broadcast %cst_36 : f32 to vector<16x160xf32>
    %51 = arith.addf %48, %50 : vector<16x160xf32>
    %52 = math.rsqrt %51 : vector<16x160xf32>
    %53 = arith.mulf %49, %52 : vector<16x160xf32>
    %c0_37 = arith.constant 0 : index
    %c0_38 = arith.constant 0 : index
    %54 = vector.load %arg10[%c0_37, %c0_38] : memref<1x160xf32, #tpu.memory_space<vmem>>, vector<1x160xf32>
    %55 = vector.broadcast %54 : vector<1x160xf32> to vector<16x160xf32>
    %56 = arith.mulf %53, %55 : vector<16x160xf32>
    %c0_39 = arith.constant 0 : index
    %c0_40 = arith.constant 0 : index
    %57 = vector.load %arg11[%c0_39, %c0_40] : memref<1x160xf32, #tpu.memory_space<vmem>>, vector<1x160xf32>
    %58 = vector.broadcast %57 : vector<1x160xf32> to vector<16x160xf32>
    %59 = arith.addf %56, %58 : vector<16x160xf32>
    %c0_41 = arith.constant 0 : index
    %c0_42 = arith.constant 0 : index
    %60 = vector.load %arg15[%c0_41, %c0_42] : memref<5x32xf32, #tpu.memory_space<vmem>>, vector<5x32xf32>
    %cst_43 = arith.constant dense<0.000000e+00> : vector<16x32xf32>
    %61 = tpu.matmul %0, %60, %cst_43 {dimension_numbers = #tpu.dot_dimension_numbers<[1], [0], [0], [1], [0, 0, 1, 1], [], []>} : vector<16x5xf32>, vector<5x32xf32>, vector<16x32xf32> -> vector<16x32xf32>
    %c0_44 = arith.constant 0 : index
    %c0_45 = arith.constant 0 : index
    %62 = vector.load %arg16[%c0_44, %c0_45] : memref<1x32xf32, #tpu.memory_space<vmem>>, vector<1x32xf32>
    %63 = vector.broadcast %62 : vector<1x32xf32> to vector<16x32xf32>
    %64 = arith.addf %61, %63 : vector<16x32xf32>
    %cst_46 = arith.constant 0.000000e+00 : f32
    %65 = vector.broadcast %cst_46 : f32 to vector<16x32xf32>
    %66 = arith.cmpf ogt, %64, %65 : vector<16x32xf32>
    %cst_47 = arith.constant 0.000000e+00 : f32
    %67 = vector.broadcast %cst_47 : f32 to vector<16x32xf32>
    %68 = arith.minimumf %64, %67 : vector<16x32xf32>
    %69 = math.exp %68 : vector<16x32xf32>
    %cst_48 = arith.constant 1.000000e+00 : f32
    %70 = vector.broadcast %cst_48 : f32 to vector<16x32xf32>
    %71 = arith.subf %69, %70 : vector<16x32xf32>
    %72 = arith.select %66, %64, %71 : vector<16x32xi1>, vector<16x32xf32>
    %c0_49 = arith.constant 0 : index
    %c0_50 = arith.constant 0 : index
    %73 = vector.load %arg17[%c0_49, %c0_50] : memref<32x5xf32, #tpu.memory_space<vmem>>, vector<32x5xf32>
    %cst_51 = arith.constant dense<0.000000e+00> : vector<16x5xf32>
    %74 = tpu.matmul %72, %73, %cst_51 {dimension_numbers = #tpu.dot_dimension_numbers<[1], [0], [0], [1], [0, 0, 1, 1], [], []>} : vector<16x32xf32>, vector<32x5xf32>, vector<16x5xf32> -> vector<16x5xf32>
    %c0_52 = arith.constant 0 : index
    %c0_53 = arith.constant 0 : index
    %75 = vector.load %arg18[%c0_52, %c0_53] : memref<1x5xf32, #tpu.memory_space<vmem>>, vector<1x5xf32>
    %76 = vector.broadcast %75 : vector<1x5xf32> to vector<16x5xf32>
    %77 = arith.addf %74, %76 : vector<16x5xf32>
    %c0_54 = arith.constant 0 : index
    %c0_55 = arith.constant 0 : index
    %78 = vector.load %arg19[%c0_54, %c0_55] : memref<5x10xf32, #tpu.memory_space<vmem>>, vector<5x10xf32>
    %cst_56 = arith.constant dense<0.000000e+00> : vector<16x10xf32>
    %79 = tpu.matmul %77, %78, %cst_56 {dimension_numbers = #tpu.dot_dimension_numbers<[1], [0], [0], [1], [0, 0, 1, 1], [], []>} : vector<16x5xf32>, vector<5x10xf32>, vector<16x10xf32> -> vector<16x10xf32>
    %c0_57 = arith.constant 0 : index
    %c0_58 = arith.constant 0 : index
    %80 = vector.load %arg20[%c0_57, %c0_58] : memref<1x10xf32, #tpu.memory_space<vmem>>, vector<1x10xf32>
    %81 = vector.broadcast %80 : vector<1x10xf32> to vector<16x10xf32>
    %82 = arith.addf %79, %81 : vector<16x10xf32>
    %83 = vector.extract_strided_slice %82 {offsets = [0, 0], sizes = [16, 5], strides = [1, 1]} : vector<16x10xf32> to vector<16x5xf32>
    %84 = vector.extract_strided_slice %82 {offsets = [0, 5], sizes = [16, 5], strides = [1, 1]} : vector<16x10xf32> to vector<16x5xf32>
    %85 = arith.negf %84 : vector<16x5xf32>
    %86 = math.exp %85 : vector<16x5xf32>
    %cst_59 = arith.constant 1.000000e+00 : f32
    %87 = vector.broadcast %cst_59 : f32 to vector<16x5xf32>
    %88 = arith.addf %87, %86 : vector<16x5xf32>
    %89 = arith.divf %87, %88 : vector<16x5xf32>
    %90 = arith.mulf %83, %89 : vector<16x5xf32>
    %c0_60 = arith.constant 0 : index
    %c0_61 = arith.constant 0 : index
    %91 = vector.load %arg21[%c0_60, %c0_61] : memref<5x5xf32, #tpu.memory_space<vmem>>, vector<5x5xf32>
    %cst_62 = arith.constant dense<0.000000e+00> : vector<16x5xf32>
    %92 = tpu.matmul %0, %91, %cst_62 {dimension_numbers = #tpu.dot_dimension_numbers<[1], [0], [0], [1], [0, 0, 1, 1], [], []>} : vector<16x5xf32>, vector<5x5xf32>, vector<16x5xf32> -> vector<16x5xf32>
    %93 = arith.addf %90, %92 : vector<16x5xf32>
    %c0_63 = arith.constant 0 : index
    %c0_64 = arith.constant 0 : index
    %94 = vector.load %arg22[%c0_63, %c0_64] : memref<1x5xf32, #tpu.memory_space<vmem>>, vector<1x5xf32>
    %95 = vector.broadcast %94 : vector<1x5xf32> to vector<16x5xf32>
    %96 = arith.addf %93, %95 : vector<16x5xf32>
    %c0_65 = arith.constant 0 : index
    %c0_66 = arith.constant 0 : index
    %97 = vector.load %arg23[%c0_65, %c0_66] : memref<1x5xf32, #tpu.memory_space<vmem>>, vector<1x5xf32>
    %c0_67 = arith.constant 0 : index
    %c0_68 = arith.constant 0 : index
    %98 = vector.load %arg24[%c0_67, %c0_68] : memref<1x5xf32, #tpu.memory_space<vmem>>, vector<1x5xf32>
    %cst_69 = arith.constant dense<0.000000e+00> : vector<16xf32>
    %99 = vector.multi_reduction <add>, %96, %cst_69 [1] : vector<16x5xf32> to vector<16xf32>
    %100 = vector.shape_cast %99 : vector<16xf32> to vector<16x1xf32>
    %cst_70 = arith.constant 5.000000e+00 : f32
    %101 = vector.broadcast %cst_70 : f32 to vector<16x1xf32>
    %102 = arith.divf %100, %101 : vector<16x1xf32>
    %103 = vector.broadcast %102 : vector<16x1xf32> to vector<16x5xf32>
    %104 = arith.subf %96, %103 : vector<16x5xf32>
    %105 = arith.mulf %104, %104 : vector<16x5xf32>
    %cst_71 = arith.constant dense<0.000000e+00> : vector<16xf32>
    %106 = vector.multi_reduction <add>, %105, %cst_71 [1] : vector<16x5xf32> to vector<16xf32>
    %107 = vector.shape_cast %106 : vector<16xf32> to vector<16x1xf32>
    %cst_72 = arith.constant 5.000000e+00 : f32
    %108 = vector.broadcast %cst_72 : f32 to vector<16x1xf32>
    %109 = arith.divf %107, %108 : vector<16x1xf32>
    %110 = vector.broadcast %102 : vector<16x1xf32> to vector<16x5xf32>
    %111 = arith.subf %96, %110 : vector<16x5xf32>
    %cst_73 = arith.constant 9.99999974E-6 : f32
    %112 = vector.broadcast %cst_73 : f32 to vector<16x1xf32>
    %113 = arith.addf %109, %112 : vector<16x1xf32>
    %114 = math.rsqrt %113 : vector<16x1xf32>
    %115 = vector.broadcast %114 : vector<16x1xf32> to vector<16x5xf32>
    %116 = arith.mulf %111, %115 : vector<16x5xf32>
    %117 = vector.broadcast %97 : vector<1x5xf32> to vector<16x5xf32>
    %118 = arith.mulf %116, %117 : vector<16x5xf32>
    %119 = vector.broadcast %98 : vector<1x5xf32> to vector<16x5xf32>
    %120 = arith.addf %118, %119 : vector<16x5xf32>
    %cst_74 = arith.constant dense<0xFF800000> : vector<16xf32>
    %121 = vector.multi_reduction <maximumf>, %120, %cst_74 [1] : vector<16x5xf32> to vector<16xf32>
    %122 = vector.shape_cast %121 : vector<16xf32> to vector<16x1xf32>
    %123 = vector.broadcast %122 : vector<16x1xf32> to vector<16x5xf32>
    %124 = arith.subf %120, %123 : vector<16x5xf32>
    %125 = math.exp %124 : vector<16x5xf32>
    %cst_75 = arith.constant dense<0.000000e+00> : vector<16xf32>
    %126 = vector.multi_reduction <add>, %125, %cst_75 [1] : vector<16x5xf32> to vector<16xf32>
    %127 = vector.shape_cast %126 : vector<16xf32> to vector<16x1xf32>
    %128 = vector.broadcast %127 : vector<16x1xf32> to vector<16x5xf32>
    %129 = arith.divf %125, %128 : vector<16x5xf32>
    %c0_76 = arith.constant 0 : index
    %c0_77 = arith.constant 0 : index
    %130 = vector.load %arg49[%c0_76, %c0_77] : memref<16x5xf32, #tpu.memory_space<vmem>>, vector<16x5xf32>
    tpu.vector_store %arg49[%c0_76, %c0_77], %129 {strides = array<i32>} : memref<16x5xf32, #tpu.memory_space<vmem>>, vector<16x5xf32>,
    %c0_78 = arith.constant 0 : index
    %c0_79 = arith.constant 0 : index
    %131 = vector.load %arg13[%c0_78, %c0_79] : memref<5x160xf32, #tpu.memory_space<vmem>>, vector<5x160xf32>
    %cst_80 = arith.constant dense<0.000000e+00> : vector<16x160xf32>
    %132 = tpu.matmul %129, %131, %cst_80 {dimension_numbers = #tpu.dot_dimension_numbers<[1], [0], [0], [1], [0, 0, 1, 1], [], []>} : vector<16x5xf32>, vector<5x160xf32>, vector<16x160xf32> -> vector<16x160xf32>
    %133 = arith.mulf %132, %59 : vector<16x160xf32>
    %c0_81 = arith.constant 0 : index
    %c0_82 = arith.constant 0 : index
    %134 = vector.load %arg14[%c0_81, %c0_82] : memref<160x32xf32, #tpu.memory_space<vmem>>, vector<160x32xf32>
    %cst_83 = arith.constant dense<0.000000e+00> : vector<16x32xf32>
    %135 = tpu.matmul %133, %134, %cst_83 {dimension_numbers = #tpu.dot_dimension_numbers<[1], [0], [0], [1], [0, 0, 1, 1], [], []>} : vector<16x160xf32>, vector<160x32xf32>, vector<16x32xf32> -> vector<16x32xf32>
    %c0_84 = arith.constant 0 : index
    %c0_85 = arith.constant 0 : index
    %136 = vector.load %arg48[%c0_84, %c0_85] : memref<16x32xf32, #tpu.memory_space<vmem>>, vector<16x32xf32>
    tpu.vector_store %arg48[%c0_84, %c0_85], %135 {strides = array<i32>} : memref<16x32xf32, #tpu.memory_space<vmem>>, vector<16x32xf32>,
    %c0_86 = arith.constant 0 : index
    %c0_87 = arith.constant 0 : index
    %137 = vector.load %arg1[%c0_86, %c0_87] : memref<8x4xf32, #tpu.memory_space<vmem>>, vector<8x4xf32>
    %c0_88 = arith.constant 0 : index
    %c0_89 = arith.constant 0 : index
    %138 = vector.load %arg25[%c0_88, %c0_89] : memref<4x32xf32, #tpu.memory_space<vmem>>, vector<4x32xf32>
    %cst_90 = arith.constant dense<0.000000e+00> : vector<8x32xf32>
    %139 = tpu.matmul %137, %138, %cst_90 {dimension_numbers = #tpu.dot_dimension_numbers<[1], [0], [0], [1], [0, 0, 1, 1], [], []>} : vector<8x4xf32>, vector<4x32xf32>, vector<8x32xf32> -> vector<8x32xf32>
    %c0_91 = arith.constant 0 : index
    %c0_92 = arith.constant 0 : index
    %140 = vector.load %arg26[%c0_91, %c0_92] : memref<1x32xf32, #tpu.memory_space<vmem>>, vector<1x32xf32>
    %141 = vector.broadcast %140 : vector<1x32xf32> to vector<8x32xf32>
    %142 = arith.addf %139, %141 : vector<8x32xf32>
    %cst_93 = arith.constant 0.000000e+00 : f32
    %143 = vector.broadcast %cst_93 : f32 to vector<8x32xf32>
    %144 = arith.cmpf ogt, %142, %143 : vector<8x32xf32>
    %cst_94 = arith.constant 0.000000e+00 : f32
    %145 = vector.broadcast %cst_94 : f32 to vector<8x32xf32>
    %146 = arith.minimumf %142, %145 : vector<8x32xf32>
    %147 = math.exp %146 : vector<8x32xf32>
    %cst_95 = arith.constant 1.000000e+00 : f32
    %148 = vector.broadcast %cst_95 : f32 to vector<8x32xf32>
    %149 = arith.subf %147, %148 : vector<8x32xf32>
    %150 = arith.select %144, %142, %149 : vector<8x32xi1>, vector<8x32xf32>
    %c0_96 = arith.constant 0 : index
    %c0_97 = arith.constant 0 : index
    %151 = vector.load %arg27[%c0_96, %c0_97] : memref<32x128xf32, #tpu.memory_space<vmem>>, vector<32x128xf32>
    %cst_98 = arith.constant dense<0.000000e+00> : vector<8x128xf32>
    %152 = tpu.matmul %150, %151, %cst_98 {dimension_numbers = #tpu.dot_dimension_numbers<[1], [0], [0], [1], [0, 0, 1, 1], [], []>} : vector<8x32xf32>, vector<32x128xf32>, vector<8x128xf32> -> vector<8x128xf32>
    %c0_99 = arith.constant 0 : index
    %c0_100 = arith.constant 0 : index
    %153 = vector.load %arg28[%c0_99, %c0_100] : memref<1x128xf32, #tpu.memory_space<vmem>>, vector<1x128xf32>
    %154 = vector.broadcast %153 : vector<1x128xf32> to vector<8x128xf32>
    %155 = arith.addf %152, %154 : vector<8x128xf32>
    %c0_101 = arith.constant 0 : index
    %c0_102 = arith.constant 0 : index
    %156 = vector.load %arg29[%c0_101, %c0_102] : memref<128x256xf32, #tpu.memory_space<vmem>>, vector<128x256xf32>
    %cst_103 = arith.constant dense<0.000000e+00> : vector<8x256xf32>
    %157 = tpu.matmul %155, %156, %cst_103 {dimension_numbers = #tpu.dot_dimension_numbers<[1], [0], [0], [1], [0, 0, 1, 1], [], []>} : vector<8x128xf32>, vector<128x256xf32>, vector<8x256xf32> -> vector<8x256xf32>
    %c0_104 = arith.constant 0 : index
    %c0_105 = arith.constant 0 : index
    %158 = vector.load %arg30[%c0_104, %c0_105] : memref<1x256xf32, #tpu.memory_space<vmem>>, vector<1x256xf32>
    %159 = vector.broadcast %158 : vector<1x256xf32> to vector<8x256xf32>
    %160 = arith.addf %157, %159 : vector<8x256xf32>
    %161 = vector.extract_strided_slice %160 {offsets = [0, 0], sizes = [8, 128], strides = [1, 1]} : vector<8x256xf32> to vector<8x128xf32>
    %162 = vector.extract_strided_slice %160 {offsets = [0, 128], sizes = [8, 128], strides = [1, 1]} : vector<8x256xf32> to vector<8x128xf32>
    %163 = arith.negf %162 : vector<8x128xf32>
    %164 = math.exp %163 : vector<8x128xf32>
    %cst_106 = arith.constant 1.000000e+00 : f32
    %165 = vector.broadcast %cst_106 : f32 to vector<8x128xf32>
    %166 = arith.addf %165, %164 : vector<8x128xf32>
    %167 = arith.divf %165, %166 : vector<8x128xf32>
    %168 = arith.mulf %161, %167 : vector<8x128xf32>
    %c0_107 = arith.constant 0 : index
    %c0_108 = arith.constant 0 : index
    %169 = vector.load %arg31[%c0_107, %c0_108] : memref<4x128xf32, #tpu.memory_space<vmem>>, vector<4x128xf32>
    %cst_109 = arith.constant dense<0.000000e+00> : vector<8x128xf32>
    %170 = tpu.matmul %137, %169, %cst_109 {dimension_numbers = #tpu.dot_dimension_numbers<[1], [0], [0], [1], [0, 0, 1, 1], [], []>} : vector<8x4xf32>, vector<4x128xf32>, vector<8x128xf32> -> vector<8x128xf32>
    %171 = arith.addf %168, %170 : vector<8x128xf32>
    %c0_110 = arith.constant 0 : index
    %c0_111 = arith.constant 0 : index
    %172 = vector.load %arg32[%c0_110, %c0_111] : memref<1x128xf32, #tpu.memory_space<vmem>>, vector<1x128xf32>
    %173 = vector.broadcast %172 : vector<1x128xf32> to vector<8x128xf32>
    %174 = arith.addf %171, %173 : vector<8x128xf32>
    %c0_112 = arith.constant 0 : index
    %c0_113 = arith.constant 0 : index
    %175 = vector.load %arg35[%c0_112, %c0_113] : memref<128x4xf32, #tpu.memory_space<vmem>>, vector<128x4xf32>
    %cst_114 = arith.constant dense<0.000000e+00> : vector<8x4xf32>
    %176 = tpu.matmul %174, %175, %cst_114 {dimension_numbers = #tpu.dot_dimension_numbers<[1], [0], [0], [1], [0, 0, 1, 1], [], []>} : vector<8x128xf32>, vector<128x4xf32>, vector<8x4xf32> -> vector<8x4xf32>
    %177 = arith.mulf %174, %174 : vector<8x128xf32>
    %c0_115 = arith.constant 0 : index
    %c0_116 = arith.constant 0 : index
    %178 = vector.load %arg35[%c0_115, %c0_116] : memref<128x4xf32, #tpu.memory_space<vmem>>, vector<128x4xf32>
    %cst_117 = arith.constant dense<0.000000e+00> : vector<8x4xf32>
    %179 = tpu.matmul %177, %178, %cst_117 {dimension_numbers = #tpu.dot_dimension_numbers<[1], [0], [0], [1], [0, 0, 1, 1], [], []>} : vector<8x128xf32>, vector<128x4xf32>, vector<8x4xf32> -> vector<8x4xf32>
    %180 = arith.mulf %176, %176 : vector<8x4xf32>
    %181 = arith.subf %179, %180 : vector<8x4xf32>
    %c0_118 = arith.constant 0 : index
    %c0_119 = arith.constant 0 : index
    %182 = vector.load %arg36[%c0_118, %c0_119] : memref<4x128xf32, #tpu.memory_space<vmem>>, vector<4x128xf32>
    %cst_120 = arith.constant dense<0.000000e+00> : vector<8x128xf32>
    %183 = tpu.matmul %176, %182, %cst_120 {dimension_numbers = #tpu.dot_dimension_numbers<[1], [0], [0], [1], [0, 0, 1, 1], [], []>} : vector<8x4xf32>, vector<4x128xf32>, vector<8x128xf32> -> vector<8x128xf32>
    %c0_121 = arith.constant 0 : index
    %c0_122 = arith.constant 0 : index
    %184 = vector.load %arg36[%c0_121, %c0_122] : memref<4x128xf32, #tpu.memory_space<vmem>>, vector<4x128xf32>
    %cst_123 = arith.constant dense<0.000000e+00> : vector<8x128xf32>
    %185 = tpu.matmul %181, %184, %cst_123 {dimension_numbers = #tpu.dot_dimension_numbers<[1], [0], [0], [1], [0, 0, 1, 1], [], []>} : vector<8x4xf32>, vector<4x128xf32>, vector<8x128xf32> -> vector<8x128xf32>
    %186 = arith.subf %174, %183 : vector<8x128xf32>
    %cst_124 = arith.constant 9.99999974E-6 : f32
    %187 = vector.broadcast %cst_124 : f32 to vector<8x128xf32>
    %188 = arith.addf %185, %187 : vector<8x128xf32>
    %189 = math.rsqrt %188 : vector<8x128xf32>
    %190 = arith.mulf %186, %189 : vector<8x128xf32>
    %c0_125 = arith.constant 0 : index
    %c0_126 = arith.constant 0 : index
    %191 = vector.load %arg33[%c0_125, %c0_126] : memref<1x128xf32, #tpu.memory_space<vmem>>, vector<1x128xf32>
    %192 = vector.broadcast %191 : vector<1x128xf32> to vector<8x128xf32>
    %193 = arith.mulf %190, %192 : vector<8x128xf32>
    %c0_127 = arith.constant 0 : index
    %c0_128 = arith.constant 0 : index
    %194 = vector.load %arg34[%c0_127, %c0_128] : memref<1x128xf32, #tpu.memory_space<vmem>>, vector<1x128xf32>
    %195 = vector.broadcast %194 : vector<1x128xf32> to vector<8x128xf32>
    %196 = arith.addf %193, %195 : vector<8x128xf32>
    %c0_129 = arith.constant 0 : index
    %c0_130 = arith.constant 0 : index
    %197 = vector.load %arg38[%c0_129, %c0_130] : memref<4x32xf32, #tpu.memory_space<vmem>>, vector<4x32xf32>
    %cst_131 = arith.constant dense<0.000000e+00> : vector<8x32xf32>
    %198 = tpu.matmul %137, %197, %cst_131 {dimension_numbers = #tpu.dot_dimension_numbers<[1], [0], [0], [1], [0, 0, 1, 1], [], []>} : vector<8x4xf32>, vector<4x32xf32>, vector<8x32xf32> -> vector<8x32xf32>
    %c0_132 = arith.constant 0 : index
    %c0_133 = arith.constant 0 : index
    %199 = vector.load %arg39[%c0_132, %c0_133] : memref<1x32xf32, #tpu.memory_space<vmem>>, vector<1x32xf32>
    %200 = vector.broadcast %199 : vector<1x32xf32> to vector<8x32xf32>
    %201 = arith.addf %198, %200 : vector<8x32xf32>
    %cst_134 = arith.constant 0.000000e+00 : f32
    %202 = vector.broadcast %cst_134 : f32 to vector<8x32xf32>
    %203 = arith.cmpf ogt, %201, %202 : vector<8x32xf32>
    %cst_135 = arith.constant 0.000000e+00 : f32
    %204 = vector.broadcast %cst_135 : f32 to vector<8x32xf32>
    %205 = arith.minimumf %201, %204 : vector<8x32xf32>
    %206 = math.exp %205 : vector<8x32xf32>
    %cst_136 = arith.constant 1.000000e+00 : f32
    %207 = vector.broadcast %cst_136 : f32 to vector<8x32xf32>
    %208 = arith.subf %206, %207 : vector<8x32xf32>
    %209 = arith.select %203, %201, %208 : vector<8x32xi1>, vector<8x32xf32>
    %c0_137 = arith.constant 0 : index
    %c0_138 = arith.constant 0 : index
    %210 = vector.load %arg40[%c0_137, %c0_138] : memref<32x4xf32, #tpu.memory_space<vmem>>, vector<32x4xf32>
    %cst_139 = arith.constant dense<0.000000e+00> : vector<8x4xf32>
    %211 = tpu.matmul %209, %210, %cst_139 {dimension_numbers = #tpu.dot_dimension_numbers<[1], [0], [0], [1], [0, 0, 1, 1], [], []>} : vector<8x32xf32>, vector<32x4xf32>, vector<8x4xf32> -> vector<8x4xf32>
    %c0_140 = arith.constant 0 : index
    %c0_141 = arith.constant 0 : index
    %212 = vector.load %arg41[%c0_140, %c0_141] : memref<1x4xf32, #tpu.memory_space<vmem>>, vector<1x4xf32>
    %213 = vector.broadcast %212 : vector<1x4xf32> to vector<8x4xf32>
    %214 = arith.addf %211, %213 : vector<8x4xf32>
    %c0_142 = arith.constant 0 : index
    %c0_143 = arith.constant 0 : index
    %215 = vector.load %arg42[%c0_142, %c0_143] : memref<4x8xf32, #tpu.memory_space<vmem>>, vector<4x8xf32>
    %cst_144 = arith.constant dense<0.000000e+00> : vector<8x8xf32>
    %216 = tpu.matmul %214, %215, %cst_144 {dimension_numbers = #tpu.dot_dimension_numbers<[1], [0], [0], [1], [0, 0, 1, 1], [], []>} : vector<8x4xf32>, vector<4x8xf32>, vector<8x8xf32> -> vector<8x8xf32>
    %c0_145 = arith.constant 0 : index
    %c0_146 = arith.constant 0 : index
    %217 = vector.load %arg43[%c0_145, %c0_146] : memref<1x8xf32, #tpu.memory_space<vmem>>, vector<1x8xf32>
    %218 = vector.broadcast %217 : vector<1x8xf32> to vector<8x8xf32>
    %219 = arith.addf %216, %218 : vector<8x8xf32>
    %220 = vector.extract_strided_slice %219 {offsets = [0, 0], sizes = [8, 4], strides = [1, 1]} : vector<8x8xf32> to vector<8x4xf32>
    %221 = vector.extract_strided_slice %219 {offsets = [0, 4], sizes = [8, 4], strides = [1, 1]} : vector<8x8xf32> to vector<8x4xf32>
    %222 = arith.negf %221 : vector<8x4xf32>
    %223 = math.exp %222 : vector<8x4xf32>
    %cst_147 = arith.constant 1.000000e+00 : f32
    %224 = vector.broadcast %cst_147 : f32 to vector<8x4xf32>
    %225 = arith.addf %224, %223 : vector<8x4xf32>
    %226 = arith.divf %224, %225 : vector<8x4xf32>
    %227 = arith.mulf %220, %226 : vector<8x4xf32>
    %c0_148 = arith.constant 0 : index
    %c0_149 = arith.constant 0 : index
    %228 = vector.load %arg44[%c0_148, %c0_149] : memref<4x4xf32, #tpu.memory_space<vmem>>, vector<4x4xf32>
    %cst_150 = arith.constant dense<0.000000e+00> : vector<8x4xf32>
    %229 = tpu.matmul %137, %228, %cst_150 {dimension_numbers = #tpu.dot_dimension_numbers<[1], [0], [0], [1], [0, 0, 1, 1], [], []>} : vector<8x4xf32>, vector<4x4xf32>, vector<8x4xf32> -> vector<8x4xf32>
    %230 = arith.addf %227, %229 : vector<8x4xf32>
    %c0_151 = arith.constant 0 : index
    %c0_152 = arith.constant 0 : index
    %231 = vector.load %arg45[%c0_151, %c0_152] : memref<1x4xf32, #tpu.memory_space<vmem>>, vector<1x4xf32>
    %232 = vector.broadcast %231 : vector<1x4xf32> to vector<8x4xf32>
    %233 = arith.addf %230, %232 : vector<8x4xf32>
    %c0_153 = arith.constant 0 : index
    %c0_154 = arith.constant 0 : index
    %234 = vector.load %arg46[%c0_153, %c0_154] : memref<1x4xf32, #tpu.memory_space<vmem>>, vector<1x4xf32>
    %c0_155 = arith.constant 0 : index
    %c0_156 = arith.constant 0 : index
    %235 = vector.load %arg47[%c0_155, %c0_156] : memref<1x4xf32, #tpu.memory_space<vmem>>, vector<1x4xf32>
    %cst_157 = arith.constant dense<0.000000e+00> : vector<8xf32>
    %236 = vector.multi_reduction <add>, %233, %cst_157 [1] : vector<8x4xf32> to vector<8xf32>
    %237 = vector.shape_cast %236 : vector<8xf32> to vector<8x1xf32>
    %cst_158 = arith.constant 4.000000e+00 : f32
    %238 = vector.broadcast %cst_158 : f32 to vector<8x1xf32>
    %239 = arith.divf %237, %238 : vector<8x1xf32>
    %240 = vector.broadcast %239 : vector<8x1xf32> to vector<8x4xf32>
    %241 = arith.subf %233, %240 : vector<8x4xf32>
    %242 = arith.mulf %241, %241 : vector<8x4xf32>
    %cst_159 = arith.constant dense<0.000000e+00> : vector<8xf32>
    %243 = vector.multi_reduction <add>, %242, %cst_159 [1] : vector<8x4xf32> to vector<8xf32>
    %244 = vector.shape_cast %243 : vector<8xf32> to vector<8x1xf32>
    %cst_160 = arith.constant 4.000000e+00 : f32
    %245 = vector.broadcast %cst_160 : f32 to vector<8x1xf32>
    %246 = arith.divf %244, %245 : vector<8x1xf32>
    %247 = vector.broadcast %239 : vector<8x1xf32> to vector<8x4xf32>
    %248 = arith.subf %233, %247 : vector<8x4xf32>
    %cst_161 = arith.constant 9.99999974E-6 : f32
    %249 = vector.broadcast %cst_161 : f32 to vector<8x1xf32>
    %250 = arith.addf %246, %249 : vector<8x1xf32>
    %251 = math.rsqrt %250 : vector<8x1xf32>
    %252 = vector.broadcast %251 : vector<8x1xf32> to vector<8x4xf32>
    %253 = arith.mulf %248, %252 : vector<8x4xf32>
    %254 = vector.broadcast %234 : vector<1x4xf32> to vector<8x4xf32>
    %255 = arith.mulf %253, %254 : vector<8x4xf32>
    %256 = vector.broadcast %235 : vector<1x4xf32> to vector<8x4xf32>
    %257 = arith.addf %255, %256 : vector<8x4xf32>
    %cst_162 = arith.constant dense<0xFF800000> : vector<8xf32>
    %258 = vector.multi_reduction <maximumf>, %257, %cst_162 [1] : vector<8x4xf32> to vector<8xf32>
    %259 = vector.shape_cast %258 : vector<8xf32> to vector<8x1xf32>
    %260 = vector.broadcast %259 : vector<8x1xf32> to vector<8x4xf32>
    %261 = arith.subf %257, %260 : vector<8x4xf32>
    %262 = math.exp %261 : vector<8x4xf32>
    %cst_163 = arith.constant dense<0.000000e+00> : vector<8xf32>
    %263 = vector.multi_reduction <add>, %262, %cst_163 [1] : vector<8x4xf32> to vector<8xf32>
    %264 = vector.shape_cast %263 : vector<8xf32> to vector<8x1xf32>
    %265 = vector.broadcast %264 : vector<8x1xf32> to vector<8x4xf32>
    %266 = arith.divf %262, %265 : vector<8x4xf32>
    %c0_164 = arith.constant 0 : index
    %c0_165 = arith.constant 0 : index
    %267 = vector.load %arg51[%c0_164, %c0_165] : memref<8x4xf32, #tpu.memory_space<vmem>>, vector<8x4xf32>
    tpu.vector_store %arg51[%c0_164, %c0_165], %266 {strides = array<i32>} : memref<8x4xf32, #tpu.memory_space<vmem>>, vector<8x4xf32>,
    %c0_166 = arith.constant 0 : index
    %c0_167 = arith.constant 0 : index
    %268 = vector.load %arg36[%c0_166, %c0_167] : memref<4x128xf32, #tpu.memory_space<vmem>>, vector<4x128xf32>
    %cst_168 = arith.constant dense<0.000000e+00> : vector<8x128xf32>
    %269 = tpu.matmul %266, %268, %cst_168 {dimension_numbers = #tpu.dot_dimension_numbers<[1], [0], [0], [1], [0, 0, 1, 1], [], []>} : vector<8x4xf32>, vector<4x128xf32>, vector<8x128xf32> -> vector<8x128xf32>
    %270 = arith.mulf %269, %196 : vector<8x128xf32>
    %c0_169 = arith.constant 0 : index
    %c0_170 = arith.constant 0 : index
    %271 = vector.load %arg37[%c0_169, %c0_170] : memref<128x32xf32, #tpu.memory_space<vmem>>, vector<128x32xf32>
    %cst_171 = arith.constant dense<0.000000e+00> : vector<8x32xf32>
    %272 = tpu.matmul %270, %271, %cst_171 {dimension_numbers = #tpu.dot_dimension_numbers<[1], [0], [0], [1], [0, 0, 1, 1], [], []>} : vector<8x128xf32>, vector<128x32xf32>, vector<8x32xf32> -> vector<8x32xf32>
    %c0_172 = arith.constant 0 : index
    %c0_173 = arith.constant 0 : index
    %273 = vector.load %arg50[%c0_172, %c0_173] : memref<8x32xf32, #tpu.memory_space<vmem>>, vector<8x32xf32>
    tpu.vector_store %arg50[%c0_172, %c0_173], %272 {strides = array<i32>} : memref<8x32xf32, #tpu.memory_space<vmem>>, vector<8x32xf32>,
    return
  }
}

</mosaic_0001>

<llo_original>
// kernel: xtft_forward.3
$region0: #{xtft_forward.3}
  #allocation0 [shape = 'u32[]', space=smem, size = 0x4, offset = 0x4, fixed_abs, tag = 'smem constant byte address 0x4 - core index']
  #allocation1 [shape = 'u32[72,128]{1,0:T(1,128)}', space=vmem, size = 0x9000, scoped, tag = 'internal scratch']
  #allocation2 [shape = 'f32[2,8,32]{2,1,0:T(8,128)}', space=vmem, size = 0x2000, scoped, tag = 'scratch operand']
  #allocation3 [shape = 'f32[2,4,32]{2,1,0:T(4,128)}', space=vmem, size = 0x1000, scoped, tag = 'scratch operand']
  %s0 = inlined_call_operand.smem [shape: u32[46], index: -1, kind: input, shape index: {}]
  %s1 = sld [smem:[%s0]]
  %s2 = scalar_lea.smem %s0, 1
  %s3 = sld [smem:[%s2]]
  %s4 = scalar_lea.smem %s0, 2
  %s5 = sld [smem:[%s4]]
  %s6 = scalar_lea.smem %s0, 3
  %s7 = sld [smem:[%s6]]
  %s8 = scalar_lea.smem %s0, 4
  %s9 = sld [smem:[%s8]]
  %s10 = scalar_lea.smem %s0, 5
  %s11 = sld [smem:[%s10]]
  %s12 = scalar_lea.smem %s0, 6
  %s13 = sld [smem:[%s12]]
  %s14 = scalar_lea.smem %s0, 7
  %s15 = sld [smem:[%s14]]
  %s16 = scalar_lea.smem %s0, 8
  %s17 = sld [smem:[%s16]]
  %s18 = scalar_lea.smem %s0, 9
  %s19 = sld [smem:[%s18]]
  %s20 = scalar_lea.smem %s0, 10
  %s21 = sld [smem:[%s20]]
  %s22 = scalar_lea.smem %s0, 11
  %s23 = sld [smem:[%s22]]
  %s24 = scalar_lea.smem %s0, 12
  %s25 = sld [smem:[%s24]]
  %s26 = scalar_lea.smem %s0, 13
  %s27 = sld [smem:[%s26]]
  %s28 = scalar_lea.smem %s0, 14
  %s29 = sld [smem:[%s28]]
  %s30 = scalar_lea.smem %s0, 15
  %s31 = sld [smem:[%s30]]
  %s32 = scalar_lea.smem %s0, 16
  %s33 = sld [smem:[%s32]]
  %s34 = scalar_lea.smem %s0, 17
  %s35 = sld [smem:[%s34]]
  %s36 = scalar_lea.smem %s0, 18
  %s37 = sld [smem:[%s36]]
  %s38 = scalar_lea.smem %s0, 19
  %s39 = sld [smem:[%s38]]
  %s40 = scalar_lea.smem %s0, 20
  %s41 = sld [smem:[%s40]]
  %s42 = scalar_lea.smem %s0, 21
  %s43 = sld [smem:[%s42]]
  %s44 = scalar_lea.smem %s0, 22
  %s45 = sld [smem:[%s44]]
  %s46 = scalar_lea.smem %s0, 23
  %s47 = sld [smem:[%s46]]
  %s48 = scalar_lea.smem %s0, 24
  %s49 = sld [smem:[%s48]]
  %s50 = scalar_lea.smem %s0, 25
  %s51 = sld [smem:[%s50]]
  %s52 = scalar_lea.smem %s0, 26
  %s53 = sld [smem:[%s52]]
  %s54 = scalar_lea.smem %s0, 27
  %s55 = sld [smem:[%s54]]
  %s56 = scalar_lea.smem %s0, 28
  %s57 = sld [smem:[%s56]]
  %s58 = scalar_lea.smem %s0, 29
  %s59 = sld [smem:[%s58]]
  %s60 = scalar_lea.smem %s0, 30
  %s61 = sld [smem:[%s60]]
  %s62 = scalar_lea.smem %s0, 31
  %s63 = sld [smem:[%s62]]
  %s64 = scalar_lea.smem %s0, 32
  %s65 = sld [smem:[%s64]]
  %s66 = scalar_lea.smem %s0, 33
  %s67 = sld [smem:[%s66]]
  %s68 = scalar_lea.smem %s0, 34
  %s69 = sld [smem:[%s68]]
  %s70 = scalar_lea.smem %s0, 35
  %s71 = sld [smem:[%s70]]
  %s72 = scalar_lea.smem %s0, 36
  %s73 = sld [smem:[%s72]]
  %s74 = scalar_lea.smem %s0, 37
  %s75 = sld [smem:[%s74]]
  %s76 = scalar_lea.smem %s0, 38
  %s77 = sld [smem:[%s76]]
  %s78 = scalar_lea.smem %s0, 39
  %s79 = sld [smem:[%s78]]
  %s80 = scalar_lea.smem %s0, 40
  %s81 = sld [smem:[%s80]]
  %s82 = scalar_lea.smem %s0, 41
  %s83 = sld [smem:[%s82]]
  %s84 = scalar_lea.smem %s0, 42
  %s85 = sld [smem:[%s84]]
  %s86 = scalar_lea.smem %s0, 43
  %s87 = sld [smem:[%s86]]
  %s88 = scalar_lea.smem %s0, 44
  %s89 = sld [smem:[%s88]]
  %s90 = scalar_lea.smem %s0, 45
  %s91 = sld [smem:[%s90]]
  %92 = xla_tuple %s89, %s91
  %s93 = sld [smem:[#allocation0]]
  $region306: #{xtft_forward.3} parent=0
    _
  %s95 = ssub.s32 1, %s93
  %s96 = scalar_select 0, %s95, %s93
  $region1: #{xtft_forward.3} parent=0
    #allocation4 [shape = 'u8[512]{0}', space=vmem, size = 0x400, scoped, tag = 'input window, operand 6, single buffered']
    #allocation5 [shape = 's32[1]{0}', space=sflag, size = 0x4, scoped, tag = 'scoped memory for xtft_forward.3']
    #allocation6 [shape = 's32[1]{0}', space=sflag, size = 0x4, scoped, tag = 'scoped memory for xtft_forward.3']
    #allocation7 [shape = 'u8[512]{0}', space=vmem, size = 0x400, scoped, tag = 'input window, operand 7, single buffered']
    #allocation8 [shape = 's32[1]{0}', space=sflag, size = 0x4, scoped, tag = 'scoped memory for xtft_forward.3']
    #allocation9 [shape = 'u8[512]{0}', space=vmem, size = 0x400, scoped, tag = 'input window, operand 12, single buffered']
    #allocation10 [shape = 'u8[512]{0}', space=vmem, size = 0x400, scoped, tag = 'input window, operand 13, single buffered']
    #allocation11 [shape = 's32[1]{0}', space=sflag, size = 0x4, scoped, tag = 'scoped memory for xtft_forward.3']
    #allocation12 [shape = 'u8[512]{0}', space=vmem, size = 0x400, scoped, tag = 'input window, operand 15, single buffered']
    #allocation13 [shape = 'u8[512]{0}', space=vmem, size = 0x400, scoped, tag = 'input window, operand 16, single buffered']
    #allocation14 [shape = 's32[1]{0}', space=sflag, size = 0x4, scoped, tag = 'scoped memory for xtft_forward.3']
    #allocation15 [shape = 'u8[512]{0}', space=vmem, size = 0x400, scoped, tag = 'input window, operand 17, single buffered']
    #allocation16 [shape = 'u8[512]{0}', space=vmem, size = 0x400, scoped, tag = 'input window, operand 19, single buffered']
    #allocation17 [shape = 's32[1]{0}', space=sflag, size = 0x4, scoped, tag = 'scoped memory for xtft_forward.3']
    #allocation18 [shape = 'u8[512]{0}', space=vmem, size = 0x400, scoped, tag = 'input window, operand 21, single buffered']
    #allocation19 [shape = 'u8[512]{0}', space=vmem, size = 0x400, scoped, tag = 'input window, operand 23, single buffered']
    #allocation20 [shape = 's32[1]{0}', space=sflag, size = 0x4, scoped, tag = 'scoped memory for xtft_forward.3']
    #allocation21 [shape = 'u8[512]{0}', space=vmem, size = 0x400, scoped, tag = 'input window, operand 25, single buffered']
    #allocation22 [shape = 'u8[16384]{0}', space=vmem, size = 0x4000, scoped, tag = 'input window, operand 26, single buffered']
    #allocation23 [shape = 's32[1]{0}', space=sflag, size = 0x4, scoped, tag = 'scoped memory for xtft_forward.3']
    #allocation24 [shape = 'u8[512]{0}', space=vmem, size = 0x400, scoped, tag = 'input window, operand 27, single buffered']
    #allocation25 [shape = 'u8[512]{0}', space=vmem, size = 0x400, scoped, tag = 'input window, operand 28, single buffered']
    #allocation26 [shape = 's32[1]{0}', space=sflag, size = 0x4, scoped, tag = 'scoped memory for xtft_forward.3']
    #allocation27 [shape = 'u8[512]{0}', space=vmem, size = 0x400, scoped, tag = 'input window, operand 29, single buffered']
    #allocation28 [shape = 'u8[16384]{0}', space=vmem, size = 0x4000, scoped, tag = 'input window, operand 30, single buffered']
    #allocation29 [shape = 's32[1]{0}', space=sflag, size = 0x4, scoped, tag = 'scoped memory for xtft_forward.3']
    #allocation30 [shape = 'u8[512]{0}', space=vmem, size = 0x400, scoped, tag = 'input window, operand 31, single buffered']
    #allocation31 [shape = 'u8[16384]{0}', space=vmem, size = 0x4000, scoped, tag = 'input window, operand 32, single buffered']
    #allocation32 [shape = 's32[1]{0}', space=sflag, size = 0x4, scoped, tag = 'scoped memory for xtft_forward.3']
    #allocation33 [shape = 'u8[512]{0}', space=vmem, size = 0x400, scoped, tag = 'input window, operand 33, single buffered']
    #allocation34 [shape = 'u8[16384]{0}', space=vmem, size = 0x4000, scoped, tag = 'input window, operand 34, single buffered']
    #allocation35 [shape = 's32[1]{0}', space=sflag, size = 0x4, scoped, tag = 'scoped memory for xtft_forward.3']
    #allocation36 [shape = 'u8[512]{0}', space=vmem, size = 0x400, scoped, tag = 'input window, operand 35, single buffered']
    #allocation37 [shape = 'u8[512]{0}', space=vmem, size = 0x400, scoped, tag = 'input window, operand 36, single buffered']
    #allocation38 [shape = 's32[1]{0}', space=sflag, size = 0x4, scoped, tag = 'scoped memory for xtft_forward.3']
    #allocation39 [shape = 'u8[512]{0}', space=vmem, size = 0x400, scoped, tag = 'input window, operand 37, single buffered']
    #allocation40 [shape = 'u8[16384]{0}', space=vmem, size = 0x4000, scoped, tag = 'input window, operand 38, single buffered']
    #allocation41 [shape = 's32[1]{0}', space=sflag, size = 0x4, scoped, tag = 'scoped memory for xtft_forward.3']
    #allocation42 [shape = 'u8[512]{0}', space=vmem, size = 0x400, scoped, tag = 'input window, operand 39, single buffered']
    #allocation43 [shape = 'u8[512]{0}', space=vmem, size = 0x400, scoped, tag = 'input window, operand 40, single buffered']
    #allocation44 [shape = 's32[1]{0}', space=sflag, size = 0x4, scoped, tag = 'scoped memory for xtft_forward.3']
    #allocation45 [shape = 'u8[512]{0}', space=vmem, size = 0x400, scoped, tag = 'input window, operand 41, single buffered']
    #allocation46 [shape = 'u8[512]{0}', space=vmem, size = 0x400, scoped, tag = 'input window, operand 43, single buffered']
    #allocation47 [shape = 's32[1]{0}', space=sflag, size = 0x4, scoped, tag = 'scoped memory for xtft_forward.3']
    #allocation48 [shape = 'u8[4096]{0}', space=vmem, size = 0x1000, scoped, tag = 'output window, operand 0, single buffered']
    %97 = vsyncpa [#allocation5], 0
    %98 = vsyncpa [#allocation8], 0
    %99 = vsyncpa [#allocation11], 0
    %100 = vsyncpa [#allocation14], 0
    %101 = vsyncpa [#allocation17], 0
    %102 = vsyncpa [#allocation20], 0
    %103 = vsyncpa [#allocation23], 0
    %104 = vsyncpa [#allocation26], 0
    %105 = vsyncpa [#allocation29], 0
    %106 = vsyncpa [#allocation32], 0
    %107 = vsyncpa [#allocation35], 0
    %108 = vsyncpa [#allocation38], 0
    %109 = vsyncpa [#allocation41], 0
    %110 = vsyncpa [#allocation44], 0
    %111 = vsyncpa [#allocation47], 0
    %112 = vsyncpa [#allocation6], 0
    // Predicated region
    $region2: #{xtft_forward.3} parent=1 // pred_check
      _
    $region3: #{xtft_forward.3} parent=1 // pred_check_branch
      %114 = sbr.rel (0) target = $region5
    $region4: #{xtft_forward.3} parent=1 // pred_region
      _
    $region5: #{xtft_forward.3} parent=1 // pred_fallthru
      _
    // Predicated region
    $region6: #{xtft_forward.3} parent=1 // pred_check
      _
    $region7: #{xtft_forward.3} parent=1 // pred_check_branch
      %116 = sbr.rel (0) target = $region9
    $region8: #{xtft_forward.3} parent=1 // pred_region
      _
    $region9: #{xtft_forward.3} parent=1 // pred_fallthru
      _
    // Predicated region
    $region10: #{xtft_forward.3} parent=1 // pred_check
      _
    $region11: #{xtft_forward.3} parent=1 // pred_check_branch
      %118 = sbr.rel (0) target = $region13
    $region12: #{xtft_forward.3} parent=1 // pred_region
      _
    $region13: #{xtft_forward.3} parent=1 // pred_fallthru
      _
    // Predicated region
    $region14: #{xtft_forward.3} parent=1 // pred_check
      _
    $region15: #{xtft_forward.3} parent=1 // pred_check_branch
      %120 = sbr.rel (0) target = $region17
    $region16: #{xtft_forward.3} parent=1 // pred_region
      _
    $region17: #{xtft_forward.3} parent=1 // pred_fallthru
      _
    // Predicated region
    $region18: #{xtft_forward.3} parent=1 // pred_check
      _
    $region19: #{xtft_forward.3} parent=1 // pred_check_branch
      %122 = sbr.rel (0) target = $region21
    $region20: #{xtft_forward.3} parent=1 // pred_region
      _
    $region21: #{xtft_forward.3} parent=1 // pred_fallthru
      _
    // Predicated region
    $region22: #{xtft_forward.3} parent=1 // pred_check
      _
    $region23: #{xtft_forward.3} parent=1 // pred_check_branch
      %124 = sbr.rel (0) target = $region25
    $region24: #{xtft_forward.3} parent=1 // pred_region
      _
    $region25: #{xtft_forward.3} parent=1 // pred_fallthru
      _
    // Predicated region
    $region26: #{xtft_forward.3} parent=1 // pred_check
      _
    $region27: #{xtft_forward.3} parent=1 // pred_check_branch
      %126 = sbr.rel (0) target = $region29
    $region28: #{xtft_forward.3} parent=1 // pred_region
      %128 = vsyncadd [#allocation5], 0
      %s130 = sshll.u32 %s13, 4
      %s131 = int_to_ptr.hbm [resolvable:$true] %s130
      %s132 = sshll.u32 [#allocation4], 4
      %s133 = int_to_ptr.vmem [resolvable:$true] %s132
      %135 = dma.hbm_to_vmem [thread:$0]  %s131, 16, %s133, [#allocation5]
    $region29: #{xtft_forward.3} parent=1 // pred_fallthru
      _
    // Predicated region
    $region30: #{xtft_forward.3} parent=1 // pred_check
      _
    $region31: #{xtft_forward.3} parent=1 // pred_check_branch
      %137 = sbr.rel (0) target = $region33
    $region32: #{xtft_forward.3} parent=1 // pred_region
      %139 = vsyncadd [#allocation8], 0
      %s141 = sshll.u32 %s15, 4
      %s142 = int_to_ptr.hbm [resolvable:$true] %s141
      %s143 = sshll.u32 [#allocation7], 4
      %s144 = int_to_ptr.vmem [resolvable:$true] %s143
      %146 = dma.hbm_to_vmem [thread:$0]  %s142, 16, %s144, [#allocation8]
    $region33: #{xtft_forward.3} parent=1 // pred_fallthru
      _
    // Predicated region
    $region34: #{xtft_forward.3} parent=1 // pred_check
      _
    $region35: #{xtft_forward.3} parent=1 // pred_check_branch
      %148 = sbr.rel (0) target = $region37
    $region36: #{xtft_forward.3} parent=1 // pred_region
      _
    $region37: #{xtft_forward.3} parent=1 // pred_fallthru
      _
    // Predicated region
    $region38: #{xtft_forward.3} parent=1 // pred_check
      _
    $region39: #{xtft_forward.3} parent=1 // pred_check_branch
      %150 = sbr.rel (0) target = $region41
    $region40: #{xtft_forward.3} parent=1 // pred_region
      _
    $region41: #{xtft_forward.3} parent=1 // pred_fallthru
      _
    // Predicated region
    $region42: #{xtft_forward.3} parent=1 // pred_check
      _
    $region43: #{xtft_forward.3} parent=1 // pred_check_branch
      %152 = sbr.rel (0) target = $region45
    $region44: #{xtft_forward.3} parent=1 // pred_region
      _
    $region45: #{xtft_forward.3} parent=1 // pred_fallthru
      _
    // Predicated region
    $region46: #{xtft_forward.3} parent=1 // pred_check
      _
    $region47: #{xtft_forward.3} parent=1 // pred_check_branch
      %154 = sbr.rel (0) target = $region49
    $region48: #{xtft_forward.3} parent=1 // pred_region
      _
    $region49: #{xtft_forward.3} parent=1 // pred_fallthru
      _
    // Predicated region
    $region50: #{xtft_forward.3} parent=1 // pred_check
      _
    $region51: #{xtft_forward.3} parent=1 // pred_check_branch
      %156 = sbr.rel (0) target = $region53
    $region52: #{xtft_forward.3} parent=1 // pred_region
      %158 = vsyncadd [#allocation8], 0
      %s160 = sshll.u32 %s25, 4
      %s161 = int_to_ptr.hbm [resolvable:$true] %s160
      %s162 = sshll.u32 [#allocation9], 4
      %s163 = int_to_ptr.vmem [resolvable:$true] %s162
      %165 = dma.hbm_to_vmem [thread:$0]  %s161, 16, %s163, [#allocation8]
    $region53: #{xtft_forward.3} parent=1 // pred_fallthru
      _
    // Predicated region
    $region54: #{xtft_forward.3} parent=1 // pred_check
      _
    $region55: #{xtft_forward.3} parent=1 // pred_check_branch
      %167 = sbr.rel (0) target = $region57
    $region56: #{xtft_forward.3} parent=1 // pred_region
      %169 = vsyncadd [#allocation11], 0
      %s171 = sshll.u32 %s27, 4
      %s172 = int_to_ptr.hbm [resolvable:$true] %s171
      %s173 = sshll.u32 [#allocation10], 4
      %s174 = int_to_ptr.vmem [resolvable:$true] %s173
      %176 = dma.hbm_to_vmem [thread:$0]  %s172, 16, %s174, [#allocation11]
    $region57: #{xtft_forward.3} parent=1 // pred_fallthru
      _
    // Predicated region
    $region58: #{xtft_forward.3} parent=1 // pred_check
      _
    $region59: #{xtft_forward.3} parent=1 // pred_check_branch
      %178 = sbr.rel (0) target = $region61
    $region60: #{xtft_forward.3} parent=1 // pred_region
      _
    $region61: #{xtft_forward.3} parent=1 // pred_fallthru
      _
    // Predicated region
    $region62: #{xtft_forward.3} parent=1 // pred_check
      _
    $region63: #{xtft_forward.3} parent=1 // pred_check_branch
      %180 = sbr.rel (0) target = $region65
    $region64: #{xtft_forward.3} parent=1 // pred_region
      %182 = vsyncadd [#allocation11], 0
      %s184 = sshll.u32 %s31, 4
      %s185 = int_to_ptr.hbm [resolvable:$true] %s184
      %s186 = sshll.u32 [#allocation12], 4
      %s187 = int_to_ptr.vmem [resolvable:$true] %s186
      %189 = dma.hbm_to_vmem [thread:$0]  %s185, 16, %s187, [#allocation11]
    $region65: #{xtft_forward.3} parent=1 // pred_fallthru
      _
    // Predicated region
    $region66: #{xtft_forward.3} parent=1 // pred_check
      _
    $region67: #{xtft_forward.3} parent=1 // pred_check_branch
      %191 = sbr.rel (0) target = $region69
    $region68: #{xtft_forward.3} parent=1 // pred_region
      %193 = vsyncadd [#allocation14], 0
      %s195 = sshll.u32 %s33, 4
      %s196 = int_to_ptr.hbm [resolvable:$true] %s195
      %s197 = sshll.u32 [#allocation13], 4
      %s198 = int_to_ptr.vmem [resolvable:$true] %s197
      %200 = dma.hbm_to_vmem [thread:$0]  %s196, 16, %s198, [#allocation14]
    $region69: #{xtft_forward.3} parent=1 // pred_fallthru
      _
    // Predicated region
    $region70: #{xtft_forward.3} parent=1 // pred_check
      _
    $region71: #{xtft_forward.3} parent=1 // pred_check_branch
      %202 = sbr.rel (0) target = $region73
    $region72: #{xtft_forward.3} parent=1 // pred_region
      %204 = vsyncadd [#allocation14], 0
      %s206 = sshll.u32 %s35, 4
      %s207 = int_to_ptr.hbm [resolvable:$true] %s206
      %s208 = sshll.u32 [#allocation15], 4
      %s209 = int_to_ptr.vmem [resolvable:$true] %s208
      %211 = dma.hbm_to_vmem [thread:$0]  %s207, 16, %s209, [#allocation14]
    $region73: #{xtft_forward.3} parent=1 // pred_fallthru
      _
    // Predicated region
    $region74: #{xtft_forward.3} parent=1 // pred_check
      _
    $region75: #{xtft_forward.3} parent=1 // pred_check_branch
      %213 = sbr.rel (0) target = $region77
    $region76: #{xtft_forward.3} parent=1 // pred_region
      _
    $region77: #{xtft_forward.3} parent=1 // pred_fallthru
      _
    // Predicated region
    $region78: #{xtft_forward.3} parent=1 // pred_check
      _
    $region79: #{xtft_forward.3} parent=1 // pred_check_branch
      %215 = sbr.rel (0) target = $region81
    $region80: #{xtft_forward.3} parent=1 // pred_region
      %217 = vsyncadd [#allocation17], 0
      %s219 = sshll.u32 %s39, 4
      %s220 = int_to_ptr.hbm [resolvable:$true] %s219
      %s221 = sshll.u32 [#allocation16], 4
      %s222 = int_to_ptr.vmem [resolvable:$true] %s221
      %224 = dma.hbm_to_vmem [thread:$0]  %s220, 16, %s222, [#allocation17]
    $region81: #{xtft_forward.3} parent=1 // pred_fallthru
      _
    // Predicated region
    $region82: #{xtft_forward.3} parent=1 // pred_check
      _
    $region83: #{xtft_forward.3} parent=1 // pred_check_branch
      %226 = sbr.rel (0) target = $region85
    $region84: #{xtft_forward.3} parent=1 // pred_region
      _
    $region85: #{xtft_forward.3} parent=1 // pred_fallthru
      _
    // Predicated region
    $region86: #{xtft_forward.3} parent=1 // pred_check
      _
    $region87: #{xtft_forward.3} parent=1 // pred_check_branch
      %228 = sbr.rel (0) target = $region89
    $region88: #{xtft_forward.3} parent=1 // pred_region
      %230 = vsyncadd [#allocation17], 0
      %s232 = sshll.u32 %s43, 4
      %s233 = int_to_ptr.hbm [resolvable:$true] %s232
      %s234 = sshll.u32 [#allocation18], 4
      %s235 = int_to_ptr.vmem [resolvable:$true] %s234
      %237 = dma.hbm_to_vmem [thread:$0]  %s233, 16, %s235, [#allocation17]
    $region89: #{xtft_forward.3} parent=1 // pred_fallthru
      _
    // Predicated region
    $region90: #{xtft_forward.3} parent=1 // pred_check
      _
    $region91: #{xtft_forward.3} parent=1 // pred_check_branch
      %239 = sbr.rel (0) target = $region93
    $region92: #{xtft_forward.3} parent=1 // pred_region
      _
    $region93: #{xtft_forward.3} parent=1 // pred_fallthru
      _
    // Predicated region
    $region94: #{xtft_forward.3} parent=1 // pred_check
      _
    $region95: #{xtft_forward.3} parent=1 // pred_check_branch
      %241 = sbr.rel (0) target = $region97
    $region96: #{xtft_forward.3} parent=1 // pred_region
      %243 = vsyncadd [#allocation20], 0
      %s245 = sshll.u32 %s47, 4
      %s246 = int_to_ptr.hbm [resolvable:$true] %s245
      %s247 = sshll.u32 [#allocation19], 4
      %s248 = int_to_ptr.vmem [resolvable:$true] %s247
      %250 = dma.hbm_to_vmem [thread:$0]  %s246, 16, %s248, [#allocation20]
    $region97: #{xtft_forward.3} parent=1 // pred_fallthru
      _
    // Predicated region
    $region98: #{xtft_forward.3} parent=1 // pred_check
      _
    $region99: #{xtft_forward.3} parent=1 // pred_check_branch
      %252 = sbr.rel (0) target = $region101
    $region100: #{xtft_forward.3} parent=1 // pred_region
      _
    $region101: #{xtft_forward.3} parent=1 // pred_fallthru
      _
    // Predicated region
    $region102: #{xtft_forward.3} parent=1 // pred_check
      _
    $region103: #{xtft_forward.3} parent=1 // pred_check_branch
      %254 = sbr.rel (0) target = $region105
    $region104: #{xtft_forward.3} parent=1 // pred_region
      %256 = vsyncadd [#allocation20], 0
      %s258 = sshll.u32 %s51, 4
      %s259 = int_to_ptr.hbm [resolvable:$true] %s258
      %s260 = sshll.u32 [#allocation21], 4
      %s261 = int_to_ptr.vmem [resolvable:$true] %s260
      %263 = dma.hbm_to_vmem [thread:$0]  %s259, 16, %s261, [#allocation20]
    $region105: #{xtft_forward.3} parent=1 // pred_fallthru
      _
    // Predicated region
    $region106: #{xtft_forward.3} parent=1 // pred_check
      _
    $region107: #{xtft_forward.3} parent=1 // pred_check_branch
      %265 = sbr.rel (0) target = $region109
    $region108: #{xtft_forward.3} parent=1 // pred_region
      %267 = vsyncadd [#allocation23], 0
      %s268 = sshll.u32 %s53, 4
      %s269 = int_to_ptr.hbm [resolvable:$true] %s268
      %s270 = sshll.u32 [#allocation22], 4
      %s271 = int_to_ptr.vmem [resolvable:$true] %s270
      %276 = dma.hbm_to_vmem [thread:$0]  %s269, 512, %s271, [#allocation23], 128, 128, 8
    $region109: #{xtft_forward.3} parent=1 // pred_fallthru
      _
    // Predicated region
    $region110: #{xtft_forward.3} parent=1 // pred_check
      _
    $region111: #{xtft_forward.3} parent=1 // pred_check_branch
      %278 = sbr.rel (0) target = $region113
    $region112: #{xtft_forward.3} parent=1 // pred_region
      %280 = vsyncadd [#allocation23], 0
      %s282 = sshll.u32 %s55, 4
      %s283 = int_to_ptr.hbm [resolvable:$true] %s282
      %s284 = sshll.u32 [#allocation24], 4
      %s285 = int_to_ptr.vmem [resolvable:$true] %s284
      %287 = dma.hbm_to_vmem [thread:$0]  %s283, 16, %s285, [#allocation23]
    $region113: #{xtft_forward.3} parent=1 // pred_fallthru
      _
    // Predicated region
    $region114: #{xtft_forward.3} parent=1 // pred_check
      _
    $region115: #{xtft_forward.3} parent=1 // pred_check_branch
      %289 = sbr.rel (0) target = $region117
    $region116: #{xtft_forward.3} parent=1 // pred_region
      %291 = vsyncadd [#allocation26], 0
      %s293 = sshll.u32 %s57, 4
      %s294 = int_to_ptr.hbm [resolvable:$true] %s293
      %s295 = sshll.u32 [#allocation25], 4
      %s296 = int_to_ptr.vmem [resolvable:$true] %s295
      %298 = dma.hbm_to_vmem [thread:$0]  %s294, 16, %s296, [#allocation26]
    $region117: #{xtft_forward.3} parent=1 // pred_fallthru
      _
    // Predicated region
    $region118: #{xtft_forward.3} parent=1 // pred_check
      _
    $region119: #{xtft_forward.3} parent=1 // pred_check_branch
      %300 = sbr.rel (0) target = $region121
    $region120: #{xtft_forward.3} parent=1 // pred_region
      %302 = vsyncadd [#allocation26], 0
      %s304 = sshll.u32 %s59, 4
      %s305 = int_to_ptr.hbm [resolvable:$true] %s304
      %s306 = sshll.u32 [#allocation27], 4
      %s307 = int_to_ptr.vmem [resolvable:$true] %s306
      %309 = dma.hbm_to_vmem [thread:$0]  %s305, 16, %s307, [#allocation26]
    $region121: #{xtft_forward.3} parent=1 // pred_fallthru
      _
    // Predicated region
    $region122: #{xtft_forward.3} parent=1 // pred_check
      _
    $region123: #{xtft_forward.3} parent=1 // pred_check_branch
      %311 = sbr.rel (0) target = $region125
    $region124: #{xtft_forward.3} parent=1 // pred_region
      %313 = vsyncadd [#allocation29], 0
      %s314 = sshll.u32 %s61, 4
      %s315 = int_to_ptr.hbm [resolvable:$true] %s314
      %s316 = sshll.u32 [#allocation28], 4
      %s317 = int_to_ptr.vmem [resolvable:$true] %s316
      %322 = dma.hbm_to_vmem [thread:$0]  %s315, 512, %s317, [#allocation29], 128, 128, 8
    $region125: #{xtft_forward.3} parent=1 // pred_fallthru
      _
    // Predicated region
    $region126: #{xtft_forward.3} parent=1 // pred_check
      _
    $region127: #{xtft_forward.3} parent=1 // pred_check_branch
      %324 = sbr.rel (0) target = $region129
    $region128: #{xtft_forward.3} parent=1 // pred_region
      %326 = vsyncadd [#allocation29], 0
      %s328 = sshll.u32 %s63, 4
      %s329 = int_to_ptr.hbm [resolvable:$true] %s328
      %s330 = sshll.u32 [#allocation30], 4
      %s331 = int_to_ptr.vmem [resolvable:$true] %s330
      %333 = dma.hbm_to_vmem [thread:$0]  %s329, 16, %s331, [#allocation29]
    $region129: #{xtft_forward.3} parent=1 // pred_fallthru
      _
    // Predicated region
    $region130: #{xtft_forward.3} parent=1 // pred_check
      _
    $region131: #{xtft_forward.3} parent=1 // pred_check_branch
      %335 = sbr.rel (0) target = $region133
    $region132: #{xtft_forward.3} parent=1 // pred_region
      %337 = vsyncadd [#allocation32], 0
      %s338 = sshll.u32 %s65, 4
      %s339 = int_to_ptr.hbm [resolvable:$true] %s338
      %s340 = sshll.u32 [#allocation31], 4
      %s341 = int_to_ptr.vmem [resolvable:$true] %s340
      %346 = dma.hbm_to_vmem [thread:$0]  %s339, 512, %s341, [#allocation32], 128, 128, 8
    $region133: #{xtft_forward.3} parent=1 // pred_fallthru
      _
    // Predicated region
    $region134: #{xtft_forward.3} parent=1 // pred_check
      _
    $region135: #{xtft_forward.3} parent=1 // pred_check_branch
      %348 = sbr.rel (0) target = $region137
    $region136: #{xtft_forward.3} parent=1 // pred_region
      %350 = vsyncadd [#allocation32], 0
      %s352 = sshll.u32 %s67, 4
      %s353 = int_to_ptr.hbm [resolvable:$true] %s352
      %s354 = sshll.u32 [#allocation33], 4
      %s355 = int_to_ptr.vmem [resolvable:$true] %s354
      %357 = dma.hbm_to_vmem [thread:$0]  %s353, 16, %s355, [#allocation32]
    $region137: #{xtft_forward.3} parent=1 // pred_fallthru
      _
    // Predicated region
    $region138: #{xtft_forward.3} parent=1 // pred_check
      _
    $region139: #{xtft_forward.3} parent=1 // pred_check_branch
      %359 = sbr.rel (0) target = $region141
    $region140: #{xtft_forward.3} parent=1 // pred_region
      %361 = vsyncadd [#allocation35], 0
      %s362 = sshll.u32 %s69, 4
      %s363 = int_to_ptr.hbm [resolvable:$true] %s362
      %s364 = sshll.u32 [#allocation34], 4
      %s365 = int_to_ptr.vmem [resolvable:$true] %s364
      %370 = dma.hbm_to_vmem [thread:$0]  %s363, 512, %s365, [#allocation35], 128, 128, 8
    $region141: #{xtft_forward.3} parent=1 // pred_fallthru
      _
    // Predicated region
    $region142: #{xtft_forward.3} parent=1 // pred_check
      _
    $region143: #{xtft_forward.3} parent=1 // pred_check_branch
      %372 = sbr.rel (0) target = $region145
    $region144: #{xtft_forward.3} parent=1 // pred_region
      %374 = vsyncadd [#allocation35], 0
      %s376 = sshll.u32 %s71, 4
      %s377 = int_to_ptr.hbm [resolvable:$true] %s376
      %s378 = sshll.u32 [#allocation36], 4
      %s379 = int_to_ptr.vmem [resolvable:$true] %s378
      %381 = dma.hbm_to_vmem [thread:$0]  %s377, 16, %s379, [#allocation35]
    $region145: #{xtft_forward.3} parent=1 // pred_fallthru
      _
    // Predicated region
    $region146: #{xtft_forward.3} parent=1 // pred_check
      _
    $region147: #{xtft_forward.3} parent=1 // pred_check_branch
      %383 = sbr.rel (0) target = $region149
    $region148: #{xtft_forward.3} parent=1 // pred_region
      %385 = vsyncadd [#allocation38], 0
      %s387 = sshll.u32 %s73, 4
      %s388 = int_to_ptr.hbm [resolvable:$true] %s387
      %s389 = sshll.u32 [#allocation37], 4
      %s390 = int_to_ptr.vmem [resolvable:$true] %s389
      %392 = dma.hbm_to_vmem [thread:$0]  %s388, 16, %s390, [#allocation38]
    $region149: #{xtft_forward.3} parent=1 // pred_fallthru
      _
    // Predicated region
    $region150: #{xtft_forward.3} parent=1 // pred_check
      _
    $region151: #{xtft_forward.3} parent=1 // pred_check_branch
      %394 = sbr.rel (0) target = $region153
    $region152: #{xtft_forward.3} parent=1 // pred_region
      %396 = vsyncadd [#allocation38], 0
      %s398 = sshll.u32 %s75, 4
      %s399 = int_to_ptr.hbm [resolvable:$true] %s398
      %s400 = sshll.u32 [#allocation39], 4
      %s401 = int_to_ptr.vmem [resolvable:$true] %s400
      %403 = dma.hbm_to_vmem [thread:$0]  %s399, 16, %s401, [#allocation38]
    $region153: #{xtft_forward.3} parent=1 // pred_fallthru
      _
    // Predicated region
    $region154: #{xtft_forward.3} parent=1 // pred_check
      _
    $region155: #{xtft_forward.3} parent=1 // pred_check_branch
      %405 = sbr.rel (0) target = $region157
    $region156: #{xtft_forward.3} parent=1 // pred_region
      %407 = vsyncadd [#allocation41], 0
      %s408 = sshll.u32 %s77, 4
      %s409 = int_to_ptr.hbm [resolvable:$true] %s408
      %s410 = sshll.u32 [#allocation40], 4
      %s411 = int_to_ptr.vmem [resolvable:$true] %s410
      %416 = dma.hbm_to_vmem [thread:$0]  %s409, 512, %s411, [#allocation41], 128, 128, 8
    $region157: #{xtft_forward.3} parent=1 // pred_fallthru
      _
    // Predicated region
    $region158: #{xtft_forward.3} parent=1 // pred_check
      _
    $region159: #{xtft_forward.3} parent=1 // pred_check_branch
      %418 = sbr.rel (0) target = $region161
    $region160: #{xtft_forward.3} parent=1 // pred_region
      %420 = vsyncadd [#allocation41], 0
      %s422 = sshll.u32 %s79, 4
      %s423 = int_to_ptr.hbm [resolvable:$true] %s422
      %s424 = sshll.u32 [#allocation42], 4
      %s425 = int_to_ptr.vmem [resolvable:$true] %s424
      %427 = dma.hbm_to_vmem [thread:$0]  %s423, 16, %s425, [#allocation41]
    $region161: #{xtft_forward.3} parent=1 // pred_fallthru
      _
    // Predicated region
    $region162: #{xtft_forward.3} parent=1 // pred_check
      _
    $region163: #{xtft_forward.3} parent=1 // pred_check_branch
      %429 = sbr.rel (0) target = $region165
    $region164: #{xtft_forward.3} parent=1 // pred_region
      %431 = vsyncadd [#allocation44], 0
      %s433 = sshll.u32 %s81, 4
      %s434 = int_to_ptr.hbm [resolvable:$true] %s433
      %s435 = sshll.u32 [#allocation43], 4
      %s436 = int_to_ptr.vmem [resolvable:$true] %s435
      %438 = dma.hbm_to_vmem [thread:$0]  %s434, 16, %s436, [#allocation44]
    $region165: #{xtft_forward.3} parent=1 // pred_fallthru
      _
    // Predicated region
    $region166: #{xtft_forward.3} parent=1 // pred_check
      _
    $region167: #{xtft_forward.3} parent=1 // pred_check_branch
      %440 = sbr.rel (0) target = $region169
    $region168: #{xtft_forward.3} parent=1 // pred_region
      %442 = vsyncadd [#allocation44], 0
      %s444 = sshll.u32 %s83, 4
      %s445 = int_to_ptr.hbm [resolvable:$true] %s444
      %s446 = sshll.u32 [#allocation45], 4
      %s447 = int_to_ptr.vmem [resolvable:$true] %s446
      %449 = dma.hbm_to_vmem [thread:$0]  %s445, 16, %s447, [#allocation44]
    $region169: #{xtft_forward.3} parent=1 // pred_fallthru
      _
    // Predicated region
    $region170: #{xtft_forward.3} parent=1 // pred_check
      _
    $region171: #{xtft_forward.3} parent=1 // pred_check_branch
      %451 = sbr.rel (0) target = $region173
    $region172: #{xtft_forward.3} parent=1 // pred_region
      _
    $region173: #{xtft_forward.3} parent=1 // pred_fallthru
      _
    // Predicated region
    $region174: #{xtft_forward.3} parent=1 // pred_check
      _
    $region175: #{xtft_forward.3} parent=1 // pred_check_branch
      %453 = sbr.rel (0) target = $region177
    $region176: #{xtft_forward.3} parent=1 // pred_region
      %455 = vsyncadd [#allocation47], 0
      %s457 = sshll.u32 %s87, 4
      %s458 = int_to_ptr.hbm [resolvable:$true] %s457
      %s459 = sshll.u32 [#allocation46], 4
      %s460 = int_to_ptr.vmem [resolvable:$true] %s459
      %462 = dma.hbm_to_vmem [thread:$0]  %s458, 16, %s460, [#allocation47]
    $region177: #{xtft_forward.3} parent=1 // pred_fallthru
      _
    // Predicated region
    $region178: #{xtft_forward.3} parent=1 // pred_check
      _
    $region179: #{xtft_forward.3} parent=1 // pred_check_branch
      %464 = sbr.rel (0) target = $region181
    $region180: #{xtft_forward.3} parent=1 // pred_region
      %466 = dma.done [#allocation5], 16
    $region181: #{xtft_forward.3} parent=1 // pred_fallthru
      _
    // Predicated region
    $region182: #{xtft_forward.3} parent=1 // pred_check
      _
    $region183: #{xtft_forward.3} parent=1 // pred_check_branch
      %468 = sbr.rel (0) target = $region185
    $region184: #{xtft_forward.3} parent=1 // pred_region
      %470 = dma.done [#allocation8], 16
    $region185: #{xtft_forward.3} parent=1 // pred_fallthru
      _
    // Predicated region
    $region186: #{xtft_forward.3} parent=1 // pred_check
      _
    $region187: #{xtft_forward.3} parent=1 // pred_check_branch
      %472 = sbr.rel (0) target = $region189
    $region188: #{xtft_forward.3} parent=1 // pred_region
      %474 = dma.done [#allocation8], 16
    $region189: #{xtft_forward.3} parent=1 // pred_fallthru
      _
    // Predicated region
    $region190: #{xtft_forward.3} parent=1 // pred_check
      _
    $region191: #{xtft_forward.3} parent=1 // pred_check_branch
      %476 = sbr.rel (0) target = $region193
    $region192: #{xtft_forward.3} parent=1 // pred_region
      %478 = dma.done [#allocation11], 16
    $region193: #{xtft_forward.3} parent=1 // pred_fallthru
      _
    // Predicated region
    $region194: #{xtft_forward.3} parent=1 // pred_check
      _
    $region195: #{xtft_forward.3} parent=1 // pred_check_branch
      %480 = sbr.rel (0) target = $region197
    $region196: #{xtft_forward.3} parent=1 // pred_region
      %482 = dma.done [#allocation11], 16
    $region197: #{xtft_forward.3} parent=1 // pred_fallthru
      _
    // Predicated region
    $region198: #{xtft_forward.3} parent=1 // pred_check
      _
    $region199: #{xtft_forward.3} parent=1 // pred_check_branch
      %484 = sbr.rel (0) target = $region201
    $region200: #{xtft_forward.3} parent=1 // pred_region
      %486 = dma.done [#allocation14], 16
    $region201: #{xtft_forward.3} parent=1 // pred_fallthru
      _
    // Predicated region
    $region202: #{xtft_forward.3} parent=1 // pred_check
      _
    $region203: #{xtft_forward.3} parent=1 // pred_check_branch
      %488 = sbr.rel (0) target = $region205
    $region204: #{xtft_forward.3} parent=1 // pred_region
      %490 = dma.done [#allocation14], 16
    $region205: #{xtft_forward.3} parent=1 // pred_fallthru
      _
    // Predicated region
    $region206: #{xtft_forward.3} parent=1 // pred_check
      _
    $region207: #{xtft_forward.3} parent=1 // pred_check_branch
      %492 = sbr.rel (0) target = $region209
    $region208: #{xtft_forward.3} parent=1 // pred_region
      %494 = dma.done [#allocation17], 16
    $region209: #{xtft_forward.3} parent=1 // pred_fallthru
      _
    // Predicated region
    $region210: #{xtft_forward.3} parent=1 // pred_check
      _
    $region211: #{xtft_forward.3} parent=1 // pred_check_branch
      %496 = sbr.rel (0) target = $region213
    $region212: #{xtft_forward.3} parent=1 // pred_region
      %498 = dma.done [#allocation17], 16
    $region213: #{xtft_forward.3} parent=1 // pred_fallthru
      _
    // Predicated region
    $region214: #{xtft_forward.3} parent=1 // pred_check
      _
    $region215: #{xtft_forward.3} parent=1 // pred_check_branch
      %500 = sbr.rel (0) target = $region217
    $region216: #{xtft_forward.3} parent=1 // pred_region
      %502 = dma.done [#allocation20], 16
    $region217: #{xtft_forward.3} parent=1 // pred_fallthru
      _
    // Predicated region
    $region218: #{xtft_forward.3} parent=1 // pred_check
      _
    $region219: #{xtft_forward.3} parent=1 // pred_check_branch
      %504 = sbr.rel (0) target = $region221
    $region220: #{xtft_forward.3} parent=1 // pred_region
      %506 = dma.done [#allocation20], 16
    $region221: #{xtft_forward.3} parent=1 // pred_fallthru
      _
    // Predicated region
    $region222: #{xtft_forward.3} parent=1 // pred_check
      _
    $region223: #{xtft_forward.3} parent=1 // pred_check_branch
      %508 = sbr.rel (0) target = $region225
    $region224: #{xtft_forward.3} parent=1 // pred_region
      %510 = dma.done [#allocation23], 512
    $region225: #{xtft_forward.3} parent=1 // pred_fallthru
      _
    // Predicated region
    $region226: #{xtft_forward.3} parent=1 // pred_check
      _
    $region227: #{xtft_forward.3} parent=1 // pred_check_branch
      %512 = sbr.rel (0) target = $region229
    $region228: #{xtft_forward.3} parent=1 // pred_region
      %514 = dma.done [#allocation23], 16
    $region229: #{xtft_forward.3} parent=1 // pred_fallthru
      _
    // Predicated region
    $region230: #{xtft_forward.3} parent=1 // pred_check
      _
    $region231: #{xtft_forward.3} parent=1 // pred_check_branch
      %516 = sbr.rel (0) target = $region233
    $region232: #{xtft_forward.3} parent=1 // pred_region
      %518 = dma.done [#allocation26], 16
    $region233: #{xtft_forward.3} parent=1 // pred_fallthru
      _
    // Predicated region
    $region234: #{xtft_forward.3} parent=1 // pred_check
      _
    $region235: #{xtft_forward.3} parent=1 // pred_check_branch
      %520 = sbr.rel (0) target = $region237
    $region236: #{xtft_forward.3} parent=1 // pred_region
      %522 = dma.done [#allocation26], 16
    $region237: #{xtft_forward.3} parent=1 // pred_fallthru
      _
    // Predicated region
    $region238: #{xtft_forward.3} parent=1 // pred_check
      _
    $region239: #{xtft_forward.3} parent=1 // pred_check_branch
      %524 = sbr.rel (0) target = $region241
    $region240: #{xtft_forward.3} parent=1 // pred_region
      %526 = dma.done [#allocation29], 512
    $region241: #{xtft_forward.3} parent=1 // pred_fallthru
      _
    // Predicated region
    $region242: #{xtft_forward.3} parent=1 // pred_check
      _
    $region243: #{xtft_forward.3} parent=1 // pred_check_branch
      %528 = sbr.rel (0) target = $region245
    $region244: #{xtft_forward.3} parent=1 // pred_region
      %530 = dma.done [#allocation29], 16
    $region245: #{xtft_forward.3} parent=1 // pred_fallthru
      _
    // Predicated region
    $region246: #{xtft_forward.3} parent=1 // pred_check
      _
    $region247: #{xtft_forward.3} parent=1 // pred_check_branch
      %532 = sbr.rel (0) target = $region249
    $region248: #{xtft_forward.3} parent=1 // pred_region
      %534 = dma.done [#allocation32], 512
    $region249: #{xtft_forward.3} parent=1 // pred_fallthru
      _
    // Predicated region
    $region250: #{xtft_forward.3} parent=1 // pred_check
      _
    $region251: #{xtft_forward.3} parent=1 // pred_check_branch
      %536 = sbr.rel (0) target = $region253
    $region252: #{xtft_forward.3} parent=1 // pred_region
      %538 = dma.done [#allocation32], 16
    $region253: #{xtft_forward.3} parent=1 // pred_fallthru
      _
    // Predicated region
    $region254: #{xtft_forward.3} parent=1 // pred_check
      _
    $region255: #{xtft_forward.3} parent=1 // pred_check_branch
      %540 = sbr.rel (0) target = $region257
    $region256: #{xtft_forward.3} parent=1 // pred_region
      %542 = dma.done [#allocation35], 512
    $region257: #{xtft_forward.3} parent=1 // pred_fallthru
      _
    // Predicated region
    $region258: #{xtft_forward.3} parent=1 // pred_check
      _
    $region259: #{xtft_forward.3} parent=1 // pred_check_branch
      %544 = sbr.rel (0) target = $region261
    $region260: #{xtft_forward.3} parent=1 // pred_region
      %546 = dma.done [#allocation35], 16
    $region261: #{xtft_forward.3} parent=1 // pred_fallthru
      _
    // Predicated region
    $region262: #{xtft_forward.3} parent=1 // pred_check
      _
    $region263: #{xtft_forward.3} parent=1 // pred_check_branch
      %548 = sbr.rel (0) target = $region265
    $region264: #{xtft_forward.3} parent=1 // pred_region
      %550 = dma.done [#allocation38], 16
    $region265: #{xtft_forward.3} parent=1 // pred_fallthru
      _
    // Predicated region
    $region266: #{xtft_forward.3} parent=1 // pred_check
      _
    $region267: #{xtft_forward.3} parent=1 // pred_check_branch
      %552 = sbr.rel (0) target = $region269
    $region268: #{xtft_forward.3} parent=1 // pred_region
      %554 = dma.done [#allocation38], 16
    $region269: #{xtft_forward.3} parent=1 // pred_fallthru
      _
    // Predicated region
    $region270: #{xtft_forward.3} parent=1 // pred_check
      _
    $region271: #{xtft_forward.3} parent=1 // pred_check_branch
      %556 = sbr.rel (0) target = $region273
    $region272: #{xtft_forward.3} parent=1 // pred_region
      %558 = dma.done [#allocation41], 512
    $region273: #{xtft_forward.3} parent=1 // pred_fallthru
      _
    // Predicated region
    $region274: #{xtft_forward.3} parent=1 // pred_check
      _
    $region275: #{xtft_forward.3} parent=1 // pred_check_branch
      %560 = sbr.rel (0) target = $region277
    $region276: #{xtft_forward.3} parent=1 // pred_region
      %562 = dma.done [#allocation41], 16
    $region277: #{xtft_forward.3} parent=1 // pred_fallthru
      _
    // Predicated region
    $region278: #{xtft_forward.3} parent=1 // pred_check
      _
    $region279: #{xtft_forward.3} parent=1 // pred_check_branch
      %564 = sbr.rel (0) target = $region281
    $region280: #{xtft_forward.3} parent=1 // pred_region
      %566 = dma.done [#allocation44], 16
    $region281: #{xtft_forward.3} parent=1 // pred_fallthru
      _
    // Predicated region
    $region282: #{xtft_forward.3} parent=1 // pred_check
      _
    $region283: #{xtft_forward.3} parent=1 // pred_check_branch
      %568 = sbr.rel (0) target = $region285
    $region284: #{xtft_forward.3} parent=1 // pred_region
      %570 = dma.done [#allocation44], 16
    $region285: #{xtft_forward.3} parent=1 // pred_fallthru
      _
    // Predicated region
    $region286: #{xtft_forward.3} parent=1 // pred_check
      _
    $region287: #{xtft_forward.3} parent=1 // pred_check_branch
      %572 = sbr.rel (0) target = $region289
    $region288: #{xtft_forward.3} parent=1 // pred_region
      %574 = dma.done [#allocation47], 16
    $region289: #{xtft_forward.3} parent=1 // pred_fallthru
      _
    %v575 = vld [vmem:[%s1] sm:$0xff]
    %v576 = vld [vmem:[%s1 + $0x8] sm:$0xff]
    %v577 = vld [vmem:[%s5] sm:$0xff]
    %v578 = vld [vmem:[%s5 + $0x8] sm:$0xff]
    %v579 = vld [vmem:[%s5 + $0x10] sm:$0xff]
    %v580 = vld [vmem:[%s5 + $0x18] sm:$0xff]
    %v581 = vld [vmem:[#allocation4] sm:$0x1]
    %v583 = vperm.slane %v581, 0
    %vm585 = vcmask 261120
    %v587 = vsel %vm585, %v575, 0
    %v590 = vsel %vm585, %v576, 0
    %592 = vmatpush.msra.mxu0 0.0
    %593 = vmatpush.msra.mxu0 0.0
    %594 = vmatpush.msra.mxu0 0.0
    %595 = vmatpush.msra.mxu0 0.0
    %596 = vmatpush.msra.mxu0 0.0
    %597 = vmatpush.msra.mxu0 0.0
    %598 = vmatpush.msra.mxu0 0.0
    %599 = vmatpush.msra.mxu0 0.0
    %600 = vmatpush.msra.mxu0 0.0
    %601 = vmatpush.msra.mxu0 0.0
    %602 = vmatpush.msra.mxu0 0.0
    %603 = vmatpush.msra.mxu0 0.0
    %604 = vmatpush.msra.mxu0 %v580
    %605 = vmatpush.msra.mxu0 %v579
    %606 = vmatpush.msra.mxu0 %v578
    %607 = vmatpush.msra.mxu0 %v577
    %608 = vmatmul.f32.gmra.mxu0 %v587
    %v609 = vpop.f32.mrf.mxu0
    %v610 = vadd.f32 %v583, %v609
    %611 = vmatmul.f32.gmra.mxu0 %v590
    %v612 = vpop.f32.mrf.mxu0
    %v613 = vadd.f32 %v583, %v612
    %614 = vdwg.mxu0
    %v615 = vld [vmem:[%s9] sm:$0xff]
    %v616 = vld [vmem:[%s9 + $0x8] sm:$0xff]
    %v617 = vld [vmem:[%s9 + $0x10] sm:$0xff]
    %v618 = vld [vmem:[%s9 + $0x18] sm:$0xff]
    %v620 = vsel %vm585, 0.0, 0
    %622 = vmatpush.msra.mxu0 0.0
    %623 = vmatpush.msra.mxu0 0.0
    %624 = vmatpush.msra.mxu0 0.0
    %625 = vmatpush.msra.mxu0 0.0
    %626 = vmatpush.msra.mxu0 0.0
    %627 = vmatpush.msra.mxu0 0.0
    %628 = vmatpush.msra.mxu0 0.0
    %629 = vmatpush.msra.mxu0 0.0
    %630 = vmatpush.msra.mxu0 0.0
    %631 = vmatpush.msra.mxu0 0.0
    %632 = vmatpush.msra.mxu0 0.0
    %633 = vmatpush.msra.mxu0 0.0
    %634 = vmatpush.msra.mxu0 %v618
    %635 = vmatpush.msra.mxu0 %v617
    %636 = vmatpush.msra.mxu0 %v616
    %637 = vmatpush.msra.mxu0 %v615
    %638 = vmatmul.f32.gmra.mxu0 %v620
    %v639 = vpop.f32.mrf.mxu0
    %v640 = vadd.f32 0.0, %v639
    %641 = vdwg.mxu0
    %v643 = vrot.slane %v640, 1
    %v646 = vadd.f32 %v610, %v640
    %v647 = vadd.f32 %v613, %v643
    %v648 = vxor.u32 %v646, 2147483648
    %v649 = vxor.u32 %v647, 2147483648
    %v650 = vmul.f32 %v648, 1.442695
    %v651 = vpow.pop %v650
    %v652 = vmul.f32 %v649, 1.442695
    %v653 = vpow.pop %v652
    %v654 = vadd.f32 %v651, 1.0
    %v655 = vadd.f32 %v653, 1.0
    %v656 = vrcp.pop %v654
    %v657 = vmul.f32 %v654, %v656
    %v658 = vsub.f32 1.0, %v657
    %v659 = vmul.f32 %v656, %v658
    %v660 = vadd.f32 %v656, %v659
    %vm661 = vweird.f32 %v654
    %vm662 = vweird.f32 %v656
    %vm663 = vmor %vm661, %vm662
    %v664 = vsel %vm663, %v656, %v660
    %v665 = vand.u32 2147483647, %v654
    %vm666 = vcmp.eq.f32.partialorder %v665, 8.507059e+37
    %v667 = vand.u32 %v654, 2147483648
    %v668 = vor.u32 1.1754944e-38, %v667
    %v669 = vsel %vm666, %v668, %v664
    %v670 = vmul.f32 1.0, %v669
    %v671 = vrcp.pop %v655
    %v672 = vmul.f32 %v655, %v671
    %v673 = vsub.f32 1.0, %v672
    %v674 = vmul.f32 %v671, %v673
    %v675 = vadd.f32 %v671, %v674
    %vm676 = vweird.f32 %v655
    %vm677 = vweird.f32 %v671
    %vm678 = vmor %vm676, %vm677
    %v679 = vsel %vm678, %v671, %v675
    %v680 = vand.u32 2147483647, %v655
    %vm681 = vcmp.eq.f32.partialorder %v680, 8.507059e+37
    %v682 = vand.u32 %v655, 2147483648
    %v683 = vor.u32 1.1754944e-38, %v682
    %v684 = vsel %vm681, %v683, %v679
    %v685 = vmul.f32 1.0, %v684
    %v686 = vtanh.pop %v646
    %v687 = vtanh.pop %v647
    %v688 = vmul.f32 %v670, 0.0
    %v689 = vmul.f32 %v685, 0.0
    %692 = vrot.lane.b32.xlu0 %v686, 32
    %v693 = vpop.permute.xlu0 %692
    %694 = vrot.lane.b32.xlu0 %v687, 32
    %v695 = vpop.permute.xlu0 %694
    %v698 = vmul.f32 %v670, %v693
    %v699 = vmul.f32 %v685, %v695
    %702 = vrot.lane.b32.xlu0 %v698, 32
    %v703 = vpop.permute.xlu0 %702
    %704 = vrot.lane.b32.xlu0 %v699, 32
    %v705 = vpop.permute.xlu0 %704
    %v708 = vadd.f32 %v688, %v703
    %v709 = vadd.f32 %v689, %v705
    %v710 = vtanh.pop %v708
    %v711 = vtanh.pop %v709
    %714 = vrot.lane.b32.xlu0 %v710, 32
    %v715 = vpop.permute.xlu0 %714
    %716 = vrot.lane.b32.xlu0 %v711, 32
    %v717 = vpop.permute.xlu0 %716
    %v720 = vmul.f32 %v670, %v715
    %v721 = vmul.f32 %v685, %v717
    %v722 = vld [vmem:[%s7] sm:$0xff]
    %v723 = vld [vmem:[%s7 + $0x8] sm:$0xff]
    %v724 = vld [vmem:[%s7 + $0x10] sm:$0xff]
    %v725 = vld [vmem:[%s7 + $0x18] sm:$0xff]
    %v726 = vld [vmem:[#allocation7] sm:$0x1]
    %v728 = vperm.slane %v726, 0
    %v732 = vrot.slane %v721, 7
    %vm733 = vcmask 1041409
    %v734 = vsel %vm733, %v732, %v720
    %735 = vrot.lane.b32.xlu0 %v734, 64
    %v736 = vpop.permute.xlu0 %735
    %v737 = vsel %vm585, %v736, 0
    %739 = vmatpush.msra.mxu0 0.0
    %740 = vmatpush.msra.mxu0 0.0
    %741 = vmatpush.msra.mxu0 0.0
    %742 = vmatpush.msra.mxu0 0.0
    %743 = vmatpush.msra.mxu0 0.0
    %744 = vmatpush.msra.mxu0 0.0
    %745 = vmatpush.msra.mxu0 0.0
    %746 = vmatpush.msra.mxu0 0.0
    %747 = vmatpush.msra.mxu0 0.0
    %748 = vmatpush.msra.mxu0 0.0
    %749 = vmatpush.msra.mxu0 0.0
    %750 = vmatpush.msra.mxu0 0.0
    %751 = vmatpush.msra.mxu0 %v725
    %752 = vmatpush.msra.mxu0 %v724
    %753 = vmatpush.msra.mxu0 %v723
    %754 = vmatpush.msra.mxu0 %v722
    %755 = vmatmul.f32.gmra.mxu0 %v737
    %v756 = vpop.f32.mrf.mxu0
    %v757 = vadd.f32 %v728, %v756
    %758 = vdwg.mxu0
    %v759 = vld [vmem:[%s11] sm:$0xff]
    %v760 = vld [vmem:[%s11 + $0x8] sm:$0xff]
    %v761 = vld [vmem:[%s11 + $0x10] sm:$0xff]
    %v762 = vld [vmem:[%s11 + $0x18] sm:$0xff]
    %763 = vmatpush.msra.mxu0 0.0
    %764 = vmatpush.msra.mxu0 0.0
    %765 = vmatpush.msra.mxu0 0.0
    %766 = vmatpush.msra.mxu0 0.0
    %767 = vmatpush.msra.mxu0 0.0
    %768 = vmatpush.msra.mxu0 0.0
    %769 = vmatpush.msra.mxu0 0.0
    %770 = vmatpush.msra.mxu0 0.0
    %771 = vmatpush.msra.mxu0 0.0
    %772 = vmatpush.msra.mxu0 0.0
    %773 = vmatpush.msra.mxu0 0.0
    %774 = vmatpush.msra.mxu0 0.0
    %775 = vmatpush.msra.mxu0 %v762
    %776 = vmatpush.msra.mxu0 %v761
    %777 = vmatpush.msra.mxu0 %v760
    %778 = vmatpush.msra.mxu0 %v759
    %779 = vmatmul.f32.gmra.mxu0 %v620
    %v780 = vpop.f32.mrf.mxu0
    %v781 = vadd.f32 0.0, %v780
    %782 = vdwg.mxu0
    %v783 = vadd.f32 %v757, %v781
    %v784 = vxor.u32 %v783, 2147483648
    %v785 = vmul.f32 %v784, 1.442695
    %v786 = vpow.pop %v785
    %v787 = vadd.f32 %v786, 1.0
    %v788 = vrcp.pop %v787
    %v789 = vmul.f32 %v787, %v788
    %v790 = vsub.f32 1.0, %v789
    %v791 = vmul.f32 %v788, %v790
    %v792 = vadd.f32 %v788, %v791
    %vm793 = vweird.f32 %v787
    %vm794 = vweird.f32 %v788
    %vm795 = vmor %vm793, %vm794
    %v796 = vsel %vm795, %v788, %v792
    %v797 = vand.u32 2147483647, %v787
    %vm798 = vcmp.eq.f32.partialorder %v797, 8.507059e+37
    %v799 = vand.u32 %v787, 2147483648
    %v800 = vor.u32 1.1754944e-38, %v799
    %v801 = vsel %vm798, %v800, %v796
    %v802 = vmul.f32 1.0, %v801
    %v803 = vtanh.pop %v783
    %v804 = vmul.f32 %v802, 0.0
    %806 = vrot.lane.b32.xlu0 %v803, 32
    %v807 = vpop.permute.xlu0 %806
    %v809 = vmul.f32 %v802, %v807
    %811 = vrot.lane.b32.xlu0 %v809, 32
    %v812 = vpop.permute.xlu0 %811
    %v814 = vadd.f32 %v804, %v812
    %v815 = vtanh.pop %v814
    %817 = vrot.lane.b32.xlu0 %v815, 32
    %v818 = vpop.permute.xlu0 %817
    %v820 = vmul.f32 %v802, %v818
    %v822 = vrot.slane %v820, 1
    %v823 = vperm.slane %v820, 0
    %v824 = vperm.slane %v822, 0
    %825 = vrot.lane.b32.xlu0 %v823, 64
    %v826 = vpop.permute.xlu0 %825
    %827 = vrot.lane.b32.xlu0 %v824, 64
    %v828 = vpop.permute.xlu0 %827
    %vm831 = vcmask 253952
    %832 = vst.msk [vmem:[#allocation2] sm:$0x1] %vm831, %v826
    %833 = vst.msk [vmem:[#allocation2 + $0x8] sm:$0x1] %vm831, %v828
    %v834 = vld [vmem:[%s9] sm:$0xff]
    %v835 = vld [vmem:[%s9 + $0x8] sm:$0xff]
    %v836 = vld [vmem:[%s9 + $0x10] sm:$0xff]
    %v837 = vld [vmem:[%s9 + $0x18] sm:$0xff]
    %838 = vmatpush.msra.mxu0 0.0
    %839 = vmatpush.msra.mxu0 0.0
    %840 = vmatpush.msra.mxu0 0.0
    %841 = vmatpush.msra.mxu0 0.0
    %842 = vmatpush.msra.mxu0 0.0
    %843 = vmatpush.msra.mxu0 0.0
    %844 = vmatpush.msra.mxu0 0.0
    %845 = vmatpush.msra.mxu0 0.0
    %846 = vmatpush.msra.mxu0 0.0
    %847 = vmatpush.msra.mxu0 0.0
    %848 = vmatpush.msra.mxu0 0.0
    %849 = vmatpush.msra.mxu0 0.0
    %850 = vmatpush.msra.mxu0 %v837
    %851 = vmatpush.msra.mxu0 %v836
    %852 = vmatpush.msra.mxu0 %v835
    %853 = vmatpush.msra.mxu0 %v834
    %854 = vmatmul.f32.gmra.mxu0 %v737
    %v855 = vpop.f32.mrf.mxu0
    %v856 = vadd.f32 0.0, %v855
    %857 = vdwg.mxu0
    %v859 = vrot.slane %v856, 7
    %v862 = vadd.f32 %v610, %v859
    %v863 = vadd.f32 %v613, %v856
    %v864 = vxor.u32 %v862, 2147483648
    %v865 = vxor.u32 %v863, 2147483648
    %v866 = vmul.f32 %v864, 1.442695
    %v867 = vpow.pop %v866
    %v868 = vmul.f32 %v865, 1.442695
    %v869 = vpow.pop %v868
    %v870 = vadd.f32 %v867, 1.0
    %v871 = vadd.f32 %v869, 1.0
    %v872 = vrcp.pop %v870
    %v873 = vmul.f32 %v870, %v872
    %v874 = vsub.f32 1.0, %v873
    %v875 = vmul.f32 %v872, %v874
    %v876 = vadd.f32 %v872, %v875
    %vm877 = vweird.f32 %v870
    %vm878 = vweird.f32 %v872
    %vm879 = vmor %vm877, %vm878
    %v880 = vsel %vm879, %v872, %v876
    %v881 = vand.u32 2147483647, %v870
    %vm882 = vcmp.eq.f32.partialorder %v881, 8.507059e+37
    %v883 = vand.u32 %v870, 2147483648
    %v884 = vor.u32 1.1754944e-38, %v883
    %v885 = vsel %vm882, %v884, %v880
    %v886 = vmul.f32 1.0, %v885
    %v887 = vrcp.pop %v871
    %v888 = vmul.f32 %v871, %v887
    %v889 = vsub.f32 1.0, %v888
    %v890 = vmul.f32 %v887, %v889
    %v891 = vadd.f32 %v887, %v890
    %vm892 = vweird.f32 %v871
    %vm893 = vweird.f32 %v887
    %vm894 = vmor %vm892, %vm893
    %v895 = vsel %vm894, %v887, %v891
    %v896 = vand.u32 2147483647, %v871
    %vm897 = vcmp.eq.f32.partialorder %v896, 8.507059e+37
    %v898 = vand.u32 %v871, 2147483648
    %v899 = vor.u32 1.1754944e-38, %v898
    %v900 = vsel %vm897, %v899, %v895
    %v901 = vmul.f32 1.0, %v900
    %v902 = vtanh.pop %v862
    %v903 = vtanh.pop %v863
    %v906 = vrot.slane %v708, 7
    %v907 = vrot.slane %v709, 7
    %v910 = vmul.f32 %v886, %v906
    %v911 = vmul.f32 %v901, %v907
    %914 = vrot.lane.b32.xlu0 %v902, 32
    %v915 = vpop.permute.xlu0 %914
    %916 = vrot.lane.b32.xlu0 %v903, 32
    %v917 = vpop.permute.xlu0 %916
    %v920 = vmul.f32 %v886, %v915
    %v921 = vmul.f32 %v901, %v917
    %924 = vrot.lane.b32.xlu0 %v920, 32
    %v925 = vpop.permute.xlu0 %924
    %926 = vrot.lane.b32.xlu0 %v921, 32
    %v927 = vpop.permute.xlu0 %926
    %v930 = vadd.f32 %v910, %v925
    %v931 = vadd.f32 %v911, %v927
    %v932 = vtanh.pop %v930
    %v933 = vtanh.pop %v931
    %936 = vrot.lane.b32.xlu0 %v932, 32
    %v937 = vpop.permute.xlu0 %936
    %938 = vrot.lane.b32.xlu0 %v933, 32
    %v939 = vpop.permute.xlu0 %938
    %v942 = vmul.f32 %v886, %v937
    %v943 = vmul.f32 %v901, %v939
    %v944 = vld [vmem:[%s7] sm:$0xff]
    %v945 = vld [vmem:[%s7 + $0x8] sm:$0xff]
    %v946 = vld [vmem:[%s7 + $0x10] sm:$0xff]
    %v947 = vld [vmem:[%s7 + $0x18] sm:$0xff]
    %v948 = vld [vmem:[#allocation7] sm:$0x1]
    %v950 = vperm.slane %v948, 0
    %v954 = vrot.slane %v942, 1
    %v955 = vsel %vm733, %v943, %v954
    %956 = vrot.lane.b32.xlu0 %v955, 64
    %v957 = vpop.permute.xlu0 %956
    %v958 = vsel %vm585, %v957, 0
    %960 = vmatpush.msra.mxu0 0.0
    %961 = vmatpush.msra.mxu0 0.0
    %962 = vmatpush.msra.mxu0 0.0
    %963 = vmatpush.msra.mxu0 0.0
    %964 = vmatpush.msra.mxu0 0.0
    %965 = vmatpush.msra.mxu0 0.0
    %966 = vmatpush.msra.mxu0 0.0
    %967 = vmatpush.msra.mxu0 0.0
    %968 = vmatpush.msra.mxu0 0.0
    %969 = vmatpush.msra.mxu0 0.0
    %970 = vmatpush.msra.mxu0 0.0
    %971 = vmatpush.msra.mxu0 0.0
    %972 = vmatpush.msra.mxu0 %v947
    %973 = vmatpush.msra.mxu0 %v946
    %974 = vmatpush.msra.mxu0 %v945
    %975 = vmatpush.msra.mxu0 %v944
    %976 = vmatmul.f32.gmra.mxu0 %v958
    %v977 = vpop.f32.mrf.mxu0
    %v978 = vadd.f32 %v950, %v977
    %979 = vdwg.mxu0
    %v980 = vld [vmem:[%s11] sm:$0xff]
    %v981 = vld [vmem:[%s11 + $0x8] sm:$0xff]
    %v982 = vld [vmem:[%s11 + $0x10] sm:$0xff]
    %v983 = vld [vmem:[%s11 + $0x18] sm:$0xff]
    %984 = vrot.lane.b32.xlu0 %v820, 64
    %v985 = vpop.permute.xlu0 %984
    %v986 = vsel %vm585, %v985, 0
    %988 = vmatpush.msra.mxu0 0.0
    %989 = vmatpush.msra.mxu0 0.0
    %990 = vmatpush.msra.mxu0 0.0
    %991 = vmatpush.msra.mxu0 0.0
    %992 = vmatpush.msra.mxu0 0.0
    %993 = vmatpush.msra.mxu0 0.0
    %994 = vmatpush.msra.mxu0 0.0
    %995 = vmatpush.msra.mxu0 0.0
    %996 = vmatpush.msra.mxu0 0.0
    %997 = vmatpush.msra.mxu0 0.0
    %998 = vmatpush.msra.mxu0 0.0
    %999 = vmatpush.msra.mxu0 0.0
    %1000 = vmatpush.msra.mxu0 %v983
    %1001 = vmatpush.msra.mxu0 %v982
    %1002 = vmatpush.msra.mxu0 %v981
    %1003 = vmatpush.msra.mxu0 %v980
    %1004 = vmatmul.f32.gmra.mxu0 %v986
    %v1005 = vpop.f32.mrf.mxu0
    %v1006 = vadd.f32 0.0, %v1005
    %1007 = vdwg.mxu0
    %v1008 = vadd.f32 %v978, %v1006
    %v1009 = vxor.u32 %v1008, 2147483648
    %v1010 = vmul.f32 %v1009, 1.442695
    %v1011 = vpow.pop %v1010
    %v1012 = vadd.f32 %v1011, 1.0
    %v1013 = vrcp.pop %v1012
    %v1014 = vmul.f32 %v1012, %v1013
    %v1015 = vsub.f32 1.0, %v1014
    %v1016 = vmul.f32 %v1013, %v1015
    %v1017 = vadd.f32 %v1013, %v1016
    %vm1018 = vweird.f32 %v1012
    %vm1019 = vweird.f32 %v1013
    %vm1020 = vmor %vm1018, %vm1019
    %v1021 = vsel %vm1020, %v1013, %v1017
    %v1022 = vand.u32 2147483647, %v1012
    %vm1023 = vcmp.eq.f32.partialorder %v1022, 8.507059e+37
    %v1024 = vand.u32 %v1012, 2147483648
    %v1025 = vor.u32 1.1754944e-38, %v1024
    %v1026 = vsel %vm1023, %v1025, %v1021
    %v1027 = vmul.f32 1.0, %v1026
    %v1028 = vtanh.pop %v1008
    %v1029 = vmul.f32 %v1027, %v814
    %1031 = vrot.lane.b32.xlu0 %v1028, 32
    %v1032 = vpop.permute.xlu0 %1031
    %v1034 = vmul.f32 %v1027, %v1032
    %1036 = vrot.lane.b32.xlu0 %v1034, 32
    %v1037 = vpop.permute.xlu0 %1036
    %v1039 = vadd.f32 %v1029, %v1037
    %v1040 = vtanh.pop %v1039
    %1042 = vrot.lane.b32.xlu0 %v1040, 32
    %v1043 = vpop.permute.xlu0 %1042
    %v1045 = vmul.f32 %v1027, %v1043
    %v1047 = vrot.slane %v1045, 1
    %v1048 = vperm.slane %v1045, 0
    %v1049 = vperm.slane %v1047, 0
    %1050 = vrot.lane.b32.xlu0 %v1048, 64
    %v1051 = vpop.permute.xlu0 %1050
    %1052 = vrot.lane.b32.xlu0 %v1049, 64
    %v1053 = vpop.permute.xlu0 %1052
    %1056 = vst.msk [vmem:[#allocation2 + $0x1] sm:$0x1] %vm831, %v1051
    %1057 = vst.msk [vmem:[#allocation2 + $0x9] sm:$0x1] %vm831, %v1053
    %v1058 = vld [vmem:[%s9] sm:$0xff]
    %v1059 = vld [vmem:[%s9 + $0x8] sm:$0xff]
    %v1060 = vld [vmem:[%s9 + $0x10] sm:$0xff]
    %v1061 = vld [vmem:[%s9 + $0x18] sm:$0xff]
    %1062 = vmatpush.msra.mxu0 0.0
    %1063 = vmatpush.msra.mxu0 0.0
    %1064 = vmatpush.msra.mxu0 0.0
    %1065 = vmatpush.msra.mxu0 0.0
    %1066 = vmatpush.msra.mxu0 0.0
    %1067 = vmatpush.msra.mxu0 0.0
    %1068 = vmatpush.msra.mxu0 0.0
    %1069 = vmatpush.msra.mxu0 0.0
    %1070 = vmatpush.msra.mxu0 0.0
    %1071 = vmatpush.msra.mxu0 0.0
    %1072 = vmatpush.msra.mxu0 0.0
    %1073 = vmatpush.msra.mxu0 0.0
    %1074 = vmatpush.msra.mxu0 %v1061
    %1075 = vmatpush.msra.mxu0 %v1060
    %1076 = vmatpush.msra.mxu0 %v1059
    %1077 = vmatpush.msra.mxu0 %v1058
    %1078 = vmatmul.f32.gmra.mxu0 %v958
    %v1079 = vpop.f32.mrf.mxu0
    %v1080 = vadd.f32 0.0, %v1079
    %1081 = vdwg.mxu0
    %v1083 = vrot.slane %v1080, 6
    %v1084 = vrot.slane %v1080, 7
    %v1087 = vadd.f32 %v610, %v1083
    %v1088 = vadd.f32 %v613, %v1084
    %v1089 = vxor.u32 %v1087, 2147483648
    %v1090 = vxor.u32 %v1088, 2147483648
    %v1091 = vmul.f32 %v1089, 1.442695
    %v1092 = vpow.pop %v1091
    %v1093 = vmul.f32 %v1090, 1.442695
    %v1094 = vpow.pop %v1093
    %v1095 = vadd.f32 %v1092, 1.0
    %v1096 = vadd.f32 %v1094, 1.0
    %v1097 = vrcp.pop %v1095
    %v1098 = vmul.f32 %v1095, %v1097
    %v1099 = vsub.f32 1.0, %v1098
    %v1100 = vmul.f32 %v1097, %v1099
    %v1101 = vadd.f32 %v1097, %v1100
    %vm1102 = vweird.f32 %v1095
    %vm1103 = vweird.f32 %v1097
    %vm1104 = vmor %vm1102, %vm1103
    %v1105 = vsel %vm1104, %v1097, %v1101
    %v1106 = vand.u32 2147483647, %v1095
    %vm1107 = vcmp.eq.f32.partialorder %v1106, 8.507059e+37
    %v1108 = vand.u32 %v1095, 2147483648
    %v1109 = vor.u32 1.1754944e-38, %v1108
    %v1110 = vsel %vm1107, %v1109, %v1105
    %v1111 = vmul.f32 1.0, %v1110
    %v1112 = vrcp.pop %v1096
    %v1113 = vmul.f32 %v1096, %v1112
    %v1114 = vsub.f32 1.0, %v1113
    %v1115 = vmul.f32 %v1112, %v1114
    %v1116 = vadd.f32 %v1112, %v1115
    %vm1117 = vweird.f32 %v1096
    %vm1118 = vweird.f32 %v1112
    %vm1119 = vmor %vm1117, %vm1118
    %v1120 = vsel %vm1119, %v1112, %v1116
    %v1121 = vand.u32 2147483647, %v1096
    %vm1122 = vcmp.eq.f32.partialorder %v1121, 8.507059e+37
    %v1123 = vand.u32 %v1096, 2147483648
    %v1124 = vor.u32 1.1754944e-38, %v1123
    %v1125 = vsel %vm1122, %v1124, %v1120
    %v1126 = vmul.f32 1.0, %v1125
    %v1127 = vtanh.pop %v1087
    %v1128 = vtanh.pop %v1088
    %v1131 = vrot.slane %v930, 7
    %v1132 = vrot.slane %v931, 7
    %v1135 = vmul.f32 %v1111, %v1131
    %v1136 = vmul.f32 %v1126, %v1132
    %1139 = vrot.lane.b32.xlu0 %v1127, 32
    %v1140 = vpop.permute.xlu0 %1139
    %1141 = vrot.lane.b32.xlu0 %v1128, 32
    %v1142 = vpop.permute.xlu0 %1141
    %v1145 = vmul.f32 %v1111, %v1140
    %v1146 = vmul.f32 %v1126, %v1142
    %1149 = vrot.lane.b32.xlu0 %v1145, 32
    %v1150 = vpop.permute.xlu0 %1149
    %1151 = vrot.lane.b32.xlu0 %v1146, 32
    %v1152 = vpop.permute.xlu0 %1151
    %v1155 = vadd.f32 %v1135, %v1150
    %v1156 = vadd.f32 %v1136, %v1152
    %v1157 = vtanh.pop %v1155
    %v1158 = vtanh.pop %v1156
    %1161 = vrot.lane.b32.xlu0 %v1157, 32
    %v1162 = vpop.permute.xlu0 %1161
    %1163 = vrot.lane.b32.xlu0 %v1158, 32
    %v1164 = vpop.permute.xlu0 %1163
    %v1167 = vmul.f32 %v1111, %v1162
    %v1168 = vmul.f32 %v1126, %v1164
    %v1169 = vld [vmem:[%s7] sm:$0xff]
    %v1170 = vld [vmem:[%s7 + $0x8] sm:$0xff]
    %v1171 = vld [vmem:[%s7 + $0x10] sm:$0xff]
    %v1172 = vld [vmem:[%s7 + $0x18] sm:$0xff]
    %v1173 = vld [vmem:[#allocation7] sm:$0x1]
    %v1175 = vperm.slane %v1173, 0
    %v1179 = vrot.slane %v1167, 2
    %v1180 = vrot.slane %v1168, 1
    %v1181 = vsel %vm733, %v1180, %v1179
    %1182 = vrot.lane.b32.xlu0 %v1181, 64
    %v1183 = vpop.permute.xlu0 %1182
    %v1184 = vsel %vm585, %v1183, 0
    %1186 = vmatpush.msra.mxu0 0.0
    %1187 = vmatpush.msra.mxu0 0.0
    %1188 = vmatpush.msra.mxu0 0.0
    %1189 = vmatpush.msra.mxu0 0.0
    %1190 = vmatpush.msra.mxu0 0.0
    %1191 = vmatpush.msra.mxu0 0.0
    %1192 = vmatpush.msra.mxu0 0.0
    %1193 = vmatpush.msra.mxu0 0.0
    %1194 = vmatpush.msra.mxu0 0.0
    %1195 = vmatpush.msra.mxu0 0.0
    %1196 = vmatpush.msra.mxu0 0.0
    %1197 = vmatpush.msra.mxu0 0.0
    %1198 = vmatpush.msra.mxu0 %v1172
    %1199 = vmatpush.msra.mxu0 %v1171
    %1200 = vmatpush.msra.mxu0 %v1170
    %1201 = vmatpush.msra.mxu0 %v1169
    %1202 = vmatmul.f32.gmra.mxu0 %v1184
    %v1203 = vpop.f32.mrf.mxu0
    %v1204 = vadd.f32 %v1175, %v1203
    %1205 = vdwg.mxu0
    %v1206 = vld [vmem:[%s11] sm:$0xff]
    %v1207 = vld [vmem:[%s11 + $0x8] sm:$0xff]
    %v1208 = vld [vmem:[%s11 + $0x10] sm:$0xff]
    %v1209 = vld [vmem:[%s11 + $0x18] sm:$0xff]
    %1210 = vrot.lane.b32.xlu0 %v1045, 64
    %v1211 = vpop.permute.xlu0 %1210
    %v1212 = vsel %vm585, %v1211, 0
    %1214 = vmatpush.msra.mxu0 0.0
    %1215 = vmatpush.msra.mxu0 0.0
    %1216 = vmatpush.msra.mxu0 0.0
    %1217 = vmatpush.msra.mxu0 0.0
    %1218 = vmatpush.msra.mxu0 0.0
    %1219 = vmatpush.msra.mxu0 0.0
    %1220 = vmatpush.msra.mxu0 0.0
    %1221 = vmatpush.msra.mxu0 0.0
    %1222 = vmatpush.msra.mxu0 0.0
    %1223 = vmatpush.msra.mxu0 0.0
    %1224 = vmatpush.msra.mxu0 0.0
    %1225 = vmatpush.msra.mxu0 0.0
    %1226 = vmatpush.msra.mxu0 %v1209
    %1227 = vmatpush.msra.mxu0 %v1208
    %1228 = vmatpush.msra.mxu0 %v1207
    %1229 = vmatpush.msra.mxu0 %v1206
    %1230 = vmatmul.f32.gmra.mxu0 %v1212
    %v1231 = vpop.f32.mrf.mxu0
    %v1232 = vadd.f32 0.0, %v1231
    %1233 = vdwg.mxu0
    %v1234 = vadd.f32 %v1204, %v1232
    %v1235 = vxor.u32 %v1234, 2147483648
    %v1236 = vmul.f32 %v1235, 1.442695
    %v1237 = vpow.pop %v1236
    %v1238 = vadd.f32 %v1237, 1.0
    %v1239 = vrcp.pop %v1238
    %v1240 = vmul.f32 %v1238, %v1239
    %v1241 = vsub.f32 1.0, %v1240
    %v1242 = vmul.f32 %v1239, %v1241
    %v1243 = vadd.f32 %v1239, %v1242
    %vm1244 = vweird.f32 %v1238
    %vm1245 = vweird.f32 %v1239
    %vm1246 = vmor %vm1244, %vm1245
    %v1247 = vsel %vm1246, %v1239, %v1243
    %v1248 = vand.u32 2147483647, %v1238
    %vm1249 = vcmp.eq.f32.partialorder %v1248, 8.507059e+37
    %v1250 = vand.u32 %v1238, 2147483648
    %v1251 = vor.u32 1.1754944e-38, %v1250
    %v1252 = vsel %vm1249, %v1251, %v1247
    %v1253 = vmul.f32 1.0, %v1252
    %v1254 = vtanh.pop %v1234
    %v1255 = vmul.f32 %v1253, %v1039
    %1257 = vrot.lane.b32.xlu0 %v1254, 32
    %v1258 = vpop.permute.xlu0 %1257
    %v1260 = vmul.f32 %v1253, %v1258
    %1262 = vrot.lane.b32.xlu0 %v1260, 32
    %v1263 = vpop.permute.xlu0 %1262
    %v1265 = vadd.f32 %v1255, %v1263
    %v1266 = vtanh.pop %v1265
    %1268 = vrot.lane.b32.xlu0 %v1266, 32
    %v1269 = vpop.permute.xlu0 %1268
    %v1271 = vmul.f32 %v1253, %v1269
    %v1273 = vrot.slane %v1271, 1
    %v1274 = vperm.slane %v1271, 0
    %v1275 = vperm.slane %v1273, 0
    %1276 = vrot.lane.b32.xlu0 %v1274, 64
    %v1277 = vpop.permute.xlu0 %1276
    %1278 = vrot.lane.b32.xlu0 %v1275, 64
    %v1279 = vpop.permute.xlu0 %1278
    %1282 = vst.msk [vmem:[#allocation2 + $0x2] sm:$0x1] %vm831, %v1277
    %1283 = vst.msk [vmem:[#allocation2 + $0xa] sm:$0x1] %vm831, %v1279
    %v1284 = vld [vmem:[%s9] sm:$0xff]
    %v1285 = vld [vmem:[%s9 + $0x8] sm:$0xff]
    %v1286 = vld [vmem:[%s9 + $0x10] sm:$0xff]
    %v1287 = vld [vmem:[%s9 + $0x18] sm:$0xff]
    %1288 = vmatpush.msra.mxu0 0.0
    %1289 = vmatpush.msra.mxu0 0.0
    %1290 = vmatpush.msra.mxu0 0.0
    %1291 = vmatpush.msra.mxu0 0.0
    %1292 = vmatpush.msra.mxu0 0.0
    %1293 = vmatpush.msra.mxu0 0.0
    %1294 = vmatpush.msra.mxu0 0.0
    %1295 = vmatpush.msra.mxu0 0.0
    %1296 = vmatpush.msra.mxu0 0.0
    %1297 = vmatpush.msra.mxu0 0.0
    %1298 = vmatpush.msra.mxu0 0.0
    %1299 = vmatpush.msra.mxu0 0.0
    %1300 = vmatpush.msra.mxu0 %v1287
    %1301 = vmatpush.msra.mxu0 %v1286
    %1302 = vmatpush.msra.mxu0 %v1285
    %1303 = vmatpush.msra.mxu0 %v1284
    %1304 = vmatmul.f32.gmra.mxu0 %v1184
    %v1305 = vpop.f32.mrf.mxu0
    %v1306 = vadd.f32 0.0, %v1305
    %1307 = vdwg.mxu0
    %v1309 = vrot.slane %v1306, 5
    %v1310 = vrot.slane %v1306, 6
    %v1313 = vadd.f32 %v610, %v1309
    %v1314 = vadd.f32 %v613, %v1310
    %v1315 = vxor.u32 %v1313, 2147483648
    %v1316 = vxor.u32 %v1314, 2147483648
    %v1317 = vmul.f32 %v1315, 1.442695
    %v1318 = vpow.pop %v1317
    %v1319 = vmul.f32 %v1316, 1.442695
    %v1320 = vpow.pop %v1319
    %v1321 = vadd.f32 %v1318, 1.0
    %v1322 = vadd.f32 %v1320, 1.0
    %v1323 = vrcp.pop %v1321
    %v1324 = vmul.f32 %v1321, %v1323
    %v1325 = vsub.f32 1.0, %v1324
    %v1326 = vmul.f32 %v1323, %v1325
    %v1327 = vadd.f32 %v1323, %v1326
    %vm1328 = vweird.f32 %v1321
    %vm1329 = vweird.f32 %v1323
    %vm1330 = vmor %vm1328, %vm1329
    %v1331 = vsel %vm1330, %v1323, %v1327
    %v1332 = vand.u32 2147483647, %v1321
    %vm1333 = vcmp.eq.f32.partialorder %v1332, 8.507059e+37
    %v1334 = vand.u32 %v1321, 2147483648
    %v1335 = vor.u32 1.1754944e-38, %v1334
    %v1336 = vsel %vm1333, %v1335, %v1331
    %v1337 = vmul.f32 1.0, %v1336
    %v1338 = vrcp.pop %v1322
    %v1339 = vmul.f32 %v1322, %v1338
    %v1340 = vsub.f32 1.0, %v1339
    %v1341 = vmul.f32 %v1338, %v1340
    %v1342 = vadd.f32 %v1338, %v1341
    %vm1343 = vweird.f32 %v1322
    %vm1344 = vweird.f32 %v1338
    %vm1345 = vmor %vm1343, %vm1344
    %v1346 = vsel %vm1345, %v1338, %v1342
    %v1347 = vand.u32 2147483647, %v1322
    %vm1348 = vcmp.eq.f32.partialorder %v1347, 8.507059e+37
    %v1349 = vand.u32 %v1322, 2147483648
    %v1350 = vor.u32 1.1754944e-38, %v1349
    %v1351 = vsel %vm1348, %v1350, %v1346
    %v1352 = vmul.f32 1.0, %v1351
    %v1353 = vtanh.pop %v1313
    %v1354 = vtanh.pop %v1314
    %v1357 = vrot.slane %v1155, 7
    %v1358 = vrot.slane %v1156, 7
    %v1361 = vmul.f32 %v1337, %v1357
    %v1362 = vmul.f32 %v1352, %v1358
    %1365 = vrot.lane.b32.xlu0 %v1353, 32
    %v1366 = vpop.permute.xlu0 %1365
    %1367 = vrot.lane.b32.xlu0 %v1354, 32
    %v1368 = vpop.permute.xlu0 %1367
    %v1371 = vmul.f32 %v1337, %v1366
    %v1372 = vmul.f32 %v1352, %v1368
    %1375 = vrot.lane.b32.xlu0 %v1371, 32
    %v1376 = vpop.permute.xlu0 %1375
    %1377 = vrot.lane.b32.xlu0 %v1372, 32
    %v1378 = vpop.permute.xlu0 %1377
    %v1381 = vadd.f32 %v1361, %v1376
    %v1382 = vadd.f32 %v1362, %v1378
    %v1383 = vtanh.pop %v1381
    %v1384 = vtanh.pop %v1382
    %1387 = vrot.lane.b32.xlu0 %v1383, 32
    %v1388 = vpop.permute.xlu0 %1387
    %1389 = vrot.lane.b32.xlu0 %v1384, 32
    %v1390 = vpop.permute.xlu0 %1389
    %v1393 = vmul.f32 %v1337, %v1388
    %v1394 = vmul.f32 %v1352, %v1390
    %v1395 = vld [vmem:[%s7] sm:$0xff]
    %v1396 = vld [vmem:[%s7 + $0x8] sm:$0xff]
    %v1397 = vld [vmem:[%s7 + $0x10] sm:$0xff]
    %v1398 = vld [vmem:[%s7 + $0x18] sm:$0xff]
    %v1399 = vld [vmem:[#allocation7] sm:$0x1]
    %v1401 = vperm.slane %v1399, 0
    %v1405 = vrot.slane %v1393, 3
    %v1406 = vrot.slane %v1394, 2
    %v1407 = vsel %vm733, %v1406, %v1405
    %1408 = vrot.lane.b32.xlu0 %v1407, 64
    %v1409 = vpop.permute.xlu0 %1408
    %v1410 = vsel %vm585, %v1409, 0
    %1412 = vmatpush.msra.mxu0 0.0
    %1413 = vmatpush.msra.mxu0 0.0
    %1414 = vmatpush.msra.mxu0 0.0
    %1415 = vmatpush.msra.mxu0 0.0
    %1416 = vmatpush.msra.mxu0 0.0
    %1417 = vmatpush.msra.mxu0 0.0
    %1418 = vmatpush.msra.mxu0 0.0
    %1419 = vmatpush.msra.mxu0 0.0
    %1420 = vmatpush.msra.mxu0 0.0
    %1421 = vmatpush.msra.mxu0 0.0
    %1422 = vmatpush.msra.mxu0 0.0
    %1423 = vmatpush.msra.mxu0 0.0
    %1424 = vmatpush.msra.mxu0 %v1398
    %1425 = vmatpush.msra.mxu0 %v1397
    %1426 = vmatpush.msra.mxu0 %v1396
    %1427 = vmatpush.msra.mxu0 %v1395
    %1428 = vmatmul.f32.gmra.mxu0 %v1410
    %v1429 = vpop.f32.mrf.mxu0
    %v1430 = vadd.f32 %v1401, %v1429
    %1431 = vdwg.mxu0
    %v1432 = vld [vmem:[%s11] sm:$0xff]
    %v1433 = vld [vmem:[%s11 + $0x8] sm:$0xff]
    %v1434 = vld [vmem:[%s11 + $0x10] sm:$0xff]
    %v1435 = vld [vmem:[%s11 + $0x18] sm:$0xff]
    %1436 = vrot.lane.b32.xlu0 %v1271, 64
    %v1437 = vpop.permute.xlu0 %1436
    %v1438 = vsel %vm585, %v1437, 0
    %1440 = vmatpush.msra.mxu0 0.0
    %1441 = vmatpush.msra.mxu0 0.0
    %1442 = vmatpush.msra.mxu0 0.0
    %1443 = vmatpush.msra.mxu0 0.0
    %1444 = vmatpush.msra.mxu0 0.0
    %1445 = vmatpush.msra.mxu0 0.0
    %1446 = vmatpush.msra.mxu0 0.0
    %1447 = vmatpush.msra.mxu0 0.0
    %1448 = vmatpush.msra.mxu0 0.0
    %1449 = vmatpush.msra.mxu0 0.0
    %1450 = vmatpush.msra.mxu0 0.0
    %1451 = vmatpush.msra.mxu0 0.0
    %1452 = vmatpush.msra.mxu0 %v1435
    %1453 = vmatpush.msra.mxu0 %v1434
    %1454 = vmatpush.msra.mxu0 %v1433
    %1455 = vmatpush.msra.mxu0 %v1432
    %1456 = vmatmul.f32.gmra.mxu0 %v1438
    %v1457 = vpop.f32.mrf.mxu0
    %v1458 = vadd.f32 0.0, %v1457
    %1459 = vdwg.mxu0
    %v1460 = vadd.f32 %v1430, %v1458
    %v1461 = vxor.u32 %v1460, 2147483648
    %v1462 = vmul.f32 %v1461, 1.442695
    %v1463 = vpow.pop %v1462
    %v1464 = vadd.f32 %v1463, 1.0
    %v1465 = vrcp.pop %v1464
    %v1466 = vmul.f32 %v1464, %v1465
    %v1467 = vsub.f32 1.0, %v1466
    %v1468 = vmul.f32 %v1465, %v1467
    %v1469 = vadd.f32 %v1465, %v1468
    %vm1470 = vweird.f32 %v1464
    %vm1471 = vweird.f32 %v1465
    %vm1472 = vmor %vm1470, %vm1471
    %v1473 = vsel %vm1472, %v1465, %v1469
    %v1474 = vand.u32 2147483647, %v1464
    %vm1475 = vcmp.eq.f32.partialorder %v1474, 8.507059e+37
    %v1476 = vand.u32 %v1464, 2147483648
    %v1477 = vor.u32 1.1754944e-38, %v1476
    %v1478 = vsel %vm1475, %v1477, %v1473
    %v1479 = vmul.f32 1.0, %v1478
    %v1480 = vtanh.pop %v1460
    %v1481 = vmul.f32 %v1479, %v1265
    %1483 = vrot.lane.b32.xlu0 %v1480, 32
    %v1484 = vpop.permute.xlu0 %1483
    %v1486 = vmul.f32 %v1479, %v1484
    %1488 = vrot.lane.b32.xlu0 %v1486, 32
    %v1489 = vpop.permute.xlu0 %1488
    %v1491 = vadd.f32 %v1481, %v1489
    %v1492 = vtanh.pop %v1491
    %1494 = vrot.lane.b32.xlu0 %v1492, 32
    %v1495 = vpop.permute.xlu0 %1494
    %v1497 = vmul.f32 %v1479, %v1495
    %v1499 = vrot.slane %v1497, 1
    %v1500 = vperm.slane %v1497, 0
    %v1501 = vperm.slane %v1499, 0
    %1502 = vrot.lane.b32.xlu0 %v1500, 64
    %v1503 = vpop.permute.xlu0 %1502
    %1504 = vrot.lane.b32.xlu0 %v1501, 64
    %v1505 = vpop.permute.xlu0 %1504
    %1508 = vst.msk [vmem:[#allocation2 + $0x3] sm:$0x1] %vm831, %v1503
    %1509 = vst.msk [vmem:[#allocation2 + $0xb] sm:$0x1] %vm831, %v1505
    %v1510 = vld [vmem:[%s9] sm:$0xff]
    %v1511 = vld [vmem:[%s9 + $0x8] sm:$0xff]
    %v1512 = vld [vmem:[%s9 + $0x10] sm:$0xff]
    %v1513 = vld [vmem:[%s9 + $0x18] sm:$0xff]
    %1514 = vmatpush.msra.mxu0 0.0
    %1515 = vmatpush.msra.mxu0 0.0
    %1516 = vmatpush.msra.mxu0 0.0
    %1517 = vmatpush.msra.mxu0 0.0
    %1518 = vmatpush.msra.mxu0 0.0
    %1519 = vmatpush.msra.mxu0 0.0
    %1520 = vmatpush.msra.mxu0 0.0
    %1521 = vmatpush.msra.mxu0 0.0
    %1522 = vmatpush.msra.mxu0 0.0
    %1523 = vmatpush.msra.mxu0 0.0
    %1524 = vmatpush.msra.mxu0 0.0
    %1525 = vmatpush.msra.mxu0 0.0
    %1526 = vmatpush.msra.mxu0 %v1513
    %1527 = vmatpush.msra.mxu0 %v1512
    %1528 = vmatpush.msra.mxu0 %v1511
    %1529 = vmatpush.msra.mxu0 %v1510
    %1530 = vmatmul.f32.gmra.mxu0 %v1410
    %v1531 = vpop.f32.mrf.mxu0
    %v1532 = vadd.f32 0.0, %v1531
    %1533 = vdwg.mxu0
    %v1535 = vrot.slane %v1532, 4
    %v1536 = vrot.slane %v1532, 5
    %v1539 = vadd.f32 %v610, %v1535
    %v1540 = vadd.f32 %v613, %v1536
    %v1541 = vxor.u32 %v1539, 2147483648
    %v1542 = vxor.u32 %v1540, 2147483648
    %v1543 = vmul.f32 %v1541, 1.442695
    %v1544 = vpow.pop %v1543
    %v1545 = vmul.f32 %v1542, 1.442695
    %v1546 = vpow.pop %v1545
    %v1547 = vadd.f32 %v1544, 1.0
    %v1548 = vadd.f32 %v1546, 1.0
    %v1549 = vrcp.pop %v1547
    %v1550 = vmul.f32 %v1547, %v1549
    %v1551 = vsub.f32 1.0, %v1550
    %v1552 = vmul.f32 %v1549, %v1551
    %v1553 = vadd.f32 %v1549, %v1552
    %vm1554 = vweird.f32 %v1547
    %vm1555 = vweird.f32 %v1549
    %vm1556 = vmor %vm1554, %vm1555
    %v1557 = vsel %vm1556, %v1549, %v1553
    %v1558 = vand.u32 2147483647, %v1547
    %vm1559 = vcmp.eq.f32.partialorder %v1558, 8.507059e+37
    %v1560 = vand.u32 %v1547, 2147483648
    %v1561 = vor.u32 1.1754944e-38, %v1560
    %v1562 = vsel %vm1559, %v1561, %v1557
    %v1563 = vmul.f32 1.0, %v1562
    %v1564 = vrcp.pop %v1548
    %v1565 = vmul.f32 %v1548, %v1564
    %v1566 = vsub.f32 1.0, %v1565
    %v1567 = vmul.f32 %v1564, %v1566
    %v1568 = vadd.f32 %v1564, %v1567
    %vm1569 = vweird.f32 %v1548
    %vm1570 = vweird.f32 %v1564
    %vm1571 = vmor %vm1569, %vm1570
    %v1572 = vsel %vm1571, %v1564, %v1568
    %v1573 = vand.u32 2147483647, %v1548
    %vm1574 = vcmp.eq.f32.partialorder %v1573, 8.507059e+37
    %v1575 = vand.u32 %v1548, 2147483648
    %v1576 = vor.u32 1.1754944e-38, %v1575
    %v1577 = vsel %vm1574, %v1576, %v1572
    %v1578 = vmul.f32 1.0, %v1577
    %v1579 = vtanh.pop %v1539
    %v1580 = vtanh.pop %v1540
    %v1583 = vrot.slane %v1381, 7
    %v1584 = vrot.slane %v1382, 7
    %v1587 = vmul.f32 %v1563, %v1583
    %v1588 = vmul.f32 %v1578, %v1584
    %1591 = vrot.lane.b32.xlu0 %v1579, 32
    %v1592 = vpop.permute.xlu0 %1591
    %1593 = vrot.lane.b32.xlu0 %v1580, 32
    %v1594 = vpop.permute.xlu0 %1593
    %v1597 = vmul.f32 %v1563, %v1592
    %v1598 = vmul.f32 %v1578, %v1594
    %1601 = vrot.lane.b32.xlu0 %v1597, 32
    %v1602 = vpop.permute.xlu0 %1601
    %1603 = vrot.lane.b32.xlu0 %v1598, 32
    %v1604 = vpop.permute.xlu0 %1603
    %v1607 = vadd.f32 %v1587, %v1602
    %v1608 = vadd.f32 %v1588, %v1604
    %v1609 = vtanh.pop %v1607
    %v1610 = vtanh.pop %v1608
    %1613 = vrot.lane.b32.xlu0 %v1609, 32
    %v1614 = vpop.permute.xlu0 %1613
    %1615 = vrot.lane.b32.xlu0 %v1610, 32
    %v1616 = vpop.permute.xlu0 %1615
    %v1619 = vmul.f32 %v1563, %v1614
    %v1620 = vmul.f32 %v1578, %v1616
    %v1621 = vld [vmem:[%s7] sm:$0xff]
    %v1622 = vld [vmem:[%s7 + $0x8] sm:$0xff]
    %v1623 = vld [vmem:[%s7 + $0x10] sm:$0xff]
    %v1624 = vld [vmem:[%s7 + $0x18] sm:$0xff]
    %v1625 = vld [vmem:[#allocation7] sm:$0x1]
    %v1627 = vperm.slane %v1625, 0
    %v1631 = vrot.slane %v1619, 4
    %v1632 = vrot.slane %v1620, 3
    %v1633 = vsel %vm733, %v1632, %v1631
    %1634 = vrot.lane.b32.xlu0 %v1633, 64
    %v1635 = vpop.permute.xlu0 %1634
    %v1636 = vsel %vm585, %v1635, 0
    %1638 = vmatpush.msra.mxu0 0.0
    %1639 = vmatpush.msra.mxu0 0.0
    %1640 = vmatpush.msra.mxu0 0.0
    %1641 = vmatpush.msra.mxu0 0.0
    %1642 = vmatpush.msra.mxu0 0.0
    %1643 = vmatpush.msra.mxu0 0.0
    %1644 = vmatpush.msra.mxu0 0.0
    %1645 = vmatpush.msra.mxu0 0.0
    %1646 = vmatpush.msra.mxu0 0.0
    %1647 = vmatpush.msra.mxu0 0.0
    %1648 = vmatpush.msra.mxu0 0.0
    %1649 = vmatpush.msra.mxu0 0.0
    %1650 = vmatpush.msra.mxu0 %v1624
    %1651 = vmatpush.msra.mxu0 %v1623
    %1652 = vmatpush.msra.mxu0 %v1622
    %1653 = vmatpush.msra.mxu0 %v1621
    %1654 = vmatmul.f32.gmra.mxu0 %v1636
    %v1655 = vpop.f32.mrf.mxu0
    %v1656 = vadd.f32 %v1627, %v1655
    %1657 = vdwg.mxu0
    %v1658 = vld [vmem:[%s11] sm:$0xff]
    %v1659 = vld [vmem:[%s11 + $0x8] sm:$0xff]
    %v1660 = vld [vmem:[%s11 + $0x10] sm:$0xff]
    %v1661 = vld [vmem:[%s11 + $0x18] sm:$0xff]
    %1662 = vrot.lane.b32.xlu0 %v1497, 64
    %v1663 = vpop.permute.xlu0 %1662
    %v1664 = vsel %vm585, %v1663, 0
    %1666 = vmatpush.msra.mxu0 0.0
    %1667 = vmatpush.msra.mxu0 0.0
    %1668 = vmatpush.msra.mxu0 0.0
    %1669 = vmatpush.msra.mxu0 0.0
    %1670 = vmatpush.msra.mxu0 0.0
    %1671 = vmatpush.msra.mxu0 0.0
    %1672 = vmatpush.msra.mxu0 0.0
    %1673 = vmatpush.msra.mxu0 0.0
    %1674 = vmatpush.msra.mxu0 0.0
    %1675 = vmatpush.msra.mxu0 0.0
    %1676 = vmatpush.msra.mxu0 0.0
    %1677 = vmatpush.msra.mxu0 0.0
    %1678 = vmatpush.msra.mxu0 %v1661
    %1679 = vmatpush.msra.mxu0 %v1660
    %1680 = vmatpush.msra.mxu0 %v1659
    %1681 = vmatpush.msra.mxu0 %v1658
    %1682 = vmatmul.f32.gmra.mxu0 %v1664
    %v1683 = vpop.f32.mrf.mxu0
    %v1684 = vadd.f32 0.0, %v1683
    %1685 = vdwg.mxu0
    %v1686 = vadd.f32 %v1656, %v1684
    %v1687 = vxor.u32 %v1686, 2147483648
    %v1688 = vmul.f32 %v1687, 1.442695
    %v1689 = vpow.pop %v1688
    %v1690 = vadd.f32 %v1689, 1.0
    %v1691 = vrcp.pop %v1690
    %v1692 = vmul.f32 %v1690, %v1691
    %v1693 = vsub.f32 1.0, %v1692
    %v1694 = vmul.f32 %v1691, %v1693
    %v1695 = vadd.f32 %v1691, %v1694
    %vm1696 = vweird.f32 %v1690
    %vm1697 = vweird.f32 %v1691
    %vm1698 = vmor %vm1696, %vm1697
    %v1699 = vsel %vm1698, %v1691, %v1695
    %v1700 = vand.u32 2147483647, %v1690
    %vm1701 = vcmp.eq.f32.partialorder %v1700, 8.507059e+37
    %v1702 = vand.u32 %v1690, 2147483648
    %v1703 = vor.u32 1.1754944e-38, %v1702
    %v1704 = vsel %vm1701, %v1703, %v1699
    %v1705 = vmul.f32 1.0, %v1704
    %v1706 = vtanh.pop %v1686
    %v1707 = vmul.f32 %v1705, %v1491
    %1709 = vrot.lane.b32.xlu0 %v1706, 32
    %v1710 = vpop.permute.xlu0 %1709
    %v1712 = vmul.f32 %v1705, %v1710
    %1714 = vrot.lane.b32.xlu0 %v1712, 32
    %v1715 = vpop.permute.xlu0 %1714
    %v1717 = vadd.f32 %v1707, %v1715
    %v1718 = vtanh.pop %v1717
    %1720 = vrot.lane.b32.xlu0 %v1718, 32
    %v1721 = vpop.permute.xlu0 %1720
    %v1723 = vmul.f32 %v1705, %v1721
    %v1725 = vrot.slane %v1723, 1
    %v1726 = vperm.slane %v1723, 0
    %v1727 = vperm.slane %v1725, 0
    %1728 = vrot.lane.b32.xlu0 %v1726, 64
    %v1729 = vpop.permute.xlu0 %1728
    %1730 = vrot.lane.b32.xlu0 %v1727, 64
    %v1731 = vpop.permute.xlu0 %1730
    %1734 = vst.msk [vmem:[#allocation2 + $0x4] sm:$0x1] %vm831, %v1729
    %1735 = vst.msk [vmem:[#allocation2 + $0xc] sm:$0x1] %vm831, %v1731
    %v1736 = vld [vmem:[%s9] sm:$0xff]
    %v1737 = vld [vmem:[%s9 + $0x8] sm:$0xff]
    %v1738 = vld [vmem:[%s9 + $0x10] sm:$0xff]
    %v1739 = vld [vmem:[%s9 + $0x18] sm:$0xff]
    %1740 = vmatpush.msra.mxu0 0.0
    %1741 = vmatpush.msra.mxu0 0.0
    %1742 = vmatpush.msra.mxu0 0.0
    %1743 = vmatpush.msra.mxu0 0.0
    %1744 = vmatpush.msra.mxu0 0.0
    %1745 = vmatpush.msra.mxu0 0.0
    %1746 = vmatpush.msra.mxu0 0.0
    %1747 = vmatpush.msra.mxu0 0.0
    %1748 = vmatpush.msra.mxu0 0.0
    %1749 = vmatpush.msra.mxu0 0.0
    %1750 = vmatpush.msra.mxu0 0.0
    %1751 = vmatpush.msra.mxu0 0.0
    %1752 = vmatpush.msra.mxu0 %v1739
    %1753 = vmatpush.msra.mxu0 %v1738
    %1754 = vmatpush.msra.mxu0 %v1737
    %1755 = vmatpush.msra.mxu0 %v1736
    %1756 = vmatmul.f32.gmra.mxu0 %v1636
    %v1757 = vpop.f32.mrf.mxu0
    %v1758 = vadd.f32 0.0, %v1757
    %1759 = vdwg.mxu0
    %v1761 = vrot.slane %v1758, 3
    %v1762 = vrot.slane %v1758, 4
    %v1765 = vadd.f32 %v610, %v1761
    %v1766 = vadd.f32 %v613, %v1762
    %v1767 = vxor.u32 %v1765, 2147483648
    %v1768 = vxor.u32 %v1766, 2147483648
    %v1769 = vmul.f32 %v1767, 1.442695
    %v1770 = vpow.pop %v1769
    %v1771 = vmul.f32 %v1768, 1.442695
    %v1772 = vpow.pop %v1771
    %v1773 = vadd.f32 %v1770, 1.0
    %v1774 = vadd.f32 %v1772, 1.0
    %v1775 = vrcp.pop %v1773
    %v1776 = vmul.f32 %v1773, %v1775
    %v1777 = vsub.f32 1.0, %v1776
    %v1778 = vmul.f32 %v1775, %v1777
    %v1779 = vadd.f32 %v1775, %v1778
    %vm1780 = vweird.f32 %v1773
    %vm1781 = vweird.f32 %v1775
    %vm1782 = vmor %vm1780, %vm1781
    %v1783 = vsel %vm1782, %v1775, %v1779
    %v1784 = vand.u32 2147483647, %v1773
    %vm1785 = vcmp.eq.f32.partialorder %v1784, 8.507059e+37
    %v1786 = vand.u32 %v1773, 2147483648
    %v1787 = vor.u32 1.1754944e-38, %v1786
    %v1788 = vsel %vm1785, %v1787, %v1783
    %v1789 = vmul.f32 1.0, %v1788
    %v1790 = vrcp.pop %v1774
    %v1791 = vmul.f32 %v1774, %v1790
    %v1792 = vsub.f32 1.0, %v1791
    %v1793 = vmul.f32 %v1790, %v1792
    %v1794 = vadd.f32 %v1790, %v1793
    %vm1795 = vweird.f32 %v1774
    %vm1796 = vweird.f32 %v1790
    %vm1797 = vmor %vm1795, %vm1796
    %v1798 = vsel %vm1797, %v1790, %v1794
    %v1799 = vand.u32 2147483647, %v1774
    %vm1800 = vcmp.eq.f32.partialorder %v1799, 8.507059e+37
    %v1801 = vand.u32 %v1774, 2147483648
    %v1802 = vor.u32 1.1754944e-38, %v1801
    %v1803 = vsel %vm1800, %v1802, %v1798
    %v1804 = vmul.f32 1.0, %v1803
    %v1805 = vtanh.pop %v1765
    %v1806 = vtanh.pop %v1766
    %v1809 = vrot.slane %v1607, 7
    %v1810 = vrot.slane %v1608, 7
    %v1813 = vmul.f32 %v1789, %v1809
    %v1814 = vmul.f32 %v1804, %v1810
    %1817 = vrot.lane.b32.xlu0 %v1805, 32
    %v1818 = vpop.permute.xlu0 %1817
    %1819 = vrot.lane.b32.xlu0 %v1806, 32
    %v1820 = vpop.permute.xlu0 %1819
    %v1823 = vmul.f32 %v1789, %v1818
    %v1824 = vmul.f32 %v1804, %v1820
    %1827 = vrot.lane.b32.xlu0 %v1823, 32
    %v1828 = vpop.permute.xlu0 %1827
    %1829 = vrot.lane.b32.xlu0 %v1824, 32
    %v1830 = vpop.permute.xlu0 %1829
    %v1833 = vadd.f32 %v1813, %v1828
    %v1834 = vadd.f32 %v1814, %v1830
    %v1835 = vtanh.pop %v1833
    %v1836 = vtanh.pop %v1834
    %1839 = vrot.lane.b32.xlu0 %v1835, 32
    %v1840 = vpop.permute.xlu0 %1839
    %1841 = vrot.lane.b32.xlu0 %v1836, 32
    %v1842 = vpop.permute.xlu0 %1841
    %v1845 = vmul.f32 %v1789, %v1840
    %v1846 = vmul.f32 %v1804, %v1842
    %v1847 = vld [vmem:[%s7] sm:$0xff]
    %v1848 = vld [vmem:[%s7 + $0x8] sm:$0xff]
    %v1849 = vld [vmem:[%s7 + $0x10] sm:$0xff]
    %v1850 = vld [vmem:[%s7 + $0x18] sm:$0xff]
    %v1851 = vld [vmem:[#allocation7] sm:$0x1]
    %v1853 = vperm.slane %v1851, 0
    %v1857 = vrot.slane %v1845, 5
    %v1858 = vrot.slane %v1846, 4
    %v1859 = vsel %vm733, %v1858, %v1857
    %1860 = vrot.lane.b32.xlu0 %v1859, 64
    %v1861 = vpop.permute.xlu0 %1860
    %v1862 = vsel %vm585, %v1861, 0
    %1864 = vmatpush.msra.mxu0 0.0
    %1865 = vmatpush.msra.mxu0 0.0
    %1866 = vmatpush.msra.mxu0 0.0
    %1867 = vmatpush.msra.mxu0 0.0
    %1868 = vmatpush.msra.mxu0 0.0
    %1869 = vmatpush.msra.mxu0 0.0
    %1870 = vmatpush.msra.mxu0 0.0
    %1871 = vmatpush.msra.mxu0 0.0
    %1872 = vmatpush.msra.mxu0 0.0
    %1873 = vmatpush.msra.mxu0 0.0
    %1874 = vmatpush.msra.mxu0 0.0
    %1875 = vmatpush.msra.mxu0 0.0
    %1876 = vmatpush.msra.mxu0 %v1850
    %1877 = vmatpush.msra.mxu0 %v1849
    %1878 = vmatpush.msra.mxu0 %v1848
    %1879 = vmatpush.msra.mxu0 %v1847
    %1880 = vmatmul.f32.gmra.mxu0 %v1862
    %v1881 = vpop.f32.mrf.mxu0
    %v1882 = vadd.f32 %v1853, %v1881
    %1883 = vdwg.mxu0
    %v1884 = vld [vmem:[%s11] sm:$0xff]
    %v1885 = vld [vmem:[%s11 + $0x8] sm:$0xff]
    %v1886 = vld [vmem:[%s11 + $0x10] sm:$0xff]
    %v1887 = vld [vmem:[%s11 + $0x18] sm:$0xff]
    %1888 = vrot.lane.b32.xlu0 %v1723, 64
    %v1889 = vpop.permute.xlu0 %1888
    %v1890 = vsel %vm585, %v1889, 0
    %1892 = vmatpush.msra.mxu0 0.0
    %1893 = vmatpush.msra.mxu0 0.0
    %1894 = vmatpush.msra.mxu0 0.0
    %1895 = vmatpush.msra.mxu0 0.0
    %1896 = vmatpush.msra.mxu0 0.0
    %1897 = vmatpush.msra.mxu0 0.0
    %1898 = vmatpush.msra.mxu0 0.0
    %1899 = vmatpush.msra.mxu0 0.0
    %1900 = vmatpush.msra.mxu0 0.0
    %1901 = vmatpush.msra.mxu0 0.0
    %1902 = vmatpush.msra.mxu0 0.0
    %1903 = vmatpush.msra.mxu0 0.0
    %1904 = vmatpush.msra.mxu0 %v1887
    %1905 = vmatpush.msra.mxu0 %v1886
    %1906 = vmatpush.msra.mxu0 %v1885
    %1907 = vmatpush.msra.mxu0 %v1884
    %1908 = vmatmul.f32.gmra.mxu0 %v1890
    %v1909 = vpop.f32.mrf.mxu0
    %v1910 = vadd.f32 0.0, %v1909
    %1911 = vdwg.mxu0
    %v1912 = vadd.f32 %v1882, %v1910
    %v1913 = vxor.u32 %v1912, 2147483648
    %v1914 = vmul.f32 %v1913, 1.442695
    %v1915 = vpow.pop %v1914
    %v1916 = vadd.f32 %v1915, 1.0
    %v1917 = vrcp.pop %v1916
    %v1918 = vmul.f32 %v1916, %v1917
    %v1919 = vsub.f32 1.0, %v1918
    %v1920 = vmul.f32 %v1917, %v1919
    %v1921 = vadd.f32 %v1917, %v1920
    %vm1922 = vweird.f32 %v1916
    %vm1923 = vweird.f32 %v1917
    %vm1924 = vmor %vm1922, %vm1923
    %v1925 = vsel %vm1924, %v1917, %v1921
    %v1926 = vand.u32 2147483647, %v1916
    %vm1927 = vcmp.eq.f32.partialorder %v1926, 8.507059e+37
    %v1928 = vand.u32 %v1916, 2147483648
    %v1929 = vor.u32 1.1754944e-38, %v1928
    %v1930 = vsel %vm1927, %v1929, %v1925
    %v1931 = vmul.f32 1.0, %v1930
    %v1932 = vtanh.pop %v1912
    %v1933 = vmul.f32 %v1931, %v1717
    %1935 = vrot.lane.b32.xlu0 %v1932, 32
    %v1936 = vpop.permute.xlu0 %1935
    %v1938 = vmul.f32 %v1931, %v1936
    %1940 = vrot.lane.b32.xlu0 %v1938, 32
    %v1941 = vpop.permute.xlu0 %1940
    %v1943 = vadd.f32 %v1933, %v1941
    %v1944 = vtanh.pop %v1943
    %1946 = vrot.lane.b32.xlu0 %v1944, 32
    %v1947 = vpop.permute.xlu0 %1946
    %v1949 = vmul.f32 %v1931, %v1947
    %v1951 = vrot.slane %v1949, 1
    %v1952 = vperm.slane %v1949, 0
    %v1953 = vperm.slane %v1951, 0
    %1954 = vrot.lane.b32.xlu0 %v1952, 64
    %v1955 = vpop.permute.xlu0 %1954
    %1956 = vrot.lane.b32.xlu0 %v1953, 64
    %v1957 = vpop.permute.xlu0 %1956
    %1960 = vst.msk [vmem:[#allocation2 + $0x5] sm:$0x1] %vm831, %v1955
    %1961 = vst.msk [vmem:[#allocation2 + $0xd] sm:$0x1] %vm831, %v1957
    %v1962 = vld [vmem:[%s9] sm:$0xff]
    %v1963 = vld [vmem:[%s9 + $0x8] sm:$0xff]
    %v1964 = vld [vmem:[%s9 + $0x10] sm:$0xff]
    %v1965 = vld [vmem:[%s9 + $0x18] sm:$0xff]
    %1966 = vmatpush.msra.mxu0 0.0
    %1967 = vmatpush.msra.mxu0 0.0
    %1968 = vmatpush.msra.mxu0 0.0
    %1969 = vmatpush.msra.mxu0 0.0
    %1970 = vmatpush.msra.mxu0 0.0
    %1971 = vmatpush.msra.mxu0 0.0
    %1972 = vmatpush.msra.mxu0 0.0
    %1973 = vmatpush.msra.mxu0 0.0
    %1974 = vmatpush.msra.mxu0 0.0
    %1975 = vmatpush.msra.mxu0 0.0
    %1976 = vmatpush.msra.mxu0 0.0
    %1977 = vmatpush.msra.mxu0 0.0
    %1978 = vmatpush.msra.mxu0 %v1965
    %1979 = vmatpush.msra.mxu0 %v1964
    %1980 = vmatpush.msra.mxu0 %v1963
    %1981 = vmatpush.msra.mxu0 %v1962
    %1982 = vmatmul.f32.gmra.mxu0 %v1862
    %v1983 = vpop.f32.mrf.mxu0
    %v1984 = vadd.f32 0.0, %v1983
    %1985 = vdwg.mxu0
    %v1987 = vrot.slane %v1984, 2
    %v1988 = vrot.slane %v1984, 3
    %v1991 = vadd.f32 %v610, %v1987
    %v1992 = vadd.f32 %v613, %v1988
    %v1993 = vxor.u32 %v1991, 2147483648
    %v1994 = vxor.u32 %v1992, 2147483648
    %v1995 = vmul.f32 %v1993, 1.442695
    %v1996 = vpow.pop %v1995
    %v1997 = vmul.f32 %v1994, 1.442695
    %v1998 = vpow.pop %v1997
    %v1999 = vadd.f32 %v1996, 1.0
    %v2000 = vadd.f32 %v1998, 1.0
    %v2001 = vrcp.pop %v1999
    %v2002 = vmul.f32 %v1999, %v2001
    %v2003 = vsub.f32 1.0, %v2002
    %v2004 = vmul.f32 %v2001, %v2003
    %v2005 = vadd.f32 %v2001, %v2004
    %vm2006 = vweird.f32 %v1999
    %vm2007 = vweird.f32 %v2001
    %vm2008 = vmor %vm2006, %vm2007
    %v2009 = vsel %vm2008, %v2001, %v2005
    %v2010 = vand.u32 2147483647, %v1999
    %vm2011 = vcmp.eq.f32.partialorder %v2010, 8.507059e+37
    %v2012 = vand.u32 %v1999, 2147483648
    %v2013 = vor.u32 1.1754944e-38, %v2012
    %v2014 = vsel %vm2011, %v2013, %v2009
    %v2015 = vmul.f32 1.0, %v2014
    %v2016 = vrcp.pop %v2000
    %v2017 = vmul.f32 %v2000, %v2016
    %v2018 = vsub.f32 1.0, %v2017
    %v2019 = vmul.f32 %v2016, %v2018
    %v2020 = vadd.f32 %v2016, %v2019
    %vm2021 = vweird.f32 %v2000
    %vm2022 = vweird.f32 %v2016
    %vm2023 = vmor %vm2021, %vm2022
    %v2024 = vsel %vm2023, %v2016, %v2020
    %v2025 = vand.u32 2147483647, %v2000
    %vm2026 = vcmp.eq.f32.partialorder %v2025, 8.507059e+37
    %v2027 = vand.u32 %v2000, 2147483648
    %v2028 = vor.u32 1.1754944e-38, %v2027
    %v2029 = vsel %vm2026, %v2028, %v2024
    %v2030 = vmul.f32 1.0, %v2029
    %v2031 = vtanh.pop %v1991
    %v2032 = vtanh.pop %v1992
    %v2035 = vrot.slane %v1833, 7
    %v2036 = vrot.slane %v1834, 7
    %v2039 = vmul.f32 %v2015, %v2035
    %v2040 = vmul.f32 %v2030, %v2036
    %2043 = vrot.lane.b32.xlu0 %v2031, 32
    %v2044 = vpop.permute.xlu0 %2043
    %2045 = vrot.lane.b32.xlu0 %v2032, 32
    %v2046 = vpop.permute.xlu0 %2045
    %v2049 = vmul.f32 %v2015, %v2044
    %v2050 = vmul.f32 %v2030, %v2046
    %2053 = vrot.lane.b32.xlu0 %v2049, 32
    %v2054 = vpop.permute.xlu0 %2053
    %2055 = vrot.lane.b32.xlu0 %v2050, 32
    %v2056 = vpop.permute.xlu0 %2055
    %v2059 = vadd.f32 %v2039, %v2054
    %v2060 = vadd.f32 %v2040, %v2056
    %v2061 = vtanh.pop %v2059
    %v2062 = vtanh.pop %v2060
    %2065 = vrot.lane.b32.xlu0 %v2061, 32
    %v2066 = vpop.permute.xlu0 %2065
    %2067 = vrot.lane.b32.xlu0 %v2062, 32
    %v2068 = vpop.permute.xlu0 %2067
    %v2071 = vmul.f32 %v2015, %v2066
    %v2072 = vmul.f32 %v2030, %v2068
    %v2073 = vld [vmem:[%s7] sm:$0xff]
    %v2074 = vld [vmem:[%s7 + $0x8] sm:$0xff]
    %v2075 = vld [vmem:[%s7 + $0x10] sm:$0xff]
    %v2076 = vld [vmem:[%s7 + $0x18] sm:$0xff]
    %v2077 = vld [vmem:[#allocation7] sm:$0x1]
    %v2079 = vperm.slane %v2077, 0
    %v2083 = vrot.slane %v2071, 6
    %v2084 = vrot.slane %v2072, 5
    %v2085 = vsel %vm733, %v2084, %v2083
    %2086 = vrot.lane.b32.xlu0 %v2085, 64
    %v2087 = vpop.permute.xlu0 %2086
    %v2088 = vsel %vm585, %v2087, 0
    %2090 = vmatpush.msra.mxu0 0.0
    %2091 = vmatpush.msra.mxu0 0.0
    %2092 = vmatpush.msra.mxu0 0.0
    %2093 = vmatpush.msra.mxu0 0.0
    %2094 = vmatpush.msra.mxu0 0.0
    %2095 = vmatpush.msra.mxu0 0.0
    %2096 = vmatpush.msra.mxu0 0.0
    %2097 = vmatpush.msra.mxu0 0.0
    %2098 = vmatpush.msra.mxu0 0.0
    %2099 = vmatpush.msra.mxu0 0.0
    %2100 = vmatpush.msra.mxu0 0.0
    %2101 = vmatpush.msra.mxu0 0.0
    %2102 = vmatpush.msra.mxu0 %v2076
    %2103 = vmatpush.msra.mxu0 %v2075
    %2104 = vmatpush.msra.mxu0 %v2074
    %2105 = vmatpush.msra.mxu0 %v2073
    %2106 = vmatmul.f32.gmra.mxu0 %v2088
    %v2107 = vpop.f32.mrf.mxu0
    %v2108 = vadd.f32 %v2079, %v2107
    %2109 = vdwg.mxu0
    %v2110 = vld [vmem:[%s11] sm:$0xff]
    %v2111 = vld [vmem:[%s11 + $0x8] sm:$0xff]
    %v2112 = vld [vmem:[%s11 + $0x10] sm:$0xff]
    %v2113 = vld [vmem:[%s11 + $0x18] sm:$0xff]
    %2114 = vrot.lane.b32.xlu0 %v1949, 64
    %v2115 = vpop.permute.xlu0 %2114
    %v2116 = vsel %vm585, %v2115, 0
    %2118 = vmatpush.msra.mxu0 0.0
    %2119 = vmatpush.msra.mxu0 0.0
    %2120 = vmatpush.msra.mxu0 0.0
    %2121 = vmatpush.msra.mxu0 0.0
    %2122 = vmatpush.msra.mxu0 0.0
    %2123 = vmatpush.msra.mxu0 0.0
    %2124 = vmatpush.msra.mxu0 0.0
    %2125 = vmatpush.msra.mxu0 0.0
    %2126 = vmatpush.msra.mxu0 0.0
    %2127 = vmatpush.msra.mxu0 0.0
    %2128 = vmatpush.msra.mxu0 0.0
    %2129 = vmatpush.msra.mxu0 0.0
    %2130 = vmatpush.msra.mxu0 %v2113
    %2131 = vmatpush.msra.mxu0 %v2112
    %2132 = vmatpush.msra.mxu0 %v2111
    %2133 = vmatpush.msra.mxu0 %v2110
    %2134 = vmatmul.f32.gmra.mxu0 %v2116
    %v2135 = vpop.f32.mrf.mxu0
    %v2136 = vadd.f32 0.0, %v2135
    %2137 = vdwg.mxu0
    %v2138 = vadd.f32 %v2108, %v2136
    %v2139 = vxor.u32 %v2138, 2147483648
    %v2140 = vmul.f32 %v2139, 1.442695
    %v2141 = vpow.pop %v2140
    %v2142 = vadd.f32 %v2141, 1.0
    %v2143 = vrcp.pop %v2142
    %v2144 = vmul.f32 %v2142, %v2143
    %v2145 = vsub.f32 1.0, %v2144
    %v2146 = vmul.f32 %v2143, %v2145
    %v2147 = vadd.f32 %v2143, %v2146
    %vm2148 = vweird.f32 %v2142
    %vm2149 = vweird.f32 %v2143
    %vm2150 = vmor %vm2148, %vm2149
    %v2151 = vsel %vm2150, %v2143, %v2147
    %v2152 = vand.u32 2147483647, %v2142
    %vm2153 = vcmp.eq.f32.partialorder %v2152, 8.507059e+37
    %v2154 = vand.u32 %v2142, 2147483648
    %v2155 = vor.u32 1.1754944e-38, %v2154
    %v2156 = vsel %vm2153, %v2155, %v2151
    %v2157 = vmul.f32 1.0, %v2156
    %v2158 = vtanh.pop %v2138
    %v2159 = vmul.f32 %v2157, %v1943
    %2161 = vrot.lane.b32.xlu0 %v2158, 32
    %v2162 = vpop.permute.xlu0 %2161
    %v2164 = vmul.f32 %v2157, %v2162
    %2166 = vrot.lane.b32.xlu0 %v2164, 32
    %v2167 = vpop.permute.xlu0 %2166
    %v2169 = vadd.f32 %v2159, %v2167
    %v2170 = vtanh.pop %v2169
    %2172 = vrot.lane.b32.xlu0 %v2170, 32
    %v2173 = vpop.permute.xlu0 %2172
    %v2175 = vmul.f32 %v2157, %v2173
    %v2177 = vrot.slane %v2175, 1
    %v2178 = vperm.slane %v2175, 0
    %v2179 = vperm.slane %v2177, 0
    %2180 = vrot.lane.b32.xlu0 %v2178, 64
    %v2181 = vpop.permute.xlu0 %2180
    %2182 = vrot.lane.b32.xlu0 %v2179, 64
    %v2183 = vpop.permute.xlu0 %2182
    %2186 = vst.msk [vmem:[#allocation2 + $0x6] sm:$0x1] %vm831, %v2181
    %2187 = vst.msk [vmem:[#allocation2 + $0xe] sm:$0x1] %vm831, %v2183
    %v2188 = vld [vmem:[%s9] sm:$0xff]
    %v2189 = vld [vmem:[%s9 + $0x8] sm:$0xff]
    %v2190 = vld [vmem:[%s9 + $0x10] sm:$0xff]
    %v2191 = vld [vmem:[%s9 + $0x18] sm:$0xff]
    %2192 = vmatpush.msra.mxu0 0.0
    %2193 = vmatpush.msra.mxu0 0.0
    %2194 = vmatpush.msra.mxu0 0.0
    %2195 = vmatpush.msra.mxu0 0.0
    %2196 = vmatpush.msra.mxu0 0.0
    %2197 = vmatpush.msra.mxu0 0.0
    %2198 = vmatpush.msra.mxu0 0.0
    %2199 = vmatpush.msra.mxu0 0.0
    %2200 = vmatpush.msra.mxu0 0.0
    %2201 = vmatpush.msra.mxu0 0.0
    %2202 = vmatpush.msra.mxu0 0.0
    %2203 = vmatpush.msra.mxu0 0.0
    %2204 = vmatpush.msra.mxu0 %v2191
    %2205 = vmatpush.msra.mxu0 %v2190
    %2206 = vmatpush.msra.mxu0 %v2189
    %2207 = vmatpush.msra.mxu0 %v2188
    %2208 = vmatmul.f32.gmra.mxu0 %v2088
    %v2209 = vpop.f32.mrf.mxu0
    %v2210 = vadd.f32 0.0, %v2209
    %2211 = vdwg.mxu0
    %v2213 = vrot.slane %v2210, 1
    %v2214 = vrot.slane %v2210, 2
    %v2217 = vadd.f32 %v610, %v2213
    %v2218 = vadd.f32 %v613, %v2214
    %v2219 = vxor.u32 %v2217, 2147483648
    %v2220 = vxor.u32 %v2218, 2147483648
    %v2221 = vmul.f32 %v2219, 1.442695
    %v2222 = vpow.pop %v2221
    %v2223 = vmul.f32 %v2220, 1.442695
    %v2224 = vpow.pop %v2223
    %v2225 = vadd.f32 %v2222, 1.0
    %v2226 = vadd.f32 %v2224, 1.0
    %v2227 = vrcp.pop %v2225
    %v2228 = vmul.f32 %v2225, %v2227
    %v2229 = vsub.f32 1.0, %v2228
    %v2230 = vmul.f32 %v2227, %v2229
    %v2231 = vadd.f32 %v2227, %v2230
    %vm2232 = vweird.f32 %v2225
    %vm2233 = vweird.f32 %v2227
    %vm2234 = vmor %vm2232, %vm2233
    %v2235 = vsel %vm2234, %v2227, %v2231
    %v2236 = vand.u32 2147483647, %v2225
    %vm2237 = vcmp.eq.f32.partialorder %v2236, 8.507059e+37
    %v2238 = vand.u32 %v2225, 2147483648
    %v2239 = vor.u32 1.1754944e-38, %v2238
    %v2240 = vsel %vm2237, %v2239, %v2235
    %v2241 = vmul.f32 1.0, %v2240
    %v2242 = vrcp.pop %v2226
    %v2243 = vmul.f32 %v2226, %v2242
    %v2244 = vsub.f32 1.0, %v2243
    %v2245 = vmul.f32 %v2242, %v2244
    %v2246 = vadd.f32 %v2242, %v2245
    %vm2247 = vweird.f32 %v2226
    %vm2248 = vweird.f32 %v2242
    %vm2249 = vmor %vm2247, %vm2248
    %v2250 = vsel %vm2249, %v2242, %v2246
    %v2251 = vand.u32 2147483647, %v2226
    %vm2252 = vcmp.eq.f32.partialorder %v2251, 8.507059e+37
    %v2253 = vand.u32 %v2226, 2147483648
    %v2254 = vor.u32 1.1754944e-38, %v2253
    %v2255 = vsel %vm2252, %v2254, %v2250
    %v2256 = vmul.f32 1.0, %v2255
    %v2257 = vtanh.pop %v2217
    %v2258 = vtanh.pop %v2218
    %v2261 = vrot.slane %v2059, 7
    %v2262 = vrot.slane %v2060, 7
    %v2265 = vmul.f32 %v2241, %v2261
    %v2266 = vmul.f32 %v2256, %v2262
    %2269 = vrot.lane.b32.xlu0 %v2257, 32
    %v2270 = vpop.permute.xlu0 %2269
    %2271 = vrot.lane.b32.xlu0 %v2258, 32
    %v2272 = vpop.permute.xlu0 %2271
    %v2275 = vmul.f32 %v2241, %v2270
    %v2276 = vmul.f32 %v2256, %v2272
    %2279 = vrot.lane.b32.xlu0 %v2275, 32
    %v2280 = vpop.permute.xlu0 %2279
    %2281 = vrot.lane.b32.xlu0 %v2276, 32
    %v2282 = vpop.permute.xlu0 %2281
    %v2285 = vadd.f32 %v2265, %v2280
    %v2286 = vadd.f32 %v2266, %v2282
    %v2287 = vtanh.pop %v2285
    %v2288 = vtanh.pop %v2286
    %2291 = vrot.lane.b32.xlu0 %v2287, 32
    %v2292 = vpop.permute.xlu0 %2291
    %2293 = vrot.lane.b32.xlu0 %v2288, 32
    %v2294 = vpop.permute.xlu0 %2293
    %v2297 = vmul.f32 %v2241, %v2292
    %v2298 = vmul.f32 %v2256, %v2294
    %v2299 = vld [vmem:[%s7] sm:$0xff]
    %v2300 = vld [vmem:[%s7 + $0x8] sm:$0xff]
    %v2301 = vld [vmem:[%s7 + $0x10] sm:$0xff]
    %v2302 = vld [vmem:[%s7 + $0x18] sm:$0xff]
    %v2303 = vld [vmem:[#allocation7] sm:$0x1]
    %v2305 = vperm.slane %v2303, 0
    %v2309 = vrot.slane %v2297, 7
    %v2310 = vrot.slane %v2298, 6
    %v2311 = vsel %vm733, %v2310, %v2309
    %2312 = vrot.lane.b32.xlu0 %v2311, 64
    %v2313 = vpop.permute.xlu0 %2312
    %v2314 = vsel %vm585, %v2313, 0
    %2316 = vmatpush.msra.mxu0 0.0
    %2317 = vmatpush.msra.mxu0 0.0
    %2318 = vmatpush.msra.mxu0 0.0
    %2319 = vmatpush.msra.mxu0 0.0
    %2320 = vmatpush.msra.mxu0 0.0
    %2321 = vmatpush.msra.mxu0 0.0
    %2322 = vmatpush.msra.mxu0 0.0
    %2323 = vmatpush.msra.mxu0 0.0
    %2324 = vmatpush.msra.mxu0 0.0
    %2325 = vmatpush.msra.mxu0 0.0
    %2326 = vmatpush.msra.mxu0 0.0
    %2327 = vmatpush.msra.mxu0 0.0
    %2328 = vmatpush.msra.mxu0 %v2302
    %2329 = vmatpush.msra.mxu0 %v2301
    %2330 = vmatpush.msra.mxu0 %v2300
    %2331 = vmatpush.msra.mxu0 %v2299
    %2332 = vmatmul.f32.gmra.mxu0 %v2314
    %v2333 = vpop.f32.mrf.mxu0
    %v2334 = vadd.f32 %v2305, %v2333
    %2335 = vdwg.mxu0
    %v2336 = vld [vmem:[%s11] sm:$0xff]
    %v2337 = vld [vmem:[%s11 + $0x8] sm:$0xff]
    %v2338 = vld [vmem:[%s11 + $0x10] sm:$0xff]
    %v2339 = vld [vmem:[%s11 + $0x18] sm:$0xff]
    %2340 = vrot.lane.b32.xlu0 %v2175, 64
    %v2341 = vpop.permute.xlu0 %2340
    %v2342 = vsel %vm585, %v2341, 0
    %2344 = vmatpush.msra.mxu0 0.0
    %2345 = vmatpush.msra.mxu0 0.0
    %2346 = vmatpush.msra.mxu0 0.0
    %2347 = vmatpush.msra.mxu0 0.0
    %2348 = vmatpush.msra.mxu0 0.0
    %2349 = vmatpush.msra.mxu0 0.0
    %2350 = vmatpush.msra.mxu0 0.0
    %2351 = vmatpush.msra.mxu0 0.0
    %2352 = vmatpush.msra.mxu0 0.0
    %2353 = vmatpush.msra.mxu0 0.0
    %2354 = vmatpush.msra.mxu0 0.0
    %2355 = vmatpush.msra.mxu0 0.0
    %2356 = vmatpush.msra.mxu0 %v2339
    %2357 = vmatpush.msra.mxu0 %v2338
    %2358 = vmatpush.msra.mxu0 %v2337
    %2359 = vmatpush.msra.mxu0 %v2336
    %2360 = vmatmul.f32.gmra.mxu0 %v2342
    %v2361 = vpop.f32.mrf.mxu0
    %v2362 = vadd.f32 0.0, %v2361
    %2363 = vdwg.mxu0
    %v2364 = vadd.f32 %v2334, %v2362
    %v2365 = vxor.u32 %v2364, 2147483648
    %v2366 = vmul.f32 %v2365, 1.442695
    %v2367 = vpow.pop %v2366
    %v2368 = vadd.f32 %v2367, 1.0
    %v2369 = vrcp.pop %v2368
    %v2370 = vmul.f32 %v2368, %v2369
    %v2371 = vsub.f32 1.0, %v2370
    %v2372 = vmul.f32 %v2369, %v2371
    %v2373 = vadd.f32 %v2369, %v2372
    %vm2374 = vweird.f32 %v2368
    %vm2375 = vweird.f32 %v2369
    %vm2376 = vmor %vm2374, %vm2375
    %v2377 = vsel %vm2376, %v2369, %v2373
    %v2378 = vand.u32 2147483647, %v2368
    %vm2379 = vcmp.eq.f32.partialorder %v2378, 8.507059e+37
    %v2380 = vand.u32 %v2368, 2147483648
    %v2381 = vor.u32 1.1754944e-38, %v2380
    %v2382 = vsel %vm2379, %v2381, %v2377
    %v2383 = vmul.f32 1.0, %v2382
    %v2384 = vtanh.pop %v2364
    %v2385 = vmul.f32 %v2383, %v2169
    %2387 = vrot.lane.b32.xlu0 %v2384, 32
    %v2388 = vpop.permute.xlu0 %2387
    %v2390 = vmul.f32 %v2383, %v2388
    %2392 = vrot.lane.b32.xlu0 %v2390, 32
    %v2393 = vpop.permute.xlu0 %2392
    %v2395 = vadd.f32 %v2385, %v2393
    %v2396 = vtanh.pop %v2395
    %2398 = vrot.lane.b32.xlu0 %v2396, 32
    %v2399 = vpop.permute.xlu0 %2398
    %v2401 = vmul.f32 %v2383, %v2399
    %v2403 = vrot.slane %v2401, 1
    %v2404 = vperm.slane %v2401, 0
    %v2405 = vperm.slane %v2403, 0
    %2406 = vrot.lane.b32.xlu0 %v2404, 64
    %v2407 = vpop.permute.xlu0 %2406
    %2408 = vrot.lane.b32.xlu0 %v2405, 64
    %v2409 = vpop.permute.xlu0 %2408
    %2412 = vst.msk [vmem:[#allocation2 + $0x7] sm:$0x1] %vm831, %v2407
    %2413 = vst.msk [vmem:[#allocation2 + $0xf] sm:$0x1] %vm831, %v2409
    %v2414 = vld [vmem:[%s3] sm:$0xff]
    %v2415 = vld [vmem:[%s17] sm:$0xff]
    %v2416 = vld [vmem:[%s17 + $0x8] sm:$0xff]
    %v2417 = vld [vmem:[%s17 + $0x10] sm:$0xff]
    %v2418 = vld [vmem:[%s17 + $0x18] sm:$0xff]
    %v2419 = vld [vmem:[#allocation9] sm:$0x1]
    %v2421 = vperm.slane %v2419, 0
    %v2424 = vsel %vm585, %v2414, 0
    %2426 = vmatpush.msra.mxu0 0.0
    %2427 = vmatpush.msra.mxu0 0.0
    %2428 = vmatpush.msra.mxu0 0.0
    %2429 = vmatpush.msra.mxu0 0.0
    %2430 = vmatpush.msra.mxu0 0.0
    %2431 = vmatpush.msra.mxu0 0.0
    %2432 = vmatpush.msra.mxu0 0.0
    %2433 = vmatpush.msra.mxu0 0.0
    %2434 = vmatpush.msra.mxu0 0.0
    %2435 = vmatpush.msra.mxu0 0.0
    %2436 = vmatpush.msra.mxu0 0.0
    %2437 = vmatpush.msra.mxu0 0.0
    %2438 = vmatpush.msra.mxu0 %v2418
    %2439 = vmatpush.msra.mxu0 %v2417
    %2440 = vmatpush.msra.mxu0 %v2416
    %2441 = vmatpush.msra.mxu0 %v2415
    %2442 = vmatmul.f32.gmra.mxu0 %v2424
    %v2443 = vpop.f32.mrf.mxu0
    %v2444 = vadd.f32 %v2421, %v2443
    %2445 = vdwg.mxu0
    %v2447 = vrot.slane %v2444, 4
    %v2449 = vld [vmem:[%s21] sm:$0xff]
    %v2450 = vld [vmem:[%s21 + $0x8] sm:$0xff]
    %v2451 = vld [vmem:[%s21 + $0x10] sm:$0xff]
    %v2452 = vld [vmem:[%s21 + $0x18] sm:$0xff]
    %2453 = vmatpush.msra.mxu0 0.0
    %2454 = vmatpush.msra.mxu0 0.0
    %2455 = vmatpush.msra.mxu0 0.0
    %2456 = vmatpush.msra.mxu0 0.0
    %2457 = vmatpush.msra.mxu0 0.0
    %2458 = vmatpush.msra.mxu0 0.0
    %2459 = vmatpush.msra.mxu0 0.0
    %2460 = vmatpush.msra.mxu0 0.0
    %2461 = vmatpush.msra.mxu0 0.0
    %2462 = vmatpush.msra.mxu0 0.0
    %2463 = vmatpush.msra.mxu0 0.0
    %2464 = vmatpush.msra.mxu0 0.0
    %2465 = vmatpush.msra.mxu0 %v2452
    %2466 = vmatpush.msra.mxu0 %v2451
    %2467 = vmatpush.msra.mxu0 %v2450
    %2468 = vmatpush.msra.mxu0 %v2449
    %2469 = vmatmul.f32.gmra.mxu0 %v2314
    %v2470 = vpop.f32.mrf.mxu0
    %v2471 = vadd.f32 0.0, %v2470
    %2472 = vdwg.mxu0
    %v2474 = vrot.slane %v2471, 1
    %v2477 = vadd.f32 %v2444, %v2471
    %v2478 = vadd.f32 %v2447, %v2474
    %v2479 = vxor.u32 %v2477, 2147483648
    %v2480 = vxor.u32 %v2478, 2147483648
    %v2481 = vmul.f32 %v2479, 1.442695
    %v2482 = vpow.pop %v2481
    %v2483 = vmul.f32 %v2480, 1.442695
    %v2484 = vpow.pop %v2483
    %v2485 = vadd.f32 %v2482, 1.0
    %v2486 = vadd.f32 %v2484, 1.0
    %v2487 = vrcp.pop %v2485
    %v2488 = vmul.f32 %v2485, %v2487
    %v2489 = vsub.f32 1.0, %v2488
    %v2490 = vmul.f32 %v2487, %v2489
    %v2491 = vadd.f32 %v2487, %v2490
    %vm2492 = vweird.f32 %v2485
    %vm2493 = vweird.f32 %v2487
    %vm2494 = vmor %vm2492, %vm2493
    %v2495 = vsel %vm2494, %v2487, %v2491
    %v2496 = vand.u32 2147483647, %v2485
    %vm2497 = vcmp.eq.f32.partialorder %v2496, 8.507059e+37
    %v2498 = vand.u32 %v2485, 2147483648
    %v2499 = vor.u32 1.1754944e-38, %v2498
    %v2500 = vsel %vm2497, %v2499, %v2495
    %v2501 = vmul.f32 1.0, %v2500
    %v2502 = vrcp.pop %v2486
    %v2503 = vmul.f32 %v2486, %v2502
    %v2504 = vsub.f32 1.0, %v2503
    %v2505 = vmul.f32 %v2502, %v2504
    %v2506 = vadd.f32 %v2502, %v2505
    %vm2507 = vweird.f32 %v2486
    %vm2508 = vweird.f32 %v2502
    %vm2509 = vmor %vm2507, %vm2508
    %v2510 = vsel %vm2509, %v2502, %v2506
    %v2511 = vand.u32 2147483647, %v2486
    %vm2512 = vcmp.eq.f32.partialorder %v2511, 8.507059e+37
    %v2513 = vand.u32 %v2486, 2147483648
    %v2514 = vor.u32 1.1754944e-38, %v2513
    %v2515 = vsel %vm2512, %v2514, %v2510
    %v2516 = vmul.f32 1.0, %v2515
    %v2517 = vtanh.pop %v2477
    %v2518 = vtanh.pop %v2478
    %2521 = vst.sshfl [vmem:[#allocation1] sm:$0xff pattern:$0x75316420] %v2285
    %s2522 = scalar_lea.vmem [#allocation1], 1
    %v2523 = vld [vmem:[%s2522] ss:$2 sm:$0xff]
    %2524 = vst.sshfl [vmem:[#allocation1 + $0x10] sm:$0xff pattern:$0x75316420] %v2286
    %s2525 = scalar_lea.vmem [#allocation1], 17
    %v2526 = vld [vmem:[%s2525] ss:$2 sm:$0xff]
    %v2527 = vrot.slane %v2523, 7
    %v2528 = vrot.slane %v2527, 4
    %v2529 = vrot.slane %v2526, 7
    %v2530 = vrot.slane %v2529, 4
    %v2533 = vmul.f32 %v2501, %v2528
    %v2534 = vmul.f32 %v2516, %v2530
    %2537 = vrot.lane.b32.xlu0 %v2517, 32
    %v2538 = vpop.permute.xlu0 %2537
    %2539 = vrot.lane.b32.xlu0 %v2518, 32
    %v2540 = vpop.permute.xlu0 %2539
    %v2543 = vmul.f32 %v2501, %v2538
    %v2544 = vmul.f32 %v2516, %v2540
    %2547 = vrot.lane.b32.xlu0 %v2543, 32
    %v2548 = vpop.permute.xlu0 %2547
    %2549 = vrot.lane.b32.xlu0 %v2544, 32
    %v2550 = vpop.permute.xlu0 %2549
    %v2553 = vadd.f32 %v2533, %v2548
    %v2554 = vadd.f32 %v2534, %v2550
    %v2555 = vtanh.pop %v2553
    %v2556 = vtanh.pop %v2554
    %2559 = vrot.lane.b32.xlu0 %v2555, 32
    %v2560 = vpop.permute.xlu0 %2559
    %2561 = vrot.lane.b32.xlu0 %v2556, 32
    %v2562 = vpop.permute.xlu0 %2561
    %v2565 = vmul.f32 %v2501, %v2560
    %v2566 = vmul.f32 %v2516, %v2562
    %v2567 = vld [vmem:[%s19] sm:$0xff]
    %v2568 = vld [vmem:[%s19 + $0x8] sm:$0xff]
    %v2569 = vld [vmem:[%s19 + $0x10] sm:$0xff]
    %v2570 = vld [vmem:[%s19 + $0x18] sm:$0xff]
    %v2571 = vld [vmem:[#allocation10] sm:$0x1]
    %v2573 = vperm.slane %v2571, 0
    %v2577 = vperm.slane %v2565, 0
    %v2578 = vperm.slane %v2566, 0
    %v2579 = vsel %vm733, %v2578, %v2577
    %2580 = vrot.lane.b32.xlu0 %v2579, 64
    %v2581 = vpop.permute.xlu0 %2580
    %v2582 = vsel %vm585, %v2581, 0
    %2584 = vmatpush.msra.mxu0 0.0
    %2585 = vmatpush.msra.mxu0 0.0
    %2586 = vmatpush.msra.mxu0 0.0
    %2587 = vmatpush.msra.mxu0 0.0
    %2588 = vmatpush.msra.mxu0 0.0
    %2589 = vmatpush.msra.mxu0 0.0
    %2590 = vmatpush.msra.mxu0 0.0
    %2591 = vmatpush.msra.mxu0 0.0
    %2592 = vmatpush.msra.mxu0 0.0
    %2593 = vmatpush.msra.mxu0 0.0
    %2594 = vmatpush.msra.mxu0 0.0
    %2595 = vmatpush.msra.mxu0 0.0
    %2596 = vmatpush.msra.mxu0 %v2570
    %2597 = vmatpush.msra.mxu0 %v2569
    %2598 = vmatpush.msra.mxu0 %v2568
    %2599 = vmatpush.msra.mxu0 %v2567
    %2600 = vmatmul.f32.gmra.mxu0 %v2582
    %v2601 = vpop.f32.mrf.mxu0
    %v2602 = vadd.f32 %v2573, %v2601
    %2603 = vdwg.mxu0
    %v2604 = vld [vmem:[%s23] sm:$0xff]
    %v2605 = vld [vmem:[%s23 + $0x8] sm:$0xff]
    %v2606 = vld [vmem:[%s23 + $0x10] sm:$0xff]
    %v2607 = vld [vmem:[%s23 + $0x18] sm:$0xff]
    %2608 = vrot.lane.b32.xlu0 %v2401, 64
    %v2609 = vpop.permute.xlu0 %2608
    %v2610 = vsel %vm585, %v2609, 0
    %2612 = vmatpush.msra.mxu0 0.0
    %2613 = vmatpush.msra.mxu0 0.0
    %2614 = vmatpush.msra.mxu0 0.0
    %2615 = vmatpush.msra.mxu0 0.0
    %2616 = vmatpush.msra.mxu0 0.0
    %2617 = vmatpush.msra.mxu0 0.0
    %2618 = vmatpush.msra.mxu0 0.0
    %2619 = vmatpush.msra.mxu0 0.0
    %2620 = vmatpush.msra.mxu0 0.0
    %2621 = vmatpush.msra.mxu0 0.0
    %2622 = vmatpush.msra.mxu0 0.0
    %2623 = vmatpush.msra.mxu0 0.0
    %2624 = vmatpush.msra.mxu0 %v2607
    %2625 = vmatpush.msra.mxu0 %v2606
    %2626 = vmatpush.msra.mxu0 %v2605
    %2627 = vmatpush.msra.mxu0 %v2604
    %2628 = vmatmul.f32.gmra.mxu0 %v2610
    %v2629 = vpop.f32.mrf.mxu0
    %v2630 = vadd.f32 0.0, %v2629
    %2631 = vdwg.mxu0
    %v2632 = vadd.f32 %v2602, %v2630
    %v2633 = vxor.u32 %v2632, 2147483648
    %v2634 = vmul.f32 %v2633, 1.442695
    %v2635 = vpow.pop %v2634
    %v2636 = vadd.f32 %v2635, 1.0
    %v2637 = vrcp.pop %v2636
    %v2638 = vmul.f32 %v2636, %v2637
    %v2639 = vsub.f32 1.0, %v2638
    %v2640 = vmul.f32 %v2637, %v2639
    %v2641 = vadd.f32 %v2637, %v2640
    %vm2642 = vweird.f32 %v2636
    %vm2643 = vweird.f32 %v2637
    %vm2644 = vmor %vm2642, %vm2643
    %v2645 = vsel %vm2644, %v2637, %v2641
    %v2646 = vand.u32 2147483647, %v2636
    %vm2647 = vcmp.eq.f32.partialorder %v2646, 8.507059e+37
    %v2648 = vand.u32 %v2636, 2147483648
    %v2649 = vor.u32 1.1754944e-38, %v2648
    %v2650 = vsel %vm2647, %v2649, %v2645
    %v2651 = vmul.f32 1.0, %v2650
    %v2652 = vtanh.pop %v2632
    %v2653 = vmul.f32 %v2651, %v2395
    %2655 = vrot.lane.b32.xlu0 %v2652, 32
    %v2656 = vpop.permute.xlu0 %2655
    %v2658 = vmul.f32 %v2651, %v2656
    %2660 = vrot.lane.b32.xlu0 %v2658, 32
    %v2661 = vpop.permute.xlu0 %2660
    %v2663 = vadd.f32 %v2653, %v2661
    %v2664 = vtanh.pop %v2663
    %2666 = vrot.lane.b32.xlu0 %v2664, 32
    %v2667 = vpop.permute.xlu0 %2666
    %v2669 = vmul.f32 %v2651, %v2667
    %v2671 = vrot.slane %v2669, 1
    %v2672 = vperm.slane %v2669, 0
    %v2673 = vperm.slane %v2671, 0
    %2674 = vrot.lane.b32.xlu0 %v2672, 64
    %v2675 = vpop.permute.xlu0 %2674
    %2676 = vrot.lane.b32.xlu0 %v2673, 64
    %v2677 = vpop.permute.xlu0 %2676
    %2680 = vst.msk [vmem:[#allocation3] sm:$0x1] %vm831, %v2675
    %2681 = vst.msk [vmem:[#allocation3 + $0x4] sm:$0x1] %vm831, %v2677
    %v2682 = vld [vmem:[%s21] sm:$0xff]
    %v2683 = vld [vmem:[%s21 + $0x8] sm:$0xff]
    %v2684 = vld [vmem:[%s21 + $0x10] sm:$0xff]
    %v2685 = vld [vmem:[%s21 + $0x18] sm:$0xff]
    %2686 = vmatpush.msra.mxu0 0.0
    %2687 = vmatpush.msra.mxu0 0.0
    %2688 = vmatpush.msra.mxu0 0.0
    %2689 = vmatpush.msra.mxu0 0.0
    %2690 = vmatpush.msra.mxu0 0.0
    %2691 = vmatpush.msra.mxu0 0.0
    %2692 = vmatpush.msra.mxu0 0.0
    %2693 = vmatpush.msra.mxu0 0.0
    %2694 = vmatpush.msra.mxu0 0.0
    %2695 = vmatpush.msra.mxu0 0.0
    %2696 = vmatpush.msra.mxu0 0.0
    %2697 = vmatpush.msra.mxu0 0.0
    %2698 = vmatpush.msra.mxu0 %v2685
    %2699 = vmatpush.msra.mxu0 %v2684
    %2700 = vmatpush.msra.mxu0 %v2683
    %2701 = vmatpush.msra.mxu0 %v2682
    %2702 = vmatmul.f32.gmra.mxu0 %v2582
    %v2703 = vpop.f32.mrf.mxu0
    %v2704 = vadd.f32 0.0, %v2703
    %2705 = vdwg.mxu0
    %v2707 = vrot.slane %v2704, 7
    %v2710 = vadd.f32 %v2444, %v2707
    %v2711 = vadd.f32 %v2447, %v2704
    %v2712 = vxor.u32 %v2710, 2147483648
    %v2713 = vxor.u32 %v2711, 2147483648
    %v2714 = vmul.f32 %v2712, 1.442695
    %v2715 = vpow.pop %v2714
    %v2716 = vmul.f32 %v2713, 1.442695
    %v2717 = vpow.pop %v2716
    %v2718 = vadd.f32 %v2715, 1.0
    %v2719 = vadd.f32 %v2717, 1.0
    %v2720 = vrcp.pop %v2718
    %v2721 = vmul.f32 %v2718, %v2720
    %v2722 = vsub.f32 1.0, %v2721
    %v2723 = vmul.f32 %v2720, %v2722
    %v2724 = vadd.f32 %v2720, %v2723
    %vm2725 = vweird.f32 %v2718
    %vm2726 = vweird.f32 %v2720
    %vm2727 = vmor %vm2725, %vm2726
    %v2728 = vsel %vm2727, %v2720, %v2724
    %v2729 = vand.u32 2147483647, %v2718
    %vm2730 = vcmp.eq.f32.partialorder %v2729, 8.507059e+37
    %v2731 = vand.u32 %v2718, 2147483648
    %v2732 = vor.u32 1.1754944e-38, %v2731
    %v2733 = vsel %vm2730, %v2732, %v2728
    %v2734 = vmul.f32 1.0, %v2733
    %v2735 = vrcp.pop %v2719
    %v2736 = vmul.f32 %v2719, %v2735
    %v2737 = vsub.f32 1.0, %v2736
    %v2738 = vmul.f32 %v2735, %v2737
    %v2739 = vadd.f32 %v2735, %v2738
    %vm2740 = vweird.f32 %v2719
    %vm2741 = vweird.f32 %v2735
    %vm2742 = vmor %vm2740, %vm2741
    %v2743 = vsel %vm2742, %v2735, %v2739
    %v2744 = vand.u32 2147483647, %v2719
    %vm2745 = vcmp.eq.f32.partialorder %v2744, 8.507059e+37
    %v2746 = vand.u32 %v2719, 2147483648
    %v2747 = vor.u32 1.1754944e-38, %v2746
    %v2748 = vsel %vm2745, %v2747, %v2743
    %v2749 = vmul.f32 1.0, %v2748
    %v2750 = vtanh.pop %v2710
    %v2751 = vtanh.pop %v2711
    %v2754 = vrot.slane %v2553, 7
    %v2755 = vrot.slane %v2554, 7
    %v2758 = vmul.f32 %v2734, %v2754
    %v2759 = vmul.f32 %v2749, %v2755
    %2762 = vrot.lane.b32.xlu0 %v2750, 32
    %v2763 = vpop.permute.xlu0 %2762
    %2764 = vrot.lane.b32.xlu0 %v2751, 32
    %v2765 = vpop.permute.xlu0 %2764
    %v2768 = vmul.f32 %v2734, %v2763
    %v2769 = vmul.f32 %v2749, %v2765
    %2772 = vrot.lane.b32.xlu0 %v2768, 32
    %v2773 = vpop.permute.xlu0 %2772
    %2774 = vrot.lane.b32.xlu0 %v2769, 32
    %v2775 = vpop.permute.xlu0 %2774
    %v2778 = vadd.f32 %v2758, %v2773
    %v2779 = vadd.f32 %v2759, %v2775
    %v2780 = vtanh.pop %v2778
    %v2781 = vtanh.pop %v2779
    %2784 = vrot.lane.b32.xlu0 %v2780, 32
    %v2785 = vpop.permute.xlu0 %2784
    %2786 = vrot.lane.b32.xlu0 %v2781, 32
    %v2787 = vpop.permute.xlu0 %2786
    %v2790 = vmul.f32 %v2734, %v2785
    %v2791 = vmul.f32 %v2749, %v2787
    %v2792 = vld [vmem:[%s19] sm:$0xff]
    %v2793 = vld [vmem:[%s19 + $0x8] sm:$0xff]
    %v2794 = vld [vmem:[%s19 + $0x10] sm:$0xff]
    %v2795 = vld [vmem:[%s19 + $0x18] sm:$0xff]
    %v2796 = vld [vmem:[#allocation10] sm:$0x1]
    %v2798 = vperm.slane %v2796, 0
    %v2802 = vperm.slane %v2790, 1
    %v2803 = vperm.slane %v2791, 1
    %v2804 = vsel %vm733, %v2803, %v2802
    %2805 = vrot.lane.b32.xlu0 %v2804, 64
    %v2806 = vpop.permute.xlu0 %2805
    %v2807 = vsel %vm585, %v2806, 0
    %2809 = vmatpush.msra.mxu0 0.0
    %2810 = vmatpush.msra.mxu0 0.0
    %2811 = vmatpush.msra.mxu0 0.0
    %2812 = vmatpush.msra.mxu0 0.0
    %2813 = vmatpush.msra.mxu0 0.0
    %2814 = vmatpush.msra.mxu0 0.0
    %2815 = vmatpush.msra.mxu0 0.0
    %2816 = vmatpush.msra.mxu0 0.0
    %2817 = vmatpush.msra.mxu0 0.0
    %2818 = vmatpush.msra.mxu0 0.0
    %2819 = vmatpush.msra.mxu0 0.0
    %2820 = vmatpush.msra.mxu0 0.0
    %2821 = vmatpush.msra.mxu0 %v2795
    %2822 = vmatpush.msra.mxu0 %v2794
    %2823 = vmatpush.msra.mxu0 %v2793
    %2824 = vmatpush.msra.mxu0 %v2792
    %2825 = vmatmul.f32.gmra.mxu0 %v2807
    %v2826 = vpop.f32.mrf.mxu0
    %v2827 = vadd.f32 %v2798, %v2826
    %2828 = vdwg.mxu0
    %v2829 = vld [vmem:[%s23] sm:$0xff]
    %v2830 = vld [vmem:[%s23 + $0x8] sm:$0xff]
    %v2831 = vld [vmem:[%s23 + $0x10] sm:$0xff]
    %v2832 = vld [vmem:[%s23 + $0x18] sm:$0xff]
    %2833 = vrot.lane.b32.xlu0 %v2669, 64
    %v2834 = vpop.permute.xlu0 %2833
    %v2835 = vsel %vm585, %v2834, 0
    %2837 = vmatpush.msra.mxu0 0.0
    %2838 = vmatpush.msra.mxu0 0.0
    %2839 = vmatpush.msra.mxu0 0.0
    %2840 = vmatpush.msra.mxu0 0.0
    %2841 = vmatpush.msra.mxu0 0.0
    %2842 = vmatpush.msra.mxu0 0.0
    %2843 = vmatpush.msra.mxu0 0.0
    %2844 = vmatpush.msra.mxu0 0.0
    %2845 = vmatpush.msra.mxu0 0.0
    %2846 = vmatpush.msra.mxu0 0.0
    %2847 = vmatpush.msra.mxu0 0.0
    %2848 = vmatpush.msra.mxu0 0.0
    %2849 = vmatpush.msra.mxu0 %v2832
    %2850 = vmatpush.msra.mxu0 %v2831
    %2851 = vmatpush.msra.mxu0 %v2830
    %2852 = vmatpush.msra.mxu0 %v2829
    %2853 = vmatmul.f32.gmra.mxu0 %v2835
    %v2854 = vpop.f32.mrf.mxu0
    %v2855 = vadd.f32 0.0, %v2854
    %2856 = vdwg.mxu0
    %v2857 = vadd.f32 %v2827, %v2855
    %v2858 = vxor.u32 %v2857, 2147483648
    %v2859 = vmul.f32 %v2858, 1.442695
    %v2860 = vpow.pop %v2859
    %v2861 = vadd.f32 %v2860, 1.0
    %v2862 = vrcp.pop %v2861
    %v2863 = vmul.f32 %v2861, %v2862
    %v2864 = vsub.f32 1.0, %v2863
    %v2865 = vmul.f32 %v2862, %v2864
    %v2866 = vadd.f32 %v2862, %v2865
    %vm2867 = vweird.f32 %v2861
    %vm2868 = vweird.f32 %v2862
    %vm2869 = vmor %vm2867, %vm2868
    %v2870 = vsel %vm2869, %v2862, %v2866
    %v2871 = vand.u32 2147483647, %v2861
    %vm2872 = vcmp.eq.f32.partialorder %v2871, 8.507059e+37
    %v2873 = vand.u32 %v2861, 2147483648
    %v2874 = vor.u32 1.1754944e-38, %v2873
    %v2875 = vsel %vm2872, %v2874, %v2870
    %v2876 = vmul.f32 1.0, %v2875
    %v2877 = vtanh.pop %v2857
    %v2878 = vmul.f32 %v2876, %v2663
    %2880 = vrot.lane.b32.xlu0 %v2877, 32
    %v2881 = vpop.permute.xlu0 %2880
    %v2883 = vmul.f32 %v2876, %v2881
    %2885 = vrot.lane.b32.xlu0 %v2883, 32
    %v2886 = vpop.permute.xlu0 %2885
    %v2888 = vadd.f32 %v2878, %v2886
    %v2889 = vtanh.pop %v2888
    %2891 = vrot.lane.b32.xlu0 %v2889, 32
    %v2892 = vpop.permute.xlu0 %2891
    %v2894 = vmul.f32 %v2876, %v2892
    %v2896 = vrot.slane %v2894, 1
    %v2897 = vperm.slane %v2894, 0
    %v2898 = vperm.slane %v2896, 0
    %2899 = vrot.lane.b32.xlu0 %v2897, 64
    %v2900 = vpop.permute.xlu0 %2899
    %2901 = vrot.lane.b32.xlu0 %v2898, 64
    %v2902 = vpop.permute.xlu0 %2901
    %2905 = vst.msk [vmem:[#allocation3 + $0x1] sm:$0x1] %vm831, %v2900
    %2906 = vst.msk [vmem:[#allocation3 + $0x5] sm:$0x1] %vm831, %v2902
    %v2907 = vld [vmem:[%s21] sm:$0xff]
    %v2908 = vld [vmem:[%s21 + $0x8] sm:$0xff]
    %v2909 = vld [vmem:[%s21 + $0x10] sm:$0xff]
    %v2910 = vld [vmem:[%s21 + $0x18] sm:$0xff]
    %2911 = vmatpush.msra.mxu0 0.0
    %2912 = vmatpush.msra.mxu0 0.0
    %2913 = vmatpush.msra.mxu0 0.0
    %2914 = vmatpush.msra.mxu0 0.0
    %2915 = vmatpush.msra.mxu0 0.0
    %2916 = vmatpush.msra.mxu0 0.0
    %2917 = vmatpush.msra.mxu0 0.0
    %2918 = vmatpush.msra.mxu0 0.0
    %2919 = vmatpush.msra.mxu0 0.0
    %2920 = vmatpush.msra.mxu0 0.0
    %2921 = vmatpush.msra.mxu0 0.0
    %2922 = vmatpush.msra.mxu0 0.0
    %2923 = vmatpush.msra.mxu0 %v2910
    %2924 = vmatpush.msra.mxu0 %v2909
    %2925 = vmatpush.msra.mxu0 %v2908
    %2926 = vmatpush.msra.mxu0 %v2907
    %2927 = vmatmul.f32.gmra.mxu0 %v2807
    %v2928 = vpop.f32.mrf.mxu0
    %v2929 = vadd.f32 0.0, %v2928
    %2930 = vdwg.mxu0
    %v2932 = vrot.slane %v2929, 6
    %v2933 = vrot.slane %v2929, 7
    %v2936 = vadd.f32 %v2444, %v2932
    %v2937 = vadd.f32 %v2447, %v2933
    %v2938 = vxor.u32 %v2936, 2147483648
    %v2939 = vxor.u32 %v2937, 2147483648
    %v2940 = vmul.f32 %v2938, 1.442695
    %v2941 = vpow.pop %v2940
    %v2942 = vmul.f32 %v2939, 1.442695
    %v2943 = vpow.pop %v2942
    %v2944 = vadd.f32 %v2941, 1.0
    %v2945 = vadd.f32 %v2943, 1.0
    %v2946 = vrcp.pop %v2944
    %v2947 = vmul.f32 %v2944, %v2946
    %v2948 = vsub.f32 1.0, %v2947
    %v2949 = vmul.f32 %v2946, %v2948
    %v2950 = vadd.f32 %v2946, %v2949
    %vm2951 = vweird.f32 %v2944
    %vm2952 = vweird.f32 %v2946
    %vm2953 = vmor %vm2951, %vm2952
    %v2954 = vsel %vm2953, %v2946, %v2950
    %v2955 = vand.u32 2147483647, %v2944
    %vm2956 = vcmp.eq.f32.partialorder %v2955, 8.507059e+37
    %v2957 = vand.u32 %v2944, 2147483648
    %v2958 = vor.u32 1.1754944e-38, %v2957
    %v2959 = vsel %vm2956, %v2958, %v2954
    %v2960 = vmul.f32 1.0, %v2959
    %v2961 = vrcp.pop %v2945
    %v2962 = vmul.f32 %v2945, %v2961
    %v2963 = vsub.f32 1.0, %v2962
    %v2964 = vmul.f32 %v2961, %v2963
    %v2965 = vadd.f32 %v2961, %v2964
    %vm2966 = vweird.f32 %v2945
    %vm2967 = vweird.f32 %v2961
    %vm2968 = vmor %vm2966, %vm2967
    %v2969 = vsel %vm2968, %v2961, %v2965
    %v2970 = vand.u32 2147483647, %v2945
    %vm2971 = vcmp.eq.f32.partialorder %v2970, 8.507059e+37
    %v2972 = vand.u32 %v2945, 2147483648
    %v2973 = vor.u32 1.1754944e-38, %v2972
    %v2974 = vsel %vm2971, %v2973, %v2969
    %v2975 = vmul.f32 1.0, %v2974
    %v2976 = vtanh.pop %v2936
    %v2977 = vtanh.pop %v2937
    %v2980 = vrot.slane %v2778, 7
    %v2981 = vrot.slane %v2779, 7
    %v2984 = vmul.f32 %v2960, %v2980
    %v2985 = vmul.f32 %v2975, %v2981
    %2988 = vrot.lane.b32.xlu0 %v2976, 32
    %v2989 = vpop.permute.xlu0 %2988
    %2990 = vrot.lane.b32.xlu0 %v2977, 32
    %v2991 = vpop.permute.xlu0 %2990
    %v2994 = vmul.f32 %v2960, %v2989
    %v2995 = vmul.f32 %v2975, %v2991
    %2998 = vrot.lane.b32.xlu0 %v2994, 32
    %v2999 = vpop.permute.xlu0 %2998
    %3000 = vrot.lane.b32.xlu0 %v2995, 32
    %v3001 = vpop.permute.xlu0 %3000
    %v3004 = vadd.f32 %v2984, %v2999
    %v3005 = vadd.f32 %v2985, %v3001
    %v3006 = vtanh.pop %v3004
    %v3007 = vtanh.pop %v3005
    %3010 = vrot.lane.b32.xlu0 %v3006, 32
    %v3011 = vpop.permute.xlu0 %3010
    %3012 = vrot.lane.b32.xlu0 %v3007, 32
    %v3013 = vpop.permute.xlu0 %3012
    %v3016 = vmul.f32 %v2960, %v3011
    %v3017 = vmul.f32 %v2975, %v3013
    %v3018 = vld [vmem:[%s19] sm:$0xff]
    %v3019 = vld [vmem:[%s19 + $0x8] sm:$0xff]
    %v3020 = vld [vmem:[%s19 + $0x10] sm:$0xff]
    %v3021 = vld [vmem:[%s19 + $0x18] sm:$0xff]
    %v3022 = vld [vmem:[#allocation10] sm:$0x1]
    %v3024 = vperm.slane %v3022, 0
    %v3028 = vperm.slane %v3016, 2
    %v3029 = vperm.slane %v3017, 2
    %v3030 = vsel %vm733, %v3029, %v3028
    %3031 = vrot.lane.b32.xlu0 %v3030, 64
    %v3032 = vpop.permute.xlu0 %3031
    %v3033 = vsel %vm585, %v3032, 0
    %3035 = vmatpush.msra.mxu0 0.0
    %3036 = vmatpush.msra.mxu0 0.0
    %3037 = vmatpush.msra.mxu0 0.0
    %3038 = vmatpush.msra.mxu0 0.0
    %3039 = vmatpush.msra.mxu0 0.0
    %3040 = vmatpush.msra.mxu0 0.0
    %3041 = vmatpush.msra.mxu0 0.0
    %3042 = vmatpush.msra.mxu0 0.0
    %3043 = vmatpush.msra.mxu0 0.0
    %3044 = vmatpush.msra.mxu0 0.0
    %3045 = vmatpush.msra.mxu0 0.0
    %3046 = vmatpush.msra.mxu0 0.0
    %3047 = vmatpush.msra.mxu0 %v3021
    %3048 = vmatpush.msra.mxu0 %v3020
    %3049 = vmatpush.msra.mxu0 %v3019
    %3050 = vmatpush.msra.mxu0 %v3018
    %3051 = vmatmul.f32.gmra.mxu0 %v3033
    %v3052 = vpop.f32.mrf.mxu0
    %v3053 = vadd.f32 %v3024, %v3052
    %3054 = vdwg.mxu0
    %v3055 = vld [vmem:[%s23] sm:$0xff]
    %v3056 = vld [vmem:[%s23 + $0x8] sm:$0xff]
    %v3057 = vld [vmem:[%s23 + $0x10] sm:$0xff]
    %v3058 = vld [vmem:[%s23 + $0x18] sm:$0xff]
    %3059 = vrot.lane.b32.xlu0 %v2894, 64
    %v3060 = vpop.permute.xlu0 %3059
    %v3061 = vsel %vm585, %v3060, 0
    %3063 = vmatpush.msra.mxu0 0.0
    %3064 = vmatpush.msra.mxu0 0.0
    %3065 = vmatpush.msra.mxu0 0.0
    %3066 = vmatpush.msra.mxu0 0.0
    %3067 = vmatpush.msra.mxu0 0.0
    %3068 = vmatpush.msra.mxu0 0.0
    %3069 = vmatpush.msra.mxu0 0.0
    %3070 = vmatpush.msra.mxu0 0.0
    %3071 = vmatpush.msra.mxu0 0.0
    %3072 = vmatpush.msra.mxu0 0.0
    %3073 = vmatpush.msra.mxu0 0.0
    %3074 = vmatpush.msra.mxu0 0.0
    %3075 = vmatpush.msra.mxu0 %v3058
    %3076 = vmatpush.msra.mxu0 %v3057
    %3077 = vmatpush.msra.mxu0 %v3056
    %3078 = vmatpush.msra.mxu0 %v3055
    %3079 = vmatmul.f32.gmra.mxu0 %v3061
    %v3080 = vpop.f32.mrf.mxu0
    %v3081 = vadd.f32 0.0, %v3080
    %3082 = vdwg.mxu0
    %v3083 = vadd.f32 %v3053, %v3081
    %v3084 = vxor.u32 %v3083, 2147483648
    %v3085 = vmul.f32 %v3084, 1.442695
    %v3086 = vpow.pop %v3085
    %v3087 = vadd.f32 %v3086, 1.0
    %v3088 = vrcp.pop %v3087
    %v3089 = vmul.f32 %v3087, %v3088
    %v3090 = vsub.f32 1.0, %v3089
    %v3091 = vmul.f32 %v3088, %v3090
    %v3092 = vadd.f32 %v3088, %v3091
    %vm3093 = vweird.f32 %v3087
    %vm3094 = vweird.f32 %v3088
    %vm3095 = vmor %vm3093, %vm3094
    %v3096 = vsel %vm3095, %v3088, %v3092
    %v3097 = vand.u32 2147483647, %v3087
    %vm3098 = vcmp.eq.f32.partialorder %v3097, 8.507059e+37
    %v3099 = vand.u32 %v3087, 2147483648
    %v3100 = vor.u32 1.1754944e-38, %v3099
    %v3101 = vsel %vm3098, %v3100, %v3096
    %v3102 = vmul.f32 1.0, %v3101
    %v3103 = vtanh.pop %v3083
    %v3104 = vmul.f32 %v3102, %v2888
    %3106 = vrot.lane.b32.xlu0 %v3103, 32
    %v3107 = vpop.permute.xlu0 %3106
    %v3109 = vmul.f32 %v3102, %v3107
    %3111 = vrot.lane.b32.xlu0 %v3109, 32
    %v3112 = vpop.permute.xlu0 %3111
    %v3114 = vadd.f32 %v3104, %v3112
    %v3115 = vtanh.pop %v3114
    %3117 = vrot.lane.b32.xlu0 %v3115, 32
    %v3118 = vpop.permute.xlu0 %3117
    %v3120 = vmul.f32 %v3102, %v3118
    %v3122 = vrot.slane %v3120, 1
    %v3123 = vperm.slane %v3120, 0
    %v3124 = vperm.slane %v3122, 0
    %3125 = vrot.lane.b32.xlu0 %v3123, 64
    %v3126 = vpop.permute.xlu0 %3125
    %3127 = vrot.lane.b32.xlu0 %v3124, 64
    %v3128 = vpop.permute.xlu0 %3127
    %3131 = vst.msk [vmem:[#allocation3 + $0x2] sm:$0x1] %vm831, %v3126
    %3132 = vst.msk [vmem:[#allocation3 + $0x6] sm:$0x1] %vm831, %v3128
    %v3133 = vld [vmem:[%s21] sm:$0xff]
    %v3134 = vld [vmem:[%s21 + $0x8] sm:$0xff]
    %v3135 = vld [vmem:[%s21 + $0x10] sm:$0xff]
    %v3136 = vld [vmem:[%s21 + $0x18] sm:$0xff]
    %3137 = vmatpush.msra.mxu0 0.0
    %3138 = vmatpush.msra.mxu0 0.0
    %3139 = vmatpush.msra.mxu0 0.0
    %3140 = vmatpush.msra.mxu0 0.0
    %3141 = vmatpush.msra.mxu0 0.0
    %3142 = vmatpush.msra.mxu0 0.0
    %3143 = vmatpush.msra.mxu0 0.0
    %3144 = vmatpush.msra.mxu0 0.0
    %3145 = vmatpush.msra.mxu0 0.0
    %3146 = vmatpush.msra.mxu0 0.0
    %3147 = vmatpush.msra.mxu0 0.0
    %3148 = vmatpush.msra.mxu0 0.0
    %3149 = vmatpush.msra.mxu0 %v3136
    %3150 = vmatpush.msra.mxu0 %v3135
    %3151 = vmatpush.msra.mxu0 %v3134
    %3152 = vmatpush.msra.mxu0 %v3133
    %3153 = vmatmul.f32.gmra.mxu0 %v3033
    %v3154 = vpop.f32.mrf.mxu0
    %v3155 = vadd.f32 0.0, %v3154
    %3156 = vdwg.mxu0
    %v3158 = vrot.slane %v3155, 5
    %v3159 = vrot.slane %v3155, 6
    %v3162 = vadd.f32 %v2444, %v3158
    %v3163 = vadd.f32 %v2447, %v3159
    %v3164 = vxor.u32 %v3162, 2147483648
    %v3165 = vxor.u32 %v3163, 2147483648
    %v3166 = vmul.f32 %v3164, 1.442695
    %v3167 = vpow.pop %v3166
    %v3168 = vmul.f32 %v3165, 1.442695
    %v3169 = vpow.pop %v3168
    %v3170 = vadd.f32 %v3167, 1.0
    %v3171 = vadd.f32 %v3169, 1.0
    %v3172 = vrcp.pop %v3170
    %v3173 = vmul.f32 %v3170, %v3172
    %v3174 = vsub.f32 1.0, %v3173
    %v3175 = vmul.f32 %v3172, %v3174
    %v3176 = vadd.f32 %v3172, %v3175
    %vm3177 = vweird.f32 %v3170
    %vm3178 = vweird.f32 %v3172
    %vm3179 = vmor %vm3177, %vm3178
    %v3180 = vsel %vm3179, %v3172, %v3176
    %v3181 = vand.u32 2147483647, %v3170
    %vm3182 = vcmp.eq.f32.partialorder %v3181, 8.507059e+37
    %v3183 = vand.u32 %v3170, 2147483648
    %v3184 = vor.u32 1.1754944e-38, %v3183
    %v3185 = vsel %vm3182, %v3184, %v3180
    %v3186 = vmul.f32 1.0, %v3185
    %v3187 = vrcp.pop %v3171
    %v3188 = vmul.f32 %v3171, %v3187
    %v3189 = vsub.f32 1.0, %v3188
    %v3190 = vmul.f32 %v3187, %v3189
    %v3191 = vadd.f32 %v3187, %v3190
    %vm3192 = vweird.f32 %v3171
    %vm3193 = vweird.f32 %v3187
    %vm3194 = vmor %vm3192, %vm3193
    %v3195 = vsel %vm3194, %v3187, %v3191
    %v3196 = vand.u32 2147483647, %v3171
    %vm3197 = vcmp.eq.f32.partialorder %v3196, 8.507059e+37
    %v3198 = vand.u32 %v3171, 2147483648
    %v3199 = vor.u32 1.1754944e-38, %v3198
    %v3200 = vsel %vm3197, %v3199, %v3195
    %v3201 = vmul.f32 1.0, %v3200
    %v3202 = vtanh.pop %v3162
    %v3203 = vtanh.pop %v3163
    %v3206 = vrot.slane %v3004, 7
    %v3207 = vrot.slane %v3005, 7
    %v3210 = vmul.f32 %v3186, %v3206
    %v3211 = vmul.f32 %v3201, %v3207
    %3214 = vrot.lane.b32.xlu0 %v3202, 32
    %v3215 = vpop.permute.xlu0 %3214
    %3216 = vrot.lane.b32.xlu0 %v3203, 32
    %v3217 = vpop.permute.xlu0 %3216
    %v3220 = vmul.f32 %v3186, %v3215
    %v3221 = vmul.f32 %v3201, %v3217
    %3224 = vrot.lane.b32.xlu0 %v3220, 32
    %v3225 = vpop.permute.xlu0 %3224
    %3226 = vrot.lane.b32.xlu0 %v3221, 32
    %v3227 = vpop.permute.xlu0 %3226
    %v3230 = vadd.f32 %v3210, %v3225
    %v3231 = vadd.f32 %v3211, %v3227
    %v3232 = vtanh.pop %v3230
    %v3233 = vtanh.pop %v3231
    %3236 = vrot.lane.b32.xlu0 %v3232, 32
    %v3237 = vpop.permute.xlu0 %3236
    %3238 = vrot.lane.b32.xlu0 %v3233, 32
    %v3239 = vpop.permute.xlu0 %3238
    %v3242 = vmul.f32 %v3186, %v3237
    %v3243 = vmul.f32 %v3201, %v3239
    %v3244 = vld [vmem:[%s19] sm:$0xff]
    %v3245 = vld [vmem:[%s19 + $0x8] sm:$0xff]
    %v3246 = vld [vmem:[%s19 + $0x10] sm:$0xff]
    %v3247 = vld [vmem:[%s19 + $0x18] sm:$0xff]
    %v3248 = vld [vmem:[#allocation10] sm:$0x1]
    %v3250 = vperm.slane %v3248, 0
    %v3254 = vperm.slane %v3242, 3
    %v3255 = vperm.slane %v3243, 3
    %v3256 = vsel %vm733, %v3255, %v3254
    %3257 = vrot.lane.b32.xlu0 %v3256, 64
    %v3258 = vpop.permute.xlu0 %3257
    %v3259 = vsel %vm585, %v3258, 0
    %3261 = vmatpush.msra.mxu0 0.0
    %3262 = vmatpush.msra.mxu0 0.0
    %3263 = vmatpush.msra.mxu0 0.0
    %3264 = vmatpush.msra.mxu0 0.0
    %3265 = vmatpush.msra.mxu0 0.0
    %3266 = vmatpush.msra.mxu0 0.0
    %3267 = vmatpush.msra.mxu0 0.0
    %3268 = vmatpush.msra.mxu0 0.0
    %3269 = vmatpush.msra.mxu0 0.0
    %3270 = vmatpush.msra.mxu0 0.0
    %3271 = vmatpush.msra.mxu0 0.0
    %3272 = vmatpush.msra.mxu0 0.0
    %3273 = vmatpush.msra.mxu0 %v3247
    %3274 = vmatpush.msra.mxu0 %v3246
    %3275 = vmatpush.msra.mxu0 %v3245
    %3276 = vmatpush.msra.mxu0 %v3244
    %3277 = vmatmul.f32.gmra.mxu0 %v3259
    %v3278 = vpop.f32.mrf.mxu0
    %v3279 = vadd.f32 %v3250, %v3278
    %3280 = vdwg.mxu0
    %v3281 = vld [vmem:[%s23] sm:$0xff]
    %v3282 = vld [vmem:[%s23 + $0x8] sm:$0xff]
    %v3283 = vld [vmem:[%s23 + $0x10] sm:$0xff]
    %v3284 = vld [vmem:[%s23 + $0x18] sm:$0xff]
    %3285 = vrot.lane.b32.xlu0 %v3120, 64
    %v3286 = vpop.permute.xlu0 %3285
    %v3287 = vsel %vm585, %v3286, 0
    %3289 = vmatpush.msra.mxu0 0.0
    %3290 = vmatpush.msra.mxu0 0.0
    %3291 = vmatpush.msra.mxu0 0.0
    %3292 = vmatpush.msra.mxu0 0.0
    %3293 = vmatpush.msra.mxu0 0.0
    %3294 = vmatpush.msra.mxu0 0.0
    %3295 = vmatpush.msra.mxu0 0.0
    %3296 = vmatpush.msra.mxu0 0.0
    %3297 = vmatpush.msra.mxu0 0.0
    %3298 = vmatpush.msra.mxu0 0.0
    %3299 = vmatpush.msra.mxu0 0.0
    %3300 = vmatpush.msra.mxu0 0.0
    %3301 = vmatpush.msra.mxu0 %v3284
    %3302 = vmatpush.msra.mxu0 %v3283
    %3303 = vmatpush.msra.mxu0 %v3282
    %3304 = vmatpush.msra.mxu0 %v3281
    %3305 = vmatmul.f32.gmra.mxu0 %v3287
    %v3306 = vpop.f32.mrf.mxu0
    %v3307 = vadd.f32 0.0, %v3306
    %3308 = vdwg.mxu0
    %v3309 = vadd.f32 %v3279, %v3307
    %v3310 = vxor.u32 %v3309, 2147483648
    %v3311 = vmul.f32 %v3310, 1.442695
    %v3312 = vpow.pop %v3311
    %v3313 = vadd.f32 %v3312, 1.0
    %v3314 = vrcp.pop %v3313
    %v3315 = vmul.f32 %v3313, %v3314
    %v3316 = vsub.f32 1.0, %v3315
    %v3317 = vmul.f32 %v3314, %v3316
    %v3318 = vadd.f32 %v3314, %v3317
    %vm3319 = vweird.f32 %v3313
    %vm3320 = vweird.f32 %v3314
    %vm3321 = vmor %vm3319, %vm3320
    %v3322 = vsel %vm3321, %v3314, %v3318
    %v3323 = vand.u32 2147483647, %v3313
    %vm3324 = vcmp.eq.f32.partialorder %v3323, 8.507059e+37
    %v3325 = vand.u32 %v3313, 2147483648
    %v3326 = vor.u32 1.1754944e-38, %v3325
    %v3327 = vsel %vm3324, %v3326, %v3322
    %v3328 = vmul.f32 1.0, %v3327
    %v3329 = vtanh.pop %v3309
    %v3330 = vmul.f32 %v3328, %v3114
    %3332 = vrot.lane.b32.xlu0 %v3329, 32
    %v3333 = vpop.permute.xlu0 %3332
    %v3335 = vmul.f32 %v3328, %v3333
    %3337 = vrot.lane.b32.xlu0 %v3335, 32
    %v3338 = vpop.permute.xlu0 %3337
    %v3340 = vadd.f32 %v3330, %v3338
    %v3341 = vtanh.pop %v3340
    %3343 = vrot.lane.b32.xlu0 %v3341, 32
    %v3344 = vpop.permute.xlu0 %3343
    %v3346 = vmul.f32 %v3328, %v3344
    %v3348 = vrot.slane %v3346, 1
    %v3349 = vperm.slane %v3346, 0
    %v3350 = vperm.slane %v3348, 0
    %3351 = vrot.lane.b32.xlu0 %v3349, 64
    %v3352 = vpop.permute.xlu0 %3351
    %3353 = vrot.lane.b32.xlu0 %v3350, 64
    %v3354 = vpop.permute.xlu0 %3353
    %3357 = vst.msk [vmem:[#allocation3 + $0x3] sm:$0x1] %vm831, %v3352
    %3358 = vst.msk [vmem:[#allocation3 + $0x7] sm:$0x1] %vm831, %v3354
    %v3359 = vld [vmem:[#allocation2] sm:$0xff]
    %v3360 = vld [vmem:[#allocation2 + $0x8] sm:$0xff]
    %v3361 = vld [vmem:[%s1] sm:$0xff]
    %v3362 = vld [vmem:[%s1 + $0x8] sm:$0xff]
    %v3363 = vld [vmem:[%s29] sm:$0xff]
    %v3364 = vld [vmem:[%s29 + $0x8] sm:$0xff]
    %v3365 = vld [vmem:[%s29 + $0x10] sm:$0xff]
    %v3366 = vld [vmem:[%s29 + $0x18] sm:$0xff]
    %v3367 = vld [vmem:[#allocation12] sm:$0x1]
    %v3369 = vperm.slane %v3367, 0
    %v3372 = vsel %vm585, %v3359, 0
    %v3375 = vsel %vm585, %v3360, 0
    %3377 = vmatpush.msra.mxu0 0.0
    %3378 = vmatpush.msra.mxu0 0.0
    %3379 = vmatpush.msra.mxu0 0.0
    %3380 = vmatpush.msra.mxu0 0.0
    %3381 = vmatpush.msra.mxu0 0.0
    %3382 = vmatpush.msra.mxu0 0.0
    %3383 = vmatpush.msra.mxu0 0.0
    %3384 = vmatpush.msra.mxu0 0.0
    %3385 = vmatpush.msra.mxu0 0.0
    %3386 = vmatpush.msra.mxu0 0.0
    %3387 = vmatpush.msra.mxu0 0.0
    %3388 = vmatpush.msra.mxu0 0.0
    %3389 = vmatpush.msra.mxu0 %v3366
    %3390 = vmatpush.msra.mxu0 %v3365
    %3391 = vmatpush.msra.mxu0 %v3364
    %3392 = vmatpush.msra.mxu0 %v3363
    %3393 = vmatmul.f32.gmra.mxu0 %v3372
    %v3394 = vpop.f32.mrf.mxu0
    %v3395 = vadd.f32 %v3369, %v3394
    %3396 = vmatmul.f32.gmra.mxu0 %v3375
    %v3397 = vpop.f32.mrf.mxu0
    %v3398 = vadd.f32 %v3369, %v3397
    %3399 = vdwg.mxu0
    %v3400 = vxor.u32 %v3395, 2147483648
    %v3401 = vxor.u32 %v3398, 2147483648
    %v3402 = vmul.f32 %v3400, 1.442695
    %v3403 = vpow.pop %v3402
    %v3404 = vmul.f32 %v3401, 1.442695
    %v3405 = vpow.pop %v3404
    %v3406 = vadd.f32 %v3403, 1.0
    %v3407 = vadd.f32 %v3405, 1.0
    %v3408 = vrcp.pop %v3406
    %v3409 = vmul.f32 %v3406, %v3408
    %v3410 = vsub.f32 1.0, %v3409
    %v3411 = vmul.f32 %v3408, %v3410
    %v3412 = vadd.f32 %v3408, %v3411
    %vm3413 = vweird.f32 %v3406
    %vm3414 = vweird.f32 %v3408
    %vm3415 = vmor %vm3413, %vm3414
    %v3416 = vsel %vm3415, %v3408, %v3412
    %v3417 = vand.u32 2147483647, %v3406
    %vm3418 = vcmp.eq.f32.partialorder %v3417, 8.507059e+37
    %v3419 = vand.u32 %v3406, 2147483648
    %v3420 = vor.u32 1.1754944e-38, %v3419
    %v3421 = vsel %vm3418, %v3420, %v3416
    %v3422 = vmul.f32 1.0, %v3421
    %v3423 = vrcp.pop %v3407
    %v3424 = vmul.f32 %v3407, %v3423
    %v3425 = vsub.f32 1.0, %v3424
    %v3426 = vmul.f32 %v3423, %v3425
    %v3427 = vadd.f32 %v3423, %v3426
    %vm3428 = vweird.f32 %v3407
    %vm3429 = vweird.f32 %v3423
    %vm3430 = vmor %vm3428, %vm3429
    %v3431 = vsel %vm3430, %v3423, %v3427
    %v3432 = vand.u32 2147483647, %v3407
    %vm3433 = vcmp.eq.f32.partialorder %v3432, 8.507059e+37
    %v3434 = vand.u32 %v3407, 2147483648
    %v3435 = vor.u32 1.1754944e-38, %v3434
    %v3436 = vsel %vm3433, %v3435, %v3431
    %v3437 = vmul.f32 1.0, %v3436
    %3440 = vrot.lane.b32.xlu0 %v3422, 96
    %v3441 = vpop.permute.xlu0 %3440
    %3442 = vrot.lane.b32.xlu0 %v3437, 96
    %v3443 = vpop.permute.xlu0 %3442
    %v3446 = vmul.f32 %v3395, %v3441
    %v3447 = vmul.f32 %v3398, %v3443
    %v3448 = vadd.f32 %v3446, %v3361
    %v3449 = vadd.f32 %v3447, %v3362
    %v3450 = vld [vmem:[#allocation13] sm:$0x1]
    %v3451 = vld [vmem:[#allocation15] sm:$0x1]
    %v3452 = vsel %vm585, %v3448, 0.0
    %3453 = vadd.xlane.f32.xlu0 %v3452
    %v3454 = vpop.xlane.xlu0 %3453
    %v3455 = vsel %vm585, %v3449, 0.0
    %3456 = vadd.xlane.f32.xlu0 %v3455
    %v3457 = vpop.xlane.xlu0 %3456
    %v3458 = vrcp.pop 32.0
    %v3459 = vmul.f32 32.0, %v3458
    %v3460 = vsub.f32 1.0, %v3459
    %v3461 = vmul.f32 %v3458, %v3460
    %v3462 = vadd.f32 %v3458, %v3461
    %vm3463 = vweird.f32 %v3458
    %v3464 = vsel %vm3463, %v3458, %v3462
    %v3465 = vmul.f32 %v3454, %v3464
    %v3466 = vmul.f32 %v3457, %v3464
    %v3467 = vsub.f32 %v3448, %v3465
    %v3468 = vsub.f32 %v3449, %v3466
    %v3469 = vmul.f32 %v3467, %v3467
    %v3470 = vmul.f32 %v3468, %v3468
    %v3471 = vsel %vm585, %v3469, 0.0
    %3472 = vadd.xlane.f32.xlu0 %v3471
    %v3473 = vpop.xlane.xlu0 %3472
    %v3474 = vsel %vm585, %v3470, 0.0
    %3475 = vadd.xlane.f32.xlu0 %v3474
    %v3476 = vpop.xlane.xlu0 %3475
    %v3477 = vmul.f32 %v3473, %v3464
    %v3478 = vmul.f32 %v3476, %v3464
    %v3479 = vadd.f32 %v3477, 1e-05
    %v3480 = vadd.f32 %v3478, 1e-05
    %v3481 = vrsqrt.pop %v3479
    %v3482 = vmul.f32 %v3481, %v3479
    %v3483 = vmul.f32 %v3482, %v3481
    %v3484 = vmul.f32 0.5, %v3483
    %v3485 = vsub.f32 1.5, %v3484
    %v3486 = vmul.f32 %v3481, %v3485
    %vm3487 = vweird.f32 %v3479
    %vm3488 = vweird.f32 %v3481
    %vm3489 = vmor %vm3487, %vm3488
    %v3490 = vsel %vm3489, %v3481, %v3486
    %v3491 = vrsqrt.pop %v3480
    %v3492 = vmul.f32 %v3491, %v3480
    %v3493 = vmul.f32 %v3492, %v3491
    %v3494 = vmul.f32 0.5, %v3493
    %v3495 = vsub.f32 1.5, %v3494
    %v3496 = vmul.f32 %v3491, %v3495
    %vm3497 = vweird.f32 %v3480
    %vm3498 = vweird.f32 %v3491
    %vm3499 = vmor %vm3497, %vm3498
    %v3500 = vsel %vm3499, %v3491, %v3496
    %v3501 = vmul.f32 %v3467, %v3490
    %v3502 = vmul.f32 %v3468, %v3500
    %v3504 = vperm.slane %v3450, 0
    %v3506 = vmul.f32 %v3501, %v3504
    %v3507 = vmul.f32 %v3502, %v3504
    %v3509 = vperm.slane %v3451, 0
    %v3511 = vadd.f32 %v3506, %v3509
    %v3512 = vadd.f32 %v3507, %v3509
    %v3513 = vld [vmem:[#allocation3] sm:$0xf]
    %v3514 = vld [vmem:[#allocation3 + $0x4] sm:$0xf]
    %v3515 = vld [vmem:[%s3] sm:$0xff]
    %3518 = vst [vmem:[#allocation1] ss:$2 sm:$0xff] %v3513
    %s3519 = scalar_lea.vmem [#allocation1], 1
    %3520 = vst [vmem:[%s3519] ss:$2 sm:$0xff] %v3514
    %v3521 = vld.sshfl [vmem:[#allocation1] sm:$0xff pattern:$0x75316420]
    %v3522 = vsel %vm585, %v3521, 0
    %3524 = vmatpush.msra.mxu0 0.0
    %3525 = vmatpush.msra.mxu0 0.0
    %3526 = vmatpush.msra.mxu0 0.0
    %3527 = vmatpush.msra.mxu0 0.0
    %3528 = vmatpush.msra.mxu0 0.0
    %3529 = vmatpush.msra.mxu0 0.0
    %3530 = vmatpush.msra.mxu0 0.0
    %3531 = vmatpush.msra.mxu0 0.0
    %3532 = vmatpush.msra.mxu0 0.0
    %3533 = vmatpush.msra.mxu0 0.0
    %3534 = vmatpush.msra.mxu0 0.0
    %3535 = vmatpush.msra.mxu0 0.0
    %3536 = vmatpush.msra.mxu0 %v3366
    %3537 = vmatpush.msra.mxu0 %v3365
    %3538 = vmatpush.msra.mxu0 %v3364
    %3539 = vmatpush.msra.mxu0 %v3363
    %3540 = vmatmul.f32.gmra.mxu0 %v3522
    %v3541 = vpop.f32.mrf.mxu0
    %v3542 = vadd.f32 %v3369, %v3541
    %3543 = vdwg.mxu0
    %v3544 = vxor.u32 %v3542, 2147483648
    %v3545 = vmul.f32 %v3544, 1.442695
    %v3546 = vpow.pop %v3545
    %v3547 = vadd.f32 %v3546, 1.0
    %v3548 = vrcp.pop %v3547
    %v3549 = vmul.f32 %v3547, %v3548
    %v3550 = vsub.f32 1.0, %v3549
    %v3551 = vmul.f32 %v3548, %v3550
    %v3552 = vadd.f32 %v3548, %v3551
    %vm3553 = vweird.f32 %v3547
    %vm3554 = vweird.f32 %v3548
    %vm3555 = vmor %vm3553, %vm3554
    %v3556 = vsel %vm3555, %v3548, %v3552
    %v3557 = vand.u32 2147483647, %v3547
    %vm3558 = vcmp.eq.f32.partialorder %v3557, 8.507059e+37
    %v3559 = vand.u32 %v3547, 2147483648
    %v3560 = vor.u32 1.1754944e-38, %v3559
    %v3561 = vsel %vm3558, %v3560, %v3556
    %v3562 = vmul.f32 1.0, %v3561
    %3564 = vrot.lane.b32.xlu0 %v3562, 96
    %v3565 = vpop.permute.xlu0 %3564
    %v3567 = vmul.f32 %v3542, %v3565
    %v3568 = vadd.f32 %v3567, %v3515
    %v3569 = vsel %vm585, %v3568, 0.0
    %3570 = vadd.xlane.f32.xlu0 %v3569
    %v3571 = vpop.xlane.xlu0 %3570
    %v3572 = vmul.f32 %v3571, %v3464
    %v3573 = vsub.f32 %v3568, %v3572
    %v3574 = vmul.f32 %v3573, %v3573
    %v3575 = vsel %vm585, %v3574, 0.0
    %3576 = vadd.xlane.f32.xlu0 %v3575
    %v3577 = vpop.xlane.xlu0 %3576
    %v3578 = vmul.f32 %v3577, %v3464
    %v3579 = vadd.f32 %v3578, 1e-05
    %v3580 = vrsqrt.pop %v3579
    %v3581 = vmul.f32 %v3580, %v3579
    %v3582 = vmul.f32 %v3581, %v3580
    %v3583 = vmul.f32 0.5, %v3582
    %v3584 = vsub.f32 1.5, %v3583
    %v3585 = vmul.f32 %v3580, %v3584
    %vm3586 = vweird.f32 %v3579
    %vm3587 = vweird.f32 %v3580
    %vm3588 = vmor %vm3586, %vm3587
    %v3589 = vsel %vm3588, %v3580, %v3585
    %v3590 = vmul.f32 %v3573, %v3589
    %v3591 = vmul.f32 %v3590, %v3504
    %v3592 = vadd.f32 %v3591, %v3509
    %v3593 = vld [vmem:[%s37] sm:$0xff]
    %v3594 = vld [vmem:[%s37 + $0x8] sm:$0xff]
    %v3595 = vld [vmem:[%s37 + $0x10] sm:$0xff]
    %v3596 = vld [vmem:[%s37 + $0x18] sm:$0xff]
    %v3597 = vld [vmem:[#allocation16] sm:$0x1]
    %v3599 = vperm.slane %v3597, 0
    %v3602 = vsel %vm585, %v3592, 0
    %3604 = vmatpush.msra.mxu0 0.0
    %3605 = vmatpush.msra.mxu0 0.0
    %3606 = vmatpush.msra.mxu0 0.0
    %3607 = vmatpush.msra.mxu0 0.0
    %3608 = vmatpush.msra.mxu0 0.0
    %3609 = vmatpush.msra.mxu0 0.0
    %3610 = vmatpush.msra.mxu0 0.0
    %3611 = vmatpush.msra.mxu0 0.0
    %3612 = vmatpush.msra.mxu0 0.0
    %3613 = vmatpush.msra.mxu0 0.0
    %3614 = vmatpush.msra.mxu0 0.0
    %3615 = vmatpush.msra.mxu0 0.0
    %3616 = vmatpush.msra.mxu0 %v3596
    %3617 = vmatpush.msra.mxu0 %v3595
    %3618 = vmatpush.msra.mxu0 %v3594
    %3619 = vmatpush.msra.mxu0 %v3593
    %3620 = vmatmul.f32.gmra.mxu0 %v3602
    %v3621 = vpop.f32.mrf.mxu0
    %v3622 = vadd.f32 %v3599, %v3621
    %3623 = vdwg.mxu0
    %v3624 = vld [vmem:[%s41] sm:$0xff]
    %v3625 = vld [vmem:[%s41 + $0x8] sm:$0xff]
    %v3626 = vld [vmem:[%s41 + $0x10] sm:$0xff]
    %v3627 = vld [vmem:[%s41 + $0x18] sm:$0xff]
    %v3628 = vld [vmem:[#allocation18] sm:$0x1]
    %v3630 = vperm.slane %v3628, 0
    %v3633 = vsel %vm585, %v3511, 0
    %v3636 = vsel %vm585, %v3512, 0
    %3638 = vmatpush.msra.mxu0 0.0
    %3639 = vmatpush.msra.mxu0 0.0
    %3640 = vmatpush.msra.mxu0 0.0
    %3641 = vmatpush.msra.mxu0 0.0
    %3642 = vmatpush.msra.mxu0 0.0
    %3643 = vmatpush.msra.mxu0 0.0
    %3644 = vmatpush.msra.mxu0 0.0
    %3645 = vmatpush.msra.mxu0 0.0
    %3646 = vmatpush.msra.mxu0 0.0
    %3647 = vmatpush.msra.mxu0 0.0
    %3648 = vmatpush.msra.mxu0 0.0
    %3649 = vmatpush.msra.mxu0 0.0
    %3650 = vmatpush.msra.mxu0 %v3627
    %3651 = vmatpush.msra.mxu0 %v3626
    %3652 = vmatpush.msra.mxu0 %v3625
    %3653 = vmatpush.msra.mxu0 %v3624
    %3654 = vmatmul.f32.gmra.mxu0 %v3633
    %v3655 = vpop.f32.mrf.mxu0
    %v3656 = vadd.f32 %v3630, %v3655
    %3657 = vmatmul.f32.gmra.mxu0 %v3636
    %v3658 = vpop.f32.mrf.mxu0
    %v3659 = vadd.f32 %v3630, %v3658
    %3660 = vdwg.mxu0
    %3661 = vmatpush.msra.mxu0 0.0
    %3662 = vmatpush.msra.mxu0 0.0
    %3663 = vmatpush.msra.mxu0 0.0
    %3664 = vmatpush.msra.mxu0 0.0
    %3665 = vmatpush.msra.mxu0 0.0
    %3666 = vmatpush.msra.mxu0 0.0
    %3667 = vmatpush.msra.mxu0 0.0
    %3668 = vmatpush.msra.mxu0 0.0
    %3669 = vmatpush.msra.mxu0 0.0
    %3670 = vmatpush.msra.mxu0 0.0
    %3671 = vmatpush.msra.mxu0 0.0
    %3672 = vmatpush.msra.mxu0 0.0
    %3673 = vmatpush.msra.mxu0 %v3627
    %3674 = vmatpush.msra.mxu0 %v3626
    %3675 = vmatpush.msra.mxu0 %v3625
    %3676 = vmatpush.msra.mxu0 %v3624
    %3677 = vmatmul.f32.gmra.mxu0 %v3602
    %v3678 = vpop.f32.mrf.mxu0
    %v3679 = vadd.f32 %v3630, %v3678
    %3680 = vdwg.mxu0
    %v3681 = vld [vmem:[%s45] sm:$0xff]
    %v3682 = vld [vmem:[%s45 + $0x8] sm:$0xff]
    %v3683 = vld [vmem:[%s45 + $0x10] sm:$0xff]
    %v3684 = vld [vmem:[%s45 + $0x18] sm:$0xff]
    %v3685 = vld [vmem:[#allocation19] sm:$0x1]
    %v3687 = vperm.slane %v3685, 0
    %3689 = vmatpush.msra.mxu0 0.0
    %3690 = vmatpush.msra.mxu0 0.0
    %3691 = vmatpush.msra.mxu0 0.0
    %3692 = vmatpush.msra.mxu0 0.0
    %3693 = vmatpush.msra.mxu0 0.0
    %3694 = vmatpush.msra.mxu0 0.0
    %3695 = vmatpush.msra.mxu0 0.0
    %3696 = vmatpush.msra.mxu0 0.0
    %3697 = vmatpush.msra.mxu0 0.0
    %3698 = vmatpush.msra.mxu0 0.0
    %3699 = vmatpush.msra.mxu0 0.0
    %3700 = vmatpush.msra.mxu0 0.0
    %3701 = vmatpush.msra.mxu0 %v3684
    %3702 = vmatpush.msra.mxu0 %v3683
    %3703 = vmatpush.msra.mxu0 %v3682
    %3704 = vmatpush.msra.mxu0 %v3681
    %3705 = vmatmul.f32.gmra.mxu0 %v3633
    %v3706 = vpop.f32.mrf.mxu0
    %v3707 = vadd.f32 %v3687, %v3706
    %3708 = vmatmul.f32.gmra.mxu0 %v3636
    %v3709 = vpop.f32.mrf.mxu0
    %v3710 = vadd.f32 %v3687, %v3709
    %3711 = vdwg.mxu0
    %3712 = vmatpush.msra.mxu0 0.0
    %3713 = vmatpush.msra.mxu0 0.0
    %3714 = vmatpush.msra.mxu0 0.0
    %3715 = vmatpush.msra.mxu0 0.0
    %3716 = vmatpush.msra.mxu0 0.0
    %3717 = vmatpush.msra.mxu0 0.0
    %3718 = vmatpush.msra.mxu0 0.0
    %3719 = vmatpush.msra.mxu0 0.0
    %3720 = vmatpush.msra.mxu0 0.0
    %3721 = vmatpush.msra.mxu0 0.0
    %3722 = vmatpush.msra.mxu0 0.0
    %3723 = vmatpush.msra.mxu0 0.0
    %3724 = vmatpush.msra.mxu0 %v3684
    %3725 = vmatpush.msra.mxu0 %v3683
    %3726 = vmatpush.msra.mxu0 %v3682
    %3727 = vmatpush.msra.mxu0 %v3681
    %3728 = vmatmul.f32.gmra.mxu0 %v3602
    %v3729 = vpop.f32.mrf.mxu0
    %v3730 = vadd.f32 %v3687, %v3729
    %3731 = vdwg.mxu0
    %v3733 = vrot.slane %v3730, 4
    %v3734 = vlaneseq
    %v3735 = vshrl.u32 %v3734, 7
    %v3736 = vlaneseq
    %v3737 = vand.u32 %v3736, 127
    %vm3738 = vcmp.ge.s32.totalorder %v3737, %v3735
    %v3739 = vsel %vm3738, -1e+09, 0.0
    %v3741 = vrot.slane %v3622, 4
    %v3743 = vrot.slane %v3679, 4
    %vm3744 = vcmask 64512
    %v3745 = vsel %vm3744, %v3622, 0
    %v3748 = vsel %vm3744, %v3656, 0
    %3750 = vmatpush.xpose.msra.mxu0 0.0
    %3751 = vmatpush.xpose.msra.mxu0 0.0
    %3752 = vmatpush.xpose.msra.mxu0 0.0
    %3753 = vmatpush.xpose.msra.mxu0 0.0
    %3754 = vmatpush.xpose.msra.mxu0 0.0
    %3755 = vmatpush.xpose.msra.mxu0 0.0
    %3756 = vmatpush.xpose.msra.mxu0 0.0
    %3757 = vmatpush.xpose.msra.mxu0 0.0
    %3758 = vmatpush.xpose.msra.mxu0 0.0
    %3759 = vmatpush.xpose.msra.mxu0 0.0
    %3760 = vmatpush.xpose.msra.mxu0 0.0
    %3761 = vmatpush.xpose.msra.mxu0 0.0
    %3762 = vmatpush.xpose.msra.mxu0 0.0
    %3763 = vmatpush.xpose.msra.mxu0 0.0
    %3764 = vmatpush.xpose.msra.mxu0 0.0
    %3765 = vmatpush.xpose.msra.mxu0 %v3748
    %3766 = vmatmul.f32.gmra.mxu0 %v3745
    %v3767 = vpop.f32.mrf.mxu0
    %v3768 = vadd.f32 0.0, %v3767
    %3769 = vdwg.mxu0
    %v3770 = vsel %vm3744, %v3741, 0
    %v3773 = vsel %vm3744, %v3659, 0
    %3775 = vmatpush.xpose.msra.mxu0 0.0
    %3776 = vmatpush.xpose.msra.mxu0 0.0
    %3777 = vmatpush.xpose.msra.mxu0 0.0
    %3778 = vmatpush.xpose.msra.mxu0 0.0
    %3779 = vmatpush.xpose.msra.mxu0 0.0
    %3780 = vmatpush.xpose.msra.mxu0 0.0
    %3781 = vmatpush.xpose.msra.mxu0 0.0
    %3782 = vmatpush.xpose.msra.mxu0 0.0
    %3783 = vmatpush.xpose.msra.mxu0 0.0
    %3784 = vmatpush.xpose.msra.mxu0 0.0
    %3785 = vmatpush.xpose.msra.mxu0 0.0
    %3786 = vmatpush.xpose.msra.mxu0 0.0
    %3787 = vmatpush.xpose.msra.mxu0 0.0
    %3788 = vmatpush.xpose.msra.mxu0 0.0
    %3789 = vmatpush.xpose.msra.mxu0 0.0
    %3790 = vmatpush.xpose.msra.mxu0 %v3773
    %3791 = vmatmul.f32.gmra.mxu0 %v3770
    %v3792 = vpop.f32.mrf.mxu0
    %v3793 = vadd.f32 0.0, %v3792
    %3794 = vdwg.mxu0
    %v3795 = vmul.f32 %v3768, 0.35355338
    %v3796 = vmul.f32 %v3793, 0.35355338
    %v3797 = vsel %vm3744, %v3679, 0
    %3799 = vmatpush.xpose.msra.mxu0 0.0
    %3800 = vmatpush.xpose.msra.mxu0 0.0
    %3801 = vmatpush.xpose.msra.mxu0 0.0
    %3802 = vmatpush.xpose.msra.mxu0 0.0
    %3803 = vmatpush.xpose.msra.mxu0 0.0
    %3804 = vmatpush.xpose.msra.mxu0 0.0
    %3805 = vmatpush.xpose.msra.mxu0 0.0
    %3806 = vmatpush.xpose.msra.mxu0 0.0
    %3807 = vmatpush.xpose.msra.mxu0 0.0
    %3808 = vmatpush.xpose.msra.mxu0 0.0
    %3809 = vmatpush.xpose.msra.mxu0 0.0
    %3810 = vmatpush.xpose.msra.mxu0 0.0
    %3811 = vmatpush.xpose.msra.mxu0 0.0
    %3812 = vmatpush.xpose.msra.mxu0 0.0
    %3813 = vmatpush.xpose.msra.mxu0 0.0
    %3814 = vmatpush.xpose.msra.mxu0 %v3797
    %3815 = vmatmul.f32.gmra.mxu0 %v3745
    %v3816 = vpop.f32.mrf.mxu0
    %v3817 = vadd.f32 0.0, %v3816
    %3818 = vdwg.mxu0
    %v3819 = vsel %vm3744, %v3743, 0
    %3821 = vmatpush.xpose.msra.mxu0 0.0
    %3822 = vmatpush.xpose.msra.mxu0 0.0
    %3823 = vmatpush.xpose.msra.mxu0 0.0
    %3824 = vmatpush.xpose.msra.mxu0 0.0
    %3825 = vmatpush.xpose.msra.mxu0 0.0
    %3826 = vmatpush.xpose.msra.mxu0 0.0
    %3827 = vmatpush.xpose.msra.mxu0 0.0
    %3828 = vmatpush.xpose.msra.mxu0 0.0
    %3829 = vmatpush.xpose.msra.mxu0 0.0
    %3830 = vmatpush.xpose.msra.mxu0 0.0
    %3831 = vmatpush.xpose.msra.mxu0 0.0
    %3832 = vmatpush.xpose.msra.mxu0 0.0
    %3833 = vmatpush.xpose.msra.mxu0 0.0
    %3834 = vmatpush.xpose.msra.mxu0 0.0
    %3835 = vmatpush.xpose.msra.mxu0 0.0
    %3836 = vmatpush.xpose.msra.mxu0 %v3819
    %3837 = vmatmul.f32.gmra.mxu0 %v3770
    %v3838 = vpop.f32.mrf.mxu0
    %v3839 = vadd.f32 0.0, %v3838
    %3840 = vdwg.mxu0
    %v3841 = vmul.f32 %v3817, 0.35355338
    %v3842 = vmul.f32 %v3839, 0.35355338
    %v3843 = vadd.f32 %v3841, %v3739
    %v3844 = vadd.f32 %v3842, %v3739
    %vm3845 = vcmask 60416
    %v3846 = vsel %vm3845, %v3795, -inf
    %3847 = vmax.xlane.f32.xlu0 %v3846
    %v3848 = vpop.xlane.xlu0 %3847
    %v3849 = vsel %vm3845, %v3796, -inf
    %3850 = vmax.xlane.f32.xlu0 %v3849
    %v3851 = vpop.xlane.xlu0 %3850
    %vm3852 = vcmask 27648
    %v3853 = vsel %vm3852, %v3843, -inf
    %3854 = vmax.xlane.f32.xlu0 %v3853
    %v3855 = vpop.xlane.xlu0 %3854
    %v3856 = vsel %vm3852, %v3844, -inf
    %3857 = vmax.xlane.f32.xlu0 %v3856
    %v3858 = vpop.xlane.xlu0 %3857
    %v3859 = vmax.f32 %v3848, %v3855
    %v3860 = vmax.f32 %v3851, %v3858
    %v3861 = vsub.f32 %v3795, %v3859
    %v3862 = vsub.f32 %v3796, %v3860
    %v3863 = vmul.f32 %v3861, 1.442695
    %v3864 = vpow.pop %v3863
    %v3865 = vmul.f32 %v3862, 1.442695
    %v3866 = vpow.pop %v3865
    %v3867 = vsub.f32 %v3843, %v3859
    %v3868 = vsub.f32 %v3844, %v3860
    %v3869 = vmul.f32 %v3867, 1.442695
    %v3870 = vpow.pop %v3869
    %v3871 = vmul.f32 %v3868, 1.442695
    %v3872 = vpow.pop %v3871
    %v3873 = vsel %vm3845, %v3864, 0.0
    %3874 = vadd.xlane.f32.xlu0 %v3873
    %v3875 = vpop.xlane.xlu0 %3874
    %v3876 = vsel %vm3845, %v3866, 0.0
    %3877 = vadd.xlane.f32.xlu0 %v3876
    %v3878 = vpop.xlane.xlu0 %3877
    %v3879 = vsel %vm3852, %v3870, 0.0
    %3880 = vadd.xlane.f32.xlu0 %v3879
    %v3881 = vpop.xlane.xlu0 %3880
    %v3882 = vsel %vm3852, %v3872, 0.0
    %3883 = vadd.xlane.f32.xlu0 %v3882
    %v3884 = vpop.xlane.xlu0 %3883
    %v3885 = vadd.f32 %v3875, %v3881
    %v3886 = vadd.f32 %v3878, %v3884
    %v3887 = vrcp.pop %v3885
    %v3888 = vmul.f32 %v3885, %v3887
    %v3889 = vsub.f32 1.0, %v3888
    %v3890 = vmul.f32 %v3887, %v3889
    %v3891 = vadd.f32 %v3887, %v3890
    %vm3892 = vweird.f32 %v3885
    %vm3893 = vweird.f32 %v3887
    %vm3894 = vmor %vm3892, %vm3893
    %v3895 = vsel %vm3894, %v3887, %v3891
    %v3896 = vand.u32 2147483647, %v3885
    %vm3897 = vcmp.eq.f32.partialorder %v3896, 8.507059e+37
    %v3898 = vand.u32 %v3885, 2147483648
    %v3899 = vor.u32 1.1754944e-38, %v3898
    %v3900 = vsel %vm3897, %v3899, %v3895
    %v3901 = vmul.f32 1.0, %v3900
    %v3902 = vrcp.pop %v3886
    %v3903 = vmul.f32 %v3886, %v3902
    %v3904 = vsub.f32 1.0, %v3903
    %v3905 = vmul.f32 %v3902, %v3904
    %v3906 = vadd.f32 %v3902, %v3905
    %vm3907 = vweird.f32 %v3886
    %vm3908 = vweird.f32 %v3902
    %vm3909 = vmor %vm3907, %vm3908
    %v3910 = vsel %vm3909, %v3902, %v3906
    %v3911 = vand.u32 2147483647, %v3886
    %vm3912 = vcmp.eq.f32.partialorder %v3911, 8.507059e+37
    %v3913 = vand.u32 %v3886, 2147483648
    %v3914 = vor.u32 1.1754944e-38, %v3913
    %v3915 = vsel %vm3912, %v3914, %v3910
    %v3916 = vmul.f32 1.0, %v3915
    %v3917 = vmul.f32 %v3864, %v3901
    %v3918 = vmul.f32 %v3866, %v3916
    %v3919 = vmul.f32 %v3870, %v3901
    %v3920 = vmul.f32 %v3872, %v3916
    %vm3921 = vcmask 31744
    %v3923 = vsel %vm3921, %v3919, 0
    %vm3925 = vcmask 1043456
    %v3926 = vsel %vm3925, %v3730, 0
    %3928 = vmatpush.msra.mxu0 0.0
    %3929 = vmatpush.msra.mxu0 0.0
    %3930 = vmatpush.msra.mxu0 0.0
    %3931 = vmatpush.msra.mxu0 0.0
    %3932 = vmatpush.msra.mxu0 0.0
    %3933 = vmatpush.msra.mxu0 0.0
    %3934 = vmatpush.msra.mxu0 0.0
    %3935 = vmatpush.msra.mxu0 0.0
    %3936 = vmatpush.msra.mxu0 0.0
    %3937 = vmatpush.msra.mxu0 0.0
    %3938 = vmatpush.msra.mxu0 0.0
    %3939 = vmatpush.msra.mxu0 0.0
    %3940 = vmatpush.msra.mxu0 0.0
    %3941 = vmatpush.msra.mxu0 0.0
    %3942 = vmatpush.msra.mxu0 0.0
    %3943 = vmatpush.msra.mxu0 %v3926
    %3944 = vmatmul.f32.gmra.mxu0 %v3923
    %v3945 = vpop.f32.mrf.mxu0
    %v3946 = vadd.f32 0.0, %v3945
    %3947 = vdwg.mxu0
    %v3949 = vsel %vm3921, %v3920, 0
    %v3951 = vsel %vm3925, %v3733, 0
    %3953 = vmatpush.msra.mxu0 0.0
    %3954 = vmatpush.msra.mxu0 0.0
    %3955 = vmatpush.msra.mxu0 0.0
    %3956 = vmatpush.msra.mxu0 0.0
    %3957 = vmatpush.msra.mxu0 0.0
    %3958 = vmatpush.msra.mxu0 0.0
    %3959 = vmatpush.msra.mxu0 0.0
    %3960 = vmatpush.msra.mxu0 0.0
    %3961 = vmatpush.msra.mxu0 0.0
    %3962 = vmatpush.msra.mxu0 0.0
    %3963 = vmatpush.msra.mxu0 0.0
    %3964 = vmatpush.msra.mxu0 0.0
    %3965 = vmatpush.msra.mxu0 0.0
    %3966 = vmatpush.msra.mxu0 0.0
    %3967 = vmatpush.msra.mxu0 0.0
    %3968 = vmatpush.msra.mxu0 %v3951
    %3969 = vmatmul.f32.gmra.mxu0 %v3949
    %v3970 = vpop.f32.mrf.mxu0
    %v3971 = vadd.f32 0.0, %v3970
    %3972 = vdwg.mxu0
    %v3974 = vsel %vm3744, %v3917, 0
    %3976 = vmatpush.msra.mxu0 0.0
    %3977 = vmatpush.msra.mxu0 0.0
    %3978 = vmatpush.msra.mxu0 0.0
    %3979 = vmatpush.msra.mxu0 0.0
    %3980 = vmatpush.msra.mxu0 0.0
    %3981 = vmatpush.msra.mxu0 0.0
    %3982 = vmatpush.msra.mxu0 0.0
    %3983 = vmatpush.msra.mxu0 0.0
    %3984 = vmatpush.msra.mxu0 0.0
    %3985 = vmatpush.msra.mxu0 0.0
    %3986 = vmatpush.msra.mxu0 0.0
    %3987 = vmatpush.msra.mxu0 0.0
    %3988 = vmatpush.msra.mxu0 0.0
    %3989 = vmatpush.msra.mxu0 0.0
    %3990 = vmatpush.msra.mxu0 0.0
    %3991 = vmatpush.msra.mxu0 %v3707
    %3992 = vmatmul.f32.gmra.mxu0 %v3974
    %v3993 = vpop.f32.mrf.mxu0
    %v3994 = vadd.f32 %v3946, %v3993
    %3995 = vdwg.mxu0
    %v3997 = vsel %vm3744, %v3918, 0
    %3999 = vmatpush.msra.mxu0 0.0
    %4000 = vmatpush.msra.mxu0 0.0
    %4001 = vmatpush.msra.mxu0 0.0
    %4002 = vmatpush.msra.mxu0 0.0
    %4003 = vmatpush.msra.mxu0 0.0
    %4004 = vmatpush.msra.mxu0 0.0
    %4005 = vmatpush.msra.mxu0 0.0
    %4006 = vmatpush.msra.mxu0 0.0
    %4007 = vmatpush.msra.mxu0 0.0
    %4008 = vmatpush.msra.mxu0 0.0
    %4009 = vmatpush.msra.mxu0 0.0
    %4010 = vmatpush.msra.mxu0 0.0
    %4011 = vmatpush.msra.mxu0 0.0
    %4012 = vmatpush.msra.mxu0 0.0
    %4013 = vmatpush.msra.mxu0 0.0
    %4014 = vmatpush.msra.mxu0 %v3710
    %4015 = vmatmul.f32.gmra.mxu0 %v3997
    %v4016 = vpop.f32.mrf.mxu0
    %v4017 = vadd.f32 %v3971, %v4016
    %4018 = vdwg.mxu0
    %4019 = vst [vmem:[#allocation1] ss:$2 sm:$0xff] %v3622
    %v4020 = vld.sshfl [vmem:[#allocation1] sm:$0xff pattern:$0x75316420]
    %4021 = vrot.lane.b32.xlu0 %v4020, 120
    %v4022 = vpop.permute.xlu0 %4021
    %4023 = vrot.lane.b32.xlu0 %v3656, 120
    %v4024 = vpop.permute.xlu0 %4023
    %v4025 = vsel %vm3744, %v4022, 0
    %v4027 = vsel %vm3744, %v4024, 0
    %4029 = vmatpush.xpose.msra.mxu0 0.0
    %4030 = vmatpush.xpose.msra.mxu0 0.0
    %4031 = vmatpush.xpose.msra.mxu0 0.0
    %4032 = vmatpush.xpose.msra.mxu0 0.0
    %4033 = vmatpush.xpose.msra.mxu0 0.0
    %4034 = vmatpush.xpose.msra.mxu0 0.0
    %4035 = vmatpush.xpose.msra.mxu0 0.0
    %4036 = vmatpush.xpose.msra.mxu0 0.0
    %4037 = vmatpush.xpose.msra.mxu0 0.0
    %4038 = vmatpush.xpose.msra.mxu0 0.0
    %4039 = vmatpush.xpose.msra.mxu0 0.0
    %4040 = vmatpush.xpose.msra.mxu0 0.0
    %4041 = vmatpush.xpose.msra.mxu0 0.0
    %4042 = vmatpush.xpose.msra.mxu0 0.0
    %4043 = vmatpush.xpose.msra.mxu0 0.0
    %4044 = vmatpush.xpose.msra.mxu0 %v4027
    %4045 = vmatmul.f32.gmra.mxu0 %v4025
    %v4046 = vpop.f32.mrf.mxu0
    %v4047 = vadd.f32 0.0, %v4046
    %4048 = vdwg.mxu0
    %4049 = vst [vmem:[#allocation1] ss:$2 sm:$0xff] %v3741
    %v4050 = vld.sshfl [vmem:[#allocation1] sm:$0xff pattern:$0x75316420]
    %4051 = vrot.lane.b32.xlu0 %v4050, 120
    %v4052 = vpop.permute.xlu0 %4051
    %4053 = vrot.lane.b32.xlu0 %v3659, 120
    %v4054 = vpop.permute.xlu0 %4053
    %v4055 = vsel %vm3744, %v4052, 0
    %v4057 = vsel %vm3744, %v4054, 0
    %4059 = vmatpush.xpose.msra.mxu0 0.0
    %4060 = vmatpush.xpose.msra.mxu0 0.0
    %4061 = vmatpush.xpose.msra.mxu0 0.0
    %4062 = vmatpush.xpose.msra.mxu0 0.0
    %4063 = vmatpush.xpose.msra.mxu0 0.0
    %4064 = vmatpush.xpose.msra.mxu0 0.0
    %4065 = vmatpush.xpose.msra.mxu0 0.0
    %4066 = vmatpush.xpose.msra.mxu0 0.0
    %4067 = vmatpush.xpose.msra.mxu0 0.0
    %4068 = vmatpush.xpose.msra.mxu0 0.0
    %4069 = vmatpush.xpose.msra.mxu0 0.0
    %4070 = vmatpush.xpose.msra.mxu0 0.0
    %4071 = vmatpush.xpose.msra.mxu0 0.0
    %4072 = vmatpush.xpose.msra.mxu0 0.0
    %4073 = vmatpush.xpose.msra.mxu0 0.0
    %4074 = vmatpush.xpose.msra.mxu0 %v4057
    %4075 = vmatmul.f32.gmra.mxu0 %v4055
    %v4076 = vpop.f32.mrf.mxu0
    %v4077 = vadd.f32 0.0, %v4076
    %4078 = vdwg.mxu0
    %v4079 = vmul.f32 %v4047, 0.35355338
    %v4080 = vmul.f32 %v4077, 0.35355338
    %4081 = vst [vmem:[#allocation1] ss:$2 sm:$0xff] %v3622
    %v4082 = vld.sshfl [vmem:[#allocation1] sm:$0xff pattern:$0x75316420]
    %4083 = vrot.lane.b32.xlu0 %v4082, 120
    %v4084 = vpop.permute.xlu0 %4083
    %4085 = vst [vmem:[#allocation1] ss:$2 sm:$0xff] %v3679
    %v4086 = vld.sshfl [vmem:[#allocation1] sm:$0xff pattern:$0x75316420]
    %4087 = vrot.lane.b32.xlu0 %v4086, 120
    %v4088 = vpop.permute.xlu0 %4087
    %v4089 = vsel %vm3744, %v4084, 0
    %v4091 = vsel %vm3744, %v4088, 0
    %4093 = vmatpush.xpose.msra.mxu0 0.0
    %4094 = vmatpush.xpose.msra.mxu0 0.0
    %4095 = vmatpush.xpose.msra.mxu0 0.0
    %4096 = vmatpush.xpose.msra.mxu0 0.0
    %4097 = vmatpush.xpose.msra.mxu0 0.0
    %4098 = vmatpush.xpose.msra.mxu0 0.0
    %4099 = vmatpush.xpose.msra.mxu0 0.0
    %4100 = vmatpush.xpose.msra.mxu0 0.0
    %4101 = vmatpush.xpose.msra.mxu0 0.0
    %4102 = vmatpush.xpose.msra.mxu0 0.0
    %4103 = vmatpush.xpose.msra.mxu0 0.0
    %4104 = vmatpush.xpose.msra.mxu0 0.0
    %4105 = vmatpush.xpose.msra.mxu0 0.0
    %4106 = vmatpush.xpose.msra.mxu0 0.0
    %4107 = vmatpush.xpose.msra.mxu0 0.0
    %4108 = vmatpush.xpose.msra.mxu0 %v4091
    %4109 = vmatmul.f32.gmra.mxu0 %v4089
    %v4110 = vpop.f32.mrf.mxu0
    %v4111 = vadd.f32 0.0, %v4110
    %4112 = vdwg.mxu0
    %4113 = vst [vmem:[#allocation1] ss:$2 sm:$0xff] %v3741
    %v4114 = vld.sshfl [vmem:[#allocation1] sm:$0xff pattern:$0x75316420]
    %4115 = vrot.lane.b32.xlu0 %v4114, 120
    %v4116 = vpop.permute.xlu0 %4115
    %4117 = vst [vmem:[#allocation1] ss:$2 sm:$0xff] %v3743
    %v4118 = vld.sshfl [vmem:[#allocation1] sm:$0xff pattern:$0x75316420]
    %4119 = vrot.lane.b32.xlu0 %v4118, 120
    %v4120 = vpop.permute.xlu0 %4119
    %v4121 = vsel %vm3744, %v4116, 0
    %v4123 = vsel %vm3744, %v4120, 0
    %4125 = vmatpush.xpose.msra.mxu0 0.0
    %4126 = vmatpush.xpose.msra.mxu0 0.0
    %4127 = vmatpush.xpose.msra.mxu0 0.0
    %4128 = vmatpush.xpose.msra.mxu0 0.0
    %4129 = vmatpush.xpose.msra.mxu0 0.0
    %4130 = vmatpush.xpose.msra.mxu0 0.0
    %4131 = vmatpush.xpose.msra.mxu0 0.0
    %4132 = vmatpush.xpose.msra.mxu0 0.0
    %4133 = vmatpush.xpose.msra.mxu0 0.0
    %4134 = vmatpush.xpose.msra.mxu0 0.0
    %4135 = vmatpush.xpose.msra.mxu0 0.0
    %4136 = vmatpush.xpose.msra.mxu0 0.0
    %4137 = vmatpush.xpose.msra.mxu0 0.0
    %4138 = vmatpush.xpose.msra.mxu0 0.0
    %4139 = vmatpush.xpose.msra.mxu0 0.0
    %4140 = vmatpush.xpose.msra.mxu0 %v4123
    %4141 = vmatmul.f32.gmra.mxu0 %v4121
    %v4142 = vpop.f32.mrf.mxu0
    %v4143 = vadd.f32 0.0, %v4142
    %4144 = vdwg.mxu0
    %v4145 = vmul.f32 %v4111, 0.35355338
    %v4146 = vmul.f32 %v4143, 0.35355338
    %v4147 = vadd.f32 %v4145, %v3739
    %v4148 = vadd.f32 %v4146, %v3739
    %v4149 = vsel %vm3845, %v4079, -inf
    %4150 = vmax.xlane.f32.xlu0 %v4149
    %v4151 = vpop.xlane.xlu0 %4150
    %v4152 = vsel %vm3845, %v4080, -inf
    %4153 = vmax.xlane.f32.xlu0 %v4152
    %v4154 = vpop.xlane.xlu0 %4153
    %v4155 = vsel %vm3852, %v4147, -inf
    %4156 = vmax.xlane.f32.xlu0 %v4155
    %v4157 = vpop.xlane.xlu0 %4156
    %v4158 = vsel %vm3852, %v4148, -inf
    %4159 = vmax.xlane.f32.xlu0 %v4158
    %v4160 = vpop.xlane.xlu0 %4159
    %v4161 = vmax.f32 %v4151, %v4157
    %v4162 = vmax.f32 %v4154, %v4160
    %v4163 = vsub.f32 %v4079, %v4161
    %v4164 = vsub.f32 %v4080, %v4162
    %v4165 = vmul.f32 %v4163, 1.442695
    %v4166 = vpow.pop %v4165
    %v4167 = vmul.f32 %v4164, 1.442695
    %v4168 = vpow.pop %v4167
    %v4169 = vsub.f32 %v4147, %v4161
    %v4170 = vsub.f32 %v4148, %v4162
    %v4171 = vmul.f32 %v4169, 1.442695
    %v4172 = vpow.pop %v4171
    %v4173 = vmul.f32 %v4170, 1.442695
    %v4174 = vpow.pop %v4173
    %v4175 = vsel %vm3845, %v4166, 0.0
    %4176 = vadd.xlane.f32.xlu0 %v4175
    %v4177 = vpop.xlane.xlu0 %4176
    %v4178 = vsel %vm3845, %v4168, 0.0
    %4179 = vadd.xlane.f32.xlu0 %v4178
    %v4180 = vpop.xlane.xlu0 %4179
    %v4181 = vsel %vm3852, %v4172, 0.0
    %4182 = vadd.xlane.f32.xlu0 %v4181
    %v4183 = vpop.xlane.xlu0 %4182
    %v4184 = vsel %vm3852, %v4174, 0.0
    %4185 = vadd.xlane.f32.xlu0 %v4184
    %v4186 = vpop.xlane.xlu0 %4185
    %v4187 = vadd.f32 %v4177, %v4183
    %v4188 = vadd.f32 %v4180, %v4186
    %v4189 = vrcp.pop %v4187
    %v4190 = vmul.f32 %v4187, %v4189
    %v4191 = vsub.f32 1.0, %v4190
    %v4192 = vmul.f32 %v4189, %v4191
    %v4193 = vadd.f32 %v4189, %v4192
    %vm4194 = vweird.f32 %v4187
    %vm4195 = vweird.f32 %v4189
    %vm4196 = vmor %vm4194, %vm4195
    %v4197 = vsel %vm4196, %v4189, %v4193
    %v4198 = vand.u32 2147483647, %v4187
    %vm4199 = vcmp.eq.f32.partialorder %v4198, 8.507059e+37
    %v4200 = vand.u32 %v4187, 2147483648
    %v4201 = vor.u32 1.1754944e-38, %v4200
    %v4202 = vsel %vm4199, %v4201, %v4197
    %v4203 = vmul.f32 1.0, %v4202
    %v4204 = vrcp.pop %v4188
    %v4205 = vmul.f32 %v4188, %v4204
    %v4206 = vsub.f32 1.0, %v4205
    %v4207 = vmul.f32 %v4204, %v4206
    %v4208 = vadd.f32 %v4204, %v4207
    %vm4209 = vweird.f32 %v4188
    %vm4210 = vweird.f32 %v4204
    %vm4211 = vmor %vm4209, %vm4210
    %v4212 = vsel %vm4211, %v4204, %v4208
    %v4213 = vand.u32 2147483647, %v4188
    %vm4214 = vcmp.eq.f32.partialorder %v4213, 8.507059e+37
    %v4215 = vand.u32 %v4188, 2147483648
    %v4216 = vor.u32 1.1754944e-38, %v4215
    %v4217 = vsel %vm4214, %v4216, %v4212
    %v4218 = vmul.f32 1.0, %v4217
    %v4219 = vmul.f32 %v4166, %v4203
    %v4220 = vmul.f32 %v4168, %v4218
    %v4221 = vmul.f32 %v4172, %v4203
    %v4222 = vmul.f32 %v4174, %v4218
    %v4224 = vsel %vm3744, %v4219, 0
    %4226 = vmatpush.msra.mxu0 0.0
    %4227 = vmatpush.msra.mxu0 0.0
    %4228 = vmatpush.msra.mxu0 0.0
    %4229 = vmatpush.msra.mxu0 0.0
    %4230 = vmatpush.msra.mxu0 0.0
    %4231 = vmatpush.msra.mxu0 0.0
    %4232 = vmatpush.msra.mxu0 0.0
    %4233 = vmatpush.msra.mxu0 0.0
    %4234 = vmatpush.msra.mxu0 0.0
    %4235 = vmatpush.msra.mxu0 0.0
    %4236 = vmatpush.msra.mxu0 0.0
    %4237 = vmatpush.msra.mxu0 0.0
    %4238 = vmatpush.msra.mxu0 0.0
    %4239 = vmatpush.msra.mxu0 0.0
    %4240 = vmatpush.msra.mxu0 0.0
    %4241 = vmatpush.msra.mxu0 %v3707
    %4242 = vmatmul.f32.gmra.mxu0 %v4224
    %v4243 = vpop.f32.mrf.mxu0
    %v4244 = vadd.f32 0.0, %v4243
    %4245 = vdwg.mxu0
    %v4247 = vsel %vm3744, %v4220, 0
    %4249 = vmatpush.msra.mxu0 0.0
    %4250 = vmatpush.msra.mxu0 0.0
    %4251 = vmatpush.msra.mxu0 0.0
    %4252 = vmatpush.msra.mxu0 0.0
    %4253 = vmatpush.msra.mxu0 0.0
    %4254 = vmatpush.msra.mxu0 0.0
    %4255 = vmatpush.msra.mxu0 0.0
    %4256 = vmatpush.msra.mxu0 0.0
    %4257 = vmatpush.msra.mxu0 0.0
    %4258 = vmatpush.msra.mxu0 0.0
    %4259 = vmatpush.msra.mxu0 0.0
    %4260 = vmatpush.msra.mxu0 0.0
    %4261 = vmatpush.msra.mxu0 0.0
    %4262 = vmatpush.msra.mxu0 0.0
    %4263 = vmatpush.msra.mxu0 0.0
    %4264 = vmatpush.msra.mxu0 %v3710
    %4265 = vmatmul.f32.gmra.mxu0 %v4247
    %v4266 = vpop.f32.mrf.mxu0
    %v4267 = vadd.f32 0.0, %v4266
    %4268 = vdwg.mxu0
    %v4269 = vadd.f32 %v3994, %v4244
    %v4270 = vadd.f32 %v4017, %v4267
    %v4272 = vsel %vm3921, %v4221, 0
    %4274 = vmatpush.msra.mxu0 0.0
    %4275 = vmatpush.msra.mxu0 0.0
    %4276 = vmatpush.msra.mxu0 0.0
    %4277 = vmatpush.msra.mxu0 0.0
    %4278 = vmatpush.msra.mxu0 0.0
    %4279 = vmatpush.msra.mxu0 0.0
    %4280 = vmatpush.msra.mxu0 0.0
    %4281 = vmatpush.msra.mxu0 0.0
    %4282 = vmatpush.msra.mxu0 0.0
    %4283 = vmatpush.msra.mxu0 0.0
    %4284 = vmatpush.msra.mxu0 0.0
    %4285 = vmatpush.msra.mxu0 0.0
    %4286 = vmatpush.msra.mxu0 0.0
    %4287 = vmatpush.msra.mxu0 0.0
    %4288 = vmatpush.msra.mxu0 0.0
    %4289 = vmatpush.msra.mxu0 %v3926
    %4290 = vmatmul.f32.gmra.mxu0 %v4272
    %v4291 = vpop.f32.mrf.mxu0
    %v4292 = vadd.f32 0.0, %v4291
    %4293 = vdwg.mxu0
    %v4295 = vsel %vm3921, %v4222, 0
    %4297 = vmatpush.msra.mxu0 0.0
    %4298 = vmatpush.msra.mxu0 0.0
    %4299 = vmatpush.msra.mxu0 0.0
    %4300 = vmatpush.msra.mxu0 0.0
    %4301 = vmatpush.msra.mxu0 0.0
    %4302 = vmatpush.msra.mxu0 0.0
    %4303 = vmatpush.msra.mxu0 0.0
    %4304 = vmatpush.msra.mxu0 0.0
    %4305 = vmatpush.msra.mxu0 0.0
    %4306 = vmatpush.msra.mxu0 0.0
    %4307 = vmatpush.msra.mxu0 0.0
    %4308 = vmatpush.msra.mxu0 0.0
    %4309 = vmatpush.msra.mxu0 0.0
    %4310 = vmatpush.msra.mxu0 0.0
    %4311 = vmatpush.msra.mxu0 0.0
    %4312 = vmatpush.msra.mxu0 %v3951
    %4313 = vmatmul.f32.gmra.mxu0 %v4295
    %v4314 = vpop.f32.mrf.mxu0
    %v4315 = vadd.f32 0.0, %v4314
    %4316 = vdwg.mxu0
    %v4317 = vadd.f32 %v4269, %v4292
    %v4318 = vadd.f32 %v4270, %v4315
    %4319 = vst [vmem:[#allocation1] ss:$2 sm:$0xff] %v3622
    %v4320 = vld.sshfl [vmem:[#allocation1] sm:$0xff pattern:$0x75316420]
    %4321 = vrot.lane.b32.xlu0 %v4320, 112
    %v4322 = vpop.permute.xlu0 %4321
    %4323 = vrot.lane.b32.xlu0 %v3656, 112
    %v4324 = vpop.permute.xlu0 %4323
    %v4325 = vsel %vm3744, %v4322, 0
    %v4327 = vsel %vm3744, %v4324, 0
    %4329 = vmatpush.xpose.msra.mxu0 0.0
    %4330 = vmatpush.xpose.msra.mxu0 0.0
    %4331 = vmatpush.xpose.msra.mxu0 0.0
    %4332 = vmatpush.xpose.msra.mxu0 0.0
    %4333 = vmatpush.xpose.msra.mxu0 0.0
    %4334 = vmatpush.xpose.msra.mxu0 0.0
    %4335 = vmatpush.xpose.msra.mxu0 0.0
    %4336 = vmatpush.xpose.msra.mxu0 0.0
    %4337 = vmatpush.xpose.msra.mxu0 0.0
    %4338 = vmatpush.xpose.msra.mxu0 0.0
    %4339 = vmatpush.xpose.msra.mxu0 0.0
    %4340 = vmatpush.xpose.msra.mxu0 0.0
    %4341 = vmatpush.xpose.msra.mxu0 0.0
    %4342 = vmatpush.xpose.msra.mxu0 0.0
    %4343 = vmatpush.xpose.msra.mxu0 0.0
    %4344 = vmatpush.xpose.msra.mxu0 %v4327
    %4345 = vmatmul.f32.gmra.mxu0 %v4325
    %v4346 = vpop.f32.mrf.mxu0
    %v4347 = vadd.f32 0.0, %v4346
    %4348 = vdwg.mxu0
    %4349 = vst [vmem:[#allocation1] ss:$2 sm:$0xff] %v3741
    %v4350 = vld.sshfl [vmem:[#allocation1] sm:$0xff pattern:$0x75316420]
    %4351 = vrot.lane.b32.xlu0 %v4350, 112
    %v4352 = vpop.permute.xlu0 %4351
    %4353 = vrot.lane.b32.xlu0 %v3659, 112
    %v4354 = vpop.permute.xlu0 %4353
    %v4355 = vsel %vm3744, %v4352, 0
    %v4357 = vsel %vm3744, %v4354, 0
    %4359 = vmatpush.xpose.msra.mxu0 0.0
    %4360 = vmatpush.xpose.msra.mxu0 0.0
    %4361 = vmatpush.xpose.msra.mxu0 0.0
    %4362 = vmatpush.xpose.msra.mxu0 0.0
    %4363 = vmatpush.xpose.msra.mxu0 0.0
    %4364 = vmatpush.xpose.msra.mxu0 0.0
    %4365 = vmatpush.xpose.msra.mxu0 0.0
    %4366 = vmatpush.xpose.msra.mxu0 0.0
    %4367 = vmatpush.xpose.msra.mxu0 0.0
    %4368 = vmatpush.xpose.msra.mxu0 0.0
    %4369 = vmatpush.xpose.msra.mxu0 0.0
    %4370 = vmatpush.xpose.msra.mxu0 0.0
    %4371 = vmatpush.xpose.msra.mxu0 0.0
    %4372 = vmatpush.xpose.msra.mxu0 0.0
    %4373 = vmatpush.xpose.msra.mxu0 0.0
    %4374 = vmatpush.xpose.msra.mxu0 %v4357
    %4375 = vmatmul.f32.gmra.mxu0 %v4355
    %v4376 = vpop.f32.mrf.mxu0
    %v4377 = vadd.f32 0.0, %v4376
    %4378 = vdwg.mxu0
    %v4379 = vmul.f32 %v4347, 0.35355338
    %v4380 = vmul.f32 %v4377, 0.35355338
    %4381 = vst [vmem:[#allocation1] ss:$2 sm:$0xff] %v3622
    %v4382 = vld.sshfl [vmem:[#allocation1] sm:$0xff pattern:$0x75316420]
    %4383 = vrot.lane.b32.xlu0 %v4382, 112
    %v4384 = vpop.permute.xlu0 %4383
    %4385 = vst [vmem:[#allocation1] ss:$2 sm:$0xff] %v3679
    %v4386 = vld.sshfl [vmem:[#allocation1] sm:$0xff pattern:$0x75316420]
    %4387 = vrot.lane.b32.xlu0 %v4386, 112
    %v4388 = vpop.permute.xlu0 %4387
    %v4389 = vsel %vm3744, %v4384, 0
    %v4391 = vsel %vm3744, %v4388, 0
    %4393 = vmatpush.xpose.msra.mxu0 0.0
    %4394 = vmatpush.xpose.msra.mxu0 0.0
    %4395 = vmatpush.xpose.msra.mxu0 0.0
    %4396 = vmatpush.xpose.msra.mxu0 0.0
    %4397 = vmatpush.xpose.msra.mxu0 0.0
    %4398 = vmatpush.xpose.msra.mxu0 0.0
    %4399 = vmatpush.xpose.msra.mxu0 0.0
    %4400 = vmatpush.xpose.msra.mxu0 0.0
    %4401 = vmatpush.xpose.msra.mxu0 0.0
    %4402 = vmatpush.xpose.msra.mxu0 0.0
    %4403 = vmatpush.xpose.msra.mxu0 0.0
    %4404 = vmatpush.xpose.msra.mxu0 0.0
    %4405 = vmatpush.xpose.msra.mxu0 0.0
    %4406 = vmatpush.xpose.msra.mxu0 0.0
    %4407 = vmatpush.xpose.msra.mxu0 0.0
    %4408 = vmatpush.xpose.msra.mxu0 %v4391
    %4409 = vmatmul.f32.gmra.mxu0 %v4389
    %v4410 = vpop.f32.mrf.mxu0
    %v4411 = vadd.f32 0.0, %v4410
    %4412 = vdwg.mxu0
    %4413 = vst [vmem:[#allocation1] ss:$2 sm:$0xff] %v3741
    %v4414 = vld.sshfl [vmem:[#allocation1] sm:$0xff pattern:$0x75316420]
    %4415 = vrot.lane.b32.xlu0 %v4414, 112
    %v4416 = vpop.permute.xlu0 %4415
    %4417 = vst [vmem:[#allocation1] ss:$2 sm:$0xff] %v3743
    %v4418 = vld.sshfl [vmem:[#allocation1] sm:$0xff pattern:$0x75316420]
    %4419 = vrot.lane.b32.xlu0 %v4418, 112
    %v4420 = vpop.permute.xlu0 %4419
    %v4421 = vsel %vm3744, %v4416, 0
    %v4423 = vsel %vm3744, %v4420, 0
    %4425 = vmatpush.xpose.msra.mxu0 0.0
    %4426 = vmatpush.xpose.msra.mxu0 0.0
    %4427 = vmatpush.xpose.msra.mxu0 0.0
    %4428 = vmatpush.xpose.msra.mxu0 0.0
    %4429 = vmatpush.xpose.msra.mxu0 0.0
    %4430 = vmatpush.xpose.msra.mxu0 0.0
    %4431 = vmatpush.xpose.msra.mxu0 0.0
    %4432 = vmatpush.xpose.msra.mxu0 0.0
    %4433 = vmatpush.xpose.msra.mxu0 0.0
    %4434 = vmatpush.xpose.msra.mxu0 0.0
    %4435 = vmatpush.xpose.msra.mxu0 0.0
    %4436 = vmatpush.xpose.msra.mxu0 0.0
    %4437 = vmatpush.xpose.msra.mxu0 0.0
    %4438 = vmatpush.xpose.msra.mxu0 0.0
    %4439 = vmatpush.xpose.msra.mxu0 0.0
    %4440 = vmatpush.xpose.msra.mxu0 %v4423
    %4441 = vmatmul.f32.gmra.mxu0 %v4421
    %v4442 = vpop.f32.mrf.mxu0
    %v4443 = vadd.f32 0.0, %v4442
    %4444 = vdwg.mxu0
    %v4445 = vmul.f32 %v4411, 0.35355338
    %v4446 = vmul.f32 %v4443, 0.35355338
    %v4447 = vadd.f32 %v4445, %v3739
    %v4448 = vadd.f32 %v4446, %v3739
    %v4449 = vsel %vm3845, %v4379, -inf
    %4450 = vmax.xlane.f32.xlu0 %v4449
    %v4451 = vpop.xlane.xlu0 %4450
    %v4452 = vsel %vm3845, %v4380, -inf
    %4453 = vmax.xlane.f32.xlu0 %v4452
    %v4454 = vpop.xlane.xlu0 %4453
    %v4455 = vsel %vm3852, %v4447, -inf
    %4456 = vmax.xlane.f32.xlu0 %v4455
    %v4457 = vpop.xlane.xlu0 %4456
    %v4458 = vsel %vm3852, %v4448, -inf
    %4459 = vmax.xlane.f32.xlu0 %v4458
    %v4460 = vpop.xlane.xlu0 %4459
    %v4461 = vmax.f32 %v4451, %v4457
    %v4462 = vmax.f32 %v4454, %v4460
    %v4463 = vsub.f32 %v4379, %v4461
    %v4464 = vsub.f32 %v4380, %v4462
    %v4465 = vmul.f32 %v4463, 1.442695
    %v4466 = vpow.pop %v4465
    %v4467 = vmul.f32 %v4464, 1.442695
    %v4468 = vpow.pop %v4467
    %v4469 = vsub.f32 %v4447, %v4461
    %v4470 = vsub.f32 %v4448, %v4462
    %v4471 = vmul.f32 %v4469, 1.442695
    %v4472 = vpow.pop %v4471
    %v4473 = vmul.f32 %v4470, 1.442695
    %v4474 = vpow.pop %v4473
    %v4475 = vsel %vm3845, %v4466, 0.0
    %4476 = vadd.xlane.f32.xlu0 %v4475
    %v4477 = vpop.xlane.xlu0 %4476
    %v4478 = vsel %vm3845, %v4468, 0.0
    %4479 = vadd.xlane.f32.xlu0 %v4478
    %v4480 = vpop.xlane.xlu0 %4479
    %v4481 = vsel %vm3852, %v4472, 0.0
    %4482 = vadd.xlane.f32.xlu0 %v4481
    %v4483 = vpop.xlane.xlu0 %4482
    %v4484 = vsel %vm3852, %v4474, 0.0
    %4485 = vadd.xlane.f32.xlu0 %v4484
    %v4486 = vpop.xlane.xlu0 %4485
    %v4487 = vadd.f32 %v4477, %v4483
    %v4488 = vadd.f32 %v4480, %v4486
    %v4489 = vrcp.pop %v4487
    %v4490 = vmul.f32 %v4487, %v4489
    %v4491 = vsub.f32 1.0, %v4490
    %v4492 = vmul.f32 %v4489, %v4491
    %v4493 = vadd.f32 %v4489, %v4492
    %vm4494 = vweird.f32 %v4487
    %vm4495 = vweird.f32 %v4489
    %vm4496 = vmor %vm4494, %vm4495
    %v4497 = vsel %vm4496, %v4489, %v4493
    %v4498 = vand.u32 2147483647, %v4487
    %vm4499 = vcmp.eq.f32.partialorder %v4498, 8.507059e+37
    %v4500 = vand.u32 %v4487, 2147483648
    %v4501 = vor.u32 1.1754944e-38, %v4500
    %v4502 = vsel %vm4499, %v4501, %v4497
    %v4503 = vmul.f32 1.0, %v4502
    %v4504 = vrcp.pop %v4488
    %v4505 = vmul.f32 %v4488, %v4504
    %v4506 = vsub.f32 1.0, %v4505
    %v4507 = vmul.f32 %v4504, %v4506
    %v4508 = vadd.f32 %v4504, %v4507
    %vm4509 = vweird.f32 %v4488
    %vm4510 = vweird.f32 %v4504
    %vm4511 = vmor %vm4509, %vm4510
    %v4512 = vsel %vm4511, %v4504, %v4508
    %v4513 = vand.u32 2147483647, %v4488
    %vm4514 = vcmp.eq.f32.partialorder %v4513, 8.507059e+37
    %v4515 = vand.u32 %v4488, 2147483648
    %v4516 = vor.u32 1.1754944e-38, %v4515
    %v4517 = vsel %vm4514, %v4516, %v4512
    %v4518 = vmul.f32 1.0, %v4517
    %v4519 = vmul.f32 %v4466, %v4503
    %v4520 = vmul.f32 %v4468, %v4518
    %v4521 = vmul.f32 %v4472, %v4503
    %v4522 = vmul.f32 %v4474, %v4518
    %v4524 = vsel %vm3744, %v4519, 0
    %4526 = vmatpush.msra.mxu0 0.0
    %4527 = vmatpush.msra.mxu0 0.0
    %4528 = vmatpush.msra.mxu0 0.0
    %4529 = vmatpush.msra.mxu0 0.0
    %4530 = vmatpush.msra.mxu0 0.0
    %4531 = vmatpush.msra.mxu0 0.0
    %4532 = vmatpush.msra.mxu0 0.0
    %4533 = vmatpush.msra.mxu0 0.0
    %4534 = vmatpush.msra.mxu0 0.0
    %4535 = vmatpush.msra.mxu0 0.0
    %4536 = vmatpush.msra.mxu0 0.0
    %4537 = vmatpush.msra.mxu0 0.0
    %4538 = vmatpush.msra.mxu0 0.0
    %4539 = vmatpush.msra.mxu0 0.0
    %4540 = vmatpush.msra.mxu0 0.0
    %4541 = vmatpush.msra.mxu0 %v3707
    %4542 = vmatmul.f32.gmra.mxu0 %v4524
    %v4543 = vpop.f32.mrf.mxu0
    %v4544 = vadd.f32 0.0, %v4543
    %4545 = vdwg.mxu0
    %v4547 = vsel %vm3744, %v4520, 0
    %4549 = vmatpush.msra.mxu0 0.0
    %4550 = vmatpush.msra.mxu0 0.0
    %4551 = vmatpush.msra.mxu0 0.0
    %4552 = vmatpush.msra.mxu0 0.0
    %4553 = vmatpush.msra.mxu0 0.0
    %4554 = vmatpush.msra.mxu0 0.0
    %4555 = vmatpush.msra.mxu0 0.0
    %4556 = vmatpush.msra.mxu0 0.0
    %4557 = vmatpush.msra.mxu0 0.0
    %4558 = vmatpush.msra.mxu0 0.0
    %4559 = vmatpush.msra.mxu0 0.0
    %4560 = vmatpush.msra.mxu0 0.0
    %4561 = vmatpush.msra.mxu0 0.0
    %4562 = vmatpush.msra.mxu0 0.0
    %4563 = vmatpush.msra.mxu0 0.0
    %4564 = vmatpush.msra.mxu0 %v3710
    %4565 = vmatmul.f32.gmra.mxu0 %v4547
    %v4566 = vpop.f32.mrf.mxu0
    %v4567 = vadd.f32 0.0, %v4566
    %4568 = vdwg.mxu0
    %v4569 = vadd.f32 %v4317, %v4544
    %v4570 = vadd.f32 %v4318, %v4567
    %v4572 = vsel %vm3921, %v4521, 0
    %4574 = vmatpush.msra.mxu0 0.0
    %4575 = vmatpush.msra.mxu0 0.0
    %4576 = vmatpush.msra.mxu0 0.0
    %4577 = vmatpush.msra.mxu0 0.0
    %4578 = vmatpush.msra.mxu0 0.0
    %4579 = vmatpush.msra.mxu0 0.0
    %4580 = vmatpush.msra.mxu0 0.0
    %4581 = vmatpush.msra.mxu0 0.0
    %4582 = vmatpush.msra.mxu0 0.0
    %4583 = vmatpush.msra.mxu0 0.0
    %4584 = vmatpush.msra.mxu0 0.0
    %4585 = vmatpush.msra.mxu0 0.0
    %4586 = vmatpush.msra.mxu0 0.0
    %4587 = vmatpush.msra.mxu0 0.0
    %4588 = vmatpush.msra.mxu0 0.0
    %4589 = vmatpush.msra.mxu0 %v3926
    %4590 = vmatmul.f32.gmra.mxu0 %v4572
    %v4591 = vpop.f32.mrf.mxu0
    %v4592 = vadd.f32 0.0, %v4591
    %4593 = vdwg.mxu0
    %v4595 = vsel %vm3921, %v4522, 0
    %4597 = vmatpush.msra.mxu0 0.0
    %4598 = vmatpush.msra.mxu0 0.0
    %4599 = vmatpush.msra.mxu0 0.0
    %4600 = vmatpush.msra.mxu0 0.0
    %4601 = vmatpush.msra.mxu0 0.0
    %4602 = vmatpush.msra.mxu0 0.0
    %4603 = vmatpush.msra.mxu0 0.0
    %4604 = vmatpush.msra.mxu0 0.0
    %4605 = vmatpush.msra.mxu0 0.0
    %4606 = vmatpush.msra.mxu0 0.0
    %4607 = vmatpush.msra.mxu0 0.0
    %4608 = vmatpush.msra.mxu0 0.0
    %4609 = vmatpush.msra.mxu0 0.0
    %4610 = vmatpush.msra.mxu0 0.0
    %4611 = vmatpush.msra.mxu0 0.0
    %4612 = vmatpush.msra.mxu0 %v3951
    %4613 = vmatmul.f32.gmra.mxu0 %v4595
    %v4614 = vpop.f32.mrf.mxu0
    %v4615 = vadd.f32 0.0, %v4614
    %4616 = vdwg.mxu0
    %v4617 = vadd.f32 %v4569, %v4592
    %v4618 = vadd.f32 %v4570, %v4615
    %4619 = vst [vmem:[#allocation1] ss:$2 sm:$0xff] %v3622
    %v4620 = vld.sshfl [vmem:[#allocation1] sm:$0xff pattern:$0x75316420]
    %4621 = vrot.lane.b32.xlu0 %v4620, 104
    %v4622 = vpop.permute.xlu0 %4621
    %4623 = vrot.lane.b32.xlu0 %v3656, 104
    %v4624 = vpop.permute.xlu0 %4623
    %v4625 = vsel %vm3744, %v4622, 0
    %v4627 = vsel %vm3744, %v4624, 0
    %4629 = vmatpush.xpose.msra.mxu0 0.0
    %4630 = vmatpush.xpose.msra.mxu0 0.0
    %4631 = vmatpush.xpose.msra.mxu0 0.0
    %4632 = vmatpush.xpose.msra.mxu0 0.0
    %4633 = vmatpush.xpose.msra.mxu0 0.0
    %4634 = vmatpush.xpose.msra.mxu0 0.0
    %4635 = vmatpush.xpose.msra.mxu0 0.0
    %4636 = vmatpush.xpose.msra.mxu0 0.0
    %4637 = vmatpush.xpose.msra.mxu0 0.0
    %4638 = vmatpush.xpose.msra.mxu0 0.0
    %4639 = vmatpush.xpose.msra.mxu0 0.0
    %4640 = vmatpush.xpose.msra.mxu0 0.0
    %4641 = vmatpush.xpose.msra.mxu0 0.0
    %4642 = vmatpush.xpose.msra.mxu0 0.0
    %4643 = vmatpush.xpose.msra.mxu0 0.0
    %4644 = vmatpush.xpose.msra.mxu0 %v4627
    %4645 = vmatmul.f32.gmra.mxu0 %v4625
    %v4646 = vpop.f32.mrf.mxu0
    %v4647 = vadd.f32 0.0, %v4646
    %4648 = vdwg.mxu0
    %4649 = vst [vmem:[#allocation1] ss:$2 sm:$0xff] %v3741
    %v4650 = vld.sshfl [vmem:[#allocation1] sm:$0xff pattern:$0x75316420]
    %4651 = vrot.lane.b32.xlu0 %v4650, 104
    %v4652 = vpop.permute.xlu0 %4651
    %4653 = vrot.lane.b32.xlu0 %v3659, 104
    %v4654 = vpop.permute.xlu0 %4653
    %v4655 = vsel %vm3744, %v4652, 0
    %v4657 = vsel %vm3744, %v4654, 0
    %4659 = vmatpush.xpose.msra.mxu0 0.0
    %4660 = vmatpush.xpose.msra.mxu0 0.0
    %4661 = vmatpush.xpose.msra.mxu0 0.0
    %4662 = vmatpush.xpose.msra.mxu0 0.0
    %4663 = vmatpush.xpose.msra.mxu0 0.0
    %4664 = vmatpush.xpose.msra.mxu0 0.0
    %4665 = vmatpush.xpose.msra.mxu0 0.0
    %4666 = vmatpush.xpose.msra.mxu0 0.0
    %4667 = vmatpush.xpose.msra.mxu0 0.0
    %4668 = vmatpush.xpose.msra.mxu0 0.0
    %4669 = vmatpush.xpose.msra.mxu0 0.0
    %4670 = vmatpush.xpose.msra.mxu0 0.0
    %4671 = vmatpush.xpose.msra.mxu0 0.0
    %4672 = vmatpush.xpose.msra.mxu0 0.0
    %4673 = vmatpush.xpose.msra.mxu0 0.0
    %4674 = vmatpush.xpose.msra.mxu0 %v4657
    %4675 = vmatmul.f32.gmra.mxu0 %v4655
    %v4676 = vpop.f32.mrf.mxu0
    %v4677 = vadd.f32 0.0, %v4676
    %4678 = vdwg.mxu0
    %v4679 = vmul.f32 %v4647, 0.35355338
    %v4680 = vmul.f32 %v4677, 0.35355338
    %4681 = vst [vmem:[#allocation1] ss:$2 sm:$0xff] %v3622
    %v4682 = vld.sshfl [vmem:[#allocation1] sm:$0xff pattern:$0x75316420]
    %4683 = vrot.lane.b32.xlu0 %v4682, 104
    %v4684 = vpop.permute.xlu0 %4683
    %4685 = vst [vmem:[#allocation1] ss:$2 sm:$0xff] %v3679
    %v4686 = vld.sshfl [vmem:[#allocation1] sm:$0xff pattern:$0x75316420]
    %4687 = vrot.lane.b32.xlu0 %v4686, 104
    %v4688 = vpop.permute.xlu0 %4687
    %v4689 = vsel %vm3744, %v4684, 0
    %v4691 = vsel %vm3744, %v4688, 0
    %4693 = vmatpush.xpose.msra.mxu0 0.0
    %4694 = vmatpush.xpose.msra.mxu0 0.0
    %4695 = vmatpush.xpose.msra.mxu0 0.0
    %4696 = vmatpush.xpose.msra.mxu0 0.0
    %4697 = vmatpush.xpose.msra.mxu0 0.0
    %4698 = vmatpush.xpose.msra.mxu0 0.0
    %4699 = vmatpush.xpose.msra.mxu0 0.0
    %4700 = vmatpush.xpose.msra.mxu0 0.0
    %4701 = vmatpush.xpose.msra.mxu0 0.0
    %4702 = vmatpush.xpose.msra.mxu0 0.0
    %4703 = vmatpush.xpose.msra.mxu0 0.0
    %4704 = vmatpush.xpose.msra.mxu0 0.0
    %4705 = vmatpush.xpose.msra.mxu0 0.0
    %4706 = vmatpush.xpose.msra.mxu0 0.0
    %4707 = vmatpush.xpose.msra.mxu0 0.0
    %4708 = vmatpush.xpose.msra.mxu0 %v4691
    %4709 = vmatmul.f32.gmra.mxu0 %v4689
    %v4710 = vpop.f32.mrf.mxu0
    %v4711 = vadd.f32 0.0, %v4710
    %4712 = vdwg.mxu0
    %4713 = vst [vmem:[#allocation1] ss:$2 sm:$0xff] %v3741
    %v4714 = vld.sshfl [vmem:[#allocation1] sm:$0xff pattern:$0x75316420]
    %4715 = vrot.lane.b32.xlu0 %v4714, 104
    %v4716 = vpop.permute.xlu0 %4715
    %4717 = vst [vmem:[#allocation1] ss:$2 sm:$0xff] %v3743
    %v4718 = vld.sshfl [vmem:[#allocation1] sm:$0xff pattern:$0x75316420]
    %4719 = vrot.lane.b32.xlu0 %v4718, 104
    %v4720 = vpop.permute.xlu0 %4719
    %v4721 = vsel %vm3744, %v4716, 0
    %v4723 = vsel %vm3744, %v4720, 0
    %4725 = vmatpush.xpose.msra.mxu0 0.0
    %4726 = vmatpush.xpose.msra.mxu0 0.0
    %4727 = vmatpush.xpose.msra.mxu0 0.0
    %4728 = vmatpush.xpose.msra.mxu0 0.0
    %4729 = vmatpush.xpose.msra.mxu0 0.0
    %4730 = vmatpush.xpose.msra.mxu0 0.0
    %4731 = vmatpush.xpose.msra.mxu0 0.0
    %4732 = vmatpush.xpose.msra.mxu0 0.0
    %4733 = vmatpush.xpose.msra.mxu0 0.0
    %4734 = vmatpush.xpose.msra.mxu0 0.0
    %4735 = vmatpush.xpose.msra.mxu0 0.0
    %4736 = vmatpush.xpose.msra.mxu0 0.0
    %4737 = vmatpush.xpose.msra.mxu0 0.0
    %4738 = vmatpush.xpose.msra.mxu0 0.0
    %4739 = vmatpush.xpose.msra.mxu0 0.0
    %4740 = vmatpush.xpose.msra.mxu0 %v4723
    %4741 = vmatmul.f32.gmra.mxu0 %v4721
    %v4742 = vpop.f32.mrf.mxu0
    %v4743 = vadd.f32 0.0, %v4742
    %4744 = vdwg.mxu0
    %v4745 = vmul.f32 %v4711, 0.35355338
    %v4746 = vmul.f32 %v4743, 0.35355338
    %v4747 = vadd.f32 %v4745, %v3739
    %v4748 = vadd.f32 %v4746, %v3739
    %v4749 = vsel %vm3845, %v4679, -inf
    %4750 = vmax.xlane.f32.xlu0 %v4749
    %v4751 = vpop.xlane.xlu0 %4750
    %v4752 = vsel %vm3845, %v4680, -inf
    %4753 = vmax.xlane.f32.xlu0 %v4752
    %v4754 = vpop.xlane.xlu0 %4753
    %v4755 = vsel %vm3852, %v4747, -inf
    %4756 = vmax.xlane.f32.xlu0 %v4755
    %v4757 = vpop.xlane.xlu0 %4756
    %v4758 = vsel %vm3852, %v4748, -inf
    %4759 = vmax.xlane.f32.xlu0 %v4758
    %v4760 = vpop.xlane.xlu0 %4759
    %v4761 = vmax.f32 %v4751, %v4757
    %v4762 = vmax.f32 %v4754, %v4760
    %v4763 = vsub.f32 %v4679, %v4761
    %v4764 = vsub.f32 %v4680, %v4762
    %v4765 = vmul.f32 %v4763, 1.442695
    %v4766 = vpow.pop %v4765
    %v4767 = vmul.f32 %v4764, 1.442695
    %v4768 = vpow.pop %v4767
    %v4769 = vsub.f32 %v4747, %v4761
    %v4770 = vsub.f32 %v4748, %v4762
    %v4771 = vmul.f32 %v4769, 1.442695
    %v4772 = vpow.pop %v4771
    %v4773 = vmul.f32 %v4770, 1.442695
    %v4774 = vpow.pop %v4773
    %v4775 = vsel %vm3845, %v4766, 0.0
    %4776 = vadd.xlane.f32.xlu0 %v4775
    %v4777 = vpop.xlane.xlu0 %4776
    %v4778 = vsel %vm3845, %v4768, 0.0
    %4779 = vadd.xlane.f32.xlu0 %v4778
    %v4780 = vpop.xlane.xlu0 %4779
    %v4781 = vsel %vm3852, %v4772, 0.0
    %4782 = vadd.xlane.f32.xlu0 %v4781
    %v4783 = vpop.xlane.xlu0 %4782
    %v4784 = vsel %vm3852, %v4774, 0.0
    %4785 = vadd.xlane.f32.xlu0 %v4784
    %v4786 = vpop.xlane.xlu0 %4785
    %v4787 = vadd.f32 %v4777, %v4783
    %v4788 = vadd.f32 %v4780, %v4786
    %v4789 = vrcp.pop %v4787
    %v4790 = vmul.f32 %v4787, %v4789
    %v4791 = vsub.f32 1.0, %v4790
    %v4792 = vmul.f32 %v4789, %v4791
    %v4793 = vadd.f32 %v4789, %v4792
    %vm4794 = vweird.f32 %v4787
    %vm4795 = vweird.f32 %v4789
    %vm4796 = vmor %vm4794, %vm4795
    %v4797 = vsel %vm4796, %v4789, %v4793
    %v4798 = vand.u32 2147483647, %v4787
    %vm4799 = vcmp.eq.f32.partialorder %v4798, 8.507059e+37
    %v4800 = vand.u32 %v4787, 2147483648
    %v4801 = vor.u32 1.1754944e-38, %v4800
    %v4802 = vsel %vm4799, %v4801, %v4797
    %v4803 = vmul.f32 1.0, %v4802
    %v4804 = vrcp.pop %v4788
    %v4805 = vmul.f32 %v4788, %v4804
    %v4806 = vsub.f32 1.0, %v4805
    %v4807 = vmul.f32 %v4804, %v4806
    %v4808 = vadd.f32 %v4804, %v4807
    %vm4809 = vweird.f32 %v4788
    %vm4810 = vweird.f32 %v4804
    %vm4811 = vmor %vm4809, %vm4810
    %v4812 = vsel %vm4811, %v4804, %v4808
    %v4813 = vand.u32 2147483647, %v4788
    %vm4814 = vcmp.eq.f32.partialorder %v4813, 8.507059e+37
    %v4815 = vand.u32 %v4788, 2147483648
    %v4816 = vor.u32 1.1754944e-38, %v4815
    %v4817 = vsel %vm4814, %v4816, %v4812
    %v4818 = vmul.f32 1.0, %v4817
    %v4819 = vmul.f32 %v4766, %v4803
    %v4820 = vmul.f32 %v4768, %v4818
    %v4821 = vmul.f32 %v4772, %v4803
    %v4822 = vmul.f32 %v4774, %v4818
    %v4824 = vsel %vm3744, %v4819, 0
    %4826 = vmatpush.msra.mxu0 0.0
    %4827 = vmatpush.msra.mxu0 0.0
    %4828 = vmatpush.msra.mxu0 0.0
    %4829 = vmatpush.msra.mxu0 0.0
    %4830 = vmatpush.msra.mxu0 0.0
    %4831 = vmatpush.msra.mxu0 0.0
    %4832 = vmatpush.msra.mxu0 0.0
    %4833 = vmatpush.msra.mxu0 0.0
    %4834 = vmatpush.msra.mxu0 0.0
    %4835 = vmatpush.msra.mxu0 0.0
    %4836 = vmatpush.msra.mxu0 0.0
    %4837 = vmatpush.msra.mxu0 0.0
    %4838 = vmatpush.msra.mxu0 0.0
    %4839 = vmatpush.msra.mxu0 0.0
    %4840 = vmatpush.msra.mxu0 0.0
    %4841 = vmatpush.msra.mxu0 %v3707
    %4842 = vmatmul.f32.gmra.mxu0 %v4824
    %v4843 = vpop.f32.mrf.mxu0
    %v4844 = vadd.f32 0.0, %v4843
    %4845 = vdwg.mxu0
    %v4847 = vsel %vm3744, %v4820, 0
    %4849 = vmatpush.msra.mxu0 0.0
    %4850 = vmatpush.msra.mxu0 0.0
    %4851 = vmatpush.msra.mxu0 0.0
    %4852 = vmatpush.msra.mxu0 0.0
    %4853 = vmatpush.msra.mxu0 0.0
    %4854 = vmatpush.msra.mxu0 0.0
    %4855 = vmatpush.msra.mxu0 0.0
    %4856 = vmatpush.msra.mxu0 0.0
    %4857 = vmatpush.msra.mxu0 0.0
    %4858 = vmatpush.msra.mxu0 0.0
    %4859 = vmatpush.msra.mxu0 0.0
    %4860 = vmatpush.msra.mxu0 0.0
    %4861 = vmatpush.msra.mxu0 0.0
    %4862 = vmatpush.msra.mxu0 0.0
    %4863 = vmatpush.msra.mxu0 0.0
    %4864 = vmatpush.msra.mxu0 %v3710
    %4865 = vmatmul.f32.gmra.mxu0 %v4847
    %v4866 = vpop.f32.mrf.mxu0
    %v4867 = vadd.f32 0.0, %v4866
    %4868 = vdwg.mxu0
    %v4869 = vadd.f32 %v4617, %v4844
    %v4870 = vadd.f32 %v4618, %v4867
    %v4872 = vsel %vm3921, %v4821, 0
    %4874 = vmatpush.msra.mxu0 0.0
    %4875 = vmatpush.msra.mxu0 0.0
    %4876 = vmatpush.msra.mxu0 0.0
    %4877 = vmatpush.msra.mxu0 0.0
    %4878 = vmatpush.msra.mxu0 0.0
    %4879 = vmatpush.msra.mxu0 0.0
    %4880 = vmatpush.msra.mxu0 0.0
    %4881 = vmatpush.msra.mxu0 0.0
    %4882 = vmatpush.msra.mxu0 0.0
    %4883 = vmatpush.msra.mxu0 0.0
    %4884 = vmatpush.msra.mxu0 0.0
    %4885 = vmatpush.msra.mxu0 0.0
    %4886 = vmatpush.msra.mxu0 0.0
    %4887 = vmatpush.msra.mxu0 0.0
    %4888 = vmatpush.msra.mxu0 0.0
    %4889 = vmatpush.msra.mxu0 %v3926
    %4890 = vmatmul.f32.gmra.mxu0 %v4872
    %v4891 = vpop.f32.mrf.mxu0
    %v4892 = vadd.f32 0.0, %v4891
    %4893 = vdwg.mxu0
    %v4895 = vsel %vm3921, %v4822, 0
    %4897 = vmatpush.msra.mxu0 0.0
    %4898 = vmatpush.msra.mxu0 0.0
    %4899 = vmatpush.msra.mxu0 0.0
    %4900 = vmatpush.msra.mxu0 0.0
    %4901 = vmatpush.msra.mxu0 0.0
    %4902 = vmatpush.msra.mxu0 0.0
    %4903 = vmatpush.msra.mxu0 0.0
    %4904 = vmatpush.msra.mxu0 0.0
    %4905 = vmatpush.msra.mxu0 0.0
    %4906 = vmatpush.msra.mxu0 0.0
    %4907 = vmatpush.msra.mxu0 0.0
    %4908 = vmatpush.msra.mxu0 0.0
    %4909 = vmatpush.msra.mxu0 0.0
    %4910 = vmatpush.msra.mxu0 0.0
    %4911 = vmatpush.msra.mxu0 0.0
    %4912 = vmatpush.msra.mxu0 %v3951
    %4913 = vmatmul.f32.gmra.mxu0 %v4895
    %v4914 = vpop.f32.mrf.mxu0
    %v4915 = vadd.f32 0.0, %v4914
    %4916 = vdwg.mxu0
    %v4917 = vadd.f32 %v4869, %v4892
    %v4918 = vadd.f32 %v4870, %v4915
    %4919 = vst [vmem:[#allocation1] ss:$2 sm:$0xff] %v3917
    %s4920 = scalar_lea.vmem [#allocation1], 1
    %4921 = vst [vmem:[%s4920] ss:$2 sm:$0xff] %v3918
    %v4922 = vld.sshfl [vmem:[#allocation1] sm:$0xff pattern:$0x75316420]
    %4924 = vst [vmem:[#allocation1] ss:$2 sm:$0xff] %v3919
    %s4925 = scalar_lea.vmem [#allocation1], 1
    %4926 = vst [vmem:[%s4925] ss:$2 sm:$0xff] %v3920
    %v4927 = vld.sshfl [vmem:[#allocation1] sm:$0xff pattern:$0x75316420]
    %4928 = vrot.lane.b32.xlu0 %v4927, 8
    %v4929 = vpop.permute.xlu0 %4928
    %4931 = vst [vmem:[#allocation1] ss:$2 sm:$0xff] %v4219
    %s4932 = scalar_lea.vmem [#allocation1], 1
    %4933 = vst [vmem:[%s4932] ss:$2 sm:$0xff] %v4220
    %v4934 = vld.sshfl [vmem:[#allocation1] sm:$0xff pattern:$0x75316420]
    %4935 = vrot.lane.b32.xlu0 %v4934, 12
    %v4936 = vpop.permute.xlu0 %4935
    %4938 = vst [vmem:[#allocation1] ss:$2 sm:$0xff] %v4221
    %s4939 = scalar_lea.vmem [#allocation1], 1
    %4940 = vst [vmem:[%s4939] ss:$2 sm:$0xff] %v4222
    %v4941 = vld.sshfl [vmem:[#allocation1] sm:$0xff pattern:$0x75316420]
    %4942 = vrot.lane.b32.xlu0 %v4941, 20
    %v4943 = vpop.permute.xlu0 %4942
    %4945 = vst [vmem:[#allocation1] ss:$2 sm:$0xff] %v4519
    %s4946 = scalar_lea.vmem [#allocation1], 1
    %4947 = vst [vmem:[%s4946] ss:$2 sm:$0xff] %v4520
    %v4948 = vld.sshfl [vmem:[#allocation1] sm:$0xff pattern:$0x75316420]
    %4949 = vrot.lane.b32.xlu0 %v4948, 24
    %v4950 = vpop.permute.xlu0 %4949
    %4952 = vst [vmem:[#allocation1] ss:$2 sm:$0xff] %v4521
    %s4953 = scalar_lea.vmem [#allocation1], 1
    %4954 = vst [vmem:[%s4953] ss:$2 sm:$0xff] %v4522
    %v4955 = vld.sshfl [vmem:[#allocation1] sm:$0xff pattern:$0x75316420]
    %4956 = vrot.lane.b32.xlu0 %v4955, 32
    %v4957 = vpop.permute.xlu0 %4956
    %4959 = vst [vmem:[#allocation1] ss:$2 sm:$0xff] %v4819
    %s4960 = scalar_lea.vmem [#allocation1], 1
    %4961 = vst [vmem:[%s4960] ss:$2 sm:$0xff] %v4820
    %v4962 = vld.sshfl [vmem:[#allocation1] sm:$0xff pattern:$0x75316420]
    %4963 = vrot.lane.b32.xlu0 %v4962, 36
    %v4964 = vpop.permute.xlu0 %4963
    %4966 = vst [vmem:[#allocation1] ss:$2 sm:$0xff] %v4821
    %s4967 = scalar_lea.vmem [#allocation1], 1
    %4968 = vst [vmem:[%s4967] ss:$2 sm:$0xff] %v4822
    %v4969 = vld.sshfl [vmem:[#allocation1] sm:$0xff pattern:$0x75316420]
    %4970 = vrot.lane.b32.xlu0 %v4969, 44
    %v4971 = vpop.permute.xlu0 %4970
    %v4973 = vsel %vm3744, %v4922, %v4929
    %vm4974 = vcmask 97280
    %v4975 = vsel %vm4974, %v4973, %v4936
    %vm4976 = vcmask 162816
    %v4977 = vsel %vm4976, %v4975, %v4943
    %vm4978 = vcmask 195584
    %v4979 = vsel %vm4978, %v4977, %v4950
    %v4980 = vsel %vm585, %v4979, %v4957
    %vm4981 = vcmask 293888
    %v4982 = vsel %vm4981, %v4980, %v4964
    %vm4983 = vcmask 359424
    %v4984 = vsel %vm4983, %v4982, %v4971
    %vm4985 = vcmask 392192
    %4986 = vst.msk [vmem:[%s91] sm:$0xff] %vm4985, %v4984
    %v4987 = vmul.f32 %v4917, 0.25
    %v4988 = vmul.f32 %v4918, 0.25
    %v4989 = vld [vmem:[%s49] sm:$0xff]
    %v4990 = vld [vmem:[#allocation21] sm:$0x1]
    %v4992 = vperm.slane %v4990, 0
    %4996 = vst [vmem:[#allocation1] ss:$2 sm:$0xff] %v4987
    %s4997 = scalar_lea.vmem [#allocation1], 1
    %4998 = vst [vmem:[%s4997] ss:$2 sm:$0xff] %v4988
    %v4999 = vld.sshfl [vmem:[#allocation1] sm:$0xff pattern:$0x75316420]
    %v5000 = vsel %vm3744, %v4999, 0
    %5002 = vmatpush.msra.mxu0 0.0
    %5003 = vmatpush.msra.mxu0 0.0
    %5004 = vmatpush.msra.mxu0 0.0
    %5005 = vmatpush.msra.mxu0 0.0
    %5006 = vmatpush.msra.mxu0 0.0
    %5007 = vmatpush.msra.mxu0 0.0
    %5008 = vmatpush.msra.mxu0 0.0
    %5009 = vmatpush.msra.mxu0 0.0
    %5010 = vmatpush.msra.mxu0 0.0
    %5011 = vmatpush.msra.mxu0 0.0
    %5012 = vmatpush.msra.mxu0 0.0
    %5013 = vmatpush.msra.mxu0 0.0
    %5014 = vmatpush.msra.mxu0 0.0
    %5015 = vmatpush.msra.mxu0 0.0
    %5016 = vmatpush.msra.mxu0 0.0
    %5017 = vmatpush.msra.mxu0 %v4989
    %5018 = vmatmul.f32.gmra.mxu0 %v5000
    %v5019 = vpop.f32.mrf.mxu0
    %v5020 = vadd.f32 %v4992, %v5019
    %5021 = vdwg.mxu0
    %v5022 = vld [vmem:[#allocation22] sm:$0xff]
    %v5023 = vld [vmem:[#allocation22 + $0x8] sm:$0xff]
    %v5024 = vld [vmem:[#allocation22 + $0x10] sm:$0xff]
    %v5025 = vld [vmem:[#allocation22 + $0x18] sm:$0xff]
    %v5026 = vld [vmem:[#allocation24] sm:$0x1]
    %v5028 = vperm.slane %v5026, 0
    %v5031 = vsel %vm585, %v5020, 0
    %5033 = vmatpush.msra.mxu0 0.0
    %5034 = vmatpush.msra.mxu0 0.0
    %5035 = vmatpush.msra.mxu0 0.0
    %5036 = vmatpush.msra.mxu0 0.0
    %5037 = vmatpush.msra.mxu0 0.0
    %5038 = vmatpush.msra.mxu0 0.0
    %5039 = vmatpush.msra.mxu0 0.0
    %5040 = vmatpush.msra.mxu0 0.0
    %5041 = vmatpush.msra.mxu0 0.0
    %5042 = vmatpush.msra.mxu0 0.0
    %5043 = vmatpush.msra.mxu0 0.0
    %5044 = vmatpush.msra.mxu0 0.0
    %5045 = vmatpush.msra.mxu0 %v5025
    %5046 = vmatpush.msra.mxu0 %v5024
    %5047 = vmatpush.msra.mxu0 %v5023
    %5048 = vmatpush.msra.mxu0 %v5022
    %5049 = vmatmul.f32.gmra.mxu0 %v5031
    %v5050 = vpop.f32.mrf.mxu0
    %v5051 = vadd.f32 %v5028, %v5050
    %5052 = vdwg.mxu0
    %v5053 = vxor.u32 %v5051, 2147483648
    %v5054 = vmul.f32 %v5053, 1.442695
    %v5055 = vpow.pop %v5054
    %v5056 = vadd.f32 %v5055, 1.0
    %v5057 = vrcp.pop %v5056
    %v5058 = vmul.f32 %v5056, %v5057
    %v5059 = vsub.f32 1.0, %v5058
    %v5060 = vmul.f32 %v5057, %v5059
    %v5061 = vadd.f32 %v5057, %v5060
    %vm5062 = vweird.f32 %v5056
    %vm5063 = vweird.f32 %v5057
    %vm5064 = vmor %vm5062, %vm5063
    %v5065 = vsel %vm5064, %v5057, %v5061
    %v5066 = vand.u32 2147483647, %v5056
    %vm5067 = vcmp.eq.f32.partialorder %v5066, 8.507059e+37
    %v5068 = vand.u32 %v5056, 2147483648
    %v5069 = vor.u32 1.1754944e-38, %v5068
    %v5070 = vsel %vm5067, %v5069, %v5065
    %v5071 = vmul.f32 1.0, %v5070
    %5073 = vrot.lane.b32.xlu0 %v5071, 96
    %v5074 = vpop.permute.xlu0 %5073
    %v5076 = vmul.f32 %v5051, %v5074
    %v5077 = vadd.f32 %v5076, %v3592
    %v5078 = vld [vmem:[#allocation25] sm:$0x1]
    %v5079 = vld [vmem:[#allocation27] sm:$0x1]
    %v5080 = vsel %vm585, %v5077, 0.0
    %5081 = vadd.xlane.f32.xlu0 %v5080
    %v5082 = vpop.xlane.xlu0 %5081
    %v5083 = vmul.f32 %v5082, %v3464
    %v5084 = vsub.f32 %v5077, %v5083
    %v5085 = vmul.f32 %v5084, %v5084
    %v5086 = vsel %vm585, %v5085, 0.0
    %5087 = vadd.xlane.f32.xlu0 %v5086
    %v5088 = vpop.xlane.xlu0 %5087
    %v5089 = vmul.f32 %v5088, %v3464
    %v5090 = vadd.f32 %v5089, 1e-05
    %v5091 = vrsqrt.pop %v5090
    %v5092 = vmul.f32 %v5091, %v5090
    %v5093 = vmul.f32 %v5092, %v5091
    %v5094 = vmul.f32 0.5, %v5093
    %v5095 = vsub.f32 1.5, %v5094
    %v5096 = vmul.f32 %v5091, %v5095
    %vm5097 = vweird.f32 %v5090
    %vm5098 = vweird.f32 %v5091
    %vm5099 = vmor %vm5097, %vm5098
    %v5100 = vsel %vm5099, %v5091, %v5096
    %v5101 = vmul.f32 %v5084, %v5100
    %v5103 = vperm.slane %v5078, 0
    %v5105 = vmul.f32 %v5101, %v5103
    %v5107 = vperm.slane %v5079, 0
    %v5109 = vadd.f32 %v5105, %v5107
    %v5110 = vld [vmem:[#allocation28] sm:$0xff]
    %v5111 = vld [vmem:[#allocation28 + $0x8] sm:$0xff]
    %v5112 = vld [vmem:[#allocation28 + $0x10] sm:$0xff]
    %v5113 = vld [vmem:[#allocation28 + $0x18] sm:$0xff]
    %v5114 = vld [vmem:[#allocation30] sm:$0x1]
    %v5116 = vperm.slane %v5114, 0
    %v5119 = vsel %vm585, %v5109, 0
    %5121 = vmatpush.msra.mxu0 0.0
    %5122 = vmatpush.msra.mxu0 0.0
    %5123 = vmatpush.msra.mxu0 0.0
    %5124 = vmatpush.msra.mxu0 0.0
    %5125 = vmatpush.msra.mxu0 0.0
    %5126 = vmatpush.msra.mxu0 0.0
    %5127 = vmatpush.msra.mxu0 0.0
    %5128 = vmatpush.msra.mxu0 0.0
    %5129 = vmatpush.msra.mxu0 0.0
    %5130 = vmatpush.msra.mxu0 0.0
    %5131 = vmatpush.msra.mxu0 0.0
    %5132 = vmatpush.msra.mxu0 0.0
    %5133 = vmatpush.msra.mxu0 %v5113
    %5134 = vmatpush.msra.mxu0 %v5112
    %5135 = vmatpush.msra.mxu0 %v5111
    %5136 = vmatpush.msra.mxu0 %v5110
    %5137 = vmatmul.f32.gmra.mxu0 %v5119
    %v5138 = vpop.f32.mrf.mxu0
    %v5139 = vadd.f32 %v5116, %v5138
    %5140 = vdwg.mxu0
    %vm5141 = vcmp.gt.f32.partialorder %v5139, 0.0
    %v5142 = vmin.f32 %v5139, 0.0
    %v5143 = vmul.f32 %v5142, 1.442695
    %v5144 = vpow.pop %v5143
    %v5145 = vsub.f32 %v5144, 1.0
    %v5146 = vsel %vm5141, %v5139, %v5145
    %v5147 = vld [vmem:[#allocation31] sm:$0xff]
    %v5148 = vld [vmem:[#allocation31 + $0x8] sm:$0xff]
    %v5149 = vld [vmem:[#allocation31 + $0x10] sm:$0xff]
    %v5150 = vld [vmem:[#allocation31 + $0x18] sm:$0xff]
    %v5151 = vld [vmem:[#allocation33] sm:$0x1]
    %v5153 = vperm.slane %v5151, 0
    %v5156 = vsel %vm585, %v5146, 0
    %5158 = vmatpush.msra.mxu0 0.0
    %5159 = vmatpush.msra.mxu0 0.0
    %5160 = vmatpush.msra.mxu0 0.0
    %5161 = vmatpush.msra.mxu0 0.0
    %5162 = vmatpush.msra.mxu0 0.0
    %5163 = vmatpush.msra.mxu0 0.0
    %5164 = vmatpush.msra.mxu0 0.0
    %5165 = vmatpush.msra.mxu0 0.0
    %5166 = vmatpush.msra.mxu0 0.0
    %5167 = vmatpush.msra.mxu0 0.0
    %5168 = vmatpush.msra.mxu0 0.0
    %5169 = vmatpush.msra.mxu0 0.0
    %5170 = vmatpush.msra.mxu0 %v5150
    %5171 = vmatpush.msra.mxu0 %v5149
    %5172 = vmatpush.msra.mxu0 %v5148
    %5173 = vmatpush.msra.mxu0 %v5147
    %5174 = vmatmul.f32.gmra.mxu0 %v5156
    %v5175 = vpop.f32.mrf.mxu0
    %v5176 = vadd.f32 %v5153, %v5175
    %5177 = vdwg.mxu0
    %v5178 = vld [vmem:[#allocation34] sm:$0xff]
    %v5179 = vld [vmem:[#allocation34 + $0x8] sm:$0xff]
    %v5180 = vld [vmem:[#allocation34 + $0x10] sm:$0xff]
    %v5181 = vld [vmem:[#allocation34 + $0x18] sm:$0xff]
    %v5182 = vld [vmem:[#allocation36] sm:$0x1]
    %v5184 = vperm.slane %v5182, 0
    %v5187 = vsel %vm585, %v5176, 0
    %5189 = vmatpush.msra.mxu0 0.0
    %5190 = vmatpush.msra.mxu0 0.0
    %5191 = vmatpush.msra.mxu0 0.0
    %5192 = vmatpush.msra.mxu0 0.0
    %5193 = vmatpush.msra.mxu0 0.0
    %5194 = vmatpush.msra.mxu0 0.0
    %5195 = vmatpush.msra.mxu0 0.0
    %5196 = vmatpush.msra.mxu0 0.0
    %5197 = vmatpush.msra.mxu0 0.0
    %5198 = vmatpush.msra.mxu0 0.0
    %5199 = vmatpush.msra.mxu0 0.0
    %5200 = vmatpush.msra.mxu0 0.0
    %5201 = vmatpush.msra.mxu0 %v5181
    %5202 = vmatpush.msra.mxu0 %v5180
    %5203 = vmatpush.msra.mxu0 %v5179
    %5204 = vmatpush.msra.mxu0 %v5178
    %5205 = vmatmul.f32.gmra.mxu0 %v5187
    %v5206 = vpop.f32.mrf.mxu0
    %v5207 = vadd.f32 %v5184, %v5206
    %5208 = vdwg.mxu0
    %v5209 = vxor.u32 %v5207, 2147483648
    %v5210 = vmul.f32 %v5209, 1.442695
    %v5211 = vpow.pop %v5210
    %v5212 = vadd.f32 %v5211, 1.0
    %v5213 = vrcp.pop %v5212
    %v5214 = vmul.f32 %v5212, %v5213
    %v5215 = vsub.f32 1.0, %v5214
    %v5216 = vmul.f32 %v5213, %v5215
    %v5217 = vadd.f32 %v5213, %v5216
    %vm5218 = vweird.f32 %v5212
    %vm5219 = vweird.f32 %v5213
    %vm5220 = vmor %vm5218, %vm5219
    %v5221 = vsel %vm5220, %v5213, %v5217
    %v5222 = vand.u32 2147483647, %v5212
    %vm5223 = vcmp.eq.f32.partialorder %v5222, 8.507059e+37
    %v5224 = vand.u32 %v5212, 2147483648
    %v5225 = vor.u32 1.1754944e-38, %v5224
    %v5226 = vsel %vm5223, %v5225, %v5221
    %v5227 = vmul.f32 1.0, %v5226
    %5229 = vrot.lane.b32.xlu0 %v5227, 96
    %v5230 = vpop.permute.xlu0 %5229
    %v5232 = vmul.f32 %v5207, %v5230
    %v5233 = vadd.f32 %v5232, %v5109
    %v5234 = vld [vmem:[#allocation37] sm:$0x1]
    %v5235 = vld [vmem:[#allocation39] sm:$0x1]
    %v5236 = vsel %vm585, %v5233, 0.0
    %5237 = vadd.xlane.f32.xlu0 %v5236
    %v5238 = vpop.xlane.xlu0 %5237
    %v5239 = vmul.f32 %v5238, %v3464
    %v5240 = vsub.f32 %v5233, %v5239
    %v5241 = vmul.f32 %v5240, %v5240
    %v5242 = vsel %vm585, %v5241, 0.0
    %5243 = vadd.xlane.f32.xlu0 %v5242
    %v5244 = vpop.xlane.xlu0 %5243
    %v5245 = vmul.f32 %v5244, %v3464
    %v5246 = vadd.f32 %v5245, 1e-05
    %v5247 = vrsqrt.pop %v5246
    %v5248 = vmul.f32 %v5247, %v5246
    %v5249 = vmul.f32 %v5248, %v5247
    %v5250 = vmul.f32 0.5, %v5249
    %v5251 = vsub.f32 1.5, %v5250
    %v5252 = vmul.f32 %v5247, %v5251
    %vm5253 = vweird.f32 %v5246
    %vm5254 = vweird.f32 %v5247
    %vm5255 = vmor %vm5253, %vm5254
    %v5256 = vsel %vm5255, %v5247, %v5252
    %v5257 = vmul.f32 %v5240, %v5256
    %v5259 = vperm.slane %v5234, 0
    %v5261 = vmul.f32 %v5257, %v5259
    %v5263 = vperm.slane %v5235, 0
    %v5265 = vadd.f32 %v5261, %v5263
    %v5266 = vld [vmem:[#allocation40] sm:$0xff]
    %v5267 = vld [vmem:[#allocation40 + $0x8] sm:$0xff]
    %v5268 = vld [vmem:[#allocation40 + $0x10] sm:$0xff]
    %v5269 = vld [vmem:[#allocation40 + $0x18] sm:$0xff]
    %v5270 = vld [vmem:[#allocation42] sm:$0x1]
    %v5272 = vperm.slane %v5270, 0
    %v5275 = vsel %vm585, %v5265, 0
    %5277 = vmatpush.msra.mxu0 0.0
    %5278 = vmatpush.msra.mxu0 0.0
    %5279 = vmatpush.msra.mxu0 0.0
    %5280 = vmatpush.msra.mxu0 0.0
    %5281 = vmatpush.msra.mxu0 0.0
    %5282 = vmatpush.msra.mxu0 0.0
    %5283 = vmatpush.msra.mxu0 0.0
    %5284 = vmatpush.msra.mxu0 0.0
    %5285 = vmatpush.msra.mxu0 0.0
    %5286 = vmatpush.msra.mxu0 0.0
    %5287 = vmatpush.msra.mxu0 0.0
    %5288 = vmatpush.msra.mxu0 0.0
    %5289 = vmatpush.msra.mxu0 %v5269
    %5290 = vmatpush.msra.mxu0 %v5268
    %5291 = vmatpush.msra.mxu0 %v5267
    %5292 = vmatpush.msra.mxu0 %v5266
    %5293 = vmatmul.f32.gmra.mxu0 %v5275
    %v5294 = vpop.f32.mrf.mxu0
    %v5295 = vadd.f32 %v5272, %v5294
    %5296 = vdwg.mxu0
    %v5297 = vxor.u32 %v5295, 2147483648
    %v5298 = vmul.f32 %v5297, 1.442695
    %v5299 = vpow.pop %v5298
    %v5300 = vadd.f32 %v5299, 1.0
    %v5301 = vrcp.pop %v5300
    %v5302 = vmul.f32 %v5300, %v5301
    %v5303 = vsub.f32 1.0, %v5302
    %v5304 = vmul.f32 %v5301, %v5303
    %v5305 = vadd.f32 %v5301, %v5304
    %vm5306 = vweird.f32 %v5300
    %vm5307 = vweird.f32 %v5301
    %vm5308 = vmor %vm5306, %vm5307
    %v5309 = vsel %vm5308, %v5301, %v5305
    %v5310 = vand.u32 2147483647, %v5300
    %vm5311 = vcmp.eq.f32.partialorder %v5310, 8.507059e+37
    %v5312 = vand.u32 %v5300, 2147483648
    %v5313 = vor.u32 1.1754944e-38, %v5312
    %v5314 = vsel %vm5311, %v5313, %v5309
    %v5315 = vmul.f32 1.0, %v5314
    %5317 = vrot.lane.b32.xlu0 %v5315, 96
    %v5318 = vpop.permute.xlu0 %5317
    %v5320 = vmul.f32 %v5295, %v5318
    %v5321 = vadd.f32 %v5320, %v3592
    %v5322 = vld [vmem:[#allocation43] sm:$0x1]
    %v5323 = vld [vmem:[#allocation45] sm:$0x1]
    %v5324 = vsel %vm585, %v5321, 0.0
    %5325 = vadd.xlane.f32.xlu0 %v5324
    %v5326 = vpop.xlane.xlu0 %5325
    %v5327 = vmul.f32 %v5326, %v3464
    %v5328 = vsub.f32 %v5321, %v5327
    %v5329 = vmul.f32 %v5328, %v5328
    %v5330 = vsel %vm585, %v5329, 0.0
    %5331 = vadd.xlane.f32.xlu0 %v5330
    %v5332 = vpop.xlane.xlu0 %5331
    %v5333 = vmul.f32 %v5332, %v3464
    %v5334 = vadd.f32 %v5333, 1e-05
    %v5335 = vrsqrt.pop %v5334
    %v5336 = vmul.f32 %v5335, %v5334
    %v5337 = vmul.f32 %v5336, %v5335
    %v5338 = vmul.f32 0.5, %v5337
    %v5339 = vsub.f32 1.5, %v5338
    %v5340 = vmul.f32 %v5335, %v5339
    %vm5341 = vweird.f32 %v5334
    %vm5342 = vweird.f32 %v5335
    %vm5343 = vmor %vm5341, %vm5342
    %v5344 = vsel %vm5343, %v5335, %v5340
    %v5345 = vmul.f32 %v5328, %v5344
    %v5347 = vperm.slane %v5322, 0
    %v5349 = vmul.f32 %v5345, %v5347
    %v5351 = vperm.slane %v5323, 0
    %v5353 = vadd.f32 %v5349, %v5351
    %v5354 = vld [vmem:[%s85] sm:$0xff]
    %v5355 = vld [vmem:[%s85 + $0x8] sm:$0xff]
    %v5356 = vld [vmem:[%s85 + $0x10] sm:$0xff]
    %v5357 = vld [vmem:[%s85 + $0x18] sm:$0xff]
    %v5358 = vld [vmem:[#allocation46] sm:$0x1]
    %v5360 = vperm.slane %v5358, 0
    %v5363 = vsel %vm585, %v5353, 0
    %5365 = vmatpush.msra.mxu0 0.0
    %5366 = vmatpush.msra.mxu0 0.0
    %5367 = vmatpush.msra.mxu0 0.0
    %5368 = vmatpush.msra.mxu0 0.0
    %5369 = vmatpush.msra.mxu0 0.0
    %5370 = vmatpush.msra.mxu0 0.0
    %5371 = vmatpush.msra.mxu0 0.0
    %5372 = vmatpush.msra.mxu0 0.0
    %5373 = vmatpush.msra.mxu0 0.0
    %5374 = vmatpush.msra.mxu0 0.0
    %5375 = vmatpush.msra.mxu0 0.0
    %5376 = vmatpush.msra.mxu0 0.0
    %5377 = vmatpush.msra.mxu0 %v5357
    %5378 = vmatpush.msra.mxu0 %v5356
    %5379 = vmatpush.msra.mxu0 %v5355
    %5380 = vmatpush.msra.mxu0 %v5354
    %5381 = vmatmul.f32.gmra.mxu0 %v5363
    %v5382 = vpop.f32.mrf.mxu0
    %v5383 = vadd.f32 %v5360, %v5382
    %5384 = vdwg.mxu0
    %vm5385 = vcmask 56320
    %5386 = vst.msk [vmem:[#allocation48] sm:$0xff] %vm5385, %v5383
    // Predicated region
    $region290: #{xtft_forward.3} parent=1 // pred_check
      _
    $region291: #{xtft_forward.3} parent=1 // pred_check_branch
      %5388 = sbr.rel (0) target = $region293
    $region292: #{xtft_forward.3} parent=1 // pred_region
      %5390 = vsyncadd [#allocation6], 0
      %s5392 = sshll.u32 [#allocation48], 4
      %s5393 = int_to_ptr.vmem [resolvable:$true] %s5392
      %s5394 = sshll.u32 %s89, 4
      %s5395 = int_to_ptr.hbm [resolvable:$true] %s5394
      %5397 = dma.vmem_to_hbm [thread:$0]  %s5393, 128, %s5395, [#allocation6]
    $region293: #{xtft_forward.3} parent=1 // pred_fallthru
      _
    // Predicated region
    $region294: #{xtft_forward.3} parent=1 // pred_check
      _
    $region295: #{xtft_forward.3} parent=1 // pred_check_branch
      %5399 = sbr.rel (0) target = $region297
    $region296: #{xtft_forward.3} parent=1 // pred_region
      _
    $region297: #{xtft_forward.3} parent=1 // pred_fallthru
      _
    // Predicated region
    $region298: #{xtft_forward.3} parent=1 // pred_check
      _
    $region299: #{xtft_forward.3} parent=1 // pred_check_branch
      %5401 = sbr.rel (0) target = $region301
    $region300: #{xtft_forward.3} parent=1 // pred_region
      %5403 = dma.done [#allocation6], 128
    $region301: #{xtft_forward.3} parent=1 // pred_fallthru
      _
    // Predicated region
    $region302: #{xtft_forward.3} parent=1 // pred_check
      _
    $region303: #{xtft_forward.3} parent=1 // pred_check_branch
      %5405 = sbr.rel (0) target = $region305
    $region304: #{xtft_forward.3} parent=1 // pred_region
      _
    $region305: #{xtft_forward.3} parent=1 // pred_fallthru
      _
    %5406 = vsyncpa [#allocation5], 1
    %5407 = vsyncpa [#allocation8], 1
    %5408 = vsyncpa [#allocation11], 1
    %5409 = vsyncpa [#allocation14], 1
    %5410 = vsyncpa [#allocation17], 1
    %5411 = vsyncpa [#allocation20], 1
    %5412 = vsyncpa [#allocation23], 1
    %5413 = vsyncpa [#allocation26], 1
    %5414 = vsyncpa [#allocation29], 1
    %5415 = vsyncpa [#allocation32], 1
    %5416 = vsyncpa [#allocation35], 1
    %5417 = vsyncpa [#allocation38], 1
    %5418 = vsyncpa [#allocation41], 1
    %5419 = vsyncpa [#allocation44], 1
    %5420 = vsyncpa [#allocation47], 1
    %5421 = vsyncpa [#allocation6], 1

// kernel: xtft_forward.2
$region0: #{xtft_forward.2}
  #allocation0 [shape = 'u32[]', space=smem, size = 0x4, offset = 0x4, fixed_abs, tag = 'smem constant byte address 0x4 - core index']
  #allocation1 [shape = 'u32[72,128]{1,0:T(1,128)}', space=vmem, size = 0x9000, scoped, tag = 'internal scratch']
  %s0 = inlined_call_operand.smem [shape: u32[52], index: -1, kind: input, shape index: {}]
  %s1 = sld [smem:[%s0]]
  %s2 = scalar_lea.smem %s0, 1
  %s3 = sld [smem:[%s2]]
  %s4 = scalar_lea.smem %s0, 2
  %s5 = sld [smem:[%s4]]
  %s6 = scalar_lea.smem %s0, 3
  %s7 = sld [smem:[%s6]]
  %s8 = scalar_lea.smem %s0, 4
  %s9 = sld [smem:[%s8]]
  %s10 = scalar_lea.smem %s0, 5
  %s11 = sld [smem:[%s10]]
  %s12 = scalar_lea.smem %s0, 6
  %s13 = sld [smem:[%s12]]
  %s14 = scalar_lea.smem %s0, 7
  %s15 = sld [smem:[%s14]]
  %s16 = scalar_lea.smem %s0, 8
  %s17 = sld [smem:[%s16]]
  %s18 = scalar_lea.smem %s0, 9
  %s19 = sld [smem:[%s18]]
  %s20 = scalar_lea.smem %s0, 10
  %s21 = sld [smem:[%s20]]
  %s22 = scalar_lea.smem %s0, 11
  %s23 = sld [smem:[%s22]]
  %s24 = scalar_lea.smem %s0, 12
  %s25 = sld [smem:[%s24]]
  %s26 = scalar_lea.smem %s0, 13
  %s27 = sld [smem:[%s26]]
  %s28 = scalar_lea.smem %s0, 14
  %s29 = sld [smem:[%s28]]
  %s30 = scalar_lea.smem %s0, 15
  %s31 = sld [smem:[%s30]]
  %s32 = scalar_lea.smem %s0, 16
  %s33 = sld [smem:[%s32]]
  %s34 = scalar_lea.smem %s0, 17
  %s35 = sld [smem:[%s34]]
  %s36 = scalar_lea.smem %s0, 18
  %s37 = sld [smem:[%s36]]
  %s38 = scalar_lea.smem %s0, 19
  %s39 = sld [smem:[%s38]]
  %s40 = scalar_lea.smem %s0, 20
  %s41 = sld [smem:[%s40]]
  %s42 = scalar_lea.smem %s0, 21
  %s43 = sld [smem:[%s42]]
  %s44 = scalar_lea.smem %s0, 22
  %s45 = sld [smem:[%s44]]
  %s46 = scalar_lea.smem %s0, 23
  %s47 = sld [smem:[%s46]]
  %s48 = scalar_lea.smem %s0, 24
  %s49 = sld [smem:[%s48]]
  %s50 = scalar_lea.smem %s0, 25
  %s51 = sld [smem:[%s50]]
  %s52 = scalar_lea.smem %s0, 26
  %s53 = sld [smem:[%s52]]
  %s54 = scalar_lea.smem %s0, 27
  %s55 = sld [smem:[%s54]]
  %s56 = scalar_lea.smem %s0, 28
  %s57 = sld [smem:[%s56]]
  %s58 = scalar_lea.smem %s0, 29
  %s59 = sld [smem:[%s58]]
  %s60 = scalar_lea.smem %s0, 30
  %s61 = sld [smem:[%s60]]
  %s62 = scalar_lea.smem %s0, 31
  %s63 = sld [smem:[%s62]]
  %s64 = scalar_lea.smem %s0, 32
  %s65 = sld [smem:[%s64]]
  %s66 = scalar_lea.smem %s0, 33
  %s67 = sld [smem:[%s66]]
  %s68 = scalar_lea.smem %s0, 34
  %s69 = sld [smem:[%s68]]
  %s70 = scalar_lea.smem %s0, 35
  %s71 = sld [smem:[%s70]]
  %s72 = scalar_lea.smem %s0, 36
  %s73 = sld [smem:[%s72]]
  %s74 = scalar_lea.smem %s0, 37
  %s75 = sld [smem:[%s74]]
  %s76 = scalar_lea.smem %s0, 38
  %s77 = sld [smem:[%s76]]
  %s78 = scalar_lea.smem %s0, 39
  %s79 = sld [smem:[%s78]]
  %s80 = scalar_lea.smem %s0, 40
  %s81 = sld [smem:[%s80]]
  %s82 = scalar_lea.smem %s0, 41
  %s83 = sld [smem:[%s82]]
  %s84 = scalar_lea.smem %s0, 42
  %s85 = sld [smem:[%s84]]
  %s86 = scalar_lea.smem %s0, 43
  %s87 = sld [smem:[%s86]]
  %s88 = scalar_lea.smem %s0, 44
  %s89 = sld [smem:[%s88]]
  %s90 = scalar_lea.smem %s0, 45
  %s91 = sld [smem:[%s90]]
  %s92 = scalar_lea.smem %s0, 46
  %s93 = sld [smem:[%s92]]
  %s94 = scalar_lea.smem %s0, 47
  %s95 = sld [smem:[%s94]]
  %s96 = scalar_lea.smem %s0, 48
  %s97 = sld [smem:[%s96]]
  %s98 = scalar_lea.smem %s0, 49
  %s99 = sld [smem:[%s98]]
  %s100 = scalar_lea.smem %s0, 50
  %s101 = sld [smem:[%s100]]
  %s102 = scalar_lea.smem %s0, 51
  %s103 = sld [smem:[%s102]]
  %104 = xla_tuple %s97, %s99, %s101, %s103
  %s105 = sld [smem:[#allocation0]]
  $region346: #{xtft_forward.2} parent=0
    _
  %s107 = ssub.s32 1, %s105
  %s108 = scalar_select 0, %s107, %s105
  $region1: #{xtft_forward.2} parent=0
    #allocation2 [shape = 'u8[512]{0}', space=vmem, size = 0x400, scoped, tag = 'input window, operand 3, single buffered']
    #allocation3 [shape = 's32[1]{0}', space=sflag, size = 0x4, scoped, tag = 'scoped memory for xtft_forward.2']
    #allocation4 [shape = 's32[1]{0}', space=sflag, size = 0x4, scoped, tag = 'scoped memory for xtft_forward.2']
    #allocation5 [shape = 'u8[1024]{0}', space=vmem, size = 0x400, scoped, tag = 'input window, operand 5, single buffered']
    #allocation6 [shape = 's32[1]{0}', space=sflag, size = 0x4, scoped, tag = 'scoped memory for xtft_forward.2']
    #allocation7 [shape = 'u8[245760]{0}', space=vmem, size = 0x3c000, scoped, tag = 'input window, operand 6, single buffered']
    #allocation8 [shape = 'u8[1536]{0}', space=vmem, size = 0x800, scoped, tag = 'input window, operand 7, single buffered']
    #allocation9 [shape = 's32[1]{0}', space=sflag, size = 0x4, scoped, tag = 'scoped memory for xtft_forward.2']
    #allocation10 [shape = 'u8[1024]{0}', space=vmem, size = 0x400, scoped, tag = 'input window, operand 9, single buffered']
    #allocation11 [shape = 'u8[1024]{0}', space=vmem, size = 0x400, scoped, tag = 'input window, operand 10, single buffered']
    #allocation12 [shape = 's32[1]{0}', space=sflag, size = 0x4, scoped, tag = 'scoped memory for xtft_forward.2']
    #allocation13 [shape = 'u8[1024]{0}', space=vmem, size = 0x400, scoped, tag = 'input window, operand 11, single buffered']
    #allocation14 [shape = 'u8[4096]{0}', space=vmem, size = 0x1000, scoped, tag = 'input window, operand 15, single buffered']
    #allocation15 [shape = 's32[1]{0}', space=sflag, size = 0x4, scoped, tag = 'scoped memory for xtft_forward.2']
    #allocation16 [shape = 'u8[512]{0}', space=vmem, size = 0x400, scoped, tag = 'input window, operand 16, single buffered']
    #allocation17 [shape = 'u8[512]{0}', space=vmem, size = 0x400, scoped, tag = 'input window, operand 18, single buffered']
    #allocation18 [shape = 's32[1]{0}', space=sflag, size = 0x4, scoped, tag = 'scoped memory for xtft_forward.2']
    #allocation19 [shape = 'u8[4096]{0}', space=vmem, size = 0x1000, scoped, tag = 'input window, operand 19, single buffered']
    #allocation20 [shape = 'u8[512]{0}', space=vmem, size = 0x400, scoped, tag = 'input window, operand 20, single buffered']
    #allocation21 [shape = 's32[1]{0}', space=sflag, size = 0x4, scoped, tag = 'scoped memory for xtft_forward.2']
    #allocation22 [shape = 'u8[4096]{0}', space=vmem, size = 0x1000, scoped, tag = 'input window, operand 21, single buffered']
    #allocation23 [shape = 'u8[512]{0}', space=vmem, size = 0x400, scoped, tag = 'input window, operand 22, single buffered']
    #allocation24 [shape = 's32[1]{0}', space=sflag, size = 0x4, scoped, tag = 'scoped memory for xtft_forward.2']
    #allocation25 [shape = 'u8[512]{0}', space=vmem, size = 0x400, scoped, tag = 'input window, operand 23, single buffered']
    #allocation26 [shape = 'u8[512]{0}', space=vmem, size = 0x400, scoped, tag = 'input window, operand 24, single buffered']
    #allocation27 [shape = 's32[1]{0}', space=sflag, size = 0x4, scoped, tag = 'scoped memory for xtft_forward.2']
    #allocation28 [shape = 'u8[512]{0}', space=vmem, size = 0x400, scoped, tag = 'input window, operand 26, single buffered']
    #allocation29 [shape = 'u8[512]{0}', space=vmem, size = 0x400, scoped, tag = 'input window, operand 28, single buffered']
    #allocation30 [shape = 's32[1]{0}', space=sflag, size = 0x4, scoped, tag = 'scoped memory for xtft_forward.2']
    #allocation31 [shape = 'u8[1024]{0}', space=vmem, size = 0x400, scoped, tag = 'input window, operand 30, single buffered']
    #allocation32 [shape = 'u8[512]{0}', space=vmem, size = 0x400, scoped, tag = 'input window, operand 32, single buffered']
    #allocation33 [shape = 's32[1]{0}', space=sflag, size = 0x4, scoped, tag = 'scoped memory for xtft_forward.2']
    #allocation34 [shape = 'u8[512]{0}', space=vmem, size = 0x400, scoped, tag = 'input window, operand 33, single buffered']
    #allocation35 [shape = 'u8[512]{0}', space=vmem, size = 0x400, scoped, tag = 'input window, operand 34, single buffered']
    #allocation36 [shape = 's32[1]{0}', space=sflag, size = 0x4, scoped, tag = 'scoped memory for xtft_forward.2']
    #allocation37 [shape = 'u8[512]{0}', space=vmem, size = 0x400, scoped, tag = 'input window, operand 39, single buffered']
    #allocation38 [shape = 'u8[512]{0}', space=vmem, size = 0x400, scoped, tag = 'input window, operand 41, single buffered']
    #allocation39 [shape = 's32[1]{0}', space=sflag, size = 0x4, scoped, tag = 'scoped memory for xtft_forward.2']
    #allocation40 [shape = 'u8[2048]{0}', space=vmem, size = 0x800, scoped, tag = 'input window, operand 42, single buffered']
    #allocation41 [shape = 'u8[512]{0}', space=vmem, size = 0x400, scoped, tag = 'input window, operand 43, single buffered']
    #allocation42 [shape = 's32[1]{0}', space=sflag, size = 0x4, scoped, tag = 'scoped memory for xtft_forward.2']
    #allocation43 [shape = 'u8[2048]{0}', space=vmem, size = 0x800, scoped, tag = 'input window, operand 44, single buffered']
    #allocation44 [shape = 'u8[512]{0}', space=vmem, size = 0x400, scoped, tag = 'input window, operand 45, single buffered']
    #allocation45 [shape = 's32[1]{0}', space=sflag, size = 0x4, scoped, tag = 'scoped memory for xtft_forward.2']
    #allocation46 [shape = 'u8[512]{0}', space=vmem, size = 0x400, scoped, tag = 'input window, operand 46, single buffered']
    #allocation47 [shape = 'u8[512]{0}', space=vmem, size = 0x400, scoped, tag = 'input window, operand 47, single buffered']
    #allocation48 [shape = 's32[1]{0}', space=sflag, size = 0x4, scoped, tag = 'scoped memory for xtft_forward.2']
    #allocation49 [shape = 'u8[4096]{0}', space=vmem, size = 0x1000, scoped, tag = 'output window, operand 3, single buffered']
    %109 = vsyncpa [#allocation3], 0
    %110 = vsyncpa [#allocation6], 0
    %111 = vsyncpa [#allocation9], 0
    %112 = vsyncpa [#allocation12], 0
    %113 = vsyncpa [#allocation15], 0
    %114 = vsyncpa [#allocation18], 0
    %115 = vsyncpa [#allocation21], 0
    %116 = vsyncpa [#allocation24], 0
    %117 = vsyncpa [#allocation27], 0
    %118 = vsyncpa [#allocation30], 0
    %119 = vsyncpa [#allocation33], 0
    %120 = vsyncpa [#allocation36], 0
    %121 = vsyncpa [#allocation39], 0
    %122 = vsyncpa [#allocation42], 0
    %123 = vsyncpa [#allocation45], 0
    %124 = vsyncpa [#allocation48], 0
    %125 = vsyncpa [#allocation4], 0
    // Predicated region
    $region2: #{xtft_forward.2} parent=1 // pred_check
      _
    $region3: #{xtft_forward.2} parent=1 // pred_check_branch
      %127 = sbr.rel (0) target = $region5
    $region4: #{xtft_forward.2} parent=1 // pred_region
      _
    $region5: #{xtft_forward.2} parent=1 // pred_fallthru
      _
    // Predicated region
    $region6: #{xtft_forward.2} parent=1 // pred_check
      _
    $region7: #{xtft_forward.2} parent=1 // pred_check_branch
      %129 = sbr.rel (0) target = $region9
    $region8: #{xtft_forward.2} parent=1 // pred_region
      _
    $region9: #{xtft_forward.2} parent=1 // pred_fallthru
      _
    // Predicated region
    $region10: #{xtft_forward.2} parent=1 // pred_check
      _
    $region11: #{xtft_forward.2} parent=1 // pred_check_branch
      %131 = sbr.rel (0) target = $region13
    $region12: #{xtft_forward.2} parent=1 // pred_region
      _
    $region13: #{xtft_forward.2} parent=1 // pred_fallthru
      _
    // Predicated region
    $region14: #{xtft_forward.2} parent=1 // pred_check
      _
    $region15: #{xtft_forward.2} parent=1 // pred_check_branch
      %133 = sbr.rel (0) target = $region17
    $region16: #{xtft_forward.2} parent=1 // pred_region
      %135 = vsyncadd [#allocation3], 0
      %s137 = sshll.u32 %s7, 4
      %s138 = int_to_ptr.hbm [resolvable:$true] %s137
      %s139 = sshll.u32 [#allocation2], 4
      %s140 = int_to_ptr.vmem [resolvable:$true] %s139
      %142 = dma.hbm_to_vmem [thread:$0]  %s138, 16, %s140, [#allocation3]
    $region17: #{xtft_forward.2} parent=1 // pred_fallthru
      _
    // Predicated region
    $region18: #{xtft_forward.2} parent=1 // pred_check
      _
    $region19: #{xtft_forward.2} parent=1 // pred_check_branch
      %144 = sbr.rel (0) target = $region21
    $region20: #{xtft_forward.2} parent=1 // pred_region
      _
    $region21: #{xtft_forward.2} parent=1 // pred_fallthru
      _
    // Predicated region
    $region22: #{xtft_forward.2} parent=1 // pred_check
      _
    $region23: #{xtft_forward.2} parent=1 // pred_check_branch
      %146 = sbr.rel (0) target = $region25
    $region24: #{xtft_forward.2} parent=1 // pred_region
      %148 = vsyncadd [#allocation6], 0
      %s150 = sshll.u32 %s11, 4
      %s151 = int_to_ptr.hbm [resolvable:$true] %s150
      %s152 = sshll.u32 [#allocation5], 4
      %s153 = int_to_ptr.vmem [resolvable:$true] %s152
      %155 = dma.hbm_to_vmem [thread:$0]  %s151, 32, %s153, [#allocation6]
    $region25: #{xtft_forward.2} parent=1 // pred_fallthru
      _
    // Predicated region
    $region26: #{xtft_forward.2} parent=1 // pred_check
      _
    $region27: #{xtft_forward.2} parent=1 // pred_check_branch
      %157 = sbr.rel (0) target = $region29
    $region28: #{xtft_forward.2} parent=1 // pred_region
      %159 = vsyncadd [#allocation6], 0
      %s160 = sshll.u32 %s13, 4
      %s161 = int_to_ptr.hbm [resolvable:$true] %s160
      %s162 = sshll.u32 [#allocation7], 4
      %s163 = int_to_ptr.vmem [resolvable:$true] %s162
      %168 = dma.hbm_to_vmem [thread:$0]  %s161, 7680, %s163, [#allocation6], 384, 384, 24
    $region29: #{xtft_forward.2} parent=1 // pred_fallthru
      _
    // Predicated region
    $region30: #{xtft_forward.2} parent=1 // pred_check
      _
    $region31: #{xtft_forward.2} parent=1 // pred_check_branch
      %170 = sbr.rel (0) target = $region33
    $region32: #{xtft_forward.2} parent=1 // pred_region
      %172 = vsyncadd [#allocation9], 0
      %s174 = sshll.u32 %s15, 4
      %s175 = int_to_ptr.hbm [resolvable:$true] %s174
      %s176 = sshll.u32 [#allocation8], 4
      %s177 = int_to_ptr.vmem [resolvable:$true] %s176
      %179 = dma.hbm_to_vmem [thread:$0]  %s175, 48, %s177, [#allocation9]
    $region33: #{xtft_forward.2} parent=1 // pred_fallthru
      _
    // Predicated region
    $region34: #{xtft_forward.2} parent=1 // pred_check
      _
    $region35: #{xtft_forward.2} parent=1 // pred_check_branch
      %181 = sbr.rel (0) target = $region37
    $region36: #{xtft_forward.2} parent=1 // pred_region
      _
    $region37: #{xtft_forward.2} parent=1 // pred_fallthru
      _
    // Predicated region
    $region38: #{xtft_forward.2} parent=1 // pred_check
      _
    $region39: #{xtft_forward.2} parent=1 // pred_check_branch
      %183 = sbr.rel (0) target = $region41
    $region40: #{xtft_forward.2} parent=1 // pred_region
      %185 = vsyncadd [#allocation9], 0
      %s187 = sshll.u32 %s19, 4
      %s188 = int_to_ptr.hbm [resolvable:$true] %s187
      %s189 = sshll.u32 [#allocation10], 4
      %s190 = int_to_ptr.vmem [resolvable:$true] %s189
      %192 = dma.hbm_to_vmem [thread:$0]  %s188, 32, %s190, [#allocation9]
    $region41: #{xtft_forward.2} parent=1 // pred_fallthru
      _
    // Predicated region
    $region42: #{xtft_forward.2} parent=1 // pred_check
      _
    $region43: #{xtft_forward.2} parent=1 // pred_check_branch
      %194 = sbr.rel (0) target = $region45
    $region44: #{xtft_forward.2} parent=1 // pred_region
      %196 = vsyncadd [#allocation12], 0
      %s198 = sshll.u32 %s21, 4
      %s199 = int_to_ptr.hbm [resolvable:$true] %s198
      %s200 = sshll.u32 [#allocation11], 4
      %s201 = int_to_ptr.vmem [resolvable:$true] %s200
      %203 = dma.hbm_to_vmem [thread:$0]  %s199, 32, %s201, [#allocation12]
    $region45: #{xtft_forward.2} parent=1 // pred_fallthru
      _
    // Predicated region
    $region46: #{xtft_forward.2} parent=1 // pred_check
      _
    $region47: #{xtft_forward.2} parent=1 // pred_check_branch
      %205 = sbr.rel (0) target = $region49
    $region48: #{xtft_forward.2} parent=1 // pred_region
      %207 = vsyncadd [#allocation12], 0
      %s209 = sshll.u32 %s23, 4
      %s210 = int_to_ptr.hbm [resolvable:$true] %s209
      %s211 = sshll.u32 [#allocation13], 4
      %s212 = int_to_ptr.vmem [resolvable:$true] %s211
      %214 = dma.hbm_to_vmem [thread:$0]  %s210, 32, %s212, [#allocation12]
    $region49: #{xtft_forward.2} parent=1 // pred_fallthru
      _
    // Predicated region
    $region50: #{xtft_forward.2} parent=1 // pred_check
      _
    $region51: #{xtft_forward.2} parent=1 // pred_check_branch
      %216 = sbr.rel (0) target = $region53
    $region52: #{xtft_forward.2} parent=1 // pred_region
      _
    $region53: #{xtft_forward.2} parent=1 // pred_fallthru
      _
    // Predicated region
    $region54: #{xtft_forward.2} parent=1 // pred_check
      _
    $region55: #{xtft_forward.2} parent=1 // pred_check_branch
      %218 = sbr.rel (0) target = $region57
    $region56: #{xtft_forward.2} parent=1 // pred_region
      _
    $region57: #{xtft_forward.2} parent=1 // pred_fallthru
      _
    // Predicated region
    $region58: #{xtft_forward.2} parent=1 // pred_check
      _
    $region59: #{xtft_forward.2} parent=1 // pred_check_branch
      %220 = sbr.rel (0) target = $region61
    $region60: #{xtft_forward.2} parent=1 // pred_region
      _
    $region61: #{xtft_forward.2} parent=1 // pred_fallthru
      _
    // Predicated region
    $region62: #{xtft_forward.2} parent=1 // pred_check
      _
    $region63: #{xtft_forward.2} parent=1 // pred_check_branch
      %222 = sbr.rel (0) target = $region65
    $region64: #{xtft_forward.2} parent=1 // pred_region
      %224 = vsyncadd [#allocation15], 0
      %s226 = sshll.u32 %s31, 4
      %s227 = int_to_ptr.hbm [resolvable:$true] %s226
      %s228 = sshll.u32 [#allocation14], 4
      %s229 = int_to_ptr.vmem [resolvable:$true] %s228
      %231 = dma.hbm_to_vmem [thread:$0]  %s227, 128, %s229, [#allocation15]
    $region65: #{xtft_forward.2} parent=1 // pred_fallthru
      _
    // Predicated region
    $region66: #{xtft_forward.2} parent=1 // pred_check
      _
    $region67: #{xtft_forward.2} parent=1 // pred_check_branch
      %233 = sbr.rel (0) target = $region69
    $region68: #{xtft_forward.2} parent=1 // pred_region
      %235 = vsyncadd [#allocation15], 0
      %s237 = sshll.u32 %s33, 4
      %s238 = int_to_ptr.hbm [resolvable:$true] %s237
      %s239 = sshll.u32 [#allocation16], 4
      %s240 = int_to_ptr.vmem [resolvable:$true] %s239
      %242 = dma.hbm_to_vmem [thread:$0]  %s238, 16, %s240, [#allocation15]
    $region69: #{xtft_forward.2} parent=1 // pred_fallthru
      _
    // Predicated region
    $region70: #{xtft_forward.2} parent=1 // pred_check
      _
    $region71: #{xtft_forward.2} parent=1 // pred_check_branch
      %244 = sbr.rel (0) target = $region73
    $region72: #{xtft_forward.2} parent=1 // pred_region
      _
    $region73: #{xtft_forward.2} parent=1 // pred_fallthru
      _
    // Predicated region
    $region74: #{xtft_forward.2} parent=1 // pred_check
      _
    $region75: #{xtft_forward.2} parent=1 // pred_check_branch
      %246 = sbr.rel (0) target = $region77
    $region76: #{xtft_forward.2} parent=1 // pred_region
      %248 = vsyncadd [#allocation18], 0
      %s250 = sshll.u32 %s37, 4
      %s251 = int_to_ptr.hbm [resolvable:$true] %s250
      %s252 = sshll.u32 [#allocation17], 4
      %s253 = int_to_ptr.vmem [resolvable:$true] %s252
      %255 = dma.hbm_to_vmem [thread:$0]  %s251, 16, %s253, [#allocation18]
    $region77: #{xtft_forward.2} parent=1 // pred_fallthru
      _
    // Predicated region
    $region78: #{xtft_forward.2} parent=1 // pred_check
      _
    $region79: #{xtft_forward.2} parent=1 // pred_check_branch
      %257 = sbr.rel (0) target = $region81
    $region80: #{xtft_forward.2} parent=1 // pred_region
      %259 = vsyncadd [#allocation18], 0
      %s261 = sshll.u32 %s39, 4
      %s262 = int_to_ptr.hbm [resolvable:$true] %s261
      %s263 = sshll.u32 [#allocation19], 4
      %s264 = int_to_ptr.vmem [resolvable:$true] %s263
      %266 = dma.hbm_to_vmem [thread:$0]  %s262, 128, %s264, [#allocation18]
    $region81: #{xtft_forward.2} parent=1 // pred_fallthru
      _
    // Predicated region
    $region82: #{xtft_forward.2} parent=1 // pred_check
      _
    $region83: #{xtft_forward.2} parent=1 // pred_check_branch
      %268 = sbr.rel (0) target = $region85
    $region84: #{xtft_forward.2} parent=1 // pred_region
      %270 = vsyncadd [#allocation21], 0
      %s272 = sshll.u32 %s41, 4
      %s273 = int_to_ptr.hbm [resolvable:$true] %s272
      %s274 = sshll.u32 [#allocation20], 4
      %s275 = int_to_ptr.vmem [resolvable:$true] %s274
      %277 = dma.hbm_to_vmem [thread:$0]  %s273, 16, %s275, [#allocation21]
    $region85: #{xtft_forward.2} parent=1 // pred_fallthru
      _
    // Predicated region
    $region86: #{xtft_forward.2} parent=1 // pred_check
      _
    $region87: #{xtft_forward.2} parent=1 // pred_check_branch
      %279 = sbr.rel (0) target = $region89
    $region88: #{xtft_forward.2} parent=1 // pred_region
      %281 = vsyncadd [#allocation21], 0
      %s283 = sshll.u32 %s43, 4
      %s284 = int_to_ptr.hbm [resolvable:$true] %s283
      %s285 = sshll.u32 [#allocation22], 4
      %s286 = int_to_ptr.vmem [resolvable:$true] %s285
      %288 = dma.hbm_to_vmem [thread:$0]  %s284, 128, %s286, [#allocation21]
    $region89: #{xtft_forward.2} parent=1 // pred_fallthru
      _
    // Predicated region
    $region90: #{xtft_forward.2} parent=1 // pred_check
      _
    $region91: #{xtft_forward.2} parent=1 // pred_check_branch
      %290 = sbr.rel (0) target = $region93
    $region92: #{xtft_forward.2} parent=1 // pred_region
      %292 = vsyncadd [#allocation24], 0
      %s294 = sshll.u32 %s45, 4
      %s295 = int_to_ptr.hbm [resolvable:$true] %s294
      %s296 = sshll.u32 [#allocation23], 4
      %s297 = int_to_ptr.vmem [resolvable:$true] %s296
      %299 = dma.hbm_to_vmem [thread:$0]  %s295, 16, %s297, [#allocation24]
    $region93: #{xtft_forward.2} parent=1 // pred_fallthru
      _
    // Predicated region
    $region94: #{xtft_forward.2} parent=1 // pred_check
      _
    $region95: #{xtft_forward.2} parent=1 // pred_check_branch
      %301 = sbr.rel (0) target = $region97
    $region96: #{xtft_forward.2} parent=1 // pred_region
      %303 = vsyncadd [#allocation24], 0
      %s305 = sshll.u32 %s47, 4
      %s306 = int_to_ptr.hbm [resolvable:$true] %s305
      %s307 = sshll.u32 [#allocation25], 4
      %s308 = int_to_ptr.vmem [resolvable:$true] %s307
      %310 = dma.hbm_to_vmem [thread:$0]  %s306, 16, %s308, [#allocation24]
    $region97: #{xtft_forward.2} parent=1 // pred_fallthru
      _
    // Predicated region
    $region98: #{xtft_forward.2} parent=1 // pred_check
      _
    $region99: #{xtft_forward.2} parent=1 // pred_check_branch
      %312 = sbr.rel (0) target = $region101
    $region100: #{xtft_forward.2} parent=1 // pred_region
      %314 = vsyncadd [#allocation27], 0
      %s316 = sshll.u32 %s49, 4
      %s317 = int_to_ptr.hbm [resolvable:$true] %s316
      %s318 = sshll.u32 [#allocation26], 4
      %s319 = int_to_ptr.vmem [resolvable:$true] %s318
      %321 = dma.hbm_to_vmem [thread:$0]  %s317, 16, %s319, [#allocation27]
    $region101: #{xtft_forward.2} parent=1 // pred_fallthru
      _
    // Predicated region
    $region102: #{xtft_forward.2} parent=1 // pred_check
      _
    $region103: #{xtft_forward.2} parent=1 // pred_check_branch
      %323 = sbr.rel (0) target = $region105
    $region104: #{xtft_forward.2} parent=1 // pred_region
      _
    $region105: #{xtft_forward.2} parent=1 // pred_fallthru
      _
    // Predicated region
    $region106: #{xtft_forward.2} parent=1 // pred_check
      _
    $region107: #{xtft_forward.2} parent=1 // pred_check_branch
      %325 = sbr.rel (0) target = $region109
    $region108: #{xtft_forward.2} parent=1 // pred_region
      %327 = vsyncadd [#allocation27], 0
      %s329 = sshll.u32 %s53, 4
      %s330 = int_to_ptr.hbm [resolvable:$true] %s329
      %s331 = sshll.u32 [#allocation28], 4
      %s332 = int_to_ptr.vmem [resolvable:$true] %s331
      %334 = dma.hbm_to_vmem [thread:$0]  %s330, 16, %s332, [#allocation27]
    $region109: #{xtft_forward.2} parent=1 // pred_fallthru
      _
    // Predicated region
    $region110: #{xtft_forward.2} parent=1 // pred_check
      _
    $region111: #{xtft_forward.2} parent=1 // pred_check_branch
      %336 = sbr.rel (0) target = $region113
    $region112: #{xtft_forward.2} parent=1 // pred_region
      _
    $region113: #{xtft_forward.2} parent=1 // pred_fallthru
      _
    // Predicated region
    $region114: #{xtft_forward.2} parent=1 // pred_check
      _
    $region115: #{xtft_forward.2} parent=1 // pred_check_branch
      %338 = sbr.rel (0) target = $region117
    $region116: #{xtft_forward.2} parent=1 // pred_region
      %340 = vsyncadd [#allocation30], 0
      %s342 = sshll.u32 %s57, 4
      %s343 = int_to_ptr.hbm [resolvable:$true] %s342
      %s344 = sshll.u32 [#allocation29], 4
      %s345 = int_to_ptr.vmem [resolvable:$true] %s344
      %347 = dma.hbm_to_vmem [thread:$0]  %s343, 16, %s345, [#allocation30]
    $region117: #{xtft_forward.2} parent=1 // pred_fallthru
      _
    // Predicated region
    $region118: #{xtft_forward.2} parent=1 // pred_check
      _
    $region119: #{xtft_forward.2} parent=1 // pred_check_branch
      %349 = sbr.rel (0) target = $region121
    $region120: #{xtft_forward.2} parent=1 // pred_region
      _
    $region121: #{xtft_forward.2} parent=1 // pred_fallthru
      _
    // Predicated region
    $region122: #{xtft_forward.2} parent=1 // pred_check
      _
    $region123: #{xtft_forward.2} parent=1 // pred_check_branch
      %351 = sbr.rel (0) target = $region125
    $region124: #{xtft_forward.2} parent=1 // pred_region
      %353 = vsyncadd [#allocation30], 0
      %s355 = sshll.u32 %s61, 4
      %s356 = int_to_ptr.hbm [resolvable:$true] %s355
      %s357 = sshll.u32 [#allocation31], 4
      %s358 = int_to_ptr.vmem [resolvable:$true] %s357
      %360 = dma.hbm_to_vmem [thread:$0]  %s356, 32, %s358, [#allocation30]
    $region125: #{xtft_forward.2} parent=1 // pred_fallthru
      _
    // Predicated region
    $region126: #{xtft_forward.2} parent=1 // pred_check
      _
    $region127: #{xtft_forward.2} parent=1 // pred_check_branch
      %362 = sbr.rel (0) target = $region129
    $region128: #{xtft_forward.2} parent=1 // pred_region
      _
    $region129: #{xtft_forward.2} parent=1 // pred_fallthru
      _
    // Predicated region
    $region130: #{xtft_forward.2} parent=1 // pred_check
      _
    $region131: #{xtft_forward.2} parent=1 // pred_check_branch
      %364 = sbr.rel (0) target = $region133
    $region132: #{xtft_forward.2} parent=1 // pred_region
      %366 = vsyncadd [#allocation33], 0
      %s368 = sshll.u32 %s65, 4
      %s369 = int_to_ptr.hbm [resolvable:$true] %s368
      %s370 = sshll.u32 [#allocation32], 4
      %s371 = int_to_ptr.vmem [resolvable:$true] %s370
      %373 = dma.hbm_to_vmem [thread:$0]  %s369, 16, %s371, [#allocation33]
    $region133: #{xtft_forward.2} parent=1 // pred_fallthru
      _
    // Predicated region
    $region134: #{xtft_forward.2} parent=1 // pred_check
      _
    $region135: #{xtft_forward.2} parent=1 // pred_check_branch
      %375 = sbr.rel (0) target = $region137
    $region136: #{xtft_forward.2} parent=1 // pred_region
      %377 = vsyncadd [#allocation33], 0
      %s379 = sshll.u32 %s67, 4
      %s380 = int_to_ptr.hbm [resolvable:$true] %s379
      %s381 = sshll.u32 [#allocation34], 4
      %s382 = int_to_ptr.vmem [resolvable:$true] %s381
      %384 = dma.hbm_to_vmem [thread:$0]  %s380, 16, %s382, [#allocation33]
    $region137: #{xtft_forward.2} parent=1 // pred_fallthru
      _
    // Predicated region
    $region138: #{xtft_forward.2} parent=1 // pred_check
      _
    $region139: #{xtft_forward.2} parent=1 // pred_check_branch
      %386 = sbr.rel (0) target = $region141
    $region140: #{xtft_forward.2} parent=1 // pred_region
      %388 = vsyncadd [#allocation36], 0
      %s390 = sshll.u32 %s69, 4
      %s391 = int_to_ptr.hbm [resolvable:$true] %s390
      %s392 = sshll.u32 [#allocation35], 4
      %s393 = int_to_ptr.vmem [resolvable:$true] %s392
      %395 = dma.hbm_to_vmem [thread:$0]  %s391, 16, %s393, [#allocation36]
    $region141: #{xtft_forward.2} parent=1 // pred_fallthru
      _
    // Predicated region
    $region142: #{xtft_forward.2} parent=1 // pred_check
      _
    $region143: #{xtft_forward.2} parent=1 // pred_check_branch
      %397 = sbr.rel (0) target = $region145
    $region144: #{xtft_forward.2} parent=1 // pred_region
      _
    $region145: #{xtft_forward.2} parent=1 // pred_fallthru
      _
    // Predicated region
    $region146: #{xtft_forward.2} parent=1 // pred_check
      _
    $region147: #{xtft_forward.2} parent=1 // pred_check_branch
      %399 = sbr.rel (0) target = $region149
    $region148: #{xtft_forward.2} parent=1 // pred_region
      _
    $region149: #{xtft_forward.2} parent=1 // pred_fallthru
      _
    // Predicated region
    $region150: #{xtft_forward.2} parent=1 // pred_check
      _
    $region151: #{xtft_forward.2} parent=1 // pred_check_branch
      %401 = sbr.rel (0) target = $region153
    $region152: #{xtft_forward.2} parent=1 // pred_region
      _
    $region153: #{xtft_forward.2} parent=1 // pred_fallthru
      _
    // Predicated region
    $region154: #{xtft_forward.2} parent=1 // pred_check
      _
    $region155: #{xtft_forward.2} parent=1 // pred_check_branch
      %403 = sbr.rel (0) target = $region157
    $region156: #{xtft_forward.2} parent=1 // pred_region
      _
    $region157: #{xtft_forward.2} parent=1 // pred_fallthru
      _
    // Predicated region
    $region158: #{xtft_forward.2} parent=1 // pred_check
      _
    $region159: #{xtft_forward.2} parent=1 // pred_check_branch
      %405 = sbr.rel (0) target = $region161
    $region160: #{xtft_forward.2} parent=1 // pred_region
      %407 = vsyncadd [#allocation36], 0
      %s409 = sshll.u32 %s79, 4
      %s410 = int_to_ptr.hbm [resolvable:$true] %s409
      %s411 = sshll.u32 [#allocation37], 4
      %s412 = int_to_ptr.vmem [resolvable:$true] %s411
      %414 = dma.hbm_to_vmem [thread:$0]  %s410, 16, %s412, [#allocation36]
    $region161: #{xtft_forward.2} parent=1 // pred_fallthru
      _
    // Predicated region
    $region162: #{xtft_forward.2} parent=1 // pred_check
      _
    $region163: #{xtft_forward.2} parent=1 // pred_check_branch
      %416 = sbr.rel (0) target = $region165
    $region164: #{xtft_forward.2} parent=1 // pred_region
      _
    $region165: #{xtft_forward.2} parent=1 // pred_fallthru
      _
    // Predicated region
    $region166: #{xtft_forward.2} parent=1 // pred_check
      _
    $region167: #{xtft_forward.2} parent=1 // pred_check_branch
      %418 = sbr.rel (0) target = $region169
    $region168: #{xtft_forward.2} parent=1 // pred_region
      %420 = vsyncadd [#allocation39], 0
      %s422 = sshll.u32 %s83, 4
      %s423 = int_to_ptr.hbm [resolvable:$true] %s422
      %s424 = sshll.u32 [#allocation38], 4
      %s425 = int_to_ptr.vmem [resolvable:$true] %s424
      %427 = dma.hbm_to_vmem [thread:$0]  %s423, 16, %s425, [#allocation39]
    $region169: #{xtft_forward.2} parent=1 // pred_fallthru
      _
    // Predicated region
    $region170: #{xtft_forward.2} parent=1 // pred_check
      _
    $region171: #{xtft_forward.2} parent=1 // pred_check_branch
      %429 = sbr.rel (0) target = $region173
    $region172: #{xtft_forward.2} parent=1 // pred_region
      %431 = vsyncadd [#allocation39], 0
      %s433 = sshll.u32 %s85, 4
      %s434 = int_to_ptr.hbm [resolvable:$true] %s433
      %s435 = sshll.u32 [#allocation40], 4
      %s436 = int_to_ptr.vmem [resolvable:$true] %s435
      %438 = dma.hbm_to_vmem [thread:$0]  %s434, 64, %s436, [#allocation39]
    $region173: #{xtft_forward.2} parent=1 // pred_fallthru
      _
    // Predicated region
    $region174: #{xtft_forward.2} parent=1 // pred_check
      _
    $region175: #{xtft_forward.2} parent=1 // pred_check_branch
      %440 = sbr.rel (0) target = $region177
    $region176: #{xtft_forward.2} parent=1 // pred_region
      %442 = vsyncadd [#allocation42], 0
      %s444 = sshll.u32 %s87, 4
      %s445 = int_to_ptr.hbm [resolvable:$true] %s444
      %s446 = sshll.u32 [#allocation41], 4
      %s447 = int_to_ptr.vmem [resolvable:$true] %s446
      %449 = dma.hbm_to_vmem [thread:$0]  %s445, 16, %s447, [#allocation42]
    $region177: #{xtft_forward.2} parent=1 // pred_fallthru
      _
    // Predicated region
    $region178: #{xtft_forward.2} parent=1 // pred_check
      _
    $region179: #{xtft_forward.2} parent=1 // pred_check_branch
      %451 = sbr.rel (0) target = $region181
    $region180: #{xtft_forward.2} parent=1 // pred_region
      %453 = vsyncadd [#allocation42], 0
      %s455 = sshll.u32 %s89, 4
      %s456 = int_to_ptr.hbm [resolvable:$true] %s455
      %s457 = sshll.u32 [#allocation43], 4
      %s458 = int_to_ptr.vmem [resolvable:$true] %s457
      %460 = dma.hbm_to_vmem [thread:$0]  %s456, 64, %s458, [#allocation42]
    $region181: #{xtft_forward.2} parent=1 // pred_fallthru
      _
    // Predicated region
    $region182: #{xtft_forward.2} parent=1 // pred_check
      _
    $region183: #{xtft_forward.2} parent=1 // pred_check_branch
      %462 = sbr.rel (0) target = $region185
    $region184: #{xtft_forward.2} parent=1 // pred_region
      %464 = vsyncadd [#allocation45], 0
      %s466 = sshll.u32 %s91, 4
      %s467 = int_to_ptr.hbm [resolvable:$true] %s466
      %s468 = sshll.u32 [#allocation44], 4
      %s469 = int_to_ptr.vmem [resolvable:$true] %s468
      %471 = dma.hbm_to_vmem [thread:$0]  %s467, 16, %s469, [#allocation45]
    $region185: #{xtft_forward.2} parent=1 // pred_fallthru
      _
    // Predicated region
    $region186: #{xtft_forward.2} parent=1 // pred_check
      _
    $region187: #{xtft_forward.2} parent=1 // pred_check_branch
      %473 = sbr.rel (0) target = $region189
    $region188: #{xtft_forward.2} parent=1 // pred_region
      %475 = vsyncadd [#allocation45], 0
      %s477 = sshll.u32 %s93, 4
      %s478 = int_to_ptr.hbm [resolvable:$true] %s477
      %s479 = sshll.u32 [#allocation46], 4
      %s480 = int_to_ptr.vmem [resolvable:$true] %s479
      %482 = dma.hbm_to_vmem [thread:$0]  %s478, 16, %s480, [#allocation45]
    $region189: #{xtft_forward.2} parent=1 // pred_fallthru
      _
    // Predicated region
    $region190: #{xtft_forward.2} parent=1 // pred_check
      _
    $region191: #{xtft_forward.2} parent=1 // pred_check_branch
      %484 = sbr.rel (0) target = $region193
    $region192: #{xtft_forward.2} parent=1 // pred_region
      %486 = vsyncadd [#allocation48], 0
      %s488 = sshll.u32 %s95, 4
      %s489 = int_to_ptr.hbm [resolvable:$true] %s488
      %s490 = sshll.u32 [#allocation47], 4
      %s491 = int_to_ptr.vmem [resolvable:$true] %s490
      %493 = dma.hbm_to_vmem [thread:$0]  %s489, 16, %s491, [#allocation48]
    $region193: #{xtft_forward.2} parent=1 // pred_fallthru
      _
    // Predicated region
    $region194: #{xtft_forward.2} parent=1 // pred_check
      _
    $region195: #{xtft_forward.2} parent=1 // pred_check_branch
      %495 = sbr.rel (0) target = $region197
    $region196: #{xtft_forward.2} parent=1 // pred_region
      %497 = dma.done [#allocation3], 16
    $region197: #{xtft_forward.2} parent=1 // pred_fallthru
      _
    // Predicated region
    $region198: #{xtft_forward.2} parent=1 // pred_check
      _
    $region199: #{xtft_forward.2} parent=1 // pred_check_branch
      %499 = sbr.rel (0) target = $region201
    $region200: #{xtft_forward.2} parent=1 // pred_region
      %501 = dma.done [#allocation6], 32
    $region201: #{xtft_forward.2} parent=1 // pred_fallthru
      _
    // Predicated region
    $region202: #{xtft_forward.2} parent=1 // pred_check
      _
    $region203: #{xtft_forward.2} parent=1 // pred_check_branch
      %503 = sbr.rel (0) target = $region205
    $region204: #{xtft_forward.2} parent=1 // pred_region
      %505 = dma.done [#allocation6], 7680
    $region205: #{xtft_forward.2} parent=1 // pred_fallthru
      _
    // Predicated region
    $region206: #{xtft_forward.2} parent=1 // pred_check
      _
    $region207: #{xtft_forward.2} parent=1 // pred_check_branch
      %507 = sbr.rel (0) target = $region209
    $region208: #{xtft_forward.2} parent=1 // pred_region
      %509 = dma.done [#allocation9], 48
    $region209: #{xtft_forward.2} parent=1 // pred_fallthru
      _
    // Predicated region
    $region210: #{xtft_forward.2} parent=1 // pred_check
      _
    $region211: #{xtft_forward.2} parent=1 // pred_check_branch
      %511 = sbr.rel (0) target = $region213
    $region212: #{xtft_forward.2} parent=1 // pred_region
      %513 = dma.done [#allocation9], 32
    $region213: #{xtft_forward.2} parent=1 // pred_fallthru
      _
    // Predicated region
    $region214: #{xtft_forward.2} parent=1 // pred_check
      _
    $region215: #{xtft_forward.2} parent=1 // pred_check_branch
      %515 = sbr.rel (0) target = $region217
    $region216: #{xtft_forward.2} parent=1 // pred_region
      %517 = dma.done [#allocation12], 32
    $region217: #{xtft_forward.2} parent=1 // pred_fallthru
      _
    // Predicated region
    $region218: #{xtft_forward.2} parent=1 // pred_check
      _
    $region219: #{xtft_forward.2} parent=1 // pred_check_branch
      %519 = sbr.rel (0) target = $region221
    $region220: #{xtft_forward.2} parent=1 // pred_region
      %521 = dma.done [#allocation12], 32
    $region221: #{xtft_forward.2} parent=1 // pred_fallthru
      _
    // Predicated region
    $region222: #{xtft_forward.2} parent=1 // pred_check
      _
    $region223: #{xtft_forward.2} parent=1 // pred_check_branch
      %523 = sbr.rel (0) target = $region225
    $region224: #{xtft_forward.2} parent=1 // pred_region
      %525 = dma.done [#allocation15], 128
    $region225: #{xtft_forward.2} parent=1 // pred_fallthru
      _
    // Predicated region
    $region226: #{xtft_forward.2} parent=1 // pred_check
      _
    $region227: #{xtft_forward.2} parent=1 // pred_check_branch
      %527 = sbr.rel (0) target = $region229
    $region228: #{xtft_forward.2} parent=1 // pred_region
      %529 = dma.done [#allocation15], 16
    $region229: #{xtft_forward.2} parent=1 // pred_fallthru
      _
    // Predicated region
    $region230: #{xtft_forward.2} parent=1 // pred_check
      _
    $region231: #{xtft_forward.2} parent=1 // pred_check_branch
      %531 = sbr.rel (0) target = $region233
    $region232: #{xtft_forward.2} parent=1 // pred_region
      %533 = dma.done [#allocation18], 16
    $region233: #{xtft_forward.2} parent=1 // pred_fallthru
      _
    // Predicated region
    $region234: #{xtft_forward.2} parent=1 // pred_check
      _
    $region235: #{xtft_forward.2} parent=1 // pred_check_branch
      %535 = sbr.rel (0) target = $region237
    $region236: #{xtft_forward.2} parent=1 // pred_region
      %537 = dma.done [#allocation18], 128
    $region237: #{xtft_forward.2} parent=1 // pred_fallthru
      _
    // Predicated region
    $region238: #{xtft_forward.2} parent=1 // pred_check
      _
    $region239: #{xtft_forward.2} parent=1 // pred_check_branch
      %539 = sbr.rel (0) target = $region241
    $region240: #{xtft_forward.2} parent=1 // pred_region
      %541 = dma.done [#allocation21], 16
    $region241: #{xtft_forward.2} parent=1 // pred_fallthru
      _
    // Predicated region
    $region242: #{xtft_forward.2} parent=1 // pred_check
      _
    $region243: #{xtft_forward.2} parent=1 // pred_check_branch
      %543 = sbr.rel (0) target = $region245
    $region244: #{xtft_forward.2} parent=1 // pred_region
      %545 = dma.done [#allocation21], 128
    $region245: #{xtft_forward.2} parent=1 // pred_fallthru
      _
    // Predicated region
    $region246: #{xtft_forward.2} parent=1 // pred_check
      _
    $region247: #{xtft_forward.2} parent=1 // pred_check_branch
      %547 = sbr.rel (0) target = $region249
    $region248: #{xtft_forward.2} parent=1 // pred_region
      %549 = dma.done [#allocation24], 16
    $region249: #{xtft_forward.2} parent=1 // pred_fallthru
      _
    // Predicated region
    $region250: #{xtft_forward.2} parent=1 // pred_check
      _
    $region251: #{xtft_forward.2} parent=1 // pred_check_branch
      %551 = sbr.rel (0) target = $region253
    $region252: #{xtft_forward.2} parent=1 // pred_region
      %553 = dma.done [#allocation24], 16
    $region253: #{xtft_forward.2} parent=1 // pred_fallthru
      _
    // Predicated region
    $region254: #{xtft_forward.2} parent=1 // pred_check
      _
    $region255: #{xtft_forward.2} parent=1 // pred_check_branch
      %555 = sbr.rel (0) target = $region257
    $region256: #{xtft_forward.2} parent=1 // pred_region
      %557 = dma.done [#allocation27], 16
    $region257: #{xtft_forward.2} parent=1 // pred_fallthru
      _
    // Predicated region
    $region258: #{xtft_forward.2} parent=1 // pred_check
      _
    $region259: #{xtft_forward.2} parent=1 // pred_check_branch
      %559 = sbr.rel (0) target = $region261
    $region260: #{xtft_forward.2} parent=1 // pred_region
      %561 = dma.done [#allocation27], 16
    $region261: #{xtft_forward.2} parent=1 // pred_fallthru
      _
    // Predicated region
    $region262: #{xtft_forward.2} parent=1 // pred_check
      _
    $region263: #{xtft_forward.2} parent=1 // pred_check_branch
      %563 = sbr.rel (0) target = $region265
    $region264: #{xtft_forward.2} parent=1 // pred_region
      %565 = dma.done [#allocation30], 16
    $region265: #{xtft_forward.2} parent=1 // pred_fallthru
      _
    // Predicated region
    $region266: #{xtft_forward.2} parent=1 // pred_check
      _
    $region267: #{xtft_forward.2} parent=1 // pred_check_branch
      %567 = sbr.rel (0) target = $region269
    $region268: #{xtft_forward.2} parent=1 // pred_region
      %569 = dma.done [#allocation30], 32
    $region269: #{xtft_forward.2} parent=1 // pred_fallthru
      _
    // Predicated region
    $region270: #{xtft_forward.2} parent=1 // pred_check
      _
    $region271: #{xtft_forward.2} parent=1 // pred_check_branch
      %571 = sbr.rel (0) target = $region273
    $region272: #{xtft_forward.2} parent=1 // pred_region
      %573 = dma.done [#allocation33], 16
    $region273: #{xtft_forward.2} parent=1 // pred_fallthru
      _
    // Predicated region
    $region274: #{xtft_forward.2} parent=1 // pred_check
      _
    $region275: #{xtft_forward.2} parent=1 // pred_check_branch
      %575 = sbr.rel (0) target = $region277
    $region276: #{xtft_forward.2} parent=1 // pred_region
      %577 = dma.done [#allocation33], 16
    $region277: #{xtft_forward.2} parent=1 // pred_fallthru
      _
    // Predicated region
    $region278: #{xtft_forward.2} parent=1 // pred_check
      _
    $region279: #{xtft_forward.2} parent=1 // pred_check_branch
      %579 = sbr.rel (0) target = $region281
    $region280: #{xtft_forward.2} parent=1 // pred_region
      %581 = dma.done [#allocation36], 16
    $region281: #{xtft_forward.2} parent=1 // pred_fallthru
      _
    // Predicated region
    $region282: #{xtft_forward.2} parent=1 // pred_check
      _
    $region283: #{xtft_forward.2} parent=1 // pred_check_branch
      %583 = sbr.rel (0) target = $region285
    $region284: #{xtft_forward.2} parent=1 // pred_region
      %585 = dma.done [#allocation36], 16
    $region285: #{xtft_forward.2} parent=1 // pred_fallthru
      _
    // Predicated region
    $region286: #{xtft_forward.2} parent=1 // pred_check
      _
    $region287: #{xtft_forward.2} parent=1 // pred_check_branch
      %587 = sbr.rel (0) target = $region289
    $region288: #{xtft_forward.2} parent=1 // pred_region
      %589 = dma.done [#allocation39], 16
    $region289: #{xtft_forward.2} parent=1 // pred_fallthru
      _
    // Predicated region
    $region290: #{xtft_forward.2} parent=1 // pred_check
      _
    $region291: #{xtft_forward.2} parent=1 // pred_check_branch
      %591 = sbr.rel (0) target = $region293
    $region292: #{xtft_forward.2} parent=1 // pred_region
      %593 = dma.done [#allocation39], 64
    $region293: #{xtft_forward.2} parent=1 // pred_fallthru
      _
    // Predicated region
    $region294: #{xtft_forward.2} parent=1 // pred_check
      _
    $region295: #{xtft_forward.2} parent=1 // pred_check_branch
      %595 = sbr.rel (0) target = $region297
    $region296: #{xtft_forward.2} parent=1 // pred_region
      %597 = dma.done [#allocation42], 16
    $region297: #{xtft_forward.2} parent=1 // pred_fallthru
      _
    // Predicated region
    $region298: #{xtft_forward.2} parent=1 // pred_check
      _
    $region299: #{xtft_forward.2} parent=1 // pred_check_branch
      %599 = sbr.rel (0) target = $region301
    $region300: #{xtft_forward.2} parent=1 // pred_region
      %601 = dma.done [#allocation42], 64
    $region301: #{xtft_forward.2} parent=1 // pred_fallthru
      _
    // Predicated region
    $region302: #{xtft_forward.2} parent=1 // pred_check
      _
    $region303: #{xtft_forward.2} parent=1 // pred_check_branch
      %603 = sbr.rel (0) target = $region305
    $region304: #{xtft_forward.2} parent=1 // pred_region
      %605 = dma.done [#allocation45], 16
    $region305: #{xtft_forward.2} parent=1 // pred_fallthru
      _
    // Predicated region
    $region306: #{xtft_forward.2} parent=1 // pred_check
      _
    $region307: #{xtft_forward.2} parent=1 // pred_check_branch
      %607 = sbr.rel (0) target = $region309
    $region308: #{xtft_forward.2} parent=1 // pred_region
      %609 = dma.done [#allocation45], 16
    $region309: #{xtft_forward.2} parent=1 // pred_fallthru
      _
    // Predicated region
    $region310: #{xtft_forward.2} parent=1 // pred_check
      _
    $region311: #{xtft_forward.2} parent=1 // pred_check_branch
      %611 = sbr.rel (0) target = $region313
    $region312: #{xtft_forward.2} parent=1 // pred_region
      %613 = dma.done [#allocation48], 16
    $region313: #{xtft_forward.2} parent=1 // pred_fallthru
      _
    %v614 = vld [vmem:[%s1] sm:$0xff]
    %v615 = vld [vmem:[%s1 + $0x8] sm:$0xff]
    %v616 = vld [vmem:[%s5] sm:$0x1f]
    %v617 = vld [vmem:[#allocation2] sm:$0x1]
    %v619 = vperm.slane %v617, 0
    %vm621 = vcmask 39936
    %v623 = vsel %vm621, %v614, 0
    %v626 = vsel %vm621, %v615, 0
    %vm628 = vcmask 1044480
    %v630 = vsel %vm628, %v616, 0
    %632 = vmatpush.msra.mxu0 0.0
    %633 = vmatpush.msra.mxu0 0.0
    %634 = vmatpush.msra.mxu0 0.0
    %635 = vmatpush.msra.mxu0 0.0
    %636 = vmatpush.msra.mxu0 0.0
    %637 = vmatpush.msra.mxu0 0.0
    %638 = vmatpush.msra.mxu0 0.0
    %639 = vmatpush.msra.mxu0 0.0
    %640 = vmatpush.msra.mxu0 0.0
    %641 = vmatpush.msra.mxu0 0.0
    %642 = vmatpush.msra.mxu0 0.0
    %643 = vmatpush.msra.mxu0 0.0
    %644 = vmatpush.msra.mxu0 0.0
    %645 = vmatpush.msra.mxu0 0.0
    %646 = vmatpush.msra.mxu0 0.0
    %647 = vmatpush.msra.mxu0 %v630
    %648 = vmatmul.f32.gmra.mxu0 %v623
    %v649 = vpop.f32.mrf.mxu0
    %v650 = vadd.f32 %v619, %v649
    %651 = vmatmul.f32.gmra.mxu0 %v626
    %v652 = vpop.f32.mrf.mxu0
    %v653 = vadd.f32 %v619, %v652
    %654 = vdwg.mxu0
    %vm655 = vcmp.gt.f32.partialorder %v650, 0.0
    %vm656 = vcmp.gt.f32.partialorder %v653, 0.0
    %v657 = vmin.f32 %v650, 0.0
    %v658 = vmin.f32 %v653, 0.0
    %v659 = vmul.f32 %v657, 1.442695
    %v660 = vpow.pop %v659
    %v661 = vmul.f32 %v658, 1.442695
    %v662 = vpow.pop %v661
    %v663 = vsub.f32 %v660, 1.0
    %v664 = vsub.f32 %v662, 1.0
    %v665 = vsel %vm655, %v650, %v663
    %v666 = vsel %vm656, %v653, %v664
    %v667 = vld [vmem:[%s9] sm:$0xff]
    %v668 = vld [vmem:[%s9 + $0x8] sm:$0xff]
    %v669 = vld [vmem:[%s9 + $0x10] sm:$0xff]
    %v670 = vld [vmem:[%s9 + $0x18] sm:$0xff]
    %v671 = vld [vmem:[%s9 + $0x20] sm:$0xff]
    %v672 = vld [vmem:[%s9 + $0x28] sm:$0xff]
    %v673 = vld [vmem:[%s9 + $0x30] sm:$0xff]
    %v674 = vld [vmem:[%s9 + $0x38] sm:$0xff]
    %v675 = vld [vmem:[%s9 + $0x40] sm:$0xff]
    %v676 = vld [vmem:[%s9 + $0x48] sm:$0xff]
    %v677 = vld [vmem:[#allocation5] sm:$0x3]
    %v679 = vperm.slane %v677, 0
    %v680 = vperm.slane %v677, 1
    %vm683 = vcmask 326656
    %v685 = vsel %vm683, %v665, 0
    %v688 = vsel %vm683, %v666, 0
    %690 = vmatpush.msra.mxu0 0.0
    %691 = vmatpush.msra.mxu0 0.0
    %692 = vmatpush.msra.mxu0 0.0
    %693 = vmatpush.msra.mxu0 0.0
    %694 = vmatpush.msra.mxu0 0.0
    %695 = vmatpush.msra.mxu0 0.0
    %696 = vmatpush.msra.mxu0 0.0
    %697 = vmatpush.msra.mxu0 0.0
    %698 = vmatpush.msra.mxu0 0.0
    %699 = vmatpush.msra.mxu0 0.0
    %700 = vmatpush.msra.mxu0 0.0
    %701 = vmatpush.msra.mxu0 %v675
    %702 = vmatpush.msra.mxu0 %v673
    %703 = vmatpush.msra.mxu0 %v671
    %704 = vmatpush.msra.mxu0 %v669
    %705 = vmatpush.msra.mxu0 %v667
    %706 = vmatmul.f32.gmra.mxu0 %v685
    %v707 = vpop.f32.mrf.mxu0
    %v708 = vadd.f32 %v679, %v707
    %709 = vmatmul.f32.gmra.mxu0 %v688
    %v710 = vpop.f32.mrf.mxu0
    %v711 = vadd.f32 %v679, %v710
    %712 = vdwg.mxu0
    %713 = vmatpush.msra.mxu0 0.0
    %714 = vmatpush.msra.mxu0 0.0
    %715 = vmatpush.msra.mxu0 0.0
    %716 = vmatpush.msra.mxu0 0.0
    %717 = vmatpush.msra.mxu0 0.0
    %718 = vmatpush.msra.mxu0 0.0
    %719 = vmatpush.msra.mxu0 0.0
    %720 = vmatpush.msra.mxu0 0.0
    %721 = vmatpush.msra.mxu0 0.0
    %722 = vmatpush.msra.mxu0 0.0
    %723 = vmatpush.msra.mxu0 0.0
    %724 = vmatpush.msra.mxu0 %v676
    %725 = vmatpush.msra.mxu0 %v674
    %726 = vmatpush.msra.mxu0 %v672
    %727 = vmatpush.msra.mxu0 %v670
    %728 = vmatpush.msra.mxu0 %v668
    %729 = vmatmul.f32.gmra.mxu0 %v685
    %v730 = vpop.f32.mrf.mxu0
    %v731 = vadd.f32 %v680, %v730
    %732 = vmatmul.f32.gmra.mxu0 %v688
    %v733 = vpop.f32.mrf.mxu0
    %v734 = vadd.f32 %v680, %v733
    %735 = vdwg.mxu0
    %v736 = vld [vmem:[#allocation7] sm:$0xff]
    %v737 = vld [vmem:[#allocation7 + $0x8] sm:$0xff]
    %v738 = vld [vmem:[#allocation7 + $0x10] sm:$0xff]
    %v739 = vld [vmem:[#allocation7 + $0x18] sm:$0xff]
    %v740 = vld [vmem:[#allocation7 + $0x20] sm:$0xff]
    %v741 = vld [vmem:[#allocation7 + $0x28] sm:$0xff]
    %v742 = vld [vmem:[#allocation7 + $0x30] sm:$0xff]
    %v743 = vld [vmem:[#allocation7 + $0x38] sm:$0xff]
    %v744 = vld [vmem:[#allocation7 + $0x40] sm:$0xff]
    %v745 = vld [vmem:[#allocation7 + $0x48] sm:$0xff]
    %v746 = vld [vmem:[#allocation7 + $0x50] sm:$0xff]
    %v747 = vld [vmem:[#allocation7 + $0x58] sm:$0xff]
    %v748 = vld [vmem:[#allocation7 + $0x60] sm:$0xff]
    %v749 = vld [vmem:[#allocation7 + $0x68] sm:$0xff]
    %v750 = vld [vmem:[#allocation7 + $0x70] sm:$0xff]
    %v751 = vld [vmem:[#allocation7 + $0x78] sm:$0xff]
    %v752 = vld [vmem:[#allocation7 + $0x80] sm:$0xff]
    %v753 = vld [vmem:[#allocation7 + $0x88] sm:$0xff]
    %v754 = vld [vmem:[#allocation7 + $0x90] sm:$0xff]
    %v755 = vld [vmem:[#allocation7 + $0x98] sm:$0xff]
    %v756 = vld [vmem:[#allocation7 + $0xa0] sm:$0xff]
    %v757 = vld [vmem:[#allocation7 + $0xa8] sm:$0xff]
    %v758 = vld [vmem:[#allocation7 + $0xb0] sm:$0xff]
    %v759 = vld [vmem:[#allocation7 + $0xb8] sm:$0xff]
    %v760 = vld [vmem:[#allocation7 + $0xc0] sm:$0xff]
    %v761 = vld [vmem:[#allocation7 + $0xc8] sm:$0xff]
    %v762 = vld [vmem:[#allocation7 + $0xd0] sm:$0xff]
    %v763 = vld [vmem:[#allocation7 + $0xd8] sm:$0xff]
    %v764 = vld [vmem:[#allocation7 + $0xe0] sm:$0xff]
    %v765 = vld [vmem:[#allocation7 + $0xe8] sm:$0xff]
    %v766 = vld [vmem:[#allocation7 + $0xf0] sm:$0xff]
    %v767 = vld [vmem:[#allocation7 + $0xf8] sm:$0xff]
    %v768 = vld [vmem:[#allocation7 + $0x100] sm:$0xff]
    %v769 = vld [vmem:[#allocation7 + $0x108] sm:$0xff]
    %v770 = vld [vmem:[#allocation7 + $0x110] sm:$0xff]
    %v771 = vld [vmem:[#allocation7 + $0x118] sm:$0xff]
    %v772 = vld [vmem:[#allocation7 + $0x120] sm:$0xff]
    %v773 = vld [vmem:[#allocation7 + $0x128] sm:$0xff]
    %v774 = vld [vmem:[#allocation7 + $0x130] sm:$0xff]
    %v775 = vld [vmem:[#allocation7 + $0x138] sm:$0xff]
    %v776 = vld [vmem:[#allocation7 + $0x140] sm:$0xff]
    %v777 = vld [vmem:[#allocation7 + $0x148] sm:$0xff]
    %v778 = vld [vmem:[#allocation7 + $0x150] sm:$0xff]
    %v779 = vld [vmem:[#allocation7 + $0x158] sm:$0xff]
    %v780 = vld [vmem:[#allocation7 + $0x160] sm:$0xff]
    %v781 = vld [vmem:[#allocation7 + $0x168] sm:$0xff]
    %v782 = vld [vmem:[#allocation7 + $0x170] sm:$0xff]
    %v783 = vld [vmem:[#allocation7 + $0x178] sm:$0xff]
    %v784 = vld [vmem:[#allocation7 + $0x180] sm:$0xff]
    %v785 = vld [vmem:[#allocation7 + $0x188] sm:$0xff]
    %v786 = vld [vmem:[#allocation7 + $0x190] sm:$0xff]
    %v787 = vld [vmem:[#allocation7 + $0x198] sm:$0xff]
    %v788 = vld [vmem:[#allocation7 + $0x1a0] sm:$0xff]
    %v789 = vld [vmem:[#allocation7 + $0x1a8] sm:$0xff]
    %v790 = vld [vmem:[#allocation7 + $0x1b0] sm:$0xff]
    %v791 = vld [vmem:[#allocation7 + $0x1b8] sm:$0xff]
    %v792 = vld [vmem:[#allocation7 + $0x1c0] sm:$0xff]
    %v793 = vld [vmem:[#allocation7 + $0x1c8] sm:$0xff]
    %v794 = vld [vmem:[#allocation7 + $0x1d0] sm:$0xff]
    %v795 = vld [vmem:[#allocation7 + $0x1d8] sm:$0xff]
    %v796 = vld [vmem:[#allocation8] sm:$0x7]
    %v798 = vperm.slane %v796, 0
    %v799 = vperm.slane %v796, 1
    %v800 = vperm.slane %v796, 2
    %vm804 = vcmask 261120
    %v806 = vsel %vm804, %v731, 0
    %v809 = vsel %vm804, %v734, 0
    %811 = vmatpush.msra.mxu0 %v781
    %812 = vmatpush.msra.mxu0 %v778
    %813 = vmatpush.msra.mxu0 %v775
    %814 = vmatpush.msra.mxu0 %v772
    %815 = vmatpush.msra.mxu0 %v769
    %816 = vmatpush.msra.mxu0 %v766
    %817 = vmatpush.msra.mxu0 %v763
    %818 = vmatpush.msra.mxu0 %v760
    %819 = vmatpush.msra.mxu0 %v757
    %820 = vmatpush.msra.mxu0 %v754
    %821 = vmatpush.msra.mxu0 %v751
    %822 = vmatpush.msra.mxu0 %v748
    %823 = vmatpush.msra.mxu0 %v745
    %824 = vmatpush.msra.mxu0 %v742
    %825 = vmatpush.msra.mxu0 %v739
    %826 = vmatpush.msra.mxu0 %v736
    %827 = vmatmul.f32.gmra.mxu0 %v708
    %v828 = vpop.f32.mrf.mxu0
    %v829 = vadd.f32 %v798, %v828
    %830 = vmatmul.f32.gmra.mxu0 %v711
    %v831 = vpop.f32.mrf.mxu0
    %v832 = vadd.f32 %v798, %v831
    %833 = vdwg.mxu0
    %834 = vmatpush.msra.mxu0 0.0
    %835 = vmatpush.msra.mxu0 0.0
    %836 = vmatpush.msra.mxu0 0.0
    %837 = vmatpush.msra.mxu0 0.0
    %838 = vmatpush.msra.mxu0 0.0
    %839 = vmatpush.msra.mxu0 0.0
    %840 = vmatpush.msra.mxu0 0.0
    %841 = vmatpush.msra.mxu0 0.0
    %842 = vmatpush.msra.mxu0 0.0
    %843 = vmatpush.msra.mxu0 0.0
    %844 = vmatpush.msra.mxu0 0.0
    %845 = vmatpush.msra.mxu0 0.0
    %846 = vmatpush.msra.mxu0 %v793
    %847 = vmatpush.msra.mxu0 %v790
    %848 = vmatpush.msra.mxu0 %v787
    %849 = vmatpush.msra.mxu0 %v784
    %850 = vmatmul.f32.gmra.mxu0 %v806
    %v851 = vpop.f32.mrf.mxu0
    %v852 = vadd.f32 %v829, %v851
    %853 = vmatmul.f32.gmra.mxu0 %v809
    %v854 = vpop.f32.mrf.mxu0
    %v855 = vadd.f32 %v832, %v854
    %856 = vdwg.mxu0
    %857 = vmatpush.msra.mxu0 %v782
    %858 = vmatpush.msra.mxu0 %v779
    %859 = vmatpush.msra.mxu0 %v776
    %860 = vmatpush.msra.mxu0 %v773
    %861 = vmatpush.msra.mxu0 %v770
    %862 = vmatpush.msra.mxu0 %v767
    %863 = vmatpush.msra.mxu0 %v764
    %864 = vmatpush.msra.mxu0 %v761
    %865 = vmatpush.msra.mxu0 %v758
    %866 = vmatpush.msra.mxu0 %v755
    %867 = vmatpush.msra.mxu0 %v752
    %868 = vmatpush.msra.mxu0 %v749
    %869 = vmatpush.msra.mxu0 %v746
    %870 = vmatpush.msra.mxu0 %v743
    %871 = vmatpush.msra.mxu0 %v740
    %872 = vmatpush.msra.mxu0 %v737
    %873 = vmatmul.f32.gmra.mxu0 %v708
    %v874 = vpop.f32.mrf.mxu0
    %v875 = vadd.f32 %v799, %v874
    %876 = vmatmul.f32.gmra.mxu0 %v711
    %v877 = vpop.f32.mrf.mxu0
    %v878 = vadd.f32 %v799, %v877
    %879 = vdwg.mxu0
    %880 = vmatpush.msra.mxu0 0.0
    %881 = vmatpush.msra.mxu0 0.0
    %882 = vmatpush.msra.mxu0 0.0
    %883 = vmatpush.msra.mxu0 0.0
    %884 = vmatpush.msra.mxu0 0.0
    %885 = vmatpush.msra.mxu0 0.0
    %886 = vmatpush.msra.mxu0 0.0
    %887 = vmatpush.msra.mxu0 0.0
    %888 = vmatpush.msra.mxu0 0.0
    %889 = vmatpush.msra.mxu0 0.0
    %890 = vmatpush.msra.mxu0 0.0
    %891 = vmatpush.msra.mxu0 0.0
    %892 = vmatpush.msra.mxu0 %v794
    %893 = vmatpush.msra.mxu0 %v791
    %894 = vmatpush.msra.mxu0 %v788
    %895 = vmatpush.msra.mxu0 %v785
    %896 = vmatmul.f32.gmra.mxu0 %v806
    %v897 = vpop.f32.mrf.mxu0
    %v898 = vadd.f32 %v875, %v897
    %899 = vmatmul.f32.gmra.mxu0 %v809
    %v900 = vpop.f32.mrf.mxu0
    %v901 = vadd.f32 %v878, %v900
    %902 = vdwg.mxu0
    %903 = vmatpush.msra.mxu0 %v783
    %904 = vmatpush.msra.mxu0 %v780
    %905 = vmatpush.msra.mxu0 %v777
    %906 = vmatpush.msra.mxu0 %v774
    %907 = vmatpush.msra.mxu0 %v771
    %908 = vmatpush.msra.mxu0 %v768
    %909 = vmatpush.msra.mxu0 %v765
    %910 = vmatpush.msra.mxu0 %v762
    %911 = vmatpush.msra.mxu0 %v759
    %912 = vmatpush.msra.mxu0 %v756
    %913 = vmatpush.msra.mxu0 %v753
    %914 = vmatpush.msra.mxu0 %v750
    %915 = vmatpush.msra.mxu0 %v747
    %916 = vmatpush.msra.mxu0 %v744
    %917 = vmatpush.msra.mxu0 %v741
    %918 = vmatpush.msra.mxu0 %v738
    %919 = vmatmul.f32.gmra.mxu0 %v708
    %v920 = vpop.f32.mrf.mxu0
    %v921 = vadd.f32 %v800, %v920
    %922 = vmatmul.f32.gmra.mxu0 %v711
    %v923 = vpop.f32.mrf.mxu0
    %v924 = vadd.f32 %v800, %v923
    %925 = vdwg.mxu0
    %926 = vmatpush.msra.mxu0 0.0
    %927 = vmatpush.msra.mxu0 0.0
    %928 = vmatpush.msra.mxu0 0.0
    %929 = vmatpush.msra.mxu0 0.0
    %930 = vmatpush.msra.mxu0 0.0
    %931 = vmatpush.msra.mxu0 0.0
    %932 = vmatpush.msra.mxu0 0.0
    %933 = vmatpush.msra.mxu0 0.0
    %934 = vmatpush.msra.mxu0 0.0
    %935 = vmatpush.msra.mxu0 0.0
    %936 = vmatpush.msra.mxu0 0.0
    %937 = vmatpush.msra.mxu0 0.0
    %938 = vmatpush.msra.mxu0 %v795
    %939 = vmatpush.msra.mxu0 %v792
    %940 = vmatpush.msra.mxu0 %v789
    %941 = vmatpush.msra.mxu0 %v786
    %942 = vmatmul.f32.gmra.mxu0 %v806
    %v943 = vpop.f32.mrf.mxu0
    %v944 = vadd.f32 %v921, %v943
    %945 = vmatmul.f32.gmra.mxu0 %v809
    %v946 = vpop.f32.mrf.mxu0
    %v947 = vadd.f32 %v924, %v946
    %948 = vdwg.mxu0
    %v949 = vxor.u32 %v898, 2147483648
    %v950 = vxor.u32 %v944, 2147483648
    %v951 = vxor.u32 %v901, 2147483648
    %v952 = vxor.u32 %v947, 2147483648
    %v953 = vmul.f32 %v949, 1.442695
    %v954 = vpow.pop %v953
    %v955 = vmul.f32 %v950, 1.442695
    %v956 = vpow.pop %v955
    %v957 = vmul.f32 %v951, 1.442695
    %v958 = vpow.pop %v957
    %v959 = vmul.f32 %v952, 1.442695
    %v960 = vpow.pop %v959
    %v961 = vadd.f32 %v954, 1.0
    %v962 = vadd.f32 %v956, 1.0
    %v963 = vadd.f32 %v958, 1.0
    %v964 = vadd.f32 %v960, 1.0
    %v965 = vrcp.pop %v961
    %v966 = vmul.f32 %v961, %v965
    %v967 = vsub.f32 1.0, %v966
    %v968 = vmul.f32 %v965, %v967
    %v969 = vadd.f32 %v965, %v968
    %vm970 = vweird.f32 %v961
    %vm971 = vweird.f32 %v965
    %vm972 = vmor %vm970, %vm971
    %v973 = vsel %vm972, %v965, %v969
    %v974 = vand.u32 2147483647, %v961
    %vm975 = vcmp.eq.f32.partialorder %v974, 8.507059e+37
    %v976 = vand.u32 %v961, 2147483648
    %v977 = vor.u32 1.1754944e-38, %v976
    %v978 = vsel %vm975, %v977, %v973
    %v979 = vmul.f32 1.0, %v978
    %v980 = vrcp.pop %v962
    %v981 = vmul.f32 %v962, %v980
    %v982 = vsub.f32 1.0, %v981
    %v983 = vmul.f32 %v980, %v982
    %v984 = vadd.f32 %v980, %v983
    %vm985 = vweird.f32 %v962
    %vm986 = vweird.f32 %v980
    %vm987 = vmor %vm985, %vm986
    %v988 = vsel %vm987, %v980, %v984
    %v989 = vand.u32 2147483647, %v962
    %vm990 = vcmp.eq.f32.partialorder %v989, 8.507059e+37
    %v991 = vand.u32 %v962, 2147483648
    %v992 = vor.u32 1.1754944e-38, %v991
    %v993 = vsel %vm990, %v992, %v988
    %v994 = vmul.f32 1.0, %v993
    %v995 = vrcp.pop %v963
    %v996 = vmul.f32 %v963, %v995
    %v997 = vsub.f32 1.0, %v996
    %v998 = vmul.f32 %v995, %v997
    %v999 = vadd.f32 %v995, %v998
    %vm1000 = vweird.f32 %v963
    %vm1001 = vweird.f32 %v995
    %vm1002 = vmor %vm1000, %vm1001
    %v1003 = vsel %vm1002, %v995, %v999
    %v1004 = vand.u32 2147483647, %v963
    %vm1005 = vcmp.eq.f32.partialorder %v1004, 8.507059e+37
    %v1006 = vand.u32 %v963, 2147483648
    %v1007 = vor.u32 1.1754944e-38, %v1006
    %v1008 = vsel %vm1005, %v1007, %v1003
    %v1009 = vmul.f32 1.0, %v1008
    %v1010 = vrcp.pop %v964
    %v1011 = vmul.f32 %v964, %v1010
    %v1012 = vsub.f32 1.0, %v1011
    %v1013 = vmul.f32 %v1010, %v1012
    %v1014 = vadd.f32 %v1010, %v1013
    %vm1015 = vweird.f32 %v964
    %vm1016 = vweird.f32 %v1010
    %vm1017 = vmor %vm1015, %vm1016
    %v1018 = vsel %vm1017, %v1010, %v1014
    %v1019 = vand.u32 2147483647, %v964
    %vm1020 = vcmp.eq.f32.partialorder %v1019, 8.507059e+37
    %v1021 = vand.u32 %v964, 2147483648
    %v1022 = vor.u32 1.1754944e-38, %v1021
    %v1023 = vsel %vm1020, %v1022, %v1018
    %v1024 = vmul.f32 1.0, %v1023
    %1029 = vrot.lane.b32.xlu0 %v979, 96
    %v1030 = vpop.permute.xlu0 %1029
    %1031 = vrot.lane.b32.xlu0 %v994, 96
    %v1032 = vpop.permute.xlu0 %1031
    %1033 = vrot.lane.b32.xlu0 %v1009, 96
    %v1034 = vpop.permute.xlu0 %1033
    %1035 = vrot.lane.b32.xlu0 %v1024, 96
    %v1036 = vpop.permute.xlu0 %1035
    %vm1037 = vcmask 785408
    %v1038 = vsel %vm1037, %v1030, %v1032
    %v1039 = vsel %vm1037, %v1034, %v1036
    %v1044 = vmul.f32 %v852, %v1038
    %v1045 = vmul.f32 %v898, %v1032
    %v1046 = vmul.f32 %v855, %v1039
    %v1047 = vmul.f32 %v901, %v1036
    %v1048 = vld [vmem:[%s17] sm:$0x1f]
    %v1049 = vld [vmem:[%s17 + $0x8] sm:$0x1f]
    %v1051 = vsel %vm628, %v1048, 0
    %v1054 = vsel %vm628, %v1049, 0
    %1056 = vmatpush.msra.mxu0 0.0
    %1057 = vmatpush.msra.mxu0 0.0
    %1058 = vmatpush.msra.mxu0 0.0
    %1059 = vmatpush.msra.mxu0 0.0
    %1060 = vmatpush.msra.mxu0 0.0
    %1061 = vmatpush.msra.mxu0 0.0
    %1062 = vmatpush.msra.mxu0 0.0
    %1063 = vmatpush.msra.mxu0 0.0
    %1064 = vmatpush.msra.mxu0 0.0
    %1065 = vmatpush.msra.mxu0 0.0
    %1066 = vmatpush.msra.mxu0 0.0
    %1067 = vmatpush.msra.mxu0 0.0
    %1068 = vmatpush.msra.mxu0 0.0
    %1069 = vmatpush.msra.mxu0 0.0
    %1070 = vmatpush.msra.mxu0 0.0
    %1071 = vmatpush.msra.mxu0 %v1051
    %1072 = vmatmul.f32.gmra.mxu0 %v623
    %v1073 = vpop.f32.mrf.mxu0
    %v1074 = vadd.f32 0.0, %v1073
    %1075 = vmatmul.f32.gmra.mxu0 %v626
    %v1076 = vpop.f32.mrf.mxu0
    %v1077 = vadd.f32 0.0, %v1076
    %1078 = vdwg.mxu0
    %1079 = vmatpush.msra.mxu0 0.0
    %1080 = vmatpush.msra.mxu0 0.0
    %1081 = vmatpush.msra.mxu0 0.0
    %1082 = vmatpush.msra.mxu0 0.0
    %1083 = vmatpush.msra.mxu0 0.0
    %1084 = vmatpush.msra.mxu0 0.0
    %1085 = vmatpush.msra.mxu0 0.0
    %1086 = vmatpush.msra.mxu0 0.0
    %1087 = vmatpush.msra.mxu0 0.0
    %1088 = vmatpush.msra.mxu0 0.0
    %1089 = vmatpush.msra.mxu0 0.0
    %1090 = vmatpush.msra.mxu0 0.0
    %1091 = vmatpush.msra.mxu0 0.0
    %1092 = vmatpush.msra.mxu0 0.0
    %1093 = vmatpush.msra.mxu0 0.0
    %1094 = vmatpush.msra.mxu0 %v1054
    %1095 = vmatmul.f32.gmra.mxu0 %v623
    %v1096 = vpop.f32.mrf.mxu0
    %v1097 = vadd.f32 0.0, %v1096
    %1098 = vmatmul.f32.gmra.mxu0 %v626
    %v1099 = vpop.f32.mrf.mxu0
    %v1100 = vadd.f32 0.0, %v1099
    %1101 = vdwg.mxu0
    %v1102 = vadd.f32 %v1044, %v1074
    %v1103 = vadd.f32 %v1045, %v1097
    %v1104 = vadd.f32 %v1046, %v1077
    %v1105 = vadd.f32 %v1047, %v1100
    %v1106 = vld [vmem:[#allocation10] sm:$0x3]
    %v1108 = vperm.slane %v1106, 0
    %v1109 = vperm.slane %v1106, 1
    %v1112 = vadd.f32 %v1102, %v1108
    %v1113 = vadd.f32 %v1103, %v1109
    %v1114 = vadd.f32 %v1104, %v1108
    %v1115 = vadd.f32 %v1105, %v1109
    %v1116 = vld [vmem:[%s25] sm:$0xff]
    %v1117 = vld [vmem:[%s25 + $0x8] sm:$0xff]
    %v1118 = vld [vmem:[%s25 + $0x10] sm:$0xff]
    %v1119 = vld [vmem:[%s25 + $0x18] sm:$0xff]
    %v1120 = vld [vmem:[%s25 + $0x20] sm:$0xff]
    %v1121 = vld [vmem:[%s25 + $0x28] sm:$0xff]
    %v1122 = vld [vmem:[%s25 + $0x30] sm:$0xff]
    %v1123 = vld [vmem:[%s25 + $0x38] sm:$0xff]
    %v1124 = vld [vmem:[%s25 + $0x40] sm:$0xff]
    %v1125 = vld [vmem:[%s25 + $0x48] sm:$0xff]
    %v1126 = vld [vmem:[%s25 + $0x50] sm:$0xff]
    %v1127 = vld [vmem:[%s25 + $0x58] sm:$0xff]
    %v1128 = vld [vmem:[%s25 + $0x60] sm:$0xff]
    %v1129 = vld [vmem:[%s25 + $0x68] sm:$0xff]
    %v1130 = vld [vmem:[%s25 + $0x70] sm:$0xff]
    %v1131 = vld [vmem:[%s25 + $0x78] sm:$0xff]
    %v1132 = vld [vmem:[%s25 + $0x80] sm:$0xff]
    %v1133 = vld [vmem:[%s25 + $0x88] sm:$0xff]
    %v1134 = vld [vmem:[%s25 + $0x90] sm:$0xff]
    %v1135 = vld [vmem:[%s25 + $0x98] sm:$0xff]
    %v1137 = vsel %vm804, %v1113, 0
    %v1140 = vsel %vm804, %v1115, 0
    %1142 = vmatpush.msra.mxu0 %v1131
    %1143 = vmatpush.msra.mxu0 %v1130
    %1144 = vmatpush.msra.mxu0 %v1129
    %1145 = vmatpush.msra.mxu0 %v1128
    %1146 = vmatpush.msra.mxu0 %v1127
    %1147 = vmatpush.msra.mxu0 %v1126
    %1148 = vmatpush.msra.mxu0 %v1125
    %1149 = vmatpush.msra.mxu0 %v1124
    %1150 = vmatpush.msra.mxu0 %v1123
    %1151 = vmatpush.msra.mxu0 %v1122
    %1152 = vmatpush.msra.mxu0 %v1121
    %1153 = vmatpush.msra.mxu0 %v1120
    %1154 = vmatpush.msra.mxu0 %v1119
    %1155 = vmatpush.msra.mxu0 %v1118
    %1156 = vmatpush.msra.mxu0 %v1117
    %1157 = vmatpush.msra.mxu0 %v1116
    %1158 = vmatmul.f32.gmra.mxu0 %v1112
    %v1159 = vpop.f32.mrf.mxu0
    %v1160 = vadd.f32 0.0, %v1159
    %1161 = vmatmul.f32.gmra.mxu0 %v1114
    %v1162 = vpop.f32.mrf.mxu0
    %v1163 = vadd.f32 0.0, %v1162
    %1164 = vdwg.mxu0
    %1165 = vmatpush.msra.mxu0 0.0
    %1166 = vmatpush.msra.mxu0 0.0
    %1167 = vmatpush.msra.mxu0 0.0
    %1168 = vmatpush.msra.mxu0 0.0
    %1169 = vmatpush.msra.mxu0 0.0
    %1170 = vmatpush.msra.mxu0 0.0
    %1171 = vmatpush.msra.mxu0 0.0
    %1172 = vmatpush.msra.mxu0 0.0
    %1173 = vmatpush.msra.mxu0 0.0
    %1174 = vmatpush.msra.mxu0 0.0
    %1175 = vmatpush.msra.mxu0 0.0
    %1176 = vmatpush.msra.mxu0 0.0
    %1177 = vmatpush.msra.mxu0 %v1135
    %1178 = vmatpush.msra.mxu0 %v1134
    %1179 = vmatpush.msra.mxu0 %v1133
    %1180 = vmatpush.msra.mxu0 %v1132
    %1181 = vmatmul.f32.gmra.mxu0 %v1137
    %v1182 = vpop.f32.mrf.mxu0
    %v1183 = vadd.f32 %v1160, %v1182
    %1184 = vmatmul.f32.gmra.mxu0 %v1140
    %v1185 = vpop.f32.mrf.mxu0
    %v1186 = vadd.f32 %v1163, %v1185
    %1187 = vdwg.mxu0
    %v1188 = vmul.f32 %v1112, %v1112
    %v1189 = vmul.f32 %v1113, %v1113
    %v1190 = vmul.f32 %v1114, %v1114
    %v1191 = vmul.f32 %v1115, %v1115
    %v1193 = vsel %vm804, %v1189, 0
    %v1196 = vsel %vm804, %v1191, 0
    %1198 = vmatpush.msra.mxu0 %v1131
    %1199 = vmatpush.msra.mxu0 %v1130
    %1200 = vmatpush.msra.mxu0 %v1129
    %1201 = vmatpush.msra.mxu0 %v1128
    %1202 = vmatpush.msra.mxu0 %v1127
    %1203 = vmatpush.msra.mxu0 %v1126
    %1204 = vmatpush.msra.mxu0 %v1125
    %1205 = vmatpush.msra.mxu0 %v1124
    %1206 = vmatpush.msra.mxu0 %v1123
    %1207 = vmatpush.msra.mxu0 %v1122
    %1208 = vmatpush.msra.mxu0 %v1121
    %1209 = vmatpush.msra.mxu0 %v1120
    %1210 = vmatpush.msra.mxu0 %v1119
    %1211 = vmatpush.msra.mxu0 %v1118
    %1212 = vmatpush.msra.mxu0 %v1117
    %1213 = vmatpush.msra.mxu0 %v1116
    %1214 = vmatmul.f32.gmra.mxu0 %v1188
    %v1215 = vpop.f32.mrf.mxu0
    %v1216 = vadd.f32 0.0, %v1215
    %1217 = vmatmul.f32.gmra.mxu0 %v1190
    %v1218 = vpop.f32.mrf.mxu0
    %v1219 = vadd.f32 0.0, %v1218
    %1220 = vdwg.mxu0
    %1221 = vmatpush.msra.mxu0 0.0
    %1222 = vmatpush.msra.mxu0 0.0
    %1223 = vmatpush.msra.mxu0 0.0
    %1224 = vmatpush.msra.mxu0 0.0
    %1225 = vmatpush.msra.mxu0 0.0
    %1226 = vmatpush.msra.mxu0 0.0
    %1227 = vmatpush.msra.mxu0 0.0
    %1228 = vmatpush.msra.mxu0 0.0
    %1229 = vmatpush.msra.mxu0 0.0
    %1230 = vmatpush.msra.mxu0 0.0
    %1231 = vmatpush.msra.mxu0 0.0
    %1232 = vmatpush.msra.mxu0 0.0
    %1233 = vmatpush.msra.mxu0 %v1135
    %1234 = vmatpush.msra.mxu0 %v1134
    %1235 = vmatpush.msra.mxu0 %v1133
    %1236 = vmatpush.msra.mxu0 %v1132
    %1237 = vmatmul.f32.gmra.mxu0 %v1193
    %v1238 = vpop.f32.mrf.mxu0
    %v1239 = vadd.f32 %v1216, %v1238
    %1240 = vmatmul.f32.gmra.mxu0 %v1196
    %v1241 = vpop.f32.mrf.mxu0
    %v1242 = vadd.f32 %v1219, %v1241
    %1243 = vdwg.mxu0
    %v1244 = vmul.f32 %v1183, %v1183
    %v1245 = vmul.f32 %v1186, %v1186
    %v1246 = vsub.f32 %v1239, %v1244
    %v1247 = vsub.f32 %v1242, %v1245
    %v1248 = vld [vmem:[%s27] sm:$0x1f]
    %v1249 = vld [vmem:[%s27 + $0x8] sm:$0x1f]
    %v1251 = vsel %vm621, %v1183, 0
    %v1254 = vsel %vm621, %v1186, 0
    %v1257 = vsel %vm628, %v1248, 0
    %v1260 = vsel %vm628, %v1249, 0
    %1262 = vmatpush.msra.mxu0 0.0
    %1263 = vmatpush.msra.mxu0 0.0
    %1264 = vmatpush.msra.mxu0 0.0
    %1265 = vmatpush.msra.mxu0 0.0
    %1266 = vmatpush.msra.mxu0 0.0
    %1267 = vmatpush.msra.mxu0 0.0
    %1268 = vmatpush.msra.mxu0 0.0
    %1269 = vmatpush.msra.mxu0 0.0
    %1270 = vmatpush.msra.mxu0 0.0
    %1271 = vmatpush.msra.mxu0 0.0
    %1272 = vmatpush.msra.mxu0 0.0
    %1273 = vmatpush.msra.mxu0 0.0
    %1274 = vmatpush.msra.mxu0 0.0
    %1275 = vmatpush.msra.mxu0 0.0
    %1276 = vmatpush.msra.mxu0 0.0
    %1277 = vmatpush.msra.mxu0 %v1257
    %1278 = vmatmul.f32.gmra.mxu0 %v1251
    %v1279 = vpop.f32.mrf.mxu0
    %v1280 = vadd.f32 0.0, %v1279
    %1281 = vmatmul.f32.gmra.mxu0 %v1254
    %v1282 = vpop.f32.mrf.mxu0
    %v1283 = vadd.f32 0.0, %v1282
    %1284 = vdwg.mxu0
    %1285 = vmatpush.msra.mxu0 0.0
    %1286 = vmatpush.msra.mxu0 0.0
    %1287 = vmatpush.msra.mxu0 0.0
    %1288 = vmatpush.msra.mxu0 0.0
    %1289 = vmatpush.msra.mxu0 0.0
    %1290 = vmatpush.msra.mxu0 0.0
    %1291 = vmatpush.msra.mxu0 0.0
    %1292 = vmatpush.msra.mxu0 0.0
    %1293 = vmatpush.msra.mxu0 0.0
    %1294 = vmatpush.msra.mxu0 0.0
    %1295 = vmatpush.msra.mxu0 0.0
    %1296 = vmatpush.msra.mxu0 0.0
    %1297 = vmatpush.msra.mxu0 0.0
    %1298 = vmatpush.msra.mxu0 0.0
    %1299 = vmatpush.msra.mxu0 0.0
    %1300 = vmatpush.msra.mxu0 %v1260
    %1301 = vmatmul.f32.gmra.mxu0 %v1251
    %v1302 = vpop.f32.mrf.mxu0
    %v1303 = vadd.f32 0.0, %v1302
    %1304 = vmatmul.f32.gmra.mxu0 %v1254
    %v1305 = vpop.f32.mrf.mxu0
    %v1306 = vadd.f32 0.0, %v1305
    %1307 = vdwg.mxu0
    %v1308 = vsub.f32 %v1112, %v1280
    %v1309 = vsub.f32 %v1113, %v1303
    %v1310 = vsub.f32 %v1114, %v1283
    %v1311 = vsub.f32 %v1115, %v1306
    %v1313 = vsel %vm621, %v1246, 0
    %v1316 = vsel %vm621, %v1247, 0
    %1318 = vmatpush.msra.mxu0 0.0
    %1319 = vmatpush.msra.mxu0 0.0
    %1320 = vmatpush.msra.mxu0 0.0
    %1321 = vmatpush.msra.mxu0 0.0
    %1322 = vmatpush.msra.mxu0 0.0
    %1323 = vmatpush.msra.mxu0 0.0
    %1324 = vmatpush.msra.mxu0 0.0
    %1325 = vmatpush.msra.mxu0 0.0
    %1326 = vmatpush.msra.mxu0 0.0
    %1327 = vmatpush.msra.mxu0 0.0
    %1328 = vmatpush.msra.mxu0 0.0
    %1329 = vmatpush.msra.mxu0 0.0
    %1330 = vmatpush.msra.mxu0 0.0
    %1331 = vmatpush.msra.mxu0 0.0
    %1332 = vmatpush.msra.mxu0 0.0
    %1333 = vmatpush.msra.mxu0 %v1257
    %1334 = vmatmul.f32.gmra.mxu0 %v1313
    %v1335 = vpop.f32.mrf.mxu0
    %v1336 = vadd.f32 1e-05, %v1335
    %1337 = vmatmul.f32.gmra.mxu0 %v1316
    %v1338 = vpop.f32.mrf.mxu0
    %v1339 = vadd.f32 1e-05, %v1338
    %1340 = vdwg.mxu0
    %1341 = vmatpush.msra.mxu0 0.0
    %1342 = vmatpush.msra.mxu0 0.0
    %1343 = vmatpush.msra.mxu0 0.0
    %1344 = vmatpush.msra.mxu0 0.0
    %1345 = vmatpush.msra.mxu0 0.0
    %1346 = vmatpush.msra.mxu0 0.0
    %1347 = vmatpush.msra.mxu0 0.0
    %1348 = vmatpush.msra.mxu0 0.0
    %1349 = vmatpush.msra.mxu0 0.0
    %1350 = vmatpush.msra.mxu0 0.0
    %1351 = vmatpush.msra.mxu0 0.0
    %1352 = vmatpush.msra.mxu0 0.0
    %1353 = vmatpush.msra.mxu0 0.0
    %1354 = vmatpush.msra.mxu0 0.0
    %1355 = vmatpush.msra.mxu0 0.0
    %1356 = vmatpush.msra.mxu0 %v1260
    %1357 = vmatmul.f32.gmra.mxu0 %v1313
    %v1358 = vpop.f32.mrf.mxu0
    %v1359 = vadd.f32 1e-05, %v1358
    %1360 = vmatmul.f32.gmra.mxu0 %v1316
    %v1361 = vpop.f32.mrf.mxu0
    %v1362 = vadd.f32 1e-05, %v1361
    %1363 = vdwg.mxu0
    %v1364 = vrsqrt.pop %v1336
    %v1365 = vmul.f32 %v1364, %v1336
    %v1366 = vmul.f32 %v1365, %v1364
    %v1367 = vmul.f32 0.5, %v1366
    %v1368 = vsub.f32 1.5, %v1367
    %v1369 = vmul.f32 %v1364, %v1368
    %vm1370 = vweird.f32 %v1336
    %vm1371 = vweird.f32 %v1364
    %vm1372 = vmor %vm1370, %vm1371
    %v1373 = vsel %vm1372, %v1364, %v1369
    %v1374 = vrsqrt.pop %v1359
    %v1375 = vmul.f32 %v1374, %v1359
    %v1376 = vmul.f32 %v1375, %v1374
    %v1377 = vmul.f32 0.5, %v1376
    %v1378 = vsub.f32 1.5, %v1377
    %v1379 = vmul.f32 %v1374, %v1378
    %vm1380 = vweird.f32 %v1359
    %vm1381 = vweird.f32 %v1374
    %vm1382 = vmor %vm1380, %vm1381
    %v1383 = vsel %vm1382, %v1374, %v1379
    %v1384 = vrsqrt.pop %v1339
    %v1385 = vmul.f32 %v1384, %v1339
    %v1386 = vmul.f32 %v1385, %v1384
    %v1387 = vmul.f32 0.5, %v1386
    %v1388 = vsub.f32 1.5, %v1387
    %v1389 = vmul.f32 %v1384, %v1388
    %vm1390 = vweird.f32 %v1339
    %vm1391 = vweird.f32 %v1384
    %vm1392 = vmor %vm1390, %vm1391
    %v1393 = vsel %vm1392, %v1384, %v1389
    %v1394 = vrsqrt.pop %v1362
    %v1395 = vmul.f32 %v1394, %v1362
    %v1396 = vmul.f32 %v1395, %v1394
    %v1397 = vmul.f32 0.5, %v1396
    %v1398 = vsub.f32 1.5, %v1397
    %v1399 = vmul.f32 %v1394, %v1398
    %vm1400 = vweird.f32 %v1362
    %vm1401 = vweird.f32 %v1394
    %vm1402 = vmor %vm1400, %vm1401
    %v1403 = vsel %vm1402, %v1394, %v1399
    %v1404 = vmul.f32 %v1308, %v1373
    %v1405 = vmul.f32 %v1309, %v1383
    %v1406 = vmul.f32 %v1310, %v1393
    %v1407 = vmul.f32 %v1311, %v1403
    %v1408 = vld [vmem:[#allocation11] sm:$0x3]
    %v1410 = vperm.slane %v1408, 0
    %v1411 = vperm.slane %v1408, 1
    %v1414 = vmul.f32 %v1404, %v1410
    %v1415 = vmul.f32 %v1405, %v1411
    %v1416 = vmul.f32 %v1406, %v1410
    %v1417 = vmul.f32 %v1407, %v1411
    %v1418 = vld [vmem:[#allocation13] sm:$0x3]
    %v1420 = vperm.slane %v1418, 0
    %v1421 = vperm.slane %v1418, 1
    %v1424 = vadd.f32 %v1414, %v1420
    %v1425 = vadd.f32 %v1415, %v1421
    %v1426 = vadd.f32 %v1416, %v1420
    %v1427 = vadd.f32 %v1417, %v1421
    %v1428 = vld [vmem:[#allocation14] sm:$0x1f]
    %v1429 = vld [vmem:[#allocation16] sm:$0x1]
    %v1431 = vperm.slane %v1429, 0
    %v1434 = vsel %vm628, %v1428, 0
    %1436 = vmatpush.msra.mxu0 0.0
    %1437 = vmatpush.msra.mxu0 0.0
    %1438 = vmatpush.msra.mxu0 0.0
    %1439 = vmatpush.msra.mxu0 0.0
    %1440 = vmatpush.msra.mxu0 0.0
    %1441 = vmatpush.msra.mxu0 0.0
    %1442 = vmatpush.msra.mxu0 0.0
    %1443 = vmatpush.msra.mxu0 0.0
    %1444 = vmatpush.msra.mxu0 0.0
    %1445 = vmatpush.msra.mxu0 0.0
    %1446 = vmatpush.msra.mxu0 0.0
    %1447 = vmatpush.msra.mxu0 0.0
    %1448 = vmatpush.msra.mxu0 0.0
    %1449 = vmatpush.msra.mxu0 0.0
    %1450 = vmatpush.msra.mxu0 0.0
    %1451 = vmatpush.msra.mxu0 %v1434
    %1452 = vmatmul.f32.gmra.mxu0 %v623
    %v1453 = vpop.f32.mrf.mxu0
    %v1454 = vadd.f32 %v1431, %v1453
    %1455 = vmatmul.f32.gmra.mxu0 %v626
    %v1456 = vpop.f32.mrf.mxu0
    %v1457 = vadd.f32 %v1431, %v1456
    %1458 = vdwg.mxu0
    %vm1459 = vcmp.gt.f32.partialorder %v1454, 0.0
    %vm1460 = vcmp.gt.f32.partialorder %v1457, 0.0
    %v1461 = vmin.f32 %v1454, 0.0
    %v1462 = vmin.f32 %v1457, 0.0
    %v1463 = vmul.f32 %v1461, 1.442695
    %v1464 = vpow.pop %v1463
    %v1465 = vmul.f32 %v1462, 1.442695
    %v1466 = vpow.pop %v1465
    %v1467 = vsub.f32 %v1464, 1.0
    %v1468 = vsub.f32 %v1466, 1.0
    %v1469 = vsel %vm1459, %v1454, %v1467
    %v1470 = vsel %vm1460, %v1457, %v1468
    %v1471 = vld [vmem:[%s35] sm:$0xff]
    %v1472 = vld [vmem:[%s35 + $0x8] sm:$0xff]
    %v1473 = vld [vmem:[%s35 + $0x10] sm:$0xff]
    %v1474 = vld [vmem:[%s35 + $0x18] sm:$0xff]
    %v1475 = vld [vmem:[#allocation17] sm:$0x1]
    %v1477 = vperm.slane %v1475, 0
    %v1480 = vsel %vm804, %v1469, 0
    %v1483 = vsel %vm804, %v1470, 0
    %1485 = vmatpush.msra.mxu0 0.0
    %1486 = vmatpush.msra.mxu0 0.0
    %1487 = vmatpush.msra.mxu0 0.0
    %1488 = vmatpush.msra.mxu0 0.0
    %1489 = vmatpush.msra.mxu0 0.0
    %1490 = vmatpush.msra.mxu0 0.0
    %1491 = vmatpush.msra.mxu0 0.0
    %1492 = vmatpush.msra.mxu0 0.0
    %1493 = vmatpush.msra.mxu0 0.0
    %1494 = vmatpush.msra.mxu0 0.0
    %1495 = vmatpush.msra.mxu0 0.0
    %1496 = vmatpush.msra.mxu0 0.0
    %1497 = vmatpush.msra.mxu0 %v1474
    %1498 = vmatpush.msra.mxu0 %v1473
    %1499 = vmatpush.msra.mxu0 %v1472
    %1500 = vmatpush.msra.mxu0 %v1471
    %1501 = vmatmul.f32.gmra.mxu0 %v1480
    %v1502 = vpop.f32.mrf.mxu0
    %v1503 = vadd.f32 %v1477, %v1502
    %1504 = vmatmul.f32.gmra.mxu0 %v1483
    %v1505 = vpop.f32.mrf.mxu0
    %v1506 = vadd.f32 %v1477, %v1505
    %1507 = vdwg.mxu0
    %v1508 = vld [vmem:[#allocation19] sm:$0x1f]
    %v1509 = vld [vmem:[#allocation20] sm:$0x1]
    %v1511 = vperm.slane %v1509, 0
    %v1514 = vsel %vm621, %v1503, 0
    %v1517 = vsel %vm621, %v1506, 0
    %v1520 = vsel %vm628, %v1508, 0
    %1522 = vmatpush.msra.mxu0 0.0
    %1523 = vmatpush.msra.mxu0 0.0
    %1524 = vmatpush.msra.mxu0 0.0
    %1525 = vmatpush.msra.mxu0 0.0
    %1526 = vmatpush.msra.mxu0 0.0
    %1527 = vmatpush.msra.mxu0 0.0
    %1528 = vmatpush.msra.mxu0 0.0
    %1529 = vmatpush.msra.mxu0 0.0
    %1530 = vmatpush.msra.mxu0 0.0
    %1531 = vmatpush.msra.mxu0 0.0
    %1532 = vmatpush.msra.mxu0 0.0
    %1533 = vmatpush.msra.mxu0 0.0
    %1534 = vmatpush.msra.mxu0 0.0
    %1535 = vmatpush.msra.mxu0 0.0
    %1536 = vmatpush.msra.mxu0 0.0
    %1537 = vmatpush.msra.mxu0 %v1520
    %1538 = vmatmul.f32.gmra.mxu0 %v1514
    %v1539 = vpop.f32.mrf.mxu0
    %v1540 = vadd.f32 %v1511, %v1539
    %1541 = vmatmul.f32.gmra.mxu0 %v1517
    %v1542 = vpop.f32.mrf.mxu0
    %v1543 = vadd.f32 %v1511, %v1542
    %1544 = vdwg.mxu0
    %v1545 = vxor.u32 %v1540, 2147483648
    %v1546 = vxor.u32 %v1543, 2147483648
    %v1547 = vmul.f32 %v1545, 1.442695
    %v1548 = vpow.pop %v1547
    %v1549 = vmul.f32 %v1546, 1.442695
    %v1550 = vpow.pop %v1549
    %v1551 = vadd.f32 %v1548, 1.0
    %v1552 = vadd.f32 %v1550, 1.0
    %v1553 = vrcp.pop %v1551
    %v1554 = vmul.f32 %v1551, %v1553
    %v1555 = vsub.f32 1.0, %v1554
    %v1556 = vmul.f32 %v1553, %v1555
    %v1557 = vadd.f32 %v1553, %v1556
    %vm1558 = vweird.f32 %v1551
    %vm1559 = vweird.f32 %v1553
    %vm1560 = vmor %vm1558, %vm1559
    %v1561 = vsel %vm1560, %v1553, %v1557
    %v1562 = vand.u32 2147483647, %v1551
    %vm1563 = vcmp.eq.f32.partialorder %v1562, 8.507059e+37
    %v1564 = vand.u32 %v1551, 2147483648
    %v1565 = vor.u32 1.1754944e-38, %v1564
    %v1566 = vsel %vm1563, %v1565, %v1561
    %v1567 = vmul.f32 1.0, %v1566
    %v1568 = vrcp.pop %v1552
    %v1569 = vmul.f32 %v1552, %v1568
    %v1570 = vsub.f32 1.0, %v1569
    %v1571 = vmul.f32 %v1568, %v1570
    %v1572 = vadd.f32 %v1568, %v1571
    %vm1573 = vweird.f32 %v1552
    %vm1574 = vweird.f32 %v1568
    %vm1575 = vmor %vm1573, %vm1574
    %v1576 = vsel %vm1575, %v1568, %v1572
    %v1577 = vand.u32 2147483647, %v1552
    %vm1578 = vcmp.eq.f32.partialorder %v1577, 8.507059e+37
    %v1579 = vand.u32 %v1552, 2147483648
    %v1580 = vor.u32 1.1754944e-38, %v1579
    %v1581 = vsel %vm1578, %v1580, %v1576
    %v1582 = vmul.f32 1.0, %v1581
    %1585 = vrot.lane.b32.xlu0 %v1567, 123
    %v1586 = vpop.permute.xlu0 %1585
    %1587 = vrot.lane.b32.xlu0 %v1582, 123
    %v1588 = vpop.permute.xlu0 %1587
    %v1591 = vmul.f32 %v1540, %v1586
    %v1592 = vmul.f32 %v1543, %v1588
    %v1593 = vld [vmem:[#allocation22] sm:$0x1f]
    %v1595 = vsel %vm628, %v1593, 0
    %1597 = vmatpush.msra.mxu0 0.0
    %1598 = vmatpush.msra.mxu0 0.0
    %1599 = vmatpush.msra.mxu0 0.0
    %1600 = vmatpush.msra.mxu0 0.0
    %1601 = vmatpush.msra.mxu0 0.0
    %1602 = vmatpush.msra.mxu0 0.0
    %1603 = vmatpush.msra.mxu0 0.0
    %1604 = vmatpush.msra.mxu0 0.0
    %1605 = vmatpush.msra.mxu0 0.0
    %1606 = vmatpush.msra.mxu0 0.0
    %1607 = vmatpush.msra.mxu0 0.0
    %1608 = vmatpush.msra.mxu0 0.0
    %1609 = vmatpush.msra.mxu0 0.0
    %1610 = vmatpush.msra.mxu0 0.0
    %1611 = vmatpush.msra.mxu0 0.0
    %1612 = vmatpush.msra.mxu0 %v1595
    %1613 = vmatmul.f32.gmra.mxu0 %v623
    %v1614 = vpop.f32.mrf.mxu0
    %v1615 = vadd.f32 0.0, %v1614
    %1616 = vmatmul.f32.gmra.mxu0 %v626
    %v1617 = vpop.f32.mrf.mxu0
    %v1618 = vadd.f32 0.0, %v1617
    %1619 = vdwg.mxu0
    %v1620 = vadd.f32 %v1591, %v1615
    %v1621 = vadd.f32 %v1592, %v1618
    %v1622 = vld [vmem:[#allocation23] sm:$0x1]
    %v1624 = vperm.slane %v1622, 0
    %v1626 = vadd.f32 %v1620, %v1624
    %v1627 = vadd.f32 %v1621, %v1624
    %v1628 = vld [vmem:[#allocation25] sm:$0x1]
    %v1629 = vld [vmem:[#allocation26] sm:$0x1]
    %v1630 = vsel %vm621, %v1626, 0.0
    %1631 = vadd.xlane.f32.xlu0 %v1630
    %v1632 = vpop.xlane.xlu0 %1631
    %v1633 = vsel %vm621, %v1627, 0.0
    %1634 = vadd.xlane.f32.xlu0 %v1633
    %v1635 = vpop.xlane.xlu0 %1634
    %v1636 = vrcp.pop 5.0
    %v1637 = vmul.f32 5.0, %v1636
    %v1638 = vsub.f32 1.0, %v1637
    %v1639 = vmul.f32 %v1636, %v1638
    %v1640 = vadd.f32 %v1636, %v1639
    %vm1641 = vweird.f32 %v1636
    %v1642 = vsel %vm1641, %v1636, %v1640
    %v1643 = vmul.f32 %v1632, %v1642
    %v1644 = vmul.f32 %v1635, %v1642
    %v1645 = vsub.f32 %v1626, %v1643
    %v1646 = vsub.f32 %v1627, %v1644
    %v1647 = vmul.f32 %v1645, %v1645
    %v1648 = vmul.f32 %v1646, %v1646
    %v1649 = vsel %vm621, %v1647, 0.0
    %1650 = vadd.xlane.f32.xlu0 %v1649
    %v1651 = vpop.xlane.xlu0 %1650
    %v1652 = vsel %vm621, %v1648, 0.0
    %1653 = vadd.xlane.f32.xlu0 %v1652
    %v1654 = vpop.xlane.xlu0 %1653
    %v1655 = vmul.f32 %v1651, %v1642
    %v1656 = vmul.f32 %v1654, %v1642
    %v1657 = vadd.f32 %v1655, 1e-05
    %v1658 = vadd.f32 %v1656, 1e-05
    %v1659 = vrsqrt.pop %v1657
    %v1660 = vmul.f32 %v1659, %v1657
    %v1661 = vmul.f32 %v1660, %v1659
    %v1662 = vmul.f32 0.5, %v1661
    %v1663 = vsub.f32 1.5, %v1662
    %v1664 = vmul.f32 %v1659, %v1663
    %vm1665 = vweird.f32 %v1657
    %vm1666 = vweird.f32 %v1659
    %vm1667 = vmor %vm1665, %vm1666
    %v1668 = vsel %vm1667, %v1659, %v1664
    %v1669 = vrsqrt.pop %v1658
    %v1670 = vmul.f32 %v1669, %v1658
    %v1671 = vmul.f32 %v1670, %v1669
    %v1672 = vmul.f32 0.5, %v1671
    %v1673 = vsub.f32 1.5, %v1672
    %v1674 = vmul.f32 %v1669, %v1673
    %vm1675 = vweird.f32 %v1658
    %vm1676 = vweird.f32 %v1669
    %vm1677 = vmor %vm1675, %vm1676
    %v1678 = vsel %vm1677, %v1669, %v1674
    %v1679 = vmul.f32 %v1645, %v1668
    %v1680 = vmul.f32 %v1646, %v1678
    %v1682 = vperm.slane %v1628, 0
    %v1684 = vmul.f32 %v1679, %v1682
    %v1685 = vmul.f32 %v1680, %v1682
    %v1687 = vperm.slane %v1629, 0
    %v1689 = vadd.f32 %v1684, %v1687
    %v1690 = vadd.f32 %v1685, %v1687
    %v1691 = vsel %vm621, %v1689, -inf
    %1692 = vmax.xlane.f32.xlu0 %v1691
    %v1693 = vpop.xlane.xlu0 %1692
    %v1694 = vsel %vm621, %v1690, -inf
    %1695 = vmax.xlane.f32.xlu0 %v1694
    %v1696 = vpop.xlane.xlu0 %1695
    %v1697 = vsub.f32 %v1689, %v1693
    %v1698 = vsub.f32 %v1690, %v1696
    %v1699 = vmul.f32 %v1697, 1.442695
    %v1700 = vpow.pop %v1699
    %v1701 = vmul.f32 %v1698, 1.442695
    %v1702 = vpow.pop %v1701
    %v1703 = vsel %vm621, %v1700, 0.0
    %1704 = vadd.xlane.f32.xlu0 %v1703
    %v1705 = vpop.xlane.xlu0 %1704
    %v1706 = vsel %vm621, %v1702, 0.0
    %1707 = vadd.xlane.f32.xlu0 %v1706
    %v1708 = vpop.xlane.xlu0 %1707
    %v1709 = vrcp.pop %v1705
    %v1710 = vmul.f32 %v1705, %v1709
    %v1711 = vsub.f32 1.0, %v1710
    %v1712 = vmul.f32 %v1709, %v1711
    %v1713 = vadd.f32 %v1709, %v1712
    %vm1714 = vweird.f32 %v1705
    %vm1715 = vweird.f32 %v1709
    %vm1716 = vmor %vm1714, %vm1715
    %v1717 = vsel %vm1716, %v1709, %v1713
    %v1718 = vand.u32 2147483647, %v1705
    %vm1719 = vcmp.eq.f32.partialorder %v1718, 8.507059e+37
    %v1720 = vand.u32 %v1705, 2147483648
    %v1721 = vor.u32 1.1754944e-38, %v1720
    %v1722 = vsel %vm1719, %v1721, %v1717
    %v1723 = vmul.f32 %v1700, %v1722
    %v1724 = vrcp.pop %v1708
    %v1725 = vmul.f32 %v1708, %v1724
    %v1726 = vsub.f32 1.0, %v1725
    %v1727 = vmul.f32 %v1724, %v1726
    %v1728 = vadd.f32 %v1724, %v1727
    %vm1729 = vweird.f32 %v1708
    %vm1730 = vweird.f32 %v1724
    %vm1731 = vmor %vm1729, %vm1730
    %v1732 = vsel %vm1731, %v1724, %v1728
    %v1733 = vand.u32 2147483647, %v1708
    %vm1734 = vcmp.eq.f32.partialorder %v1733, 8.507059e+37
    %v1735 = vand.u32 %v1708, 2147483648
    %v1736 = vor.u32 1.1754944e-38, %v1735
    %v1737 = vsel %vm1734, %v1736, %v1732
    %v1738 = vmul.f32 %v1702, %v1737
    %1739 = vst.msk [vmem:[%s99] sm:$0xff] %vm621, %v1723
    %1740 = vst.msk [vmem:[%s99 + $0x8] sm:$0xff] %vm621, %v1738
    %v1741 = vld [vmem:[%s27] sm:$0x1f]
    %v1742 = vld [vmem:[%s27 + $0x8] sm:$0x1f]
    %v1744 = vsel %vm621, %v1723, 0
    %v1747 = vsel %vm621, %v1738, 0
    %v1750 = vsel %vm628, %v1741, 0
    %v1753 = vsel %vm628, %v1742, 0
    %1755 = vmatpush.msra.mxu0 0.0
    %1756 = vmatpush.msra.mxu0 0.0
    %1757 = vmatpush.msra.mxu0 0.0
    %1758 = vmatpush.msra.mxu0 0.0
    %1759 = vmatpush.msra.mxu0 0.0
    %1760 = vmatpush.msra.mxu0 0.0
    %1761 = vmatpush.msra.mxu0 0.0
    %1762 = vmatpush.msra.mxu0 0.0
    %1763 = vmatpush.msra.mxu0 0.0
    %1764 = vmatpush.msra.mxu0 0.0
    %1765 = vmatpush.msra.mxu0 0.0
    %1766 = vmatpush.msra.mxu0 0.0
    %1767 = vmatpush.msra.mxu0 0.0
    %1768 = vmatpush.msra.mxu0 0.0
    %1769 = vmatpush.msra.mxu0 0.0
    %1770 = vmatpush.msra.mxu0 %v1750
    %1771 = vmatmul.f32.gmra.mxu0 %v1744
    %v1772 = vpop.f32.mrf.mxu0
    %v1773 = vadd.f32 0.0, %v1772
    %1774 = vmatmul.f32.gmra.mxu0 %v1747
    %v1775 = vpop.f32.mrf.mxu0
    %v1776 = vadd.f32 0.0, %v1775
    %1777 = vdwg.mxu0
    %1778 = vmatpush.msra.mxu0 0.0
    %1779 = vmatpush.msra.mxu0 0.0
    %1780 = vmatpush.msra.mxu0 0.0
    %1781 = vmatpush.msra.mxu0 0.0
    %1782 = vmatpush.msra.mxu0 0.0
    %1783 = vmatpush.msra.mxu0 0.0
    %1784 = vmatpush.msra.mxu0 0.0
    %1785 = vmatpush.msra.mxu0 0.0
    %1786 = vmatpush.msra.mxu0 0.0
    %1787 = vmatpush.msra.mxu0 0.0
    %1788 = vmatpush.msra.mxu0 0.0
    %1789 = vmatpush.msra.mxu0 0.0
    %1790 = vmatpush.msra.mxu0 0.0
    %1791 = vmatpush.msra.mxu0 0.0
    %1792 = vmatpush.msra.mxu0 0.0
    %1793 = vmatpush.msra.mxu0 %v1753
    %1794 = vmatmul.f32.gmra.mxu0 %v1744
    %v1795 = vpop.f32.mrf.mxu0
    %v1796 = vadd.f32 0.0, %v1795
    %1797 = vmatmul.f32.gmra.mxu0 %v1747
    %v1798 = vpop.f32.mrf.mxu0
    %v1799 = vadd.f32 0.0, %v1798
    %1800 = vdwg.mxu0
    %v1801 = vmul.f32 %v1773, %v1424
    %v1802 = vmul.f32 %v1796, %v1425
    %v1803 = vmul.f32 %v1776, %v1426
    %v1804 = vmul.f32 %v1799, %v1427
    %v1805 = vld [vmem:[%s29] sm:$0xff]
    %v1806 = vld [vmem:[%s29 + $0x8] sm:$0xff]
    %v1807 = vld [vmem:[%s29 + $0x10] sm:$0xff]
    %v1808 = vld [vmem:[%s29 + $0x18] sm:$0xff]
    %v1809 = vld [vmem:[%s29 + $0x20] sm:$0xff]
    %v1810 = vld [vmem:[%s29 + $0x28] sm:$0xff]
    %v1811 = vld [vmem:[%s29 + $0x30] sm:$0xff]
    %v1812 = vld [vmem:[%s29 + $0x38] sm:$0xff]
    %v1813 = vld [vmem:[%s29 + $0x40] sm:$0xff]
    %v1814 = vld [vmem:[%s29 + $0x48] sm:$0xff]
    %v1815 = vld [vmem:[%s29 + $0x50] sm:$0xff]
    %v1816 = vld [vmem:[%s29 + $0x58] sm:$0xff]
    %v1817 = vld [vmem:[%s29 + $0x60] sm:$0xff]
    %v1818 = vld [vmem:[%s29 + $0x68] sm:$0xff]
    %v1819 = vld [vmem:[%s29 + $0x70] sm:$0xff]
    %v1820 = vld [vmem:[%s29 + $0x78] sm:$0xff]
    %v1821 = vld [vmem:[%s29 + $0x80] sm:$0xff]
    %v1822 = vld [vmem:[%s29 + $0x88] sm:$0xff]
    %v1823 = vld [vmem:[%s29 + $0x90] sm:$0xff]
    %v1824 = vld [vmem:[%s29 + $0x98] sm:$0xff]
    %v1826 = vsel %vm804, %v1802, 0
    %v1829 = vsel %vm804, %v1804, 0
    %1831 = vmatpush.msra.mxu0 %v1820
    %1832 = vmatpush.msra.mxu0 %v1819
    %1833 = vmatpush.msra.mxu0 %v1818
    %1834 = vmatpush.msra.mxu0 %v1817
    %1835 = vmatpush.msra.mxu0 %v1816
    %1836 = vmatpush.msra.mxu0 %v1815
    %1837 = vmatpush.msra.mxu0 %v1814
    %1838 = vmatpush.msra.mxu0 %v1813
    %1839 = vmatpush.msra.mxu0 %v1812
    %1840 = vmatpush.msra.mxu0 %v1811
    %1841 = vmatpush.msra.mxu0 %v1810
    %1842 = vmatpush.msra.mxu0 %v1809
    %1843 = vmatpush.msra.mxu0 %v1808
    %1844 = vmatpush.msra.mxu0 %v1807
    %1845 = vmatpush.msra.mxu0 %v1806
    %1846 = vmatpush.msra.mxu0 %v1805
    %1847 = vmatmul.f32.gmra.mxu0 %v1801
    %v1848 = vpop.f32.mrf.mxu0
    %v1849 = vadd.f32 0.0, %v1848
    %1850 = vmatmul.f32.gmra.mxu0 %v1803
    %v1851 = vpop.f32.mrf.mxu0
    %v1852 = vadd.f32 0.0, %v1851
    %1853 = vdwg.mxu0
    %1854 = vmatpush.msra.mxu0 0.0
    %1855 = vmatpush.msra.mxu0 0.0
    %1856 = vmatpush.msra.mxu0 0.0
    %1857 = vmatpush.msra.mxu0 0.0
    %1858 = vmatpush.msra.mxu0 0.0
    %1859 = vmatpush.msra.mxu0 0.0
    %1860 = vmatpush.msra.mxu0 0.0
    %1861 = vmatpush.msra.mxu0 0.0
    %1862 = vmatpush.msra.mxu0 0.0
    %1863 = vmatpush.msra.mxu0 0.0
    %1864 = vmatpush.msra.mxu0 0.0
    %1865 = vmatpush.msra.mxu0 0.0
    %1866 = vmatpush.msra.mxu0 %v1824
    %1867 = vmatpush.msra.mxu0 %v1823
    %1868 = vmatpush.msra.mxu0 %v1822
    %1869 = vmatpush.msra.mxu0 %v1821
    %1870 = vmatmul.f32.gmra.mxu0 %v1826
    %v1871 = vpop.f32.mrf.mxu0
    %v1872 = vadd.f32 %v1849, %v1871
    %1873 = vmatmul.f32.gmra.mxu0 %v1829
    %v1874 = vpop.f32.mrf.mxu0
    %v1875 = vadd.f32 %v1852, %v1874
    %1876 = vdwg.mxu0
    %1877 = vst.msk [vmem:[%s97] sm:$0xff] %vm804, %v1872
    %1878 = vst.msk [vmem:[%s97 + $0x8] sm:$0xff] %vm804, %v1875
    %v1879 = vld [vmem:[%s3] sm:$0xff]
    %v1880 = vld [vmem:[%s51] sm:$0xf]
    %v1881 = vld [vmem:[#allocation28] sm:$0x1]
    %v1883 = vperm.slane %v1881, 0
    %vm1885 = vcmask 31744
    %v1887 = vsel %vm1885, %v1879, 0
    %vm1889 = vcmask 1043456
    %v1891 = vsel %vm1889, %v1880, 0
    %1893 = vmatpush.msra.mxu0 0.0
    %1894 = vmatpush.msra.mxu0 0.0
    %1895 = vmatpush.msra.mxu0 0.0
    %1896 = vmatpush.msra.mxu0 0.0
    %1897 = vmatpush.msra.mxu0 0.0
    %1898 = vmatpush.msra.mxu0 0.0
    %1899 = vmatpush.msra.mxu0 0.0
    %1900 = vmatpush.msra.mxu0 0.0
    %1901 = vmatpush.msra.mxu0 0.0
    %1902 = vmatpush.msra.mxu0 0.0
    %1903 = vmatpush.msra.mxu0 0.0
    %1904 = vmatpush.msra.mxu0 0.0
    %1905 = vmatpush.msra.mxu0 0.0
    %1906 = vmatpush.msra.mxu0 0.0
    %1907 = vmatpush.msra.mxu0 0.0
    %1908 = vmatpush.msra.mxu0 %v1891
    %1909 = vmatmul.f32.gmra.mxu0 %v1887
    %v1910 = vpop.f32.mrf.mxu0
    %v1911 = vadd.f32 %v1883, %v1910
    %1912 = vdwg.mxu0
    %vm1913 = vcmp.gt.f32.partialorder %v1911, 0.0
    %v1914 = vmin.f32 %v1911, 0.0
    %v1915 = vmul.f32 %v1914, 1.442695
    %v1916 = vpow.pop %v1915
    %v1917 = vsub.f32 %v1916, 1.0
    %v1918 = vsel %vm1913, %v1911, %v1917
    %v1919 = vld [vmem:[%s55] sm:$0xff]
    %v1920 = vld [vmem:[%s55 + $0x8] sm:$0xff]
    %v1921 = vld [vmem:[%s55 + $0x10] sm:$0xff]
    %v1922 = vld [vmem:[%s55 + $0x18] sm:$0xff]
    %v1923 = vld [vmem:[#allocation29] sm:$0x1]
    %v1925 = vperm.slane %v1923, 0
    %v1928 = vsel %vm804, %v1918, 0
    %1930 = vmatpush.msra.mxu0 0.0
    %1931 = vmatpush.msra.mxu0 0.0
    %1932 = vmatpush.msra.mxu0 0.0
    %1933 = vmatpush.msra.mxu0 0.0
    %1934 = vmatpush.msra.mxu0 0.0
    %1935 = vmatpush.msra.mxu0 0.0
    %1936 = vmatpush.msra.mxu0 0.0
    %1937 = vmatpush.msra.mxu0 0.0
    %1938 = vmatpush.msra.mxu0 0.0
    %1939 = vmatpush.msra.mxu0 0.0
    %1940 = vmatpush.msra.mxu0 0.0
    %1941 = vmatpush.msra.mxu0 0.0
    %1942 = vmatpush.msra.mxu0 %v1922
    %1943 = vmatpush.msra.mxu0 %v1921
    %1944 = vmatpush.msra.mxu0 %v1920
    %1945 = vmatpush.msra.mxu0 %v1919
    %1946 = vmatmul.f32.gmra.mxu0 %v1928
    %v1947 = vpop.f32.mrf.mxu0
    %v1948 = vadd.f32 %v1925, %v1947
    %1949 = vdwg.mxu0
    %v1950 = vld [vmem:[%s59] sm:$0xff]
    %v1951 = vld [vmem:[%s59 + $0x8] sm:$0xff]
    %v1952 = vld [vmem:[%s59 + $0x10] sm:$0xff]
    %v1953 = vld [vmem:[%s59 + $0x18] sm:$0xff]
    %v1954 = vld [vmem:[%s59 + $0x20] sm:$0xff]
    %v1955 = vld [vmem:[%s59 + $0x28] sm:$0xff]
    %v1956 = vld [vmem:[%s59 + $0x30] sm:$0xff]
    %v1957 = vld [vmem:[%s59 + $0x38] sm:$0xff]
    %v1958 = vld [vmem:[%s59 + $0x40] sm:$0xff]
    %v1959 = vld [vmem:[%s59 + $0x48] sm:$0xff]
    %v1960 = vld [vmem:[%s59 + $0x50] sm:$0xff]
    %v1961 = vld [vmem:[%s59 + $0x58] sm:$0xff]
    %v1962 = vld [vmem:[%s59 + $0x60] sm:$0xff]
    %v1963 = vld [vmem:[%s59 + $0x68] sm:$0xff]
    %v1964 = vld [vmem:[%s59 + $0x70] sm:$0xff]
    %v1965 = vld [vmem:[%s59 + $0x78] sm:$0xff]
    %v1966 = vld [vmem:[%s59 + $0x80] sm:$0xff]
    %v1967 = vld [vmem:[%s59 + $0x88] sm:$0xff]
    %v1968 = vld [vmem:[%s59 + $0x90] sm:$0xff]
    %v1969 = vld [vmem:[%s59 + $0x98] sm:$0xff]
    %v1970 = vld [vmem:[%s59 + $0xa0] sm:$0xff]
    %v1971 = vld [vmem:[%s59 + $0xa8] sm:$0xff]
    %v1972 = vld [vmem:[%s59 + $0xb0] sm:$0xff]
    %v1973 = vld [vmem:[%s59 + $0xb8] sm:$0xff]
    %v1974 = vld [vmem:[%s59 + $0xc0] sm:$0xff]
    %v1975 = vld [vmem:[%s59 + $0xc8] sm:$0xff]
    %v1976 = vld [vmem:[%s59 + $0xd0] sm:$0xff]
    %v1977 = vld [vmem:[%s59 + $0xd8] sm:$0xff]
    %v1978 = vld [vmem:[%s59 + $0xe0] sm:$0xff]
    %v1979 = vld [vmem:[%s59 + $0xe8] sm:$0xff]
    %v1980 = vld [vmem:[%s59 + $0xf0] sm:$0xff]
    %v1981 = vld [vmem:[%s59 + $0xf8] sm:$0xff]
    %v1982 = vld [vmem:[#allocation31] sm:$0x3]
    %v1984 = vperm.slane %v1982, 0
    %v1985 = vperm.slane %v1982, 1
    %1988 = vmatpush.msra.mxu0 %v1980
    %1989 = vmatpush.msra.mxu0 %v1978
    %1990 = vmatpush.msra.mxu0 %v1976
    %1991 = vmatpush.msra.mxu0 %v1974
    %1992 = vmatpush.msra.mxu0 %v1972
    %1993 = vmatpush.msra.mxu0 %v1970
    %1994 = vmatpush.msra.mxu0 %v1968
    %1995 = vmatpush.msra.mxu0 %v1966
    %1996 = vmatpush.msra.mxu0 %v1964
    %1997 = vmatpush.msra.mxu0 %v1962
    %1998 = vmatpush.msra.mxu0 %v1960
    %1999 = vmatpush.msra.mxu0 %v1958
    %2000 = vmatpush.msra.mxu0 %v1956
    %2001 = vmatpush.msra.mxu0 %v1954
    %2002 = vmatpush.msra.mxu0 %v1952
    %2003 = vmatpush.msra.mxu0 %v1950
    %2004 = vmatmul.f32.gmra.mxu0 %v1948
    %v2005 = vpop.f32.mrf.mxu0
    %v2006 = vadd.f32 %v1984, %v2005
    %2007 = vdwg.mxu0
    %2008 = vmatpush.msra.mxu0 %v1981
    %2009 = vmatpush.msra.mxu0 %v1979
    %2010 = vmatpush.msra.mxu0 %v1977
    %2011 = vmatpush.msra.mxu0 %v1975
    %2012 = vmatpush.msra.mxu0 %v1973
    %2013 = vmatpush.msra.mxu0 %v1971
    %2014 = vmatpush.msra.mxu0 %v1969
    %2015 = vmatpush.msra.mxu0 %v1967
    %2016 = vmatpush.msra.mxu0 %v1965
    %2017 = vmatpush.msra.mxu0 %v1963
    %2018 = vmatpush.msra.mxu0 %v1961
    %2019 = vmatpush.msra.mxu0 %v1959
    %2020 = vmatpush.msra.mxu0 %v1957
    %2021 = vmatpush.msra.mxu0 %v1955
    %2022 = vmatpush.msra.mxu0 %v1953
    %2023 = vmatpush.msra.mxu0 %v1951
    %2024 = vmatmul.f32.gmra.mxu0 %v1948
    %v2025 = vpop.f32.mrf.mxu0
    %v2026 = vadd.f32 %v1985, %v2025
    %2027 = vdwg.mxu0
    %v2028 = vxor.u32 %v2026, 2147483648
    %v2029 = vmul.f32 %v2028, 1.442695
    %v2030 = vpow.pop %v2029
    %v2031 = vadd.f32 %v2030, 1.0
    %v2032 = vrcp.pop %v2031
    %v2033 = vmul.f32 %v2031, %v2032
    %v2034 = vsub.f32 1.0, %v2033
    %v2035 = vmul.f32 %v2032, %v2034
    %v2036 = vadd.f32 %v2032, %v2035
    %vm2037 = vweird.f32 %v2031
    %vm2038 = vweird.f32 %v2032
    %vm2039 = vmor %vm2037, %vm2038
    %v2040 = vsel %vm2039, %v2032, %v2036
    %v2041 = vand.u32 2147483647, %v2031
    %vm2042 = vcmp.eq.f32.partialorder %v2041, 8.507059e+37
    %v2043 = vand.u32 %v2031, 2147483648
    %v2044 = vor.u32 1.1754944e-38, %v2043
    %v2045 = vsel %vm2042, %v2044, %v2040
    %v2046 = vmul.f32 1.0, %v2045
    %v2047 = vmul.f32 %v2006, %v2046
    %v2048 = vld [vmem:[%s63] sm:$0xf]
    %v2050 = vsel %vm1889, %v2048, 0
    %2052 = vmatpush.msra.mxu0 0.0
    %2053 = vmatpush.msra.mxu0 0.0
    %2054 = vmatpush.msra.mxu0 0.0
    %2055 = vmatpush.msra.mxu0 0.0
    %2056 = vmatpush.msra.mxu0 0.0
    %2057 = vmatpush.msra.mxu0 0.0
    %2058 = vmatpush.msra.mxu0 0.0
    %2059 = vmatpush.msra.mxu0 0.0
    %2060 = vmatpush.msra.mxu0 0.0
    %2061 = vmatpush.msra.mxu0 0.0
    %2062 = vmatpush.msra.mxu0 0.0
    %2063 = vmatpush.msra.mxu0 0.0
    %2064 = vmatpush.msra.mxu0 0.0
    %2065 = vmatpush.msra.mxu0 0.0
    %2066 = vmatpush.msra.mxu0 0.0
    %2067 = vmatpush.msra.mxu0 %v2050
    %2068 = vmatmul.f32.gmra.mxu0 %v1887
    %v2069 = vpop.f32.mrf.mxu0
    %v2070 = vadd.f32 0.0, %v2069
    %2071 = vdwg.mxu0
    %v2072 = vadd.f32 %v2047, %v2070
    %v2073 = vld [vmem:[#allocation32] sm:$0x1]
    %v2075 = vperm.slane %v2073, 0
    %v2077 = vadd.f32 %v2072, %v2075
    %v2078 = vld [vmem:[%s71] sm:$0xff]
    %v2079 = vld [vmem:[%s71 + $0x8] sm:$0xff]
    %v2080 = vld [vmem:[%s71 + $0x10] sm:$0xff]
    %v2081 = vld [vmem:[%s71 + $0x18] sm:$0xff]
    %v2082 = vld [vmem:[%s71 + $0x20] sm:$0xff]
    %v2083 = vld [vmem:[%s71 + $0x28] sm:$0xff]
    %v2084 = vld [vmem:[%s71 + $0x30] sm:$0xff]
    %v2085 = vld [vmem:[%s71 + $0x38] sm:$0xff]
    %v2086 = vld [vmem:[%s71 + $0x40] sm:$0xff]
    %v2087 = vld [vmem:[%s71 + $0x48] sm:$0xff]
    %v2088 = vld [vmem:[%s71 + $0x50] sm:$0xff]
    %v2089 = vld [vmem:[%s71 + $0x58] sm:$0xff]
    %v2090 = vld [vmem:[%s71 + $0x60] sm:$0xff]
    %v2091 = vld [vmem:[%s71 + $0x68] sm:$0xff]
    %v2092 = vld [vmem:[%s71 + $0x70] sm:$0xff]
    %v2093 = vld [vmem:[%s71 + $0x78] sm:$0xff]
    %2094 = vmatpush.msra.mxu0 %v2093
    %2095 = vmatpush.msra.mxu0 %v2092
    %2096 = vmatpush.msra.mxu0 %v2091
    %2097 = vmatpush.msra.mxu0 %v2090
    %2098 = vmatpush.msra.mxu0 %v2089
    %2099 = vmatpush.msra.mxu0 %v2088
    %2100 = vmatpush.msra.mxu0 %v2087
    %2101 = vmatpush.msra.mxu0 %v2086
    %2102 = vmatpush.msra.mxu0 %v2085
    %2103 = vmatpush.msra.mxu0 %v2084
    %2104 = vmatpush.msra.mxu0 %v2083
    %2105 = vmatpush.msra.mxu0 %v2082
    %2106 = vmatpush.msra.mxu0 %v2081
    %2107 = vmatpush.msra.mxu0 %v2080
    %2108 = vmatpush.msra.mxu0 %v2079
    %2109 = vmatpush.msra.mxu0 %v2078
    %2110 = vmatmul.f32.gmra.mxu0 %v2077
    %v2111 = vpop.f32.mrf.mxu0
    %v2112 = vadd.f32 0.0, %v2111
    %2113 = vdwg.mxu0
    %v2114 = vmul.f32 %v2077, %v2077
    %2115 = vmatpush.msra.mxu0 %v2093
    %2116 = vmatpush.msra.mxu0 %v2092
    %2117 = vmatpush.msra.mxu0 %v2091
    %2118 = vmatpush.msra.mxu0 %v2090
    %2119 = vmatpush.msra.mxu0 %v2089
    %2120 = vmatpush.msra.mxu0 %v2088
    %2121 = vmatpush.msra.mxu0 %v2087
    %2122 = vmatpush.msra.mxu0 %v2086
    %2123 = vmatpush.msra.mxu0 %v2085
    %2124 = vmatpush.msra.mxu0 %v2084
    %2125 = vmatpush.msra.mxu0 %v2083
    %2126 = vmatpush.msra.mxu0 %v2082
    %2127 = vmatpush.msra.mxu0 %v2081
    %2128 = vmatpush.msra.mxu0 %v2080
    %2129 = vmatpush.msra.mxu0 %v2079
    %2130 = vmatpush.msra.mxu0 %v2078
    %2131 = vmatmul.f32.gmra.mxu0 %v2114
    %v2132 = vpop.f32.mrf.mxu0
    %v2133 = vadd.f32 0.0, %v2132
    %2134 = vdwg.mxu0
    %v2135 = vmul.f32 %v2112, %v2112
    %v2136 = vsub.f32 %v2133, %v2135
    %v2137 = vld [vmem:[%s73] sm:$0xf]
    %v2139 = vsel %vm1885, %v2112, 0
    %v2142 = vsel %vm1889, %v2137, 0
    %2144 = vmatpush.msra.mxu0 0.0
    %2145 = vmatpush.msra.mxu0 0.0
    %2146 = vmatpush.msra.mxu0 0.0
    %2147 = vmatpush.msra.mxu0 0.0
    %2148 = vmatpush.msra.mxu0 0.0
    %2149 = vmatpush.msra.mxu0 0.0
    %2150 = vmatpush.msra.mxu0 0.0
    %2151 = vmatpush.msra.mxu0 0.0
    %2152 = vmatpush.msra.mxu0 0.0
    %2153 = vmatpush.msra.mxu0 0.0
    %2154 = vmatpush.msra.mxu0 0.0
    %2155 = vmatpush.msra.mxu0 0.0
    %2156 = vmatpush.msra.mxu0 0.0
    %2157 = vmatpush.msra.mxu0 0.0
    %2158 = vmatpush.msra.mxu0 0.0
    %2159 = vmatpush.msra.mxu0 %v2142
    %2160 = vmatmul.f32.gmra.mxu0 %v2139
    %v2161 = vpop.f32.mrf.mxu0
    %v2162 = vadd.f32 0.0, %v2161
    %2163 = vdwg.mxu0
    %v2164 = vsub.f32 %v2077, %v2162
    %v2166 = vsel %vm1885, %v2136, 0
    %2168 = vmatpush.msra.mxu0 0.0
    %2169 = vmatpush.msra.mxu0 0.0
    %2170 = vmatpush.msra.mxu0 0.0
    %2171 = vmatpush.msra.mxu0 0.0
    %2172 = vmatpush.msra.mxu0 0.0
    %2173 = vmatpush.msra.mxu0 0.0
    %2174 = vmatpush.msra.mxu0 0.0
    %2175 = vmatpush.msra.mxu0 0.0
    %2176 = vmatpush.msra.mxu0 0.0
    %2177 = vmatpush.msra.mxu0 0.0
    %2178 = vmatpush.msra.mxu0 0.0
    %2179 = vmatpush.msra.mxu0 0.0
    %2180 = vmatpush.msra.mxu0 0.0
    %2181 = vmatpush.msra.mxu0 0.0
    %2182 = vmatpush.msra.mxu0 0.0
    %2183 = vmatpush.msra.mxu0 %v2142
    %2184 = vmatmul.f32.gmra.mxu0 %v2166
    %v2185 = vpop.f32.mrf.mxu0
    %v2186 = vadd.f32 1e-05, %v2185
    %2187 = vdwg.mxu0
    %v2188 = vrsqrt.pop %v2186
    %v2189 = vmul.f32 %v2188, %v2186
    %v2190 = vmul.f32 %v2189, %v2188
    %v2191 = vmul.f32 0.5, %v2190
    %v2192 = vsub.f32 1.5, %v2191
    %v2193 = vmul.f32 %v2188, %v2192
    %vm2194 = vweird.f32 %v2186
    %vm2195 = vweird.f32 %v2188
    %vm2196 = vmor %vm2194, %vm2195
    %v2197 = vsel %vm2196, %v2188, %v2193
    %v2198 = vmul.f32 %v2164, %v2197
    %v2199 = vld [vmem:[#allocation34] sm:$0x1]
    %v2201 = vperm.slane %v2199, 0
    %v2203 = vmul.f32 %v2198, %v2201
    %v2204 = vld [vmem:[#allocation35] sm:$0x1]
    %v2206 = vperm.slane %v2204, 0
    %v2208 = vadd.f32 %v2203, %v2206
    %v2209 = vld [vmem:[%s77] sm:$0xf]
    %v2210 = vld [vmem:[#allocation37] sm:$0x1]
    %v2212 = vperm.slane %v2210, 0
    %v2215 = vsel %vm1889, %v2209, 0
    %2217 = vmatpush.msra.mxu0 0.0
    %2218 = vmatpush.msra.mxu0 0.0
    %2219 = vmatpush.msra.mxu0 0.0
    %2220 = vmatpush.msra.mxu0 0.0
    %2221 = vmatpush.msra.mxu0 0.0
    %2222 = vmatpush.msra.mxu0 0.0
    %2223 = vmatpush.msra.mxu0 0.0
    %2224 = vmatpush.msra.mxu0 0.0
    %2225 = vmatpush.msra.mxu0 0.0
    %2226 = vmatpush.msra.mxu0 0.0
    %2227 = vmatpush.msra.mxu0 0.0
    %2228 = vmatpush.msra.mxu0 0.0
    %2229 = vmatpush.msra.mxu0 0.0
    %2230 = vmatpush.msra.mxu0 0.0
    %2231 = vmatpush.msra.mxu0 0.0
    %2232 = vmatpush.msra.mxu0 %v2215
    %2233 = vmatmul.f32.gmra.mxu0 %v1887
    %v2234 = vpop.f32.mrf.mxu0
    %v2235 = vadd.f32 %v2212, %v2234
    %2236 = vdwg.mxu0
    %vm2237 = vcmp.gt.f32.partialorder %v2235, 0.0
    %v2238 = vmin.f32 %v2235, 0.0
    %v2239 = vmul.f32 %v2238, 1.442695
    %v2240 = vpow.pop %v2239
    %v2241 = vsub.f32 %v2240, 1.0
    %v2242 = vsel %vm2237, %v2235, %v2241
    %v2243 = vld [vmem:[%s81] sm:$0xff]
    %v2244 = vld [vmem:[%s81 + $0x8] sm:$0xff]
    %v2245 = vld [vmem:[%s81 + $0x10] sm:$0xff]
    %v2246 = vld [vmem:[%s81 + $0x18] sm:$0xff]
    %v2247 = vld [vmem:[#allocation38] sm:$0x1]
    %v2249 = vperm.slane %v2247, 0
    %v2252 = vsel %vm804, %v2242, 0
    %2254 = vmatpush.msra.mxu0 0.0
    %2255 = vmatpush.msra.mxu0 0.0
    %2256 = vmatpush.msra.mxu0 0.0
    %2257 = vmatpush.msra.mxu0 0.0
    %2258 = vmatpush.msra.mxu0 0.0
    %2259 = vmatpush.msra.mxu0 0.0
    %2260 = vmatpush.msra.mxu0 0.0
    %2261 = vmatpush.msra.mxu0 0.0
    %2262 = vmatpush.msra.mxu0 0.0
    %2263 = vmatpush.msra.mxu0 0.0
    %2264 = vmatpush.msra.mxu0 0.0
    %2265 = vmatpush.msra.mxu0 0.0
    %2266 = vmatpush.msra.mxu0 %v2246
    %2267 = vmatpush.msra.mxu0 %v2245
    %2268 = vmatpush.msra.mxu0 %v2244
    %2269 = vmatpush.msra.mxu0 %v2243
    %2270 = vmatmul.f32.gmra.mxu0 %v2252
    %v2271 = vpop.f32.mrf.mxu0
    %v2272 = vadd.f32 %v2249, %v2271
    %2273 = vdwg.mxu0
    %v2274 = vld [vmem:[#allocation40] sm:$0xf]
    %v2275 = vld [vmem:[#allocation41] sm:$0x1]
    %v2277 = vperm.slane %v2275, 0
    %v2280 = vsel %vm1885, %v2272, 0
    %v2283 = vsel %vm1889, %v2274, 0
    %2285 = vmatpush.msra.mxu0 0.0
    %2286 = vmatpush.msra.mxu0 0.0
    %2287 = vmatpush.msra.mxu0 0.0
    %2288 = vmatpush.msra.mxu0 0.0
    %2289 = vmatpush.msra.mxu0 0.0
    %2290 = vmatpush.msra.mxu0 0.0
    %2291 = vmatpush.msra.mxu0 0.0
    %2292 = vmatpush.msra.mxu0 0.0
    %2293 = vmatpush.msra.mxu0 0.0
    %2294 = vmatpush.msra.mxu0 0.0
    %2295 = vmatpush.msra.mxu0 0.0
    %2296 = vmatpush.msra.mxu0 0.0
    %2297 = vmatpush.msra.mxu0 0.0
    %2298 = vmatpush.msra.mxu0 0.0
    %2299 = vmatpush.msra.mxu0 0.0
    %2300 = vmatpush.msra.mxu0 %v2283
    %2301 = vmatmul.f32.gmra.mxu0 %v2280
    %v2302 = vpop.f32.mrf.mxu0
    %v2303 = vadd.f32 %v2277, %v2302
    %2304 = vdwg.mxu0
    %v2305 = vxor.u32 %v2303, 2147483648
    %v2306 = vmul.f32 %v2305, 1.442695
    %v2307 = vpow.pop %v2306
    %v2308 = vadd.f32 %v2307, 1.0
    %v2309 = vrcp.pop %v2308
    %v2310 = vmul.f32 %v2308, %v2309
    %v2311 = vsub.f32 1.0, %v2310
    %v2312 = vmul.f32 %v2309, %v2311
    %v2313 = vadd.f32 %v2309, %v2312
    %vm2314 = vweird.f32 %v2308
    %vm2315 = vweird.f32 %v2309
    %vm2316 = vmor %vm2314, %vm2315
    %v2317 = vsel %vm2316, %v2309, %v2313
    %v2318 = vand.u32 2147483647, %v2308
    %vm2319 = vcmp.eq.f32.partialorder %v2318, 8.507059e+37
    %v2320 = vand.u32 %v2308, 2147483648
    %v2321 = vor.u32 1.1754944e-38, %v2320
    %v2322 = vsel %vm2319, %v2321, %v2317
    %v2323 = vmul.f32 1.0, %v2322
    %2325 = vrot.lane.b32.xlu0 %v2323, 124
    %v2326 = vpop.permute.xlu0 %2325
    %v2328 = vmul.f32 %v2303, %v2326
    %v2329 = vld [vmem:[#allocation43] sm:$0xf]
    %v2331 = vsel %vm1889, %v2329, 0
    %2333 = vmatpush.msra.mxu0 0.0
    %2334 = vmatpush.msra.mxu0 0.0
    %2335 = vmatpush.msra.mxu0 0.0
    %2336 = vmatpush.msra.mxu0 0.0
    %2337 = vmatpush.msra.mxu0 0.0
    %2338 = vmatpush.msra.mxu0 0.0
    %2339 = vmatpush.msra.mxu0 0.0
    %2340 = vmatpush.msra.mxu0 0.0
    %2341 = vmatpush.msra.mxu0 0.0
    %2342 = vmatpush.msra.mxu0 0.0
    %2343 = vmatpush.msra.mxu0 0.0
    %2344 = vmatpush.msra.mxu0 0.0
    %2345 = vmatpush.msra.mxu0 0.0
    %2346 = vmatpush.msra.mxu0 0.0
    %2347 = vmatpush.msra.mxu0 0.0
    %2348 = vmatpush.msra.mxu0 %v2331
    %2349 = vmatmul.f32.gmra.mxu0 %v1887
    %v2350 = vpop.f32.mrf.mxu0
    %v2351 = vadd.f32 0.0, %v2350
    %2352 = vdwg.mxu0
    %v2353 = vadd.f32 %v2328, %v2351
    %v2354 = vld [vmem:[#allocation44] sm:$0x1]
    %v2356 = vperm.slane %v2354, 0
    %v2358 = vadd.f32 %v2353, %v2356
    %v2359 = vld [vmem:[#allocation46] sm:$0x1]
    %v2360 = vld [vmem:[#allocation47] sm:$0x1]
    %v2361 = vsel %vm1885, %v2358, 0.0
    %2362 = vadd.xlane.f32.xlu0 %v2361
    %v2363 = vpop.xlane.xlu0 %2362
    %v2364 = vrcp.pop 4.0
    %v2365 = vmul.f32 4.0, %v2364
    %v2366 = vsub.f32 1.0, %v2365
    %v2367 = vmul.f32 %v2364, %v2366
    %v2368 = vadd.f32 %v2364, %v2367
    %vm2369 = vweird.f32 %v2364
    %v2370 = vsel %vm2369, %v2364, %v2368
    %v2371 = vmul.f32 %v2363, %v2370
    %v2372 = vsub.f32 %v2358, %v2371
    %v2373 = vmul.f32 %v2372, %v2372
    %v2374 = vsel %vm1885, %v2373, 0.0
    %2375 = vadd.xlane.f32.xlu0 %v2374
    %v2376 = vpop.xlane.xlu0 %2375
    %v2377 = vmul.f32 %v2376, %v2370
    %v2378 = vadd.f32 %v2377, 1e-05
    %v2379 = vrsqrt.pop %v2378
    %v2380 = vmul.f32 %v2379, %v2378
    %v2381 = vmul.f32 %v2380, %v2379
    %v2382 = vmul.f32 0.5, %v2381
    %v2383 = vsub.f32 1.5, %v2382
    %v2384 = vmul.f32 %v2379, %v2383
    %vm2385 = vweird.f32 %v2378
    %vm2386 = vweird.f32 %v2379
    %vm2387 = vmor %vm2385, %vm2386
    %v2388 = vsel %vm2387, %v2379, %v2384
    %v2389 = vmul.f32 %v2372, %v2388
    %v2391 = vperm.slane %v2359, 0
    %v2393 = vmul.f32 %v2389, %v2391
    %v2395 = vperm.slane %v2360, 0
    %v2397 = vadd.f32 %v2393, %v2395
    %v2398 = vsel %vm1885, %v2397, -inf
    %2399 = vmax.xlane.f32.xlu0 %v2398
    %v2400 = vpop.xlane.xlu0 %2399
    %v2401 = vsub.f32 %v2397, %v2400
    %v2402 = vmul.f32 %v2401, 1.442695
    %v2403 = vpow.pop %v2402
    %v2404 = vsel %vm1885, %v2403, 0.0
    %2405 = vadd.xlane.f32.xlu0 %v2404
    %v2406 = vpop.xlane.xlu0 %2405
    %v2407 = vrcp.pop %v2406
    %v2408 = vmul.f32 %v2406, %v2407
    %v2409 = vsub.f32 1.0, %v2408
    %v2410 = vmul.f32 %v2407, %v2409
    %v2411 = vadd.f32 %v2407, %v2410
    %vm2412 = vweird.f32 %v2406
    %vm2413 = vweird.f32 %v2407
    %vm2414 = vmor %vm2412, %vm2413
    %v2415 = vsel %vm2414, %v2407, %v2411
    %v2416 = vand.u32 2147483647, %v2406
    %vm2417 = vcmp.eq.f32.partialorder %v2416, 8.507059e+37
    %v2418 = vand.u32 %v2406, 2147483648
    %v2419 = vor.u32 1.1754944e-38, %v2418
    %v2420 = vsel %vm2417, %v2419, %v2415
    %v2421 = vmul.f32 %v2403, %v2420
    %2422 = vst.msk [vmem:[#allocation49] sm:$0xff] %vm1885, %v2421
    %v2423 = vld [vmem:[%s73] sm:$0xf]
    %v2425 = vsel %vm1885, %v2421, 0
    %v2428 = vsel %vm1889, %v2423, 0
    %2430 = vmatpush.msra.mxu0 0.0
    %2431 = vmatpush.msra.mxu0 0.0
    %2432 = vmatpush.msra.mxu0 0.0
    %2433 = vmatpush.msra.mxu0 0.0
    %2434 = vmatpush.msra.mxu0 0.0
    %2435 = vmatpush.msra.mxu0 0.0
    %2436 = vmatpush.msra.mxu0 0.0
    %2437 = vmatpush.msra.mxu0 0.0
    %2438 = vmatpush.msra.mxu0 0.0
    %2439 = vmatpush.msra.mxu0 0.0
    %2440 = vmatpush.msra.mxu0 0.0
    %2441 = vmatpush.msra.mxu0 0.0
    %2442 = vmatpush.msra.mxu0 0.0
    %2443 = vmatpush.msra.mxu0 0.0
    %2444 = vmatpush.msra.mxu0 0.0
    %2445 = vmatpush.msra.mxu0 %v2428
    %2446 = vmatmul.f32.gmra.mxu0 %v2425
    %v2447 = vpop.f32.mrf.mxu0
    %v2448 = vadd.f32 0.0, %v2447
    %2449 = vdwg.mxu0
    %v2450 = vmul.f32 %v2448, %v2208
    %v2451 = vld [vmem:[%s75] sm:$0xff]
    %v2452 = vld [vmem:[%s75 + $0x8] sm:$0xff]
    %v2453 = vld [vmem:[%s75 + $0x10] sm:$0xff]
    %v2454 = vld [vmem:[%s75 + $0x18] sm:$0xff]
    %v2455 = vld [vmem:[%s75 + $0x20] sm:$0xff]
    %v2456 = vld [vmem:[%s75 + $0x28] sm:$0xff]
    %v2457 = vld [vmem:[%s75 + $0x30] sm:$0xff]
    %v2458 = vld [vmem:[%s75 + $0x38] sm:$0xff]
    %v2459 = vld [vmem:[%s75 + $0x40] sm:$0xff]
    %v2460 = vld [vmem:[%s75 + $0x48] sm:$0xff]
    %v2461 = vld [vmem:[%s75 + $0x50] sm:$0xff]
    %v2462 = vld [vmem:[%s75 + $0x58] sm:$0xff]
    %v2463 = vld [vmem:[%s75 + $0x60] sm:$0xff]
    %v2464 = vld [vmem:[%s75 + $0x68] sm:$0xff]
    %v2465 = vld [vmem:[%s75 + $0x70] sm:$0xff]
    %v2466 = vld [vmem:[%s75 + $0x78] sm:$0xff]
    %2467 = vmatpush.msra.mxu0 %v2466
    %2468 = vmatpush.msra.mxu0 %v2465
    %2469 = vmatpush.msra.mxu0 %v2464
    %2470 = vmatpush.msra.mxu0 %v2463
    %2471 = vmatpush.msra.mxu0 %v2462
    %2472 = vmatpush.msra.mxu0 %v2461
    %2473 = vmatpush.msra.mxu0 %v2460
    %2474 = vmatpush.msra.mxu0 %v2459
    %2475 = vmatpush.msra.mxu0 %v2458
    %2476 = vmatpush.msra.mxu0 %v2457
    %2477 = vmatpush.msra.mxu0 %v2456
    %2478 = vmatpush.msra.mxu0 %v2455
    %2479 = vmatpush.msra.mxu0 %v2454
    %2480 = vmatpush.msra.mxu0 %v2453
    %2481 = vmatpush.msra.mxu0 %v2452
    %2482 = vmatpush.msra.mxu0 %v2451
    %2483 = vmatmul.f32.gmra.mxu0 %v2450
    %v2484 = vpop.f32.mrf.mxu0
    %v2485 = vadd.f32 0.0, %v2484
    %2486 = vdwg.mxu0
    %2487 = vst.msk [vmem:[%s101] sm:$0xff] %vm804, %v2485
    // Predicated region
    $region314: #{xtft_forward.2} parent=1 // pred_check
      _
    $region315: #{xtft_forward.2} parent=1 // pred_check_branch
      %2489 = sbr.rel (0) target = $region317
    $region316: #{xtft_forward.2} parent=1 // pred_region
      _
    $region317: #{xtft_forward.2} parent=1 // pred_fallthru
      _
    // Predicated region
    $region318: #{xtft_forward.2} parent=1 // pred_check
      _
    $region319: #{xtft_forward.2} parent=1 // pred_check_branch
      %2491 = sbr.rel (0) target = $region321
    $region320: #{xtft_forward.2} parent=1 // pred_region
      _
    $region321: #{xtft_forward.2} parent=1 // pred_fallthru
      _
    // Predicated region
    $region322: #{xtft_forward.2} parent=1 // pred_check
      _
    $region323: #{xtft_forward.2} parent=1 // pred_check_branch
      %2493 = sbr.rel (0) target = $region325
    $region324: #{xtft_forward.2} parent=1 // pred_region
      _
    $region325: #{xtft_forward.2} parent=1 // pred_fallthru
      _
    // Predicated region
    $region326: #{xtft_forward.2} parent=1 // pred_check
      _
    $region327: #{xtft_forward.2} parent=1 // pred_check_branch
      %2495 = sbr.rel (0) target = $region329
    $region328: #{xtft_forward.2} parent=1 // pred_region
      %2497 = vsyncadd [#allocation4], 0
      %s2499 = sshll.u32 [#allocation49], 4
      %s2500 = int_to_ptr.vmem [resolvable:$true] %s2499
      %s2501 = sshll.u32 %s103, 4
      %s2502 = int_to_ptr.hbm [resolvable:$true] %s2501
      %2504 = dma.vmem_to_hbm [thread:$0]  %s2500, 128, %s2502, [#allocation4]
    $region329: #{xtft_forward.2} parent=1 // pred_fallthru
      _
    // Predicated region
    $region330: #{xtft_forward.2} parent=1 // pred_check
      _
    $region331: #{xtft_forward.2} parent=1 // pred_check_branch
      %2506 = sbr.rel (0) target = $region333
    $region332: #{xtft_forward.2} parent=1 // pred_region
      _
    $region333: #{xtft_forward.2} parent=1 // pred_fallthru
      _
    // Predicated region
    $region334: #{xtft_forward.2} parent=1 // pred_check
      _
    $region335: #{xtft_forward.2} parent=1 // pred_check_branch
      %2508 = sbr.rel (0) target = $region337
    $region336: #{xtft_forward.2} parent=1 // pred_region
      _
    $region337: #{xtft_forward.2} parent=1 // pred_fallthru
      _
    // Predicated region
    $region338: #{xtft_forward.2} parent=1 // pred_check
      _
    $region339: #{xtft_forward.2} parent=1 // pred_check_branch
      %2510 = sbr.rel (0) target = $region341
    $region340: #{xtft_forward.2} parent=1 // pred_region
      _
    $region341: #{xtft_forward.2} parent=1 // pred_fallthru
      _
    // Predicated region
    $region342: #{xtft_forward.2} parent=1 // pred_check
      _
    $region343: #{xtft_forward.2} parent=1 // pred_check_branch
      %2512 = sbr.rel (0) target = $region345
    $region344: #{xtft_forward.2} parent=1 // pred_region
      %2514 = dma.done [#allocation4], 128
    $region345: #{xtft_forward.2} parent=1 // pred_fallthru
      _
    %2515 = vsyncpa [#allocation3], 1
    %2516 = vsyncpa [#allocation6], 1
    %2517 = vsyncpa [#allocation9], 1
    %2518 = vsyncpa [#allocation12], 1
    %2519 = vsyncpa [#allocation15], 1
    %2520 = vsyncpa [#allocation18], 1
    %2521 = vsyncpa [#allocation21], 1
    %2522 = vsyncpa [#allocation24], 1
    %2523 = vsyncpa [#allocation27], 1
    %2524 = vsyncpa [#allocation30], 1
    %2525 = vsyncpa [#allocation33], 1
    %2526 = vsyncpa [#allocation36], 1
    %2527 = vsyncpa [#allocation39], 1
    %2528 = vsyncpa [#allocation42], 1
    %2529 = vsyncpa [#allocation45], 1
    %2530 = vsyncpa [#allocation48], 1
    %2531 = vsyncpa [#allocation4], 1

</llo_original>
